<compile_context>
chip_gen: v7x
topology: tpu7x:2x2x1
jax: 0.10.0
libtpu: 0.0.40
codegen_flags: <defaults>
</compile_context>

<pallas_src>
import math
import numpy as np

import jax
import jax.numpy as jnp
from jax.experimental import pallas as pl
from jax.experimental.pallas import tpu as pltpu

# ---- static problem sizes (stand-ins for batch_tree's vf_shape entries) ----
B    = 2               # batch
C0   = 16              # output_dim  (channels of x_hat)
CH1  = 64              # deconv0 output channels
CH2  = 32              # deconv1 output channels
W2   = 8               # vf_shape 2 -> (1, 8)   unpool width for i == 0
WD0  = W2 - 1          # width after deconv0 = 7
W1   = 14              # vf_shape 1 -> (1, 14)  unpool width for i == 1
WD1  = W1 - 1          # width after deconv1 = 13
W0   = 26              # vf_shape 0 -> (1, 26)  unpool width for i == 2
WD2  = W0 - 2          # rows after deconv2 = 24 (each row carries 7 taps)
KW2  = 7               # deconv2 kernel width / taps per row
WOUT = WD2 * KW2       # 168 = flattened output width per sample
EPS  = 1e-12

# ---- packed-weight buffer layout: one (W_ROWS, 128) f32 buffer built ONCE ----
ROW_W0A = 0            # (16, :64)  deconv0 tap A  (-> up[1:])
ROW_W0B = 16           # (16, :64)  deconv0 tap B  (-> up[:-1])
ROW_W1A = 32           # (64, :32)  deconv1 tap A
ROW_W1B = 96           # (64, :32)  deconv1 tap B
ROW_W2  = 160          # (32, :128) deconv2 weight, lanes 0:7 real, rest 0
ROW_B0  = 192          # (1, :64)
ROW_B1  = 200          # (1, :32)
ROW_B2  = 208          # (1, :128) scalar bias replicated across lanes
ROW_R0  = 216          # (14, :2)   level-0 sample-replication matrix
ROW_JL  = 232          # (14, :1)   level-0 local row index j (as f32)
ROW_P1  = 248          # (26, :14)  level-1 even-slot scatter (rows 2m <- m)
ROW_Q1  = 280          # (26, :14)  level-1 odd-slot scatter  (rows 2m+1 <- m)
ROW_S1  = 312          # (26, :14)  level-1 odd-slot shifted  (rows 2m+1 <- m+1)
ROW_P2  = 344          # (48, :26)  level-2 scatter for h_even (odd rows)
ROW_Q2  = 392          # (48, :26)  level-2 scatter for h_odd  (even rows)
W_ROWS  = 440          # 440 * 128 * 4 B = 220 KiB resident once in VMEM


# ------------------------------ Pallas kernel --------------------------------
def _kernel(x0_ref, idx2_ref, idx1_ref, idx0_ref, w_ref, out_ref):
    f32 = jnp.float32
    HI  = jax.lax.Precision.HIGHEST

    def dot(a, b):
        # MXU is hugely under-utilized here, so full-f32 passes are free and buy
        # PyTorch-f32 parity (and exactness of the 0/1 scatter matmuls).
        return jnp.dot(a, b, precision=HI, preferred_element_type=f32)

    # -- packed weights / scatter matrices (sliced once, reused) ---------------
    w0a = w_ref[ROW_W0A:ROW_W0A + C0, 0:CH1]            # (16, 64)
    w0b = w_ref[ROW_W0B:ROW_W0B + C0, 0:CH1]            # (16, 64)
    w1a = w_ref[ROW_W1A:ROW_W1A + CH1, 0:CH2]           # (64, 32)
    w1b = w_ref[ROW_W1B:ROW_W1B + CH1, 0:CH2]           # (64, 32)
    w2p = w_ref[ROW_W2:ROW_W2 + CH2, :]                 # (32, 128) lanes 0:7 real
    b0  = w_ref[ROW_B0:ROW_B0 + 1, 0:CH1]               # (1, 64)
    b1  = w_ref[ROW_B1:ROW_B1 + 1, 0:CH2]               # (1, 32)
    b2  = w_ref[ROW_B2:ROW_B2 + 1, :]                   # (1, 128)
    R0  = w_ref[ROW_R0:ROW_R0 + B * WD0, 0:B]           # (14, 2)  row b*7+j -> sample b
    jl0 = w_ref[ROW_JL:ROW_JL + B * WD0, 0:1]           # (14, 1)  local row j as f32
    P1  = w_ref[ROW_P1:ROW_P1 + B * WD1, 0:B * WD0]     # (26, 14)
    Q1  = w_ref[ROW_Q1:ROW_Q1 + B * WD1, 0:B * WD0]     # (26, 14)
    S1  = w_ref[ROW_S1:ROW_S1 + B * WD1, 0:B * WD0]     # (26, 14)
    P2  = w_ref[ROW_P2:ROW_P2 + B * WD2, 0:B * WD1]     # (48, 26)
    Q2  = w_ref[ROW_Q2:ROW_Q2 + B * WD2, 0:B * WD1]     # (48, 26)

    def l2norm_relu(h):
        # F.normalize over channels (lane axis), then relu; rsqrt -> EUP slot.
        ss  = jnp.sum(h * h, axis=-1, keepdims=True)
        inv = jax.lax.rsqrt(jnp.maximum(ss, EPS * EPS))
        return jnp.maximum(h * inv, 0.0)

    # ---- i == 0: max_unpool (window 8) fused with deconv0's input shift ------
    # Replicate x0 / idx2 to the (B*7, C0) deconv-input rows with a 0/1 matrix
    # on the MXU.  The index replication is EXACT (one nonzero per output row,
    # integer values < 8, HIGHEST precision), so the float equality is safe.
    x0  = x0_ref[...]                                    # (2, 16)
    i2f = idx2_ref[...].astype(f32)                      # (2, 16)
    xr  = dot(R0, x0)                                    # (14, 16)
    ir  = dot(R0, i2f)                                   # (14, 16)
    A0  = jnp.where(ir == jl0 + 1.0, xr, 0.0)            # up0[j + 1]
    B0  = jnp.where(ir == jl0, xr, 0.0)                  # up0[j]
    h   = dot(A0, w0a) + dot(B0, w0b) + b0               # (14, 64)
    h   = l2norm_relu(h)

    # ---- i == 1: max_unpool (window 2) fused with deconv1's input shift ------
    # Assumes genuine (1,2)-pool argmax indices: idx[b*7+w] in {2w, 2w+1}.  The
    # parity mask is computed on integers BEFORE any matmul; the block-diagonal
    # P1/Q1/S1 matrices then scatter straight into A1 = up1[1:], B1 = up1[:-1].
    even = jnp.bitwise_and(idx1_ref[...], 1) == 0        # (14, 64)
    h_e  = jnp.where(even, h, 0.0)
    h_o  = jnp.where(even, 0.0, h)
    B1   = dot(P1, h_e) + dot(Q1, h_o)                   # (26, 64)
    A1   = dot(P1, h_o) + dot(S1, h_e)                   # (26, 64)
    h    = dot(A1, w1a) + dot(B1, w1b) + b1              # (26, 32)
    h    = l2norm_relu(h)

    # ---- i == 2: max_unpool (window 2) fused with deconv2 --------------------
    # stride 7 / pad 7 means only rows up2[1:-1] contribute, one kernel tap per
    # lane, so the whole deconv is a single (48,32)@(32,128) matmul.
    even = jnp.bitwise_and(idx0_ref[...], 1) == 0        # (26, 32)
    h_e  = jnp.where(even, h, 0.0)
    h_o  = jnp.where(even, 0.0, h)
    C2   = dot(P2, h_e) + dot(Q2, h_o)                   # (48, 32)
    # Lane-dense, unmasked store: lanes 7:128 of w2p are zero so they hold only
    # the bias; they are sliced away outside the kernel.
    out_ref[...] = dot(C2, w2p) + b2                     # (48, 128)


# ------------------- host-side (init-time) weight packing --------------------
def pack_weights(params):
    """Pack all weights, biases and the block-diagonal unpool/shift scatter
    matrices into ONE (W_ROWS, 128) f32 buffer.  Runs ONCE at parameter-init
    time on the host (numpy); the jitted forward only consumes the result."""
    w0 = np.asarray(params['w0'], np.float32)            # (C0, 64, 1, 2)
    w1 = np.asarray(params['w1'], np.float32)            # (64, 32, 1, 2)
    w2 = np.asarray(params['w2'], np.float32)            # (32, 1, 1, 7)
    b0 = np.asarray(params['b0'], np.float32)
    b1 = np.asarray(params['b1'], np.float32)
    b2 = np.asarray(params['b2'], np.float32)

    buf = np.zeros((W_ROWS, 128), np.float32)
    buf[ROW_W0A:ROW_W0A + C0, 0:CH1] = w0[:, :, 0, 0]
    buf[ROW_W0B:ROW_W0B + C0, 0:CH1] = w0[:, :, 0, 1]
    buf[ROW_W1A:ROW_W1A + CH1, 0:CH2] = w1[:, :, 0, 0]
    buf[ROW_W1B:ROW_W1B + CH1, 0:CH2] = w1[:, :, 0, 1]
    buf[ROW_W2:ROW_W2 + CH2, 0:KW2] = w2[:, 0, 0, :]     # lanes 7:128 stay zero
    buf[ROW_B0, 0:CH1] = b0
    buf[ROW_B1, 0:CH2] = b1
    buf[ROW_B2, :] = b2[0]
    # Level-0: replicate sample rows onto the (B*WD0) deconv-input rows and
    # record the local row index j for the unpool-position compare.
    for b in range(B):
        for j in range(WD0):
            buf[ROW_R0 + b * WD0 + j, b] = 1.0
            buf[ROW_JL + b * WD0 + j, 0] = float(j)
    # Level-1: block-diag scatter of even/odd-masked rows into up1[:-1]/up1[1:].
    for b in range(B):
        for m in range(WD0):                                         # even rows 2m   <- col m
            buf[ROW_P1 + b * WD1 + 2 * m, b * WD0 + m] = 1.0
        for m in range(WD0 - 1):                                     # odd rows 2m+1
            buf[ROW_Q1 + b * WD1 + 2 * m + 1, b * WD0 + m] = 1.0     #   <- col m    (up1[:-1])
            buf[ROW_S1 + b * WD1 + 2 * m + 1, b * WD0 + m + 1] = 1.0 #   <- col m+1  (up1[1:])
    # Level-2: scatter straight into up2[1:-1] (output row m <- up2[m+1]).
    for b in range(B):
        for w in range(1, WD1):                                      # odd rows 2w-1 <- h_e[w]
            buf[ROW_P2 + b * WD2 + 2 * w - 1, b * WD1 + w] = 1.0
        for w in range(WD1 - 1):                                     # even rows 2w  <- h_o[w]
            buf[ROW_Q2 + b * WD2 + 2 * w, b * WD1 + w] = 1.0
    return buf


# --------------------------------- wrapper ------------------------------------
@jax.jit
def dec_list_flow_cnn(x_hat, idx2, idx1, idx0, wpack):
    """x_hat: (B, C0)  (x_hat.view(B, -1, 1, 1) with unit dims dropped);
    idx*: per-level max_unpool indices, channels-last (B, W_in, C);
    wpack: pre-packed (W_ROWS, 128) buffer built once by pack_weights()."""
    x0 = x_hat.reshape(B, C0).astype(jnp.float32)
    i2 = idx2.reshape(B, C0).astype(jnp.int32)            # level-0 window is the whole (1,8) map
    i1 = idx1.reshape(B * WD0, CH1).astype(jnp.int32)     # (14, 64), rows b*7 + w
    i0 = idx0.reshape(B * WD1, CH2).astype(jnp.int32)     # (26, 32), rows b*13 + w

    vmem = pl.BlockSpec(memory_space=pltpu.MemorySpace.VMEM)
    out = pl.pallas_call(
        _kernel,
        out_shape=jax.ShapeDtypeStruct((B * WD2, 128), jnp.float32),
        in_specs=[vmem, vmem, vmem, vmem, vmem],
        out_specs=vmem,
    )(x0, i2, i1, i0, wpack)
    # lanes 0:7 hold the 7 deconv2 taps of each output row; rows are b*24 + m.
    return out[:, :KW2].reshape(B, WOUT)                  # x.view(B, -1)


# --------------------------- deterministic params -----------------------------
def _xavier_uniform(key, shape, gain=1.414):
    # torch convention for dim>2 tensors: fan_in = size(1)*rf, fan_out = size(0)*rf
    rf = shape[2] * shape[3]
    fan_in, fan_out = shape[1] * rf, shape[0] * rf
    bound = gain * math.sqrt(6.0 / (fan_in + fan_out))
    return jax.random.uniform(key, shape, jnp.float32, -bound, bound)


def init_params(key):
    ks = jax.random.split(key, 6)
    # ConvTranspose2d weight layout: (Cin, Cout, kH, kW)
    w0 = _xavier_uniform(ks[0], (C0, CH1, 1, 2))
    w1 = _xavier_uniform(ks[1], (CH1, CH2, 1, 2))
    w2 = _xavier_uniform(ks[2], (CH2, 1, 1, KW2))

    def bias(k, fan_in, n):
        bnd = 1.0 / math.sqrt(fan_in)
        return jax.random.uniform(k, (n,), jnp.float32, -bnd, bnd)

    b0 = bias(ks[3], CH1 * 2, CH1)
    b1 = bias(ks[4], CH2 * 2, CH2)
    b2 = bias(ks[5], 1 * KW2, 1)
    return {'w0': w0, 'w1': w1, 'w2': w2, 'b0': b0, 'b1': b1, 'b2': b2}


# ---------------------------- pure-JAX reference ------------------------------
def _reference_forward(x_hat, idx2, idx1, idx0, params):
    """Faithful per-sample re-implementation of the torch forward (general
    scatter unpool, separate deconv taps, sqrt-based F.normalize)."""
    HI = jax.lax.Precision.HIGHEST
    dot = lambda a, b: jnp.dot(a, b, precision=HI)
    w0a, w0b = params['w0'][:, :, 0, 0], params['w0'][:, :, 0, 1]
    w1a, w1b = params['w1'][:, :, 0, 0], params['w1'][:, :, 0, 1]
    w2m = params['w2'][:, 0, 0, :]
    b0, b1, b2 = params['b0'], params['b1'], params['b2']

    def unpool(x, idx, w_out):              # F.max_unpool2d with H == 1
        w_in, c = x.shape
        rows = jnp.arange(w_out)[:, None]
        out = jnp.zeros((w_out, c), jnp.float32)
        for wi in range(w_in):
            out = out + jnp.where(rows == idx[wi][None, :], x[wi][None, :], 0.0)
        return out

    def norm_relu(h):
        n = jnp.sqrt(jnp.sum(h * h, axis=-1, keepdims=True))
        return jnp.maximum(h / jnp.maximum(n, EPS), 0.0)

    def one_sample(x, i2, i1, i0):
        up = unpool(x.reshape(1, C0), i2, W2)
        h = dot(up[1:], w0a) + dot(up[:-1], w0b) + b0[None, :]
        h = norm_relu(h)
        up = unpool(h, i1, W1)
        h = dot(up[1:], w1a) + dot(up[:-1], w1b) + b1[None, :]
        h = norm_relu(h)
        up = unpool(h, i0, W0)
        out = dot(up[1:-1], w2m) + b2[None, :]
        return out.reshape(-1)

    return jnp.stack([one_sample(x_hat[b], idx2[b], idx1[b], idx0[b])
                      for b in range(B)])


# ----------------------------------- main --------------------------------------
if __name__ == "__main__":
    key = jax.random.PRNGKey(0)
    kx, ki2, ki1, ki0, kp = jax.random.split(key, 5)

    x_hat = jax.random.normal(kx, (B, C0), jnp.float32)
    # Per-level max_unpool indices, channels-last (B, W_in, C).  Level 0 pooled
    # over the whole (1, 8) window (any target in [0, 8)); levels 1/2 come from
    # a (1, 2) pool, so input column w targets 2*w or 2*w + 1 (never colliding
    # within a (batch, channel) slice) -- exactly what real argmax indices give.
    idx2 = jax.random.randint(ki2, (B, 1, C0), 0, W2, jnp.int32)
    idx1 = (2 * jax.lax.broadcasted_iota(jnp.int32, (B, WD0, CH1), 1)
            + jax.random.randint(ki1, (B, WD0, CH1), 0, 2, jnp.int32))
    idx0 = (2 * jax.lax.broadcasted_iota(jnp.int32, (B, WD1, CH2), 1)
            + jax.random.randint(ki0, (B, WD1, CH2), 0, 2, jnp.int32))

    params = init_params(kp)
    wpack = jnp.asarray(pack_weights(params))   # packed ONCE, reused every call

    out = jax.block_until_ready(
        dec_list_flow_cnn(x_hat, idx2, idx1, idx0, wpack))
    ref = _reference_forward(x_hat, idx2, idx1, idx0, params)

    assert out.shape == (B, WOUT), out.shape
    # precision=HIGHEST on every dot -> f32-level agreement with the reference;
    # real layout / index / weight bugs show up as O(0.1 - 1) errors.
    assert jnp.allclose(out, ref, rtol=1e-4, atol=1e-4), \
        float(jnp.max(jnp.abs(out - ref)))
    print("KERNEL_OK")
</pallas_src>

<mosaic_0001>
module attributes {stable_mosaic.version = 11 : i64} {
  func.func @_kernel(%arg0: memref<2x16xf32, #tpu.memory_space<vmem>>, %arg1: memref<2x16xi32, #tpu.memory_space<vmem>>, %arg2: memref<14x64xi32, #tpu.memory_space<vmem>>, %arg3: memref<26x32xi32, #tpu.memory_space<vmem>>, %arg4: memref<440x128xf32, #tpu.memory_space<vmem>>, %arg5: memref<48x128xf32, #tpu.memory_space<vmem>>) attributes {dimension_semantics = [], scalar_prefetch = 0 : i64, scratch_operands = 0 : i64, tpu.core_type = #tpu.core_type<tc>} {
    %c0 = arith.constant 0 : index
    %c0_0 = arith.constant 0 : index
    %0 = vector.load %arg4[%c0, %c0_0] : memref<440x128xf32, #tpu.memory_space<vmem>>, vector<16x64xf32>
    %c16 = arith.constant 16 : index
    %c0_1 = arith.constant 0 : index
    %1 = vector.load %arg4[%c16, %c0_1] : memref<440x128xf32, #tpu.memory_space<vmem>>, vector<16x64xf32>
    %c32 = arith.constant 32 : index
    %c0_2 = arith.constant 0 : index
    %2 = vector.load %arg4[%c32, %c0_2] : memref<440x128xf32, #tpu.memory_space<vmem>>, vector<64x32xf32>
    %c96 = arith.constant 96 : index
    %c0_3 = arith.constant 0 : index
    %3 = vector.load %arg4[%c96, %c0_3] : memref<440x128xf32, #tpu.memory_space<vmem>>, vector<64x32xf32>
    %c160 = arith.constant 160 : index
    %c0_4 = arith.constant 0 : index
    %4 = vector.load %arg4[%c160, %c0_4] : memref<440x128xf32, #tpu.memory_space<vmem>>, vector<32x128xf32>
    %c192 = arith.constant 192 : index
    %c0_5 = arith.constant 0 : index
    %5 = vector.load %arg4[%c192, %c0_5] : memref<440x128xf32, #tpu.memory_space<vmem>>, vector<1x64xf32>
    %c200 = arith.constant 200 : index
    %c0_6 = arith.constant 0 : index
    %6 = vector.load %arg4[%c200, %c0_6] : memref<440x128xf32, #tpu.memory_space<vmem>>, vector<1x32xf32>
    %c208 = arith.constant 208 : index
    %c0_7 = arith.constant 0 : index
    %7 = vector.load %arg4[%c208, %c0_7] : memref<440x128xf32, #tpu.memory_space<vmem>>, vector<1x128xf32>
    %c216 = arith.constant 216 : index
    %c0_8 = arith.constant 0 : index
    %8 = vector.load %arg4[%c216, %c0_8] : memref<440x128xf32, #tpu.memory_space<vmem>>, vector<14x2xf32>
    %c232 = arith.constant 232 : index
    %c0_9 = arith.constant 0 : index
    %9 = vector.load %arg4[%c232, %c0_9] : memref<440x128xf32, #tpu.memory_space<vmem>>, vector<14x1xf32>
    %c248 = arith.constant 248 : index
    %c0_10 = arith.constant 0 : index
    %10 = vector.load %arg4[%c248, %c0_10] : memref<440x128xf32, #tpu.memory_space<vmem>>, vector<26x14xf32>
    %c280 = arith.constant 280 : index
    %c0_11 = arith.constant 0 : index
    %11 = vector.load %arg4[%c280, %c0_11] : memref<440x128xf32, #tpu.memory_space<vmem>>, vector<26x14xf32>
    %c312 = arith.constant 312 : index
    %c0_12 = arith.constant 0 : index
    %12 = vector.load %arg4[%c312, %c0_12] : memref<440x128xf32, #tpu.memory_space<vmem>>, vector<26x14xf32>
    %c344 = arith.constant 344 : index
    %c0_13 = arith.constant 0 : index
    %13 = vector.load %arg4[%c344, %c0_13] : memref<440x128xf32, #tpu.memory_space<vmem>>, vector<48x26xf32>
    %c392 = arith.constant 392 : index
    %c0_14 = arith.constant 0 : index
    %14 = vector.load %arg4[%c392, %c0_14] : memref<440x128xf32, #tpu.memory_space<vmem>>, vector<48x26xf32>
    %c0_15 = arith.constant 0 : index
    %c0_16 = arith.constant 0 : index
    %15 = vector.load %arg0[%c0_15, %c0_16] : memref<2x16xf32, #tpu.memory_space<vmem>>, vector<2x16xf32>
    %c0_17 = arith.constant 0 : index
    %c0_18 = arith.constant 0 : index
    %16 = vector.load %arg1[%c0_17, %c0_18] : memref<2x16xi32, #tpu.memory_space<vmem>>, vector<2x16xi32>
    %17 = arith.sitofp %16 : vector<2x16xi32> to vector<2x16xf32>
    %cst = arith.constant dense<0.000000e+00> : vector<14x16xf32>
    %18 = tpu.matmul %8, %15, %cst {dimension_numbers = #tpu.dot_dimension_numbers<[1], [0], [0], [1], [0, 0, 1, 1], [], []>, precision = #tpu.contract_precision<fp32>} : vector<14x2xf32>, vector<2x16xf32>, vector<14x16xf32> -> vector<14x16xf32>
    %cst_19 = arith.constant dense<0.000000e+00> : vector<14x16xf32>
    %19 = tpu.matmul %8, %17, %cst_19 {dimension_numbers = #tpu.dot_dimension_numbers<[1], [0], [0], [1], [0, 0, 1, 1], [], []>, precision = #tpu.contract_precision<fp32>} : vector<14x2xf32>, vector<2x16xf32>, vector<14x16xf32> -> vector<14x16xf32>
    %cst_20 = arith.constant 1.000000e+00 : f32
    %20 = vector.broadcast %cst_20 : f32 to vector<14x1xf32>
    %21 = arith.addf %9, %20 : vector<14x1xf32>
    %22 = vector.broadcast %21 : vector<14x1xf32> to vector<14x16xf32>
    %23 = arith.cmpf oeq, %19, %22 : vector<14x16xf32>
    %cst_21 = arith.constant 0.000000e+00 : f32
    %24 = vector.broadcast %cst_21 : f32 to vector<14x16xf32>
    %25 = arith.select %23, %18, %24 : vector<14x16xi1>, vector<14x16xf32>
    %26 = vector.broadcast %9 : vector<14x1xf32> to vector<14x16xf32>
    %27 = arith.cmpf oeq, %19, %26 : vector<14x16xf32>
    %cst_22 = arith.constant 0.000000e+00 : f32
    %28 = vector.broadcast %cst_22 : f32 to vector<14x16xf32>
    %29 = arith.select %27, %18, %28 : vector<14x16xi1>, vector<14x16xf32>
    %cst_23 = arith.constant dense<0.000000e+00> : vector<14x64xf32>
    %30 = tpu.matmul %25, %0, %cst_23 {dimension_numbers = #tpu.dot_dimension_numbers<[1], [0], [0], [1], [0, 0, 1, 1], [], []>, precision = #tpu.contract_precision<fp32>} : vector<14x16xf32>, vector<16x64xf32>, vector<14x64xf32> -> vector<14x64xf32>
    %cst_24 = arith.constant dense<0.000000e+00> : vector<14x64xf32>
    %31 = tpu.matmul %29, %1, %cst_24 {dimension_numbers = #tpu.dot_dimension_numbers<[1], [0], [0], [1], [0, 0, 1, 1], [], []>, precision = #tpu.contract_precision<fp32>} : vector<14x16xf32>, vector<16x64xf32>, vector<14x64xf32> -> vector<14x64xf32>
    %32 = arith.addf %30, %31 : vector<14x64xf32>
    %33 = vector.broadcast %5 : vector<1x64xf32> to vector<14x64xf32>
    %34 = arith.addf %32, %33 : vector<14x64xf32>
    %35 = arith.mulf %34, %34 : vector<14x64xf32>
    %cst_25 = arith.constant dense<0.000000e+00> : vector<14xf32>
    %36 = vector.multi_reduction <add>, %35, %cst_25 [1] : vector<14x64xf32> to vector<14xf32>
    %37 = vector.shape_cast %36 : vector<14xf32> to vector<14x1xf32>
    %cst_26 = arith.constant 1.000000e-24 : f32
    %38 = vector.broadcast %cst_26 : f32 to vector<14x1xf32>
    %39 = arith.maximumf %37, %38 : vector<14x1xf32>
    %40 = math.rsqrt %39 : vector<14x1xf32>
    %41 = vector.broadcast %40 : vector<14x1xf32> to vector<14x64xf32>
    %42 = arith.mulf %34, %41 : vector<14x64xf32>
    %cst_27 = arith.constant 0.000000e+00 : f32
    %43 = vector.broadcast %cst_27 : f32 to vector<14x64xf32>
    %44 = arith.maximumf %42, %43 : vector<14x64xf32>
    %c0_28 = arith.constant 0 : index
    %c0_29 = arith.constant 0 : index
    %45 = vector.load %arg2[%c0_28, %c0_29] : memref<14x64xi32, #tpu.memory_space<vmem>>, vector<14x64xi32>
    %c1_i32 = arith.constant 1 : i32
    %46 = vector.broadcast %c1_i32 : i32 to vector<14x64xi32>
    %47 = arith.andi %45, %46 : vector<14x64xi32>
    %c0_i32 = arith.constant 0 : i32
    %48 = vector.broadcast %c0_i32 : i32 to vector<14x64xi32>
    %49 = arith.cmpi eq, %47, %48 : vector<14x64xi32>
    %cst_30 = arith.constant 0.000000e+00 : f32
    %50 = vector.broadcast %cst_30 : f32 to vector<14x64xf32>
    %51 = arith.select %49, %44, %50 : vector<14x64xi1>, vector<14x64xf32>
    %cst_31 = arith.constant 0.000000e+00 : f32
    %52 = vector.broadcast %cst_31 : f32 to vector<14x64xf32>
    %53 = arith.select %49, %52, %44 : vector<14x64xi1>, vector<14x64xf32>
    %cst_32 = arith.constant dense<0.000000e+00> : vector<26x64xf32>
    %54 = tpu.matmul %10, %51, %cst_32 {dimension_numbers = #tpu.dot_dimension_numbers<[1], [0], [0], [1], [0, 0, 1, 1], [], []>, precision = #tpu.contract_precision<fp32>} : vector<26x14xf32>, vector<14x64xf32>, vector<26x64xf32> -> vector<26x64xf32>
    %cst_33 = arith.constant dense<0.000000e+00> : vector<26x64xf32>
    %55 = tpu.matmul %11, %53, %cst_33 {dimension_numbers = #tpu.dot_dimension_numbers<[1], [0], [0], [1], [0, 0, 1, 1], [], []>, precision = #tpu.contract_precision<fp32>} : vector<26x14xf32>, vector<14x64xf32>, vector<26x64xf32> -> vector<26x64xf32>
    %56 = arith.addf %54, %55 : vector<26x64xf32>
    %cst_34 = arith.constant dense<0.000000e+00> : vector<26x64xf32>
    %57 = tpu.matmul %10, %53, %cst_34 {dimension_numbers = #tpu.dot_dimension_numbers<[1], [0], [0], [1], [0, 0, 1, 1], [], []>, precision = #tpu.contract_precision<fp32>} : vector<26x14xf32>, vector<14x64xf32>, vector<26x64xf32> -> vector<26x64xf32>
    %cst_35 = arith.constant dense<0.000000e+00> : vector<26x64xf32>
    %58 = tpu.matmul %12, %51, %cst_35 {dimension_numbers = #tpu.dot_dimension_numbers<[1], [0], [0], [1], [0, 0, 1, 1], [], []>, precision = #tpu.contract_precision<fp32>} : vector<26x14xf32>, vector<14x64xf32>, vector<26x64xf32> -> vector<26x64xf32>
    %59 = arith.addf %57, %58 : vector<26x64xf32>
    %cst_36 = arith.constant dense<0.000000e+00> : vector<26x32xf32>
    %60 = tpu.matmul %59, %2, %cst_36 {dimension_numbers = #tpu.dot_dimension_numbers<[1], [0], [0], [1], [0, 0, 1, 1], [], []>, precision = #tpu.contract_precision<fp32>} : vector<26x64xf32>, vector<64x32xf32>, vector<26x32xf32> -> vector<26x32xf32>
    %cst_37 = arith.constant dense<0.000000e+00> : vector<26x32xf32>
    %61 = tpu.matmul %56, %3, %cst_37 {dimension_numbers = #tpu.dot_dimension_numbers<[1], [0], [0], [1], [0, 0, 1, 1], [], []>, precision = #tpu.contract_precision<fp32>} : vector<26x64xf32>, vector<64x32xf32>, vector<26x32xf32> -> vector<26x32xf32>
    %62 = arith.addf %60, %61 : vector<26x32xf32>
    %63 = vector.broadcast %6 : vector<1x32xf32> to vector<26x32xf32>
    %64 = arith.addf %62, %63 : vector<26x32xf32>
    %65 = arith.mulf %64, %64 : vector<26x32xf32>
    %cst_38 = arith.constant dense<0.000000e+00> : vector<26xf32>
    %66 = vector.multi_reduction <add>, %65, %cst_38 [1] : vector<26x32xf32> to vector<26xf32>
    %67 = vector.shape_cast %66 : vector<26xf32> to vector<26x1xf32>
    %cst_39 = arith.constant 1.000000e-24 : f32
    %68 = vector.broadcast %cst_39 : f32 to vector<26x1xf32>
    %69 = arith.maximumf %67, %68 : vector<26x1xf32>
    %70 = math.rsqrt %69 : vector<26x1xf32>
    %71 = vector.broadcast %70 : vector<26x1xf32> to vector<26x32xf32>
    %72 = arith.mulf %64, %71 : vector<26x32xf32>
    %cst_40 = arith.constant 0.000000e+00 : f32
    %73 = vector.broadcast %cst_40 : f32 to vector<26x32xf32>
    %74 = arith.maximumf %72, %73 : vector<26x32xf32>
    %c0_41 = arith.constant 0 : index
    %c0_42 = arith.constant 0 : index
    %75 = vector.load %arg3[%c0_41, %c0_42] : memref<26x32xi32, #tpu.memory_space<vmem>>, vector<26x32xi32>
    %c1_i32_43 = arith.constant 1 : i32
    %76 = vector.broadcast %c1_i32_43 : i32 to vector<26x32xi32>
    %77 = arith.andi %75, %76 : vector<26x32xi32>
    %c0_i32_44 = arith.constant 0 : i32
    %78 = vector.broadcast %c0_i32_44 : i32 to vector<26x32xi32>
    %79 = arith.cmpi eq, %77, %78 : vector<26x32xi32>
    %cst_45 = arith.constant 0.000000e+00 : f32
    %80 = vector.broadcast %cst_45 : f32 to vector<26x32xf32>
    %81 = arith.select %79, %74, %80 : vector<26x32xi1>, vector<26x32xf32>
    %cst_46 = arith.constant 0.000000e+00 : f32
    %82 = vector.broadcast %cst_46 : f32 to vector<26x32xf32>
    %83 = arith.select %79, %82, %74 : vector<26x32xi1>, vector<26x32xf32>
    %cst_47 = arith.constant dense<0.000000e+00> : vector<48x32xf32>
    %84 = tpu.matmul %13, %81, %cst_47 {dimension_numbers = #tpu.dot_dimension_numbers<[1], [0], [0], [1], [0, 0, 1, 1], [], []>, precision = #tpu.contract_precision<fp32>} : vector<48x26xf32>, vector<26x32xf32>, vector<48x32xf32> -> vector<48x32xf32>
    %cst_48 = arith.constant dense<0.000000e+00> : vector<48x32xf32>
    %85 = tpu.matmul %14, %83, %cst_48 {dimension_numbers = #tpu.dot_dimension_numbers<[1], [0], [0], [1], [0, 0, 1, 1], [], []>, precision = #tpu.contract_precision<fp32>} : vector<48x26xf32>, vector<26x32xf32>, vector<48x32xf32> -> vector<48x32xf32>
    %86 = arith.addf %84, %85 : vector<48x32xf32>
    %cst_49 = arith.constant dense<0.000000e+00> : vector<48x128xf32>
    %87 = tpu.matmul %86, %4, %cst_49 {dimension_numbers = #tpu.dot_dimension_numbers<[1], [0], [0], [1], [0, 0, 1, 1], [], []>, precision = #tpu.contract_precision<fp32>} : vector<48x32xf32>, vector<32x128xf32>, vector<48x128xf32> -> vector<48x128xf32>
    %88 = vector.broadcast %7 : vector<1x128xf32> to vector<48x128xf32>
    %89 = arith.addf %87, %88 : vector<48x128xf32>
    %c0_50 = arith.constant 0 : index
    %c0_51 = arith.constant 0 : index
    %90 = vector.load %arg5[%c0_50, %c0_51] : memref<48x128xf32, #tpu.memory_space<vmem>>, vector<48x128xf32>
    tpu.vector_store %arg5[%c0_50, %c0_51], %89 {strides = array<i32>} : memref<48x128xf32, #tpu.memory_space<vmem>>, vector<48x128xf32>,
    return
  }
}

</mosaic_0001>

<llo_original>
// kernel: dec_list_flow_cnn.1
$region0: #{dec_list_flow_cnn.1}
  #allocation0 [shape = 'u32[]', space=smem, size = 0x4, offset = 0x4, fixed_abs, tag = 'smem constant byte address 0x4 - core index']
  #allocation1 [shape = 'u32[144,128]{1,0:T(1,128)}', space=vmem, size = 0x12000, scoped, tag = 'internal scratch']
  %s0 = inlined_call_operand.vmem [shape: f32[2,16], index: 0, kind: input, shape index: {}]
  %s1 = inlined_call_operand.vmem [shape: s32[2,16], index: 1, kind: input, shape index: {}]
  %s2 = inlined_call_operand.vmem [shape: s32[14,64], index: 2, kind: input, shape index: {}]
  %s3 = inlined_call_operand.vmem [shape: s32[26,32], index: 3, kind: input, shape index: {}]
  %s4 = inlined_call_operand.hbm [shape: f32[440,128], index: 4, kind: input, shape index: {}]
  %s5 = inlined_call_operand.vmem [shape: f32[48,128], index: 5, kind: output, shape index: {}]
  %s6 = sld [smem:[#allocation0]]
  $region34: #{dec_list_flow_cnn.1} parent=0
    _
  %s8 = ssub.s32 1, %s6
  %s9 = scalar_select 0, %s8, %s6
  $region1: #{dec_list_flow_cnn.1} parent=0
    #allocation2 [shape = 'u8[225280]{0}', space=vmem, size = 0x37000, scoped, tag = 'input window, operand 4, single buffered']
    #allocation3 [shape = 's32[1]{0}', space=sflag, size = 0x4, scoped, tag = 'scoped memory for dec_list_flow_cnn.1']
    %10 = vsyncpa [#allocation3], 0
    // Predicated region
    $region2: #{dec_list_flow_cnn.1} parent=1 // pred_check
      _
    $region3: #{dec_list_flow_cnn.1} parent=1 // pred_check_branch
      %12 = sbr.rel (0) target = $region5
    $region4: #{dec_list_flow_cnn.1} parent=1 // pred_region
      _
    $region5: #{dec_list_flow_cnn.1} parent=1 // pred_fallthru
      _
    // Predicated region
    $region6: #{dec_list_flow_cnn.1} parent=1 // pred_check
      _
    $region7: #{dec_list_flow_cnn.1} parent=1 // pred_check_branch
      %14 = sbr.rel (0) target = $region9
    $region8: #{dec_list_flow_cnn.1} parent=1 // pred_region
      _
    $region9: #{dec_list_flow_cnn.1} parent=1 // pred_fallthru
      _
    // Predicated region
    $region10: #{dec_list_flow_cnn.1} parent=1 // pred_check
      _
    $region11: #{dec_list_flow_cnn.1} parent=1 // pred_check_branch
      %16 = sbr.rel (0) target = $region13
    $region12: #{dec_list_flow_cnn.1} parent=1 // pred_region
      _
    $region13: #{dec_list_flow_cnn.1} parent=1 // pred_fallthru
      _
    // Predicated region
    $region14: #{dec_list_flow_cnn.1} parent=1 // pred_check
      _
    $region15: #{dec_list_flow_cnn.1} parent=1 // pred_check_branch
      %18 = sbr.rel (0) target = $region17
    $region16: #{dec_list_flow_cnn.1} parent=1 // pred_region
      _
    $region17: #{dec_list_flow_cnn.1} parent=1 // pred_fallthru
      _
    // Predicated region
    $region18: #{dec_list_flow_cnn.1} parent=1 // pred_check
      _
    $region19: #{dec_list_flow_cnn.1} parent=1 // pred_check_branch
      %20 = sbr.rel (0) target = $region21
    $region20: #{dec_list_flow_cnn.1} parent=1 // pred_region
      %s22 = ssub.s32 7040, 7040
      %23 = vsyncadd [#allocation3], %s22
      %s24 = sshll.u32 [#allocation2], 4
      %s25 = int_to_ptr.vmem [resolvable:$true] %s24
      %30 = dma.hbm_to_vmem [thread:$0]  %s4, 7040, %s25, [#allocation3], 128, 128, 8
    $region21: #{dec_list_flow_cnn.1} parent=1 // pred_fallthru
      _
    // Predicated region
    $region22: #{dec_list_flow_cnn.1} parent=1 // pred_check
      _
    $region23: #{dec_list_flow_cnn.1} parent=1 // pred_check_branch
      %32 = sbr.rel (0) target = $region25
    $region24: #{dec_list_flow_cnn.1} parent=1 // pred_region
      %33 = dma.done [#allocation3], 7040
    $region25: #{dec_list_flow_cnn.1} parent=1 // pred_fallthru
      _
    %v34 = vld [vmem:[#allocation2] sm:$0xff]
    %v35 = vld [vmem:[#allocation2 + $0x8] sm:$0xff]
    %v36 = vld [vmem:[#allocation2 + $0x10] sm:$0xff]
    %v37 = vld [vmem:[#allocation2 + $0x18] sm:$0xff]
    %v38 = vld [vmem:[#allocation2 + $0x20] sm:$0xff]
    %v39 = vld [vmem:[#allocation2 + $0x28] sm:$0xff]
    %v40 = vld [vmem:[#allocation2 + $0x30] sm:$0xff]
    %v41 = vld [vmem:[#allocation2 + $0x38] sm:$0xff]
    %v42 = vld [vmem:[#allocation2 + $0x40] sm:$0xff]
    %v43 = vld [vmem:[#allocation2 + $0x48] sm:$0xff]
    %v44 = vld [vmem:[#allocation2 + $0x50] sm:$0xff]
    %v45 = vld [vmem:[#allocation2 + $0x58] sm:$0xff]
    %v46 = vld [vmem:[#allocation2 + $0x60] sm:$0xff]
    %v47 = vld [vmem:[#allocation2 + $0x68] sm:$0xff]
    %v48 = vld [vmem:[#allocation2 + $0x70] sm:$0xff]
    %v49 = vld [vmem:[#allocation2 + $0x78] sm:$0xff]
    %v50 = vld [vmem:[#allocation2 + $0x80] sm:$0xff]
    %v51 = vld [vmem:[#allocation2 + $0x88] sm:$0xff]
    %v52 = vld [vmem:[#allocation2 + $0x90] sm:$0xff]
    %v53 = vld [vmem:[#allocation2 + $0x98] sm:$0xff]
    %v54 = vld [vmem:[#allocation2 + $0xa0] sm:$0xff]
    %v55 = vld [vmem:[#allocation2 + $0xa8] sm:$0xff]
    %v56 = vld [vmem:[#allocation2 + $0xb0] sm:$0xff]
    %v57 = vld [vmem:[#allocation2 + $0xb8] sm:$0xff]
    %v58 = vld [vmem:[#allocation2 + $0xc0] sm:$0x1]
    %v59 = vld [vmem:[#allocation2 + $0xc8] sm:$0x1]
    %v60 = vld [vmem:[#allocation2 + $0xd0] sm:$0x1]
    %v61 = vld [vmem:[#allocation2 + $0xd8] sm:$0xff]
    %v62 = vld [vmem:[#allocation2 + $0xe0] sm:$0x3f]
    %v63 = vld [vmem:[#allocation2 + $0xe8] sm:$0xff]
    %v64 = vld [vmem:[#allocation2 + $0xf0] sm:$0x3f]
    %v65 = vld [vmem:[#allocation2 + $0xf8] sm:$0xff]
    %v66 = vld [vmem:[#allocation2 + $0x100] sm:$0xff]
    %v67 = vld [vmem:[#allocation2 + $0x108] sm:$0xff]
    %v68 = vld [vmem:[#allocation2 + $0x110] sm:$0x3]
    %v69 = vld [vmem:[#allocation2 + $0x118] sm:$0xff]
    %v70 = vld [vmem:[#allocation2 + $0x120] sm:$0xff]
    %v71 = vld [vmem:[#allocation2 + $0x128] sm:$0xff]
    %v72 = vld [vmem:[#allocation2 + $0x130] sm:$0x3]
    %v73 = vld [vmem:[#allocation2 + $0x138] sm:$0xff]
    %v74 = vld [vmem:[#allocation2 + $0x140] sm:$0xff]
    %v75 = vld [vmem:[#allocation2 + $0x148] sm:$0xff]
    %v76 = vld [vmem:[#allocation2 + $0x150] sm:$0x3]
    %v77 = vld [vmem:[#allocation2 + $0x158] sm:$0xff]
    %v78 = vld [vmem:[#allocation2 + $0x160] sm:$0xff]
    %v79 = vld [vmem:[#allocation2 + $0x168] sm:$0xff]
    %v80 = vld [vmem:[#allocation2 + $0x170] sm:$0xff]
    %v81 = vld [vmem:[#allocation2 + $0x178] sm:$0xff]
    %v82 = vld [vmem:[#allocation2 + $0x180] sm:$0xff]
    %v83 = vld [vmem:[#allocation2 + $0x188] sm:$0xff]
    %v84 = vld [vmem:[#allocation2 + $0x190] sm:$0xff]
    %v85 = vld [vmem:[#allocation2 + $0x198] sm:$0xff]
    %v86 = vld [vmem:[#allocation2 + $0x1a0] sm:$0xff]
    %v87 = vld [vmem:[#allocation2 + $0x1a8] sm:$0xff]
    %v88 = vld [vmem:[#allocation2 + $0x1b0] sm:$0xff]
    %v89 = vld [vmem:[%s0] sm:$0x3]
    %v90 = vld [vmem:[%s1] sm:$0x3]
    %v91 = vcvt.s32.f32 %v90
    %vm92 = vcmask 15360
    %v94 = vsel %vm92, %v61, 0
    %v97 = vsel %vm92, %v62, 0
    %vm99 = vcmask 1041408
    %v101 = vsel %vm99, %v89, 0
    %103 = vmatprep.subr.mxu0 0.0
    %v104 = vand.u32 %v101, 4294901760
    %105 = vmatpush1.msra.mxu0 %v104
    %106 = vmatprep.subr.mxu0 0.0
    %107 = vmatpush1.msra.mxu0 0.0
    %108 = vmatprep.subr.mxu0 0.0
    %109 = vmatpush1.msra.mxu0 0.0
    %110 = vmatprep.subr.mxu0 0.0
    %111 = vmatpush1.msra.mxu0 0.0
    %112 = vmatprep.subr.mxu0 0.0
    %113 = vmatpush1.msra.mxu0 0.0
    %114 = vmatprep.subr.mxu0 0.0
    %115 = vmatpush1.msra.mxu0 0.0
    %116 = vmatprep.subr.mxu0 0.0
    %117 = vmatpush1.msra.mxu0 0.0
    %118 = vmatprep.subr.mxu0 0.0
    %119 = vmatpush1.msra.mxu0 0.0
    %120 = vmatprep.subr.mxu0 0.0
    %121 = vmatpush1.msra.mxu0 0.0
    %122 = vmatprep.subr.mxu0 0.0
    %123 = vmatpush1.msra.mxu0 0.0
    %124 = vmatprep.subr.mxu0 0.0
    %125 = vmatpush1.msra.mxu0 0.0
    %126 = vmatprep.subr.mxu0 0.0
    %127 = vmatpush1.msra.mxu0 0.0
    %128 = vmatprep.subr.mxu0 0.0
    %129 = vmatpush1.msra.mxu0 0.0
    %130 = vmatprep.subr.mxu0 0.0
    %131 = vmatpush1.msra.mxu0 0.0
    %132 = vmatprep.subr.mxu0 0.0
    %133 = vmatpush1.msra.mxu0 0.0
    %134 = vmatprep.subr.mxu0 0.0
    %135 = vmatpush1.msra.mxu0 0.0
    %136 = vmatprep.subr.mxu0 0.0
    %137 = vmatpush1.msra.mxu0 0.0
    %138 = vmatprep.subr.mxu0 0.0
    %139 = vmatpush1.msra.mxu0 0.0
    %140 = vmatprep.subr.mxu0 0.0
    %141 = vmatpush1.msra.mxu0 0.0
    %142 = vmatprep.subr.mxu0 0.0
    %143 = vmatpush1.msra.mxu0 0.0
    %144 = vmatprep.subr.mxu0 0.0
    %145 = vmatpush1.msra.mxu0 0.0
    %146 = vmatprep.subr.mxu0 0.0
    %147 = vmatpush1.msra.mxu0 0.0
    %148 = vmatprep.subr.mxu0 0.0
    %149 = vmatpush1.msra.mxu0 0.0
    %150 = vmatprep.subr.mxu0 0.0
    %151 = vmatpush1.msra.mxu0 0.0
    %152 = vmatprep.subr.mxu0 0.0
    %153 = vmatpush1.msra.mxu0 0.0
    %154 = vmatprep.subr.mxu0 0.0
    %155 = vmatpush1.msra.mxu0 0.0
    %156 = vmatprep.subr.mxu0 0.0
    %157 = vmatpush1.msra.mxu0 0.0
    %158 = vmatprep.subr.mxu0 0.0
    %159 = vmatpush1.msra.mxu0 0.0
    %160 = vmatprep.subr.mxu0 0.0
    %161 = vmatpush1.msra.mxu0 0.0
    %162 = vmatprep.subr.mxu0 0.0
    %163 = vmatpush1.msra.mxu0 0.0
    %164 = vmatprep.subr.mxu0 0.0
    %165 = vmatpush1.msra.mxu0 0.0
    %166 = vmatprep.subr.mxu0 0.0
    %167 = vmatpush1.msra.mxu0 0.0
    %168 = vmatprep.mubr.f32.mxu0 0.0
    %v169 = vand.u32 %v94, 4294901760
    %v170 = vsub.f32 %v94, %v169
    %v171 = vand.u32 %v170, 4294901760
    %v172 = vsub.f32 %v170, %v171
    %v173 = vand.u32 %v172, 4294901760
    %174 = vmatmul.mubr.f32.gmra.mrb[0].mxu0 %v173
    %v175 = vpop.f32.mrb[0].mxu0
    %v176 = vadd.f32 0.0, %v175
    %v177 = vpop.f32.mrb[0].mxu0
    %178 = vmatprep.mubr.f32.mxu0 0.0
    %v179 = vand.u32 %v97, 4294901760
    %v180 = vsub.f32 %v97, %v179
    %v181 = vand.u32 %v180, 4294901760
    %v182 = vsub.f32 %v180, %v181
    %v183 = vand.u32 %v182, 4294901760
    %184 = vmatmul.mubr.f32.gmra.mrb[0].mxu0 %v183
    %v185 = vpop.f32.mrb[0].mxu0
    %v186 = vadd.f32 0.0, %v185
    %v187 = vpop.f32.mrb[0].mxu0
    %188 = vdwg.mxu0
    %189 = vmatprep.subr.mxu0 0.0
    %v190 = vand.u32 %v101, 4294901760
    %v191 = vsub.f32 %v101, %v190
    %v192 = vand.u32 %v191, 4294901760
    %v193 = vsub.f32 %v191, %v192
    %v194 = vand.u32 %v193, 4294901760
    %195 = vmatpush1.msra.mxu0 %v194
    %196 = vmatprep.subr.mxu0 0.0
    %197 = vmatpush1.msra.mxu0 0.0
    %198 = vmatprep.subr.mxu0 0.0
    %199 = vmatpush1.msra.mxu0 0.0
    %200 = vmatprep.subr.mxu0 0.0
    %201 = vmatpush1.msra.mxu0 0.0
    %202 = vmatprep.subr.mxu0 0.0
    %203 = vmatpush1.msra.mxu0 0.0
    %204 = vmatprep.subr.mxu0 0.0
    %205 = vmatpush1.msra.mxu0 0.0
    %206 = vmatprep.subr.mxu0 0.0
    %207 = vmatpush1.msra.mxu0 0.0
    %208 = vmatprep.subr.mxu0 0.0
    %209 = vmatpush1.msra.mxu0 0.0
    %210 = vmatprep.subr.mxu0 0.0
    %211 = vmatpush1.msra.mxu0 0.0
    %212 = vmatprep.subr.mxu0 0.0
    %213 = vmatpush1.msra.mxu0 0.0
    %214 = vmatprep.subr.mxu0 0.0
    %215 = vmatpush1.msra.mxu0 0.0
    %216 = vmatprep.subr.mxu0 0.0
    %217 = vmatpush1.msra.mxu0 0.0
    %218 = vmatprep.subr.mxu0 0.0
    %219 = vmatpush1.msra.mxu0 0.0
    %220 = vmatprep.subr.mxu0 0.0
    %221 = vmatpush1.msra.mxu0 0.0
    %222 = vmatprep.subr.mxu0 0.0
    %223 = vmatpush1.msra.mxu0 0.0
    %224 = vmatprep.subr.mxu0 0.0
    %225 = vmatpush1.msra.mxu0 0.0
    %226 = vmatprep.subr.mxu0 0.0
    %227 = vmatpush1.msra.mxu0 0.0
    %228 = vmatprep.subr.mxu0 0.0
    %229 = vmatpush1.msra.mxu0 0.0
    %230 = vmatprep.subr.mxu0 0.0
    %231 = vmatpush1.msra.mxu0 0.0
    %232 = vmatprep.subr.mxu0 0.0
    %233 = vmatpush1.msra.mxu0 0.0
    %234 = vmatprep.subr.mxu0 0.0
    %235 = vmatpush1.msra.mxu0 0.0
    %236 = vmatprep.subr.mxu0 0.0
    %237 = vmatpush1.msra.mxu0 0.0
    %238 = vmatprep.subr.mxu0 0.0
    %239 = vmatpush1.msra.mxu0 0.0
    %240 = vmatprep.subr.mxu0 0.0
    %241 = vmatpush1.msra.mxu0 0.0
    %242 = vmatprep.subr.mxu0 0.0
    %243 = vmatpush1.msra.mxu0 0.0
    %244 = vmatprep.subr.mxu0 0.0
    %245 = vmatpush1.msra.mxu0 0.0
    %246 = vmatprep.subr.mxu0 0.0
    %247 = vmatpush1.msra.mxu0 0.0
    %248 = vmatprep.subr.mxu0 0.0
    %249 = vmatpush1.msra.mxu0 0.0
    %250 = vmatprep.subr.mxu0 0.0
    %251 = vmatpush1.msra.mxu0 0.0
    %252 = vmatprep.subr.mxu0 0.0
    %253 = vmatpush1.msra.mxu0 0.0
    %254 = vmatprep.subr.mxu0 0.0
    %255 = vmatpush1.msra.mxu0 0.0
    %256 = vmatprep.subr.mxu0 0.0
    %257 = vmatpush1.msra.mxu0 0.0
    %258 = vmatprep.mubr.f32.mxu0 0.0
    %v259 = vand.u32 %v94, 4294901760
    %260 = vmatmul.mubr.f32.gmra.mrb[0].mxu0 %v259
    %v261 = vpop.f32.mrb[0].mxu0
    %v262 = vadd.f32 %v176, %v261
    %v263 = vpop.f32.mrb[0].mxu0
    %264 = vmatprep.mubr.f32.mxu0 0.0
    %v265 = vand.u32 %v97, 4294901760
    %266 = vmatmul.mubr.f32.gmra.mrb[0].mxu0 %v265
    %v267 = vpop.f32.mrb[0].mxu0
    %v268 = vadd.f32 %v186, %v267
    %v269 = vpop.f32.mrb[0].mxu0
    %270 = vdwg.mxu0
    %271 = vmatprep.subr.mxu0 0.0
    %v272 = vand.u32 %v101, 4294901760
    %v273 = vsub.f32 %v101, %v272
    %274 = vmatpush1.msra.mxu0 %v273
    %275 = vmatprep.subr.mxu0 0.0
    %276 = vmatpush1.msra.mxu0 0.0
    %277 = vmatprep.subr.mxu0 0.0
    %278 = vmatpush1.msra.mxu0 0.0
    %279 = vmatprep.subr.mxu0 0.0
    %280 = vmatpush1.msra.mxu0 0.0
    %281 = vmatprep.subr.mxu0 0.0
    %282 = vmatpush1.msra.mxu0 0.0
    %283 = vmatprep.subr.mxu0 0.0
    %284 = vmatpush1.msra.mxu0 0.0
    %285 = vmatprep.subr.mxu0 0.0
    %286 = vmatpush1.msra.mxu0 0.0
    %287 = vmatprep.subr.mxu0 0.0
    %288 = vmatpush1.msra.mxu0 0.0
    %289 = vmatprep.subr.mxu0 0.0
    %290 = vmatpush1.msra.mxu0 0.0
    %291 = vmatprep.subr.mxu0 0.0
    %292 = vmatpush1.msra.mxu0 0.0
    %293 = vmatprep.subr.mxu0 0.0
    %294 = vmatpush1.msra.mxu0 0.0
    %295 = vmatprep.subr.mxu0 0.0
    %296 = vmatpush1.msra.mxu0 0.0
    %297 = vmatprep.subr.mxu0 0.0
    %298 = vmatpush1.msra.mxu0 0.0
    %299 = vmatprep.subr.mxu0 0.0
    %300 = vmatpush1.msra.mxu0 0.0
    %301 = vmatprep.subr.mxu0 0.0
    %302 = vmatpush1.msra.mxu0 0.0
    %303 = vmatprep.subr.mxu0 0.0
    %304 = vmatpush1.msra.mxu0 0.0
    %305 = vmatprep.subr.mxu0 0.0
    %306 = vmatpush1.msra.mxu0 0.0
    %307 = vmatprep.subr.mxu0 0.0
    %308 = vmatpush1.msra.mxu0 0.0
    %309 = vmatprep.subr.mxu0 0.0
    %310 = vmatpush1.msra.mxu0 0.0
    %311 = vmatprep.subr.mxu0 0.0
    %312 = vmatpush1.msra.mxu0 0.0
    %313 = vmatprep.subr.mxu0 0.0
    %314 = vmatpush1.msra.mxu0 0.0
    %315 = vmatprep.subr.mxu0 0.0
    %316 = vmatpush1.msra.mxu0 0.0
    %317 = vmatprep.subr.mxu0 0.0
    %318 = vmatpush1.msra.mxu0 0.0
    %319 = vmatprep.subr.mxu0 0.0
    %320 = vmatpush1.msra.mxu0 0.0
    %321 = vmatprep.subr.mxu0 0.0
    %322 = vmatpush1.msra.mxu0 0.0
    %323 = vmatprep.subr.mxu0 0.0
    %324 = vmatpush1.msra.mxu0 0.0
    %325 = vmatprep.subr.mxu0 0.0
    %326 = vmatpush1.msra.mxu0 0.0
    %327 = vmatprep.subr.mxu0 0.0
    %328 = vmatpush1.msra.mxu0 0.0
    %329 = vmatprep.subr.mxu0 0.0
    %330 = vmatpush1.msra.mxu0 0.0
    %331 = vmatprep.subr.mxu0 0.0
    %332 = vmatpush1.msra.mxu0 0.0
    %333 = vmatprep.subr.mxu0 0.0
    %334 = vmatpush1.msra.mxu0 0.0
    %335 = vmatprep.subr.mxu0 0.0
    %336 = vmatpush1.msra.mxu0 0.0
    %337 = vmatprep.mubr.f32.mxu0 0.0
    %v338 = vand.u32 %v94, 4294901760
    %v339 = vsub.f32 %v94, %v338
    %340 = vmatmul.mubr.f32.gmra.mrb[0].mxu0 %v339
    %v341 = vpop.f32.mrb[0].mxu0
    %v342 = vadd.f32 %v262, %v341
    %v343 = vpop.f32.mrb[0].mxu0
    %344 = vmatprep.mubr.f32.mxu0 0.0
    %v345 = vand.u32 %v97, 4294901760
    %v346 = vsub.f32 %v97, %v345
    %347 = vmatmul.mubr.f32.gmra.mrb[0].mxu0 %v346
    %v348 = vpop.f32.mrb[0].mxu0
    %v349 = vadd.f32 %v268, %v348
    %v350 = vpop.f32.mrb[0].mxu0
    %351 = vdwg.mxu0
    %352 = vmatprep.subr.mxu0 0.0
    %v353 = vand.u32 %v101, 4294901760
    %354 = vmatpush1.msra.mxu0 %v353
    %355 = vmatprep.subr.mxu0 0.0
    %356 = vmatpush1.msra.mxu0 0.0
    %357 = vmatprep.subr.mxu0 0.0
    %358 = vmatpush1.msra.mxu0 0.0
    %359 = vmatprep.subr.mxu0 0.0
    %360 = vmatpush1.msra.mxu0 0.0
    %361 = vmatprep.subr.mxu0 0.0
    %362 = vmatpush1.msra.mxu0 0.0
    %363 = vmatprep.subr.mxu0 0.0
    %364 = vmatpush1.msra.mxu0 0.0
    %365 = vmatprep.subr.mxu0 0.0
    %366 = vmatpush1.msra.mxu0 0.0
    %367 = vmatprep.subr.mxu0 0.0
    %368 = vmatpush1.msra.mxu0 0.0
    %369 = vmatprep.subr.mxu0 0.0
    %370 = vmatpush1.msra.mxu0 0.0
    %371 = vmatprep.subr.mxu0 0.0
    %372 = vmatpush1.msra.mxu0 0.0
    %373 = vmatprep.subr.mxu0 0.0
    %374 = vmatpush1.msra.mxu0 0.0
    %375 = vmatprep.subr.mxu0 0.0
    %376 = vmatpush1.msra.mxu0 0.0
    %377 = vmatprep.subr.mxu0 0.0
    %378 = vmatpush1.msra.mxu0 0.0
    %379 = vmatprep.subr.mxu0 0.0
    %380 = vmatpush1.msra.mxu0 0.0
    %381 = vmatprep.subr.mxu0 0.0
    %382 = vmatpush1.msra.mxu0 0.0
    %383 = vmatprep.subr.mxu0 0.0
    %384 = vmatpush1.msra.mxu0 0.0
    %385 = vmatprep.subr.mxu0 0.0
    %386 = vmatpush1.msra.mxu0 0.0
    %387 = vmatprep.subr.mxu0 0.0
    %388 = vmatpush1.msra.mxu0 0.0
    %389 = vmatprep.subr.mxu0 0.0
    %390 = vmatpush1.msra.mxu0 0.0
    %391 = vmatprep.subr.mxu0 0.0
    %392 = vmatpush1.msra.mxu0 0.0
    %393 = vmatprep.subr.mxu0 0.0
    %394 = vmatpush1.msra.mxu0 0.0
    %395 = vmatprep.subr.mxu0 0.0
    %396 = vmatpush1.msra.mxu0 0.0
    %397 = vmatprep.subr.mxu0 0.0
    %398 = vmatpush1.msra.mxu0 0.0
    %399 = vmatprep.subr.mxu0 0.0
    %400 = vmatpush1.msra.mxu0 0.0
    %401 = vmatprep.subr.mxu0 0.0
    %402 = vmatpush1.msra.mxu0 0.0
    %403 = vmatprep.subr.mxu0 0.0
    %404 = vmatpush1.msra.mxu0 0.0
    %405 = vmatprep.subr.mxu0 0.0
    %406 = vmatpush1.msra.mxu0 0.0
    %407 = vmatprep.subr.mxu0 0.0
    %408 = vmatpush1.msra.mxu0 0.0
    %409 = vmatprep.subr.mxu0 0.0
    %410 = vmatpush1.msra.mxu0 0.0
    %411 = vmatprep.subr.mxu0 0.0
    %412 = vmatpush1.msra.mxu0 0.0
    %413 = vmatprep.subr.mxu0 0.0
    %414 = vmatpush1.msra.mxu0 0.0
    %415 = vmatprep.subr.mxu0 0.0
    %416 = vmatpush1.msra.mxu0 0.0
    %417 = vmatprep.mubr.f32.mxu0 0.0
    %v418 = vand.u32 %v94, 4294901760
    %v419 = vsub.f32 %v94, %v418
    %v420 = vand.u32 %v419, 4294901760
    %421 = vmatmul.mubr.f32.gmra.mrb[0].mxu0 %v420
    %v422 = vpop.f32.mrb[0].mxu0
    %v423 = vadd.f32 %v342, %v422
    %v424 = vpop.f32.mrb[0].mxu0
    %425 = vmatprep.mubr.f32.mxu0 0.0
    %v426 = vand.u32 %v97, 4294901760
    %v427 = vsub.f32 %v97, %v426
    %v428 = vand.u32 %v427, 4294901760
    %429 = vmatmul.mubr.f32.gmra.mrb[0].mxu0 %v428
    %v430 = vpop.f32.mrb[0].mxu0
    %v431 = vadd.f32 %v349, %v430
    %v432 = vpop.f32.mrb[0].mxu0
    %433 = vdwg.mxu0
    %434 = vmatprep.subr.mxu0 0.0
    %v435 = vand.u32 %v101, 4294901760
    %v436 = vsub.f32 %v101, %v435
    %v437 = vand.u32 %v436, 4294901760
    %438 = vmatpush1.msra.mxu0 %v437
    %439 = vmatprep.subr.mxu0 0.0
    %440 = vmatpush1.msra.mxu0 0.0
    %441 = vmatprep.subr.mxu0 0.0
    %442 = vmatpush1.msra.mxu0 0.0
    %443 = vmatprep.subr.mxu0 0.0
    %444 = vmatpush1.msra.mxu0 0.0
    %445 = vmatprep.subr.mxu0 0.0
    %446 = vmatpush1.msra.mxu0 0.0
    %447 = vmatprep.subr.mxu0 0.0
    %448 = vmatpush1.msra.mxu0 0.0
    %449 = vmatprep.subr.mxu0 0.0
    %450 = vmatpush1.msra.mxu0 0.0
    %451 = vmatprep.subr.mxu0 0.0
    %452 = vmatpush1.msra.mxu0 0.0
    %453 = vmatprep.subr.mxu0 0.0
    %454 = vmatpush1.msra.mxu0 0.0
    %455 = vmatprep.subr.mxu0 0.0
    %456 = vmatpush1.msra.mxu0 0.0
    %457 = vmatprep.subr.mxu0 0.0
    %458 = vmatpush1.msra.mxu0 0.0
    %459 = vmatprep.subr.mxu0 0.0
    %460 = vmatpush1.msra.mxu0 0.0
    %461 = vmatprep.subr.mxu0 0.0
    %462 = vmatpush1.msra.mxu0 0.0
    %463 = vmatprep.subr.mxu0 0.0
    %464 = vmatpush1.msra.mxu0 0.0
    %465 = vmatprep.subr.mxu0 0.0
    %466 = vmatpush1.msra.mxu0 0.0
    %467 = vmatprep.subr.mxu0 0.0
    %468 = vmatpush1.msra.mxu0 0.0
    %469 = vmatprep.subr.mxu0 0.0
    %470 = vmatpush1.msra.mxu0 0.0
    %471 = vmatprep.subr.mxu0 0.0
    %472 = vmatpush1.msra.mxu0 0.0
    %473 = vmatprep.subr.mxu0 0.0
    %474 = vmatpush1.msra.mxu0 0.0
    %475 = vmatprep.subr.mxu0 0.0
    %476 = vmatpush1.msra.mxu0 0.0
    %477 = vmatprep.subr.mxu0 0.0
    %478 = vmatpush1.msra.mxu0 0.0
    %479 = vmatprep.subr.mxu0 0.0
    %480 = vmatpush1.msra.mxu0 0.0
    %481 = vmatprep.subr.mxu0 0.0
    %482 = vmatpush1.msra.mxu0 0.0
    %483 = vmatprep.subr.mxu0 0.0
    %484 = vmatpush1.msra.mxu0 0.0
    %485 = vmatprep.subr.mxu0 0.0
    %486 = vmatpush1.msra.mxu0 0.0
    %487 = vmatprep.subr.mxu0 0.0
    %488 = vmatpush1.msra.mxu0 0.0
    %489 = vmatprep.subr.mxu0 0.0
    %490 = vmatpush1.msra.mxu0 0.0
    %491 = vmatprep.subr.mxu0 0.0
    %492 = vmatpush1.msra.mxu0 0.0
    %493 = vmatprep.subr.mxu0 0.0
    %494 = vmatpush1.msra.mxu0 0.0
    %495 = vmatprep.subr.mxu0 0.0
    %496 = vmatpush1.msra.mxu0 0.0
    %497 = vmatprep.subr.mxu0 0.0
    %498 = vmatpush1.msra.mxu0 0.0
    %499 = vmatprep.subr.mxu0 0.0
    %500 = vmatpush1.msra.mxu0 0.0
    %501 = vmatprep.mubr.f32.mxu0 0.0
    %v502 = vand.u32 %v94, 4294901760
    %503 = vmatmul.mubr.f32.gmra.mrb[0].mxu0 %v502
    %v504 = vpop.f32.mrb[0].mxu0
    %v505 = vadd.f32 %v423, %v504
    %v506 = vpop.f32.mrb[0].mxu0
    %507 = vmatprep.mubr.f32.mxu0 0.0
    %v508 = vand.u32 %v97, 4294901760
    %509 = vmatmul.mubr.f32.gmra.mrb[0].mxu0 %v508
    %v510 = vpop.f32.mrb[0].mxu0
    %v511 = vadd.f32 %v431, %v510
    %v512 = vpop.f32.mrb[0].mxu0
    %513 = vdwg.mxu0
    %514 = vmatprep.subr.mxu0 0.0
    %v515 = vand.u32 %v101, 4294901760
    %516 = vmatpush1.msra.mxu0 %v515
    %517 = vmatprep.subr.mxu0 0.0
    %518 = vmatpush1.msra.mxu0 0.0
    %519 = vmatprep.subr.mxu0 0.0
    %520 = vmatpush1.msra.mxu0 0.0
    %521 = vmatprep.subr.mxu0 0.0
    %522 = vmatpush1.msra.mxu0 0.0
    %523 = vmatprep.subr.mxu0 0.0
    %524 = vmatpush1.msra.mxu0 0.0
    %525 = vmatprep.subr.mxu0 0.0
    %526 = vmatpush1.msra.mxu0 0.0
    %527 = vmatprep.subr.mxu0 0.0
    %528 = vmatpush1.msra.mxu0 0.0
    %529 = vmatprep.subr.mxu0 0.0
    %530 = vmatpush1.msra.mxu0 0.0
    %531 = vmatprep.subr.mxu0 0.0
    %532 = vmatpush1.msra.mxu0 0.0
    %533 = vmatprep.subr.mxu0 0.0
    %534 = vmatpush1.msra.mxu0 0.0
    %535 = vmatprep.subr.mxu0 0.0
    %536 = vmatpush1.msra.mxu0 0.0
    %537 = vmatprep.subr.mxu0 0.0
    %538 = vmatpush1.msra.mxu0 0.0
    %539 = vmatprep.subr.mxu0 0.0
    %540 = vmatpush1.msra.mxu0 0.0
    %541 = vmatprep.subr.mxu0 0.0
    %542 = vmatpush1.msra.mxu0 0.0
    %543 = vmatprep.subr.mxu0 0.0
    %544 = vmatpush1.msra.mxu0 0.0
    %545 = vmatprep.subr.mxu0 0.0
    %546 = vmatpush1.msra.mxu0 0.0
    %547 = vmatprep.subr.mxu0 0.0
    %548 = vmatpush1.msra.mxu0 0.0
    %549 = vmatprep.subr.mxu0 0.0
    %550 = vmatpush1.msra.mxu0 0.0
    %551 = vmatprep.subr.mxu0 0.0
    %552 = vmatpush1.msra.mxu0 0.0
    %553 = vmatprep.subr.mxu0 0.0
    %554 = vmatpush1.msra.mxu0 0.0
    %555 = vmatprep.subr.mxu0 0.0
    %556 = vmatpush1.msra.mxu0 0.0
    %557 = vmatprep.subr.mxu0 0.0
    %558 = vmatpush1.msra.mxu0 0.0
    %559 = vmatprep.subr.mxu0 0.0
    %560 = vmatpush1.msra.mxu0 0.0
    %561 = vmatprep.subr.mxu0 0.0
    %562 = vmatpush1.msra.mxu0 0.0
    %563 = vmatprep.subr.mxu0 0.0
    %564 = vmatpush1.msra.mxu0 0.0
    %565 = vmatprep.subr.mxu0 0.0
    %566 = vmatpush1.msra.mxu0 0.0
    %567 = vmatprep.subr.mxu0 0.0
    %568 = vmatpush1.msra.mxu0 0.0
    %569 = vmatprep.subr.mxu0 0.0
    %570 = vmatpush1.msra.mxu0 0.0
    %571 = vmatprep.subr.mxu0 0.0
    %572 = vmatpush1.msra.mxu0 0.0
    %573 = vmatprep.subr.mxu0 0.0
    %574 = vmatpush1.msra.mxu0 0.0
    %575 = vmatprep.subr.mxu0 0.0
    %576 = vmatpush1.msra.mxu0 0.0
    %577 = vmatprep.subr.mxu0 0.0
    %578 = vmatpush1.msra.mxu0 0.0
    %579 = vmatprep.mubr.f32.mxu0 0.0
    %v580 = vand.u32 %v94, 4294901760
    %581 = vmatmul.mubr.f32.gmra.mrb[0].mxu0 %v580
    %v582 = vpop.f32.mrb[0].mxu0
    %v583 = vadd.f32 %v505, %v582
    %v584 = vpop.f32.mrb[0].mxu0
    %585 = vmatprep.mubr.f32.mxu0 0.0
    %v586 = vand.u32 %v97, 4294901760
    %587 = vmatmul.mubr.f32.gmra.mrb[0].mxu0 %v586
    %v588 = vpop.f32.mrb[0].mxu0
    %v589 = vadd.f32 %v511, %v588
    %v590 = vpop.f32.mrb[0].mxu0
    %591 = vdwg.mxu0
    %v593 = vsel %vm99, %v91, 0
    %595 = vmatprep.subr.mxu0 0.0
    %v596 = vand.u32 %v593, 4294901760
    %597 = vmatpush1.msra.mxu0 %v596
    %598 = vmatprep.subr.mxu0 0.0
    %599 = vmatpush1.msra.mxu0 0.0
    %600 = vmatprep.subr.mxu0 0.0
    %601 = vmatpush1.msra.mxu0 0.0
    %602 = vmatprep.subr.mxu0 0.0
    %603 = vmatpush1.msra.mxu0 0.0
    %604 = vmatprep.subr.mxu0 0.0
    %605 = vmatpush1.msra.mxu0 0.0
    %606 = vmatprep.subr.mxu0 0.0
    %607 = vmatpush1.msra.mxu0 0.0
    %608 = vmatprep.subr.mxu0 0.0
    %609 = vmatpush1.msra.mxu0 0.0
    %610 = vmatprep.subr.mxu0 0.0
    %611 = vmatpush1.msra.mxu0 0.0
    %612 = vmatprep.subr.mxu0 0.0
    %613 = vmatpush1.msra.mxu0 0.0
    %614 = vmatprep.subr.mxu0 0.0
    %615 = vmatpush1.msra.mxu0 0.0
    %616 = vmatprep.subr.mxu0 0.0
    %617 = vmatpush1.msra.mxu0 0.0
    %618 = vmatprep.subr.mxu0 0.0
    %619 = vmatpush1.msra.mxu0 0.0
    %620 = vmatprep.subr.mxu0 0.0
    %621 = vmatpush1.msra.mxu0 0.0
    %622 = vmatprep.subr.mxu0 0.0
    %623 = vmatpush1.msra.mxu0 0.0
    %624 = vmatprep.subr.mxu0 0.0
    %625 = vmatpush1.msra.mxu0 0.0
    %626 = vmatprep.subr.mxu0 0.0
    %627 = vmatpush1.msra.mxu0 0.0
    %628 = vmatprep.subr.mxu0 0.0
    %629 = vmatpush1.msra.mxu0 0.0
    %630 = vmatprep.subr.mxu0 0.0
    %631 = vmatpush1.msra.mxu0 0.0
    %632 = vmatprep.subr.mxu0 0.0
    %633 = vmatpush1.msra.mxu0 0.0
    %634 = vmatprep.subr.mxu0 0.0
    %635 = vmatpush1.msra.mxu0 0.0
    %636 = vmatprep.subr.mxu0 0.0
    %637 = vmatpush1.msra.mxu0 0.0
    %638 = vmatprep.subr.mxu0 0.0
    %639 = vmatpush1.msra.mxu0 0.0
    %640 = vmatprep.subr.mxu0 0.0
    %641 = vmatpush1.msra.mxu0 0.0
    %642 = vmatprep.subr.mxu0 0.0
    %643 = vmatpush1.msra.mxu0 0.0
    %644 = vmatprep.subr.mxu0 0.0
    %645 = vmatpush1.msra.mxu0 0.0
    %646 = vmatprep.subr.mxu0 0.0
    %647 = vmatpush1.msra.mxu0 0.0
    %648 = vmatprep.subr.mxu0 0.0
    %649 = vmatpush1.msra.mxu0 0.0
    %650 = vmatprep.subr.mxu0 0.0
    %651 = vmatpush1.msra.mxu0 0.0
    %652 = vmatprep.subr.mxu0 0.0
    %653 = vmatpush1.msra.mxu0 0.0
    %654 = vmatprep.subr.mxu0 0.0
    %655 = vmatpush1.msra.mxu0 0.0
    %656 = vmatprep.subr.mxu0 0.0
    %657 = vmatpush1.msra.mxu0 0.0
    %658 = vmatprep.subr.mxu0 0.0
    %659 = vmatpush1.msra.mxu0 0.0
    %660 = vmatprep.mubr.f32.mxu0 0.0
    %v661 = vand.u32 %v94, 4294901760
    %v662 = vsub.f32 %v94, %v661
    %v663 = vand.u32 %v662, 4294901760
    %v664 = vsub.f32 %v662, %v663
    %v665 = vand.u32 %v664, 4294901760
    %666 = vmatmul.mubr.f32.gmra.mrb[0].mxu0 %v665
    %v667 = vpop.f32.mrb[0].mxu0
    %v668 = vadd.f32 0.0, %v667
    %v669 = vpop.f32.mrb[0].mxu0
    %670 = vmatprep.mubr.f32.mxu0 0.0
    %v671 = vand.u32 %v97, 4294901760
    %v672 = vsub.f32 %v97, %v671
    %v673 = vand.u32 %v672, 4294901760
    %v674 = vsub.f32 %v672, %v673
    %v675 = vand.u32 %v674, 4294901760
    %676 = vmatmul.mubr.f32.gmra.mrb[0].mxu0 %v675
    %v677 = vpop.f32.mrb[0].mxu0
    %v678 = vadd.f32 0.0, %v677
    %v679 = vpop.f32.mrb[0].mxu0
    %680 = vdwg.mxu0
    %681 = vmatprep.subr.mxu0 0.0
    %v682 = vand.u32 %v593, 4294901760
    %v683 = vsub.f32 %v593, %v682
    %v684 = vand.u32 %v683, 4294901760
    %v685 = vsub.f32 %v683, %v684
    %v686 = vand.u32 %v685, 4294901760
    %687 = vmatpush1.msra.mxu0 %v686
    %688 = vmatprep.subr.mxu0 0.0
    %689 = vmatpush1.msra.mxu0 0.0
    %690 = vmatprep.subr.mxu0 0.0
    %691 = vmatpush1.msra.mxu0 0.0
    %692 = vmatprep.subr.mxu0 0.0
    %693 = vmatpush1.msra.mxu0 0.0
    %694 = vmatprep.subr.mxu0 0.0
    %695 = vmatpush1.msra.mxu0 0.0
    %696 = vmatprep.subr.mxu0 0.0
    %697 = vmatpush1.msra.mxu0 0.0
    %698 = vmatprep.subr.mxu0 0.0
    %699 = vmatpush1.msra.mxu0 0.0
    %700 = vmatprep.subr.mxu0 0.0
    %701 = vmatpush1.msra.mxu0 0.0
    %702 = vmatprep.subr.mxu0 0.0
    %703 = vmatpush1.msra.mxu0 0.0
    %704 = vmatprep.subr.mxu0 0.0
    %705 = vmatpush1.msra.mxu0 0.0
    %706 = vmatprep.subr.mxu0 0.0
    %707 = vmatpush1.msra.mxu0 0.0
    %708 = vmatprep.subr.mxu0 0.0
    %709 = vmatpush1.msra.mxu0 0.0
    %710 = vmatprep.subr.mxu0 0.0
    %711 = vmatpush1.msra.mxu0 0.0
    %712 = vmatprep.subr.mxu0 0.0
    %713 = vmatpush1.msra.mxu0 0.0
    %714 = vmatprep.subr.mxu0 0.0
    %715 = vmatpush1.msra.mxu0 0.0
    %716 = vmatprep.subr.mxu0 0.0
    %717 = vmatpush1.msra.mxu0 0.0
    %718 = vmatprep.subr.mxu0 0.0
    %719 = vmatpush1.msra.mxu0 0.0
    %720 = vmatprep.subr.mxu0 0.0
    %721 = vmatpush1.msra.mxu0 0.0
    %722 = vmatprep.subr.mxu0 0.0
    %723 = vmatpush1.msra.mxu0 0.0
    %724 = vmatprep.subr.mxu0 0.0
    %725 = vmatpush1.msra.mxu0 0.0
    %726 = vmatprep.subr.mxu0 0.0
    %727 = vmatpush1.msra.mxu0 0.0
    %728 = vmatprep.subr.mxu0 0.0
    %729 = vmatpush1.msra.mxu0 0.0
    %730 = vmatprep.subr.mxu0 0.0
    %731 = vmatpush1.msra.mxu0 0.0
    %732 = vmatprep.subr.mxu0 0.0
    %733 = vmatpush1.msra.mxu0 0.0
    %734 = vmatprep.subr.mxu0 0.0
    %735 = vmatpush1.msra.mxu0 0.0
    %736 = vmatprep.subr.mxu0 0.0
    %737 = vmatpush1.msra.mxu0 0.0
    %738 = vmatprep.subr.mxu0 0.0
    %739 = vmatpush1.msra.mxu0 0.0
    %740 = vmatprep.subr.mxu0 0.0
    %741 = vmatpush1.msra.mxu0 0.0
    %742 = vmatprep.subr.mxu0 0.0
    %743 = vmatpush1.msra.mxu0 0.0
    %744 = vmatprep.subr.mxu0 0.0
    %745 = vmatpush1.msra.mxu0 0.0
    %746 = vmatprep.subr.mxu0 0.0
    %747 = vmatpush1.msra.mxu0 0.0
    %748 = vmatprep.subr.mxu0 0.0
    %749 = vmatpush1.msra.mxu0 0.0
    %750 = vmatprep.mubr.f32.mxu0 0.0
    %v751 = vand.u32 %v94, 4294901760
    %752 = vmatmul.mubr.f32.gmra.mrb[0].mxu0 %v751
    %v753 = vpop.f32.mrb[0].mxu0
    %v754 = vadd.f32 %v668, %v753
    %v755 = vpop.f32.mrb[0].mxu0
    %756 = vmatprep.mubr.f32.mxu0 0.0
    %v757 = vand.u32 %v97, 4294901760
    %758 = vmatmul.mubr.f32.gmra.mrb[0].mxu0 %v757
    %v759 = vpop.f32.mrb[0].mxu0
    %v760 = vadd.f32 %v678, %v759
    %v761 = vpop.f32.mrb[0].mxu0
    %762 = vdwg.mxu0
    %763 = vmatprep.subr.mxu0 0.0
    %v764 = vand.u32 %v593, 4294901760
    %v765 = vsub.f32 %v593, %v764
    %766 = vmatpush1.msra.mxu0 %v765
    %767 = vmatprep.subr.mxu0 0.0
    %768 = vmatpush1.msra.mxu0 0.0
    %769 = vmatprep.subr.mxu0 0.0
    %770 = vmatpush1.msra.mxu0 0.0
    %771 = vmatprep.subr.mxu0 0.0
    %772 = vmatpush1.msra.mxu0 0.0
    %773 = vmatprep.subr.mxu0 0.0
    %774 = vmatpush1.msra.mxu0 0.0
    %775 = vmatprep.subr.mxu0 0.0
    %776 = vmatpush1.msra.mxu0 0.0
    %777 = vmatprep.subr.mxu0 0.0
    %778 = vmatpush1.msra.mxu0 0.0
    %779 = vmatprep.subr.mxu0 0.0
    %780 = vmatpush1.msra.mxu0 0.0
    %781 = vmatprep.subr.mxu0 0.0
    %782 = vmatpush1.msra.mxu0 0.0
    %783 = vmatprep.subr.mxu0 0.0
    %784 = vmatpush1.msra.mxu0 0.0
    %785 = vmatprep.subr.mxu0 0.0
    %786 = vmatpush1.msra.mxu0 0.0
    %787 = vmatprep.subr.mxu0 0.0
    %788 = vmatpush1.msra.mxu0 0.0
    %789 = vmatprep.subr.mxu0 0.0
    %790 = vmatpush1.msra.mxu0 0.0
    %791 = vmatprep.subr.mxu0 0.0
    %792 = vmatpush1.msra.mxu0 0.0
    %793 = vmatprep.subr.mxu0 0.0
    %794 = vmatpush1.msra.mxu0 0.0
    %795 = vmatprep.subr.mxu0 0.0
    %796 = vmatpush1.msra.mxu0 0.0
    %797 = vmatprep.subr.mxu0 0.0
    %798 = vmatpush1.msra.mxu0 0.0
    %799 = vmatprep.subr.mxu0 0.0
    %800 = vmatpush1.msra.mxu0 0.0
    %801 = vmatprep.subr.mxu0 0.0
    %802 = vmatpush1.msra.mxu0 0.0
    %803 = vmatprep.subr.mxu0 0.0
    %804 = vmatpush1.msra.mxu0 0.0
    %805 = vmatprep.subr.mxu0 0.0
    %806 = vmatpush1.msra.mxu0 0.0
    %807 = vmatprep.subr.mxu0 0.0
    %808 = vmatpush1.msra.mxu0 0.0
    %809 = vmatprep.subr.mxu0 0.0
    %810 = vmatpush1.msra.mxu0 0.0
    %811 = vmatprep.subr.mxu0 0.0
    %812 = vmatpush1.msra.mxu0 0.0
    %813 = vmatprep.subr.mxu0 0.0
    %814 = vmatpush1.msra.mxu0 0.0
    %815 = vmatprep.subr.mxu0 0.0
    %816 = vmatpush1.msra.mxu0 0.0
    %817 = vmatprep.subr.mxu0 0.0
    %818 = vmatpush1.msra.mxu0 0.0
    %819 = vmatprep.subr.mxu0 0.0
    %820 = vmatpush1.msra.mxu0 0.0
    %821 = vmatprep.subr.mxu0 0.0
    %822 = vmatpush1.msra.mxu0 0.0
    %823 = vmatprep.subr.mxu0 0.0
    %824 = vmatpush1.msra.mxu0 0.0
    %825 = vmatprep.subr.mxu0 0.0
    %826 = vmatpush1.msra.mxu0 0.0
    %827 = vmatprep.subr.mxu0 0.0
    %828 = vmatpush1.msra.mxu0 0.0
    %829 = vmatprep.mubr.f32.mxu0 0.0
    %v830 = vand.u32 %v94, 4294901760
    %v831 = vsub.f32 %v94, %v830
    %832 = vmatmul.mubr.f32.gmra.mrb[0].mxu0 %v831
    %v833 = vpop.f32.mrb[0].mxu0
    %v834 = vadd.f32 %v754, %v833
    %v835 = vpop.f32.mrb[0].mxu0
    %836 = vmatprep.mubr.f32.mxu0 0.0
    %v837 = vand.u32 %v97, 4294901760
    %v838 = vsub.f32 %v97, %v837
    %839 = vmatmul.mubr.f32.gmra.mrb[0].mxu0 %v838
    %v840 = vpop.f32.mrb[0].mxu0
    %v841 = vadd.f32 %v760, %v840
    %v842 = vpop.f32.mrb[0].mxu0
    %843 = vdwg.mxu0
    %844 = vmatprep.subr.mxu0 0.0
    %v845 = vand.u32 %v593, 4294901760
    %846 = vmatpush1.msra.mxu0 %v845
    %847 = vmatprep.subr.mxu0 0.0
    %848 = vmatpush1.msra.mxu0 0.0
    %849 = vmatprep.subr.mxu0 0.0
    %850 = vmatpush1.msra.mxu0 0.0
    %851 = vmatprep.subr.mxu0 0.0
    %852 = vmatpush1.msra.mxu0 0.0
    %853 = vmatprep.subr.mxu0 0.0
    %854 = vmatpush1.msra.mxu0 0.0
    %855 = vmatprep.subr.mxu0 0.0
    %856 = vmatpush1.msra.mxu0 0.0
    %857 = vmatprep.subr.mxu0 0.0
    %858 = vmatpush1.msra.mxu0 0.0
    %859 = vmatprep.subr.mxu0 0.0
    %860 = vmatpush1.msra.mxu0 0.0
    %861 = vmatprep.subr.mxu0 0.0
    %862 = vmatpush1.msra.mxu0 0.0
    %863 = vmatprep.subr.mxu0 0.0
    %864 = vmatpush1.msra.mxu0 0.0
    %865 = vmatprep.subr.mxu0 0.0
    %866 = vmatpush1.msra.mxu0 0.0
    %867 = vmatprep.subr.mxu0 0.0
    %868 = vmatpush1.msra.mxu0 0.0
    %869 = vmatprep.subr.mxu0 0.0
    %870 = vmatpush1.msra.mxu0 0.0
    %871 = vmatprep.subr.mxu0 0.0
    %872 = vmatpush1.msra.mxu0 0.0
    %873 = vmatprep.subr.mxu0 0.0
    %874 = vmatpush1.msra.mxu0 0.0
    %875 = vmatprep.subr.mxu0 0.0
    %876 = vmatpush1.msra.mxu0 0.0
    %877 = vmatprep.subr.mxu0 0.0
    %878 = vmatpush1.msra.mxu0 0.0
    %879 = vmatprep.subr.mxu0 0.0
    %880 = vmatpush1.msra.mxu0 0.0
    %881 = vmatprep.subr.mxu0 0.0
    %882 = vmatpush1.msra.mxu0 0.0
    %883 = vmatprep.subr.mxu0 0.0
    %884 = vmatpush1.msra.mxu0 0.0
    %885 = vmatprep.subr.mxu0 0.0
    %886 = vmatpush1.msra.mxu0 0.0
    %887 = vmatprep.subr.mxu0 0.0
    %888 = vmatpush1.msra.mxu0 0.0
    %889 = vmatprep.subr.mxu0 0.0
    %890 = vmatpush1.msra.mxu0 0.0
    %891 = vmatprep.subr.mxu0 0.0
    %892 = vmatpush1.msra.mxu0 0.0
    %893 = vmatprep.subr.mxu0 0.0
    %894 = vmatpush1.msra.mxu0 0.0
    %895 = vmatprep.subr.mxu0 0.0
    %896 = vmatpush1.msra.mxu0 0.0
    %897 = vmatprep.subr.mxu0 0.0
    %898 = vmatpush1.msra.mxu0 0.0
    %899 = vmatprep.subr.mxu0 0.0
    %900 = vmatpush1.msra.mxu0 0.0
    %901 = vmatprep.subr.mxu0 0.0
    %902 = vmatpush1.msra.mxu0 0.0
    %903 = vmatprep.subr.mxu0 0.0
    %904 = vmatpush1.msra.mxu0 0.0
    %905 = vmatprep.subr.mxu0 0.0
    %906 = vmatpush1.msra.mxu0 0.0
    %907 = vmatprep.subr.mxu0 0.0
    %908 = vmatpush1.msra.mxu0 0.0
    %909 = vmatprep.mubr.f32.mxu0 0.0
    %v910 = vand.u32 %v94, 4294901760
    %v911 = vsub.f32 %v94, %v910
    %v912 = vand.u32 %v911, 4294901760
    %913 = vmatmul.mubr.f32.gmra.mrb[0].mxu0 %v912
    %v914 = vpop.f32.mrb[0].mxu0
    %v915 = vadd.f32 %v834, %v914
    %v916 = vpop.f32.mrb[0].mxu0
    %917 = vmatprep.mubr.f32.mxu0 0.0
    %v918 = vand.u32 %v97, 4294901760
    %v919 = vsub.f32 %v97, %v918
    %v920 = vand.u32 %v919, 4294901760
    %921 = vmatmul.mubr.f32.gmra.mrb[0].mxu0 %v920
    %v922 = vpop.f32.mrb[0].mxu0
    %v923 = vadd.f32 %v841, %v922
    %v924 = vpop.f32.mrb[0].mxu0
    %925 = vdwg.mxu0
    %926 = vmatprep.subr.mxu0 0.0
    %v927 = vand.u32 %v593, 4294901760
    %v928 = vsub.f32 %v593, %v927
    %v929 = vand.u32 %v928, 4294901760
    %930 = vmatpush1.msra.mxu0 %v929
    %931 = vmatprep.subr.mxu0 0.0
    %932 = vmatpush1.msra.mxu0 0.0
    %933 = vmatprep.subr.mxu0 0.0
    %934 = vmatpush1.msra.mxu0 0.0
    %935 = vmatprep.subr.mxu0 0.0
    %936 = vmatpush1.msra.mxu0 0.0
    %937 = vmatprep.subr.mxu0 0.0
    %938 = vmatpush1.msra.mxu0 0.0
    %939 = vmatprep.subr.mxu0 0.0
    %940 = vmatpush1.msra.mxu0 0.0
    %941 = vmatprep.subr.mxu0 0.0
    %942 = vmatpush1.msra.mxu0 0.0
    %943 = vmatprep.subr.mxu0 0.0
    %944 = vmatpush1.msra.mxu0 0.0
    %945 = vmatprep.subr.mxu0 0.0
    %946 = vmatpush1.msra.mxu0 0.0
    %947 = vmatprep.subr.mxu0 0.0
    %948 = vmatpush1.msra.mxu0 0.0
    %949 = vmatprep.subr.mxu0 0.0
    %950 = vmatpush1.msra.mxu0 0.0
    %951 = vmatprep.subr.mxu0 0.0
    %952 = vmatpush1.msra.mxu0 0.0
    %953 = vmatprep.subr.mxu0 0.0
    %954 = vmatpush1.msra.mxu0 0.0
    %955 = vmatprep.subr.mxu0 0.0
    %956 = vmatpush1.msra.mxu0 0.0
    %957 = vmatprep.subr.mxu0 0.0
    %958 = vmatpush1.msra.mxu0 0.0
    %959 = vmatprep.subr.mxu0 0.0
    %960 = vmatpush1.msra.mxu0 0.0
    %961 = vmatprep.subr.mxu0 0.0
    %962 = vmatpush1.msra.mxu0 0.0
    %963 = vmatprep.subr.mxu0 0.0
    %964 = vmatpush1.msra.mxu0 0.0
    %965 = vmatprep.subr.mxu0 0.0
    %966 = vmatpush1.msra.mxu0 0.0
    %967 = vmatprep.subr.mxu0 0.0
    %968 = vmatpush1.msra.mxu0 0.0
    %969 = vmatprep.subr.mxu0 0.0
    %970 = vmatpush1.msra.mxu0 0.0
    %971 = vmatprep.subr.mxu0 0.0
    %972 = vmatpush1.msra.mxu0 0.0
    %973 = vmatprep.subr.mxu0 0.0
    %974 = vmatpush1.msra.mxu0 0.0
    %975 = vmatprep.subr.mxu0 0.0
    %976 = vmatpush1.msra.mxu0 0.0
    %977 = vmatprep.subr.mxu0 0.0
    %978 = vmatpush1.msra.mxu0 0.0
    %979 = vmatprep.subr.mxu0 0.0
    %980 = vmatpush1.msra.mxu0 0.0
    %981 = vmatprep.subr.mxu0 0.0
    %982 = vmatpush1.msra.mxu0 0.0
    %983 = vmatprep.subr.mxu0 0.0
    %984 = vmatpush1.msra.mxu0 0.0
    %985 = vmatprep.subr.mxu0 0.0
    %986 = vmatpush1.msra.mxu0 0.0
    %987 = vmatprep.subr.mxu0 0.0
    %988 = vmatpush1.msra.mxu0 0.0
    %989 = vmatprep.subr.mxu0 0.0
    %990 = vmatpush1.msra.mxu0 0.0
    %991 = vmatprep.subr.mxu0 0.0
    %992 = vmatpush1.msra.mxu0 0.0
    %993 = vmatprep.mubr.f32.mxu0 0.0
    %v994 = vand.u32 %v94, 4294901760
    %995 = vmatmul.mubr.f32.gmra.mrb[0].mxu0 %v994
    %v996 = vpop.f32.mrb[0].mxu0
    %v997 = vadd.f32 %v915, %v996
    %v998 = vpop.f32.mrb[0].mxu0
    %999 = vmatprep.mubr.f32.mxu0 0.0
    %v1000 = vand.u32 %v97, 4294901760
    %1001 = vmatmul.mubr.f32.gmra.mrb[0].mxu0 %v1000
    %v1002 = vpop.f32.mrb[0].mxu0
    %v1003 = vadd.f32 %v923, %v1002
    %v1004 = vpop.f32.mrb[0].mxu0
    %1005 = vdwg.mxu0
    %1006 = vmatprep.subr.mxu0 0.0
    %v1007 = vand.u32 %v593, 4294901760
    %1008 = vmatpush1.msra.mxu0 %v1007
    %1009 = vmatprep.subr.mxu0 0.0
    %1010 = vmatpush1.msra.mxu0 0.0
    %1011 = vmatprep.subr.mxu0 0.0
    %1012 = vmatpush1.msra.mxu0 0.0
    %1013 = vmatprep.subr.mxu0 0.0
    %1014 = vmatpush1.msra.mxu0 0.0
    %1015 = vmatprep.subr.mxu0 0.0
    %1016 = vmatpush1.msra.mxu0 0.0
    %1017 = vmatprep.subr.mxu0 0.0
    %1018 = vmatpush1.msra.mxu0 0.0
    %1019 = vmatprep.subr.mxu0 0.0
    %1020 = vmatpush1.msra.mxu0 0.0
    %1021 = vmatprep.subr.mxu0 0.0
    %1022 = vmatpush1.msra.mxu0 0.0
    %1023 = vmatprep.subr.mxu0 0.0
    %1024 = vmatpush1.msra.mxu0 0.0
    %1025 = vmatprep.subr.mxu0 0.0
    %1026 = vmatpush1.msra.mxu0 0.0
    %1027 = vmatprep.subr.mxu0 0.0
    %1028 = vmatpush1.msra.mxu0 0.0
    %1029 = vmatprep.subr.mxu0 0.0
    %1030 = vmatpush1.msra.mxu0 0.0
    %1031 = vmatprep.subr.mxu0 0.0
    %1032 = vmatpush1.msra.mxu0 0.0
    %1033 = vmatprep.subr.mxu0 0.0
    %1034 = vmatpush1.msra.mxu0 0.0
    %1035 = vmatprep.subr.mxu0 0.0
    %1036 = vmatpush1.msra.mxu0 0.0
    %1037 = vmatprep.subr.mxu0 0.0
    %1038 = vmatpush1.msra.mxu0 0.0
    %1039 = vmatprep.subr.mxu0 0.0
    %1040 = vmatpush1.msra.mxu0 0.0
    %1041 = vmatprep.subr.mxu0 0.0
    %1042 = vmatpush1.msra.mxu0 0.0
    %1043 = vmatprep.subr.mxu0 0.0
    %1044 = vmatpush1.msra.mxu0 0.0
    %1045 = vmatprep.subr.mxu0 0.0
    %1046 = vmatpush1.msra.mxu0 0.0
    %1047 = vmatprep.subr.mxu0 0.0
    %1048 = vmatpush1.msra.mxu0 0.0
    %1049 = vmatprep.subr.mxu0 0.0
    %1050 = vmatpush1.msra.mxu0 0.0
    %1051 = vmatprep.subr.mxu0 0.0
    %1052 = vmatpush1.msra.mxu0 0.0
    %1053 = vmatprep.subr.mxu0 0.0
    %1054 = vmatpush1.msra.mxu0 0.0
    %1055 = vmatprep.subr.mxu0 0.0
    %1056 = vmatpush1.msra.mxu0 0.0
    %1057 = vmatprep.subr.mxu0 0.0
    %1058 = vmatpush1.msra.mxu0 0.0
    %1059 = vmatprep.subr.mxu0 0.0
    %1060 = vmatpush1.msra.mxu0 0.0
    %1061 = vmatprep.subr.mxu0 0.0
    %1062 = vmatpush1.msra.mxu0 0.0
    %1063 = vmatprep.subr.mxu0 0.0
    %1064 = vmatpush1.msra.mxu0 0.0
    %1065 = vmatprep.subr.mxu0 0.0
    %1066 = vmatpush1.msra.mxu0 0.0
    %1067 = vmatprep.subr.mxu0 0.0
    %1068 = vmatpush1.msra.mxu0 0.0
    %1069 = vmatprep.subr.mxu0 0.0
    %1070 = vmatpush1.msra.mxu0 0.0
    %1071 = vmatprep.mubr.f32.mxu0 0.0
    %v1072 = vand.u32 %v94, 4294901760
    %1073 = vmatmul.mubr.f32.gmra.mrb[0].mxu0 %v1072
    %v1074 = vpop.f32.mrb[0].mxu0
    %v1075 = vadd.f32 %v997, %v1074
    %v1076 = vpop.f32.mrb[0].mxu0
    %1077 = vmatprep.mubr.f32.mxu0 0.0
    %v1078 = vand.u32 %v97, 4294901760
    %1079 = vmatmul.mubr.f32.gmra.mrb[0].mxu0 %v1078
    %v1080 = vpop.f32.mrb[0].mxu0
    %v1081 = vadd.f32 %v1003, %v1080
    %v1082 = vpop.f32.mrb[0].mxu0
    %1083 = vdwg.mxu0
    %v1084 = vadd.f32 %v63, 1.0
    %v1085 = vadd.f32 %v64, 1.0
    %1087 = vset.pattern.permute.xlu0 0
    %1088 = vperm.xlu0 %1087, %v1084
    %v1089 = vpop.permute.xlu0 %1088
    %1092 = vset.pattern.permute.xlu0 0
    %1093 = vperm.xlu0 %1092, %v1085
    %v1094 = vpop.permute.xlu0 %1093
    %vm1096 = vcmp.eq.f32.partialorder %v1075, %v1089
    %vm1097 = vcmp.eq.f32.partialorder %v1081, %v1094
    %v1098 = vsel %vm1096, %v583, 0.0
    %v1099 = vsel %vm1097, %v589, 0.0
    %1101 = vset.pattern.permute.xlu0 0
    %1102 = vperm.xlu0 %1101, %v63
    %v1103 = vpop.permute.xlu0 %1102
    %1106 = vset.pattern.permute.xlu0 0
    %1107 = vperm.xlu0 %1106, %v64
    %v1108 = vpop.permute.xlu0 %1107
    %vm1110 = vcmp.eq.f32.partialorder %v1075, %v1103
    %vm1111 = vcmp.eq.f32.partialorder %v1081, %v1108
    %v1112 = vsel %vm1110, %v583, 0.0
    %v1113 = vsel %vm1111, %v589, 0.0
    %vm1114 = vcmask 130048
    %v1116 = vsel %vm1114, %v1112, 0
    %v1119 = vsel %vm1114, %v1113, 0
    %1121 = vmatprep.subr.mxu0 0.0
    %v1122 = vand.u32 %v36, 4294901760
    %1123 = vmatpush1.msra.mxu0 %v1122
    %1124 = vmatprep.subr.mxu0 0.0
    %v1125 = vand.u32 %v37, 4294901760
    %1126 = vmatpush1.msra.mxu0 %v1125
    %1127 = vmatprep.subr.mxu0 0.0
    %1128 = vmatpush1.msra.mxu0 0.0
    %1129 = vmatprep.subr.mxu0 0.0
    %1130 = vmatpush1.msra.mxu0 0.0
    %1131 = vmatprep.subr.mxu0 0.0
    %1132 = vmatpush1.msra.mxu0 0.0
    %1133 = vmatprep.subr.mxu0 0.0
    %1134 = vmatpush1.msra.mxu0 0.0
    %1135 = vmatprep.subr.mxu0 0.0
    %1136 = vmatpush1.msra.mxu0 0.0
    %1137 = vmatprep.subr.mxu0 0.0
    %1138 = vmatpush1.msra.mxu0 0.0
    %1139 = vmatprep.subr.mxu0 0.0
    %1140 = vmatpush1.msra.mxu0 0.0
    %1141 = vmatprep.subr.mxu0 0.0
    %1142 = vmatpush1.msra.mxu0 0.0
    %1143 = vmatprep.subr.mxu0 0.0
    %1144 = vmatpush1.msra.mxu0 0.0
    %1145 = vmatprep.subr.mxu0 0.0
    %1146 = vmatpush1.msra.mxu0 0.0
    %1147 = vmatprep.subr.mxu0 0.0
    %1148 = vmatpush1.msra.mxu0 0.0
    %1149 = vmatprep.subr.mxu0 0.0
    %1150 = vmatpush1.msra.mxu0 0.0
    %1151 = vmatprep.subr.mxu0 0.0
    %1152 = vmatpush1.msra.mxu0 0.0
    %1153 = vmatprep.subr.mxu0 0.0
    %1154 = vmatpush1.msra.mxu0 0.0
    %1155 = vmatprep.subr.mxu0 0.0
    %1156 = vmatpush1.msra.mxu0 0.0
    %1157 = vmatprep.subr.mxu0 0.0
    %1158 = vmatpush1.msra.mxu0 0.0
    %1159 = vmatprep.subr.mxu0 0.0
    %1160 = vmatpush1.msra.mxu0 0.0
    %1161 = vmatprep.subr.mxu0 0.0
    %1162 = vmatpush1.msra.mxu0 0.0
    %1163 = vmatprep.subr.mxu0 0.0
    %1164 = vmatpush1.msra.mxu0 0.0
    %1165 = vmatprep.subr.mxu0 0.0
    %1166 = vmatpush1.msra.mxu0 0.0
    %1167 = vmatprep.subr.mxu0 0.0
    %1168 = vmatpush1.msra.mxu0 0.0
    %1169 = vmatprep.subr.mxu0 0.0
    %1170 = vmatpush1.msra.mxu0 0.0
    %1171 = vmatprep.subr.mxu0 0.0
    %1172 = vmatpush1.msra.mxu0 0.0
    %1173 = vmatprep.subr.mxu0 0.0
    %1174 = vmatpush1.msra.mxu0 0.0
    %1175 = vmatprep.subr.mxu0 0.0
    %1176 = vmatpush1.msra.mxu0 0.0
    %1177 = vmatprep.subr.mxu0 0.0
    %1178 = vmatpush1.msra.mxu0 0.0
    %1179 = vmatprep.subr.mxu0 0.0
    %1180 = vmatpush1.msra.mxu0 0.0
    %1181 = vmatprep.subr.mxu0 0.0
    %1182 = vmatpush1.msra.mxu0 0.0
    %1183 = vmatprep.subr.mxu0 0.0
    %1184 = vmatpush1.msra.mxu0 0.0
    %1185 = vmatprep.subr.mxu0 0.0
    %1186 = vmatpush1.msra.mxu0 0.0
    %1187 = vmatprep.mubr.f32.mxu0 0.0
    %v1188 = vand.u32 %v1116, 4294901760
    %v1189 = vsub.f32 %v1116, %v1188
    %v1190 = vand.u32 %v1189, 4294901760
    %v1191 = vsub.f32 %v1189, %v1190
    %v1192 = vand.u32 %v1191, 4294901760
    %1193 = vmatmul.mubr.f32.gmra.mrb[0].mxu0 %v1192
    %v1194 = vpop.f32.mrb[0].mxu0
    %v1195 = vadd.f32 0.0, %v1194
    %v1196 = vpop.f32.mrb[0].mxu0
    %1197 = vmatprep.mubr.f32.mxu0 0.0
    %v1198 = vand.u32 %v1119, 4294901760
    %v1199 = vsub.f32 %v1119, %v1198
    %v1200 = vand.u32 %v1199, 4294901760
    %v1201 = vsub.f32 %v1199, %v1200
    %v1202 = vand.u32 %v1201, 4294901760
    %1203 = vmatmul.mubr.f32.gmra.mrb[0].mxu0 %v1202
    %v1204 = vpop.f32.mrb[0].mxu0
    %v1205 = vadd.f32 0.0, %v1204
    %v1206 = vpop.f32.mrb[0].mxu0
    %1207 = vdwg.mxu0
    %1208 = vmatprep.subr.mxu0 0.0
    %v1209 = vand.u32 %v36, 4294901760
    %v1210 = vsub.f32 %v36, %v1209
    %v1211 = vand.u32 %v1210, 4294901760
    %v1212 = vsub.f32 %v1210, %v1211
    %v1213 = vand.u32 %v1212, 4294901760
    %1214 = vmatpush1.msra.mxu0 %v1213
    %1215 = vmatprep.subr.mxu0 0.0
    %v1216 = vand.u32 %v37, 4294901760
    %v1217 = vsub.f32 %v37, %v1216
    %v1218 = vand.u32 %v1217, 4294901760
    %v1219 = vsub.f32 %v1217, %v1218
    %v1220 = vand.u32 %v1219, 4294901760
    %1221 = vmatpush1.msra.mxu0 %v1220
    %1222 = vmatprep.subr.mxu0 0.0
    %1223 = vmatpush1.msra.mxu0 0.0
    %1224 = vmatprep.subr.mxu0 0.0
    %1225 = vmatpush1.msra.mxu0 0.0
    %1226 = vmatprep.subr.mxu0 0.0
    %1227 = vmatpush1.msra.mxu0 0.0
    %1228 = vmatprep.subr.mxu0 0.0
    %1229 = vmatpush1.msra.mxu0 0.0
    %1230 = vmatprep.subr.mxu0 0.0
    %1231 = vmatpush1.msra.mxu0 0.0
    %1232 = vmatprep.subr.mxu0 0.0
    %1233 = vmatpush1.msra.mxu0 0.0
    %1234 = vmatprep.subr.mxu0 0.0
    %1235 = vmatpush1.msra.mxu0 0.0
    %1236 = vmatprep.subr.mxu0 0.0
    %1237 = vmatpush1.msra.mxu0 0.0
    %1238 = vmatprep.subr.mxu0 0.0
    %1239 = vmatpush1.msra.mxu0 0.0
    %1240 = vmatprep.subr.mxu0 0.0
    %1241 = vmatpush1.msra.mxu0 0.0
    %1242 = vmatprep.subr.mxu0 0.0
    %1243 = vmatpush1.msra.mxu0 0.0
    %1244 = vmatprep.subr.mxu0 0.0
    %1245 = vmatpush1.msra.mxu0 0.0
    %1246 = vmatprep.subr.mxu0 0.0
    %1247 = vmatpush1.msra.mxu0 0.0
    %1248 = vmatprep.subr.mxu0 0.0
    %1249 = vmatpush1.msra.mxu0 0.0
    %1250 = vmatprep.subr.mxu0 0.0
    %1251 = vmatpush1.msra.mxu0 0.0
    %1252 = vmatprep.subr.mxu0 0.0
    %1253 = vmatpush1.msra.mxu0 0.0
    %1254 = vmatprep.subr.mxu0 0.0
    %1255 = vmatpush1.msra.mxu0 0.0
    %1256 = vmatprep.subr.mxu0 0.0
    %1257 = vmatpush1.msra.mxu0 0.0
    %1258 = vmatprep.subr.mxu0 0.0
    %1259 = vmatpush1.msra.mxu0 0.0
    %1260 = vmatprep.subr.mxu0 0.0
    %1261 = vmatpush1.msra.mxu0 0.0
    %1262 = vmatprep.subr.mxu0 0.0
    %1263 = vmatpush1.msra.mxu0 0.0
    %1264 = vmatprep.subr.mxu0 0.0
    %1265 = vmatpush1.msra.mxu0 0.0
    %1266 = vmatprep.subr.mxu0 0.0
    %1267 = vmatpush1.msra.mxu0 0.0
    %1268 = vmatprep.subr.mxu0 0.0
    %1269 = vmatpush1.msra.mxu0 0.0
    %1270 = vmatprep.subr.mxu0 0.0
    %1271 = vmatpush1.msra.mxu0 0.0
    %1272 = vmatprep.subr.mxu0 0.0
    %1273 = vmatpush1.msra.mxu0 0.0
    %1274 = vmatprep.subr.mxu0 0.0
    %1275 = vmatpush1.msra.mxu0 0.0
    %1276 = vmatprep.subr.mxu0 0.0
    %1277 = vmatpush1.msra.mxu0 0.0
    %1278 = vmatprep.subr.mxu0 0.0
    %1279 = vmatpush1.msra.mxu0 0.0
    %1280 = vmatprep.subr.mxu0 0.0
    %1281 = vmatpush1.msra.mxu0 0.0
    %1282 = vmatprep.mubr.f32.mxu0 0.0
    %v1283 = vand.u32 %v1116, 4294901760
    %1284 = vmatmul.mubr.f32.gmra.mrb[0].mxu0 %v1283
    %v1285 = vpop.f32.mrb[0].mxu0
    %v1286 = vadd.f32 %v1195, %v1285
    %v1287 = vpop.f32.mrb[0].mxu0
    %1288 = vmatprep.mubr.f32.mxu0 0.0
    %v1289 = vand.u32 %v1119, 4294901760
    %1290 = vmatmul.mubr.f32.gmra.mrb[0].mxu0 %v1289
    %v1291 = vpop.f32.mrb[0].mxu0
    %v1292 = vadd.f32 %v1205, %v1291
    %v1293 = vpop.f32.mrb[0].mxu0
    %1294 = vdwg.mxu0
    %1295 = vmatprep.subr.mxu0 0.0
    %v1296 = vand.u32 %v36, 4294901760
    %v1297 = vsub.f32 %v36, %v1296
    %1298 = vmatpush1.msra.mxu0 %v1297
    %1299 = vmatprep.subr.mxu0 0.0
    %v1300 = vand.u32 %v37, 4294901760
    %v1301 = vsub.f32 %v37, %v1300
    %1302 = vmatpush1.msra.mxu0 %v1301
    %1303 = vmatprep.subr.mxu0 0.0
    %1304 = vmatpush1.msra.mxu0 0.0
    %1305 = vmatprep.subr.mxu0 0.0
    %1306 = vmatpush1.msra.mxu0 0.0
    %1307 = vmatprep.subr.mxu0 0.0
    %1308 = vmatpush1.msra.mxu0 0.0
    %1309 = vmatprep.subr.mxu0 0.0
    %1310 = vmatpush1.msra.mxu0 0.0
    %1311 = vmatprep.subr.mxu0 0.0
    %1312 = vmatpush1.msra.mxu0 0.0
    %1313 = vmatprep.subr.mxu0 0.0
    %1314 = vmatpush1.msra.mxu0 0.0
    %1315 = vmatprep.subr.mxu0 0.0
    %1316 = vmatpush1.msra.mxu0 0.0
    %1317 = vmatprep.subr.mxu0 0.0
    %1318 = vmatpush1.msra.mxu0 0.0
    %1319 = vmatprep.subr.mxu0 0.0
    %1320 = vmatpush1.msra.mxu0 0.0
    %1321 = vmatprep.subr.mxu0 0.0
    %1322 = vmatpush1.msra.mxu0 0.0
    %1323 = vmatprep.subr.mxu0 0.0
    %1324 = vmatpush1.msra.mxu0 0.0
    %1325 = vmatprep.subr.mxu0 0.0
    %1326 = vmatpush1.msra.mxu0 0.0
    %1327 = vmatprep.subr.mxu0 0.0
    %1328 = vmatpush1.msra.mxu0 0.0
    %1329 = vmatprep.subr.mxu0 0.0
    %1330 = vmatpush1.msra.mxu0 0.0
    %1331 = vmatprep.subr.mxu0 0.0
    %1332 = vmatpush1.msra.mxu0 0.0
    %1333 = vmatprep.subr.mxu0 0.0
    %1334 = vmatpush1.msra.mxu0 0.0
    %1335 = vmatprep.subr.mxu0 0.0
    %1336 = vmatpush1.msra.mxu0 0.0
    %1337 = vmatprep.subr.mxu0 0.0
    %1338 = vmatpush1.msra.mxu0 0.0
    %1339 = vmatprep.subr.mxu0 0.0
    %1340 = vmatpush1.msra.mxu0 0.0
    %1341 = vmatprep.subr.mxu0 0.0
    %1342 = vmatpush1.msra.mxu0 0.0
    %1343 = vmatprep.subr.mxu0 0.0
    %1344 = vmatpush1.msra.mxu0 0.0
    %1345 = vmatprep.subr.mxu0 0.0
    %1346 = vmatpush1.msra.mxu0 0.0
    %1347 = vmatprep.subr.mxu0 0.0
    %1348 = vmatpush1.msra.mxu0 0.0
    %1349 = vmatprep.subr.mxu0 0.0
    %1350 = vmatpush1.msra.mxu0 0.0
    %1351 = vmatprep.subr.mxu0 0.0
    %1352 = vmatpush1.msra.mxu0 0.0
    %1353 = vmatprep.subr.mxu0 0.0
    %1354 = vmatpush1.msra.mxu0 0.0
    %1355 = vmatprep.subr.mxu0 0.0
    %1356 = vmatpush1.msra.mxu0 0.0
    %1357 = vmatprep.subr.mxu0 0.0
    %1358 = vmatpush1.msra.mxu0 0.0
    %1359 = vmatprep.subr.mxu0 0.0
    %1360 = vmatpush1.msra.mxu0 0.0
    %1361 = vmatprep.subr.mxu0 0.0
    %1362 = vmatpush1.msra.mxu0 0.0
    %1363 = vmatprep.mubr.f32.mxu0 0.0
    %v1364 = vand.u32 %v1116, 4294901760
    %v1365 = vsub.f32 %v1116, %v1364
    %1366 = vmatmul.mubr.f32.gmra.mrb[0].mxu0 %v1365
    %v1367 = vpop.f32.mrb[0].mxu0
    %v1368 = vadd.f32 %v1286, %v1367
    %v1369 = vpop.f32.mrb[0].mxu0
    %1370 = vmatprep.mubr.f32.mxu0 0.0
    %v1371 = vand.u32 %v1119, 4294901760
    %v1372 = vsub.f32 %v1119, %v1371
    %1373 = vmatmul.mubr.f32.gmra.mrb[0].mxu0 %v1372
    %v1374 = vpop.f32.mrb[0].mxu0
    %v1375 = vadd.f32 %v1292, %v1374
    %v1376 = vpop.f32.mrb[0].mxu0
    %1377 = vdwg.mxu0
    %1378 = vmatprep.subr.mxu0 0.0
    %v1379 = vand.u32 %v36, 4294901760
    %1380 = vmatpush1.msra.mxu0 %v1379
    %1381 = vmatprep.subr.mxu0 0.0
    %v1382 = vand.u32 %v37, 4294901760
    %1383 = vmatpush1.msra.mxu0 %v1382
    %1384 = vmatprep.subr.mxu0 0.0
    %1385 = vmatpush1.msra.mxu0 0.0
    %1386 = vmatprep.subr.mxu0 0.0
    %1387 = vmatpush1.msra.mxu0 0.0
    %1388 = vmatprep.subr.mxu0 0.0
    %1389 = vmatpush1.msra.mxu0 0.0
    %1390 = vmatprep.subr.mxu0 0.0
    %1391 = vmatpush1.msra.mxu0 0.0
    %1392 = vmatprep.subr.mxu0 0.0
    %1393 = vmatpush1.msra.mxu0 0.0
    %1394 = vmatprep.subr.mxu0 0.0
    %1395 = vmatpush1.msra.mxu0 0.0
    %1396 = vmatprep.subr.mxu0 0.0
    %1397 = vmatpush1.msra.mxu0 0.0
    %1398 = vmatprep.subr.mxu0 0.0
    %1399 = vmatpush1.msra.mxu0 0.0
    %1400 = vmatprep.subr.mxu0 0.0
    %1401 = vmatpush1.msra.mxu0 0.0
    %1402 = vmatprep.subr.mxu0 0.0
    %1403 = vmatpush1.msra.mxu0 0.0
    %1404 = vmatprep.subr.mxu0 0.0
    %1405 = vmatpush1.msra.mxu0 0.0
    %1406 = vmatprep.subr.mxu0 0.0
    %1407 = vmatpush1.msra.mxu0 0.0
    %1408 = vmatprep.subr.mxu0 0.0
    %1409 = vmatpush1.msra.mxu0 0.0
    %1410 = vmatprep.subr.mxu0 0.0
    %1411 = vmatpush1.msra.mxu0 0.0
    %1412 = vmatprep.subr.mxu0 0.0
    %1413 = vmatpush1.msra.mxu0 0.0
    %1414 = vmatprep.subr.mxu0 0.0
    %1415 = vmatpush1.msra.mxu0 0.0
    %1416 = vmatprep.subr.mxu0 0.0
    %1417 = vmatpush1.msra.mxu0 0.0
    %1418 = vmatprep.subr.mxu0 0.0
    %1419 = vmatpush1.msra.mxu0 0.0
    %1420 = vmatprep.subr.mxu0 0.0
    %1421 = vmatpush1.msra.mxu0 0.0
    %1422 = vmatprep.subr.mxu0 0.0
    %1423 = vmatpush1.msra.mxu0 0.0
    %1424 = vmatprep.subr.mxu0 0.0
    %1425 = vmatpush1.msra.mxu0 0.0
    %1426 = vmatprep.subr.mxu0 0.0
    %1427 = vmatpush1.msra.mxu0 0.0
    %1428 = vmatprep.subr.mxu0 0.0
    %1429 = vmatpush1.msra.mxu0 0.0
    %1430 = vmatprep.subr.mxu0 0.0
    %1431 = vmatpush1.msra.mxu0 0.0
    %1432 = vmatprep.subr.mxu0 0.0
    %1433 = vmatpush1.msra.mxu0 0.0
    %1434 = vmatprep.subr.mxu0 0.0
    %1435 = vmatpush1.msra.mxu0 0.0
    %1436 = vmatprep.subr.mxu0 0.0
    %1437 = vmatpush1.msra.mxu0 0.0
    %1438 = vmatprep.subr.mxu0 0.0
    %1439 = vmatpush1.msra.mxu0 0.0
    %1440 = vmatprep.subr.mxu0 0.0
    %1441 = vmatpush1.msra.mxu0 0.0
    %1442 = vmatprep.subr.mxu0 0.0
    %1443 = vmatpush1.msra.mxu0 0.0
    %1444 = vmatprep.mubr.f32.mxu0 0.0
    %v1445 = vand.u32 %v1116, 4294901760
    %v1446 = vsub.f32 %v1116, %v1445
    %v1447 = vand.u32 %v1446, 4294901760
    %1448 = vmatmul.mubr.f32.gmra.mrb[0].mxu0 %v1447
    %v1449 = vpop.f32.mrb[0].mxu0
    %v1450 = vadd.f32 %v1368, %v1449
    %v1451 = vpop.f32.mrb[0].mxu0
    %1452 = vmatprep.mubr.f32.mxu0 0.0
    %v1453 = vand.u32 %v1119, 4294901760
    %v1454 = vsub.f32 %v1119, %v1453
    %v1455 = vand.u32 %v1454, 4294901760
    %1456 = vmatmul.mubr.f32.gmra.mrb[0].mxu0 %v1455
    %v1457 = vpop.f32.mrb[0].mxu0
    %v1458 = vadd.f32 %v1375, %v1457
    %v1459 = vpop.f32.mrb[0].mxu0
    %1460 = vdwg.mxu0
    %1461 = vmatprep.subr.mxu0 0.0
    %v1462 = vand.u32 %v36, 4294901760
    %v1463 = vsub.f32 %v36, %v1462
    %v1464 = vand.u32 %v1463, 4294901760
    %1465 = vmatpush1.msra.mxu0 %v1464
    %1466 = vmatprep.subr.mxu0 0.0
    %v1467 = vand.u32 %v37, 4294901760
    %v1468 = vsub.f32 %v37, %v1467
    %v1469 = vand.u32 %v1468, 4294901760
    %1470 = vmatpush1.msra.mxu0 %v1469
    %1471 = vmatprep.subr.mxu0 0.0
    %1472 = vmatpush1.msra.mxu0 0.0
    %1473 = vmatprep.subr.mxu0 0.0
    %1474 = vmatpush1.msra.mxu0 0.0
    %1475 = vmatprep.subr.mxu0 0.0
    %1476 = vmatpush1.msra.mxu0 0.0
    %1477 = vmatprep.subr.mxu0 0.0
    %1478 = vmatpush1.msra.mxu0 0.0
    %1479 = vmatprep.subr.mxu0 0.0
    %1480 = vmatpush1.msra.mxu0 0.0
    %1481 = vmatprep.subr.mxu0 0.0
    %1482 = vmatpush1.msra.mxu0 0.0
    %1483 = vmatprep.subr.mxu0 0.0
    %1484 = vmatpush1.msra.mxu0 0.0
    %1485 = vmatprep.subr.mxu0 0.0
    %1486 = vmatpush1.msra.mxu0 0.0
    %1487 = vmatprep.subr.mxu0 0.0
    %1488 = vmatpush1.msra.mxu0 0.0
    %1489 = vmatprep.subr.mxu0 0.0
    %1490 = vmatpush1.msra.mxu0 0.0
    %1491 = vmatprep.subr.mxu0 0.0
    %1492 = vmatpush1.msra.mxu0 0.0
    %1493 = vmatprep.subr.mxu0 0.0
    %1494 = vmatpush1.msra.mxu0 0.0
    %1495 = vmatprep.subr.mxu0 0.0
    %1496 = vmatpush1.msra.mxu0 0.0
    %1497 = vmatprep.subr.mxu0 0.0
    %1498 = vmatpush1.msra.mxu0 0.0
    %1499 = vmatprep.subr.mxu0 0.0
    %1500 = vmatpush1.msra.mxu0 0.0
    %1501 = vmatprep.subr.mxu0 0.0
    %1502 = vmatpush1.msra.mxu0 0.0
    %1503 = vmatprep.subr.mxu0 0.0
    %1504 = vmatpush1.msra.mxu0 0.0
    %1505 = vmatprep.subr.mxu0 0.0
    %1506 = vmatpush1.msra.mxu0 0.0
    %1507 = vmatprep.subr.mxu0 0.0
    %1508 = vmatpush1.msra.mxu0 0.0
    %1509 = vmatprep.subr.mxu0 0.0
    %1510 = vmatpush1.msra.mxu0 0.0
    %1511 = vmatprep.subr.mxu0 0.0
    %1512 = vmatpush1.msra.mxu0 0.0
    %1513 = vmatprep.subr.mxu0 0.0
    %1514 = vmatpush1.msra.mxu0 0.0
    %1515 = vmatprep.subr.mxu0 0.0
    %1516 = vmatpush1.msra.mxu0 0.0
    %1517 = vmatprep.subr.mxu0 0.0
    %1518 = vmatpush1.msra.mxu0 0.0
    %1519 = vmatprep.subr.mxu0 0.0
    %1520 = vmatpush1.msra.mxu0 0.0
    %1521 = vmatprep.subr.mxu0 0.0
    %1522 = vmatpush1.msra.mxu0 0.0
    %1523 = vmatprep.subr.mxu0 0.0
    %1524 = vmatpush1.msra.mxu0 0.0
    %1525 = vmatprep.subr.mxu0 0.0
    %1526 = vmatpush1.msra.mxu0 0.0
    %1527 = vmatprep.subr.mxu0 0.0
    %1528 = vmatpush1.msra.mxu0 0.0
    %1529 = vmatprep.subr.mxu0 0.0
    %1530 = vmatpush1.msra.mxu0 0.0
    %1531 = vmatprep.mubr.f32.mxu0 0.0
    %v1532 = vand.u32 %v1116, 4294901760
    %1533 = vmatmul.mubr.f32.gmra.mrb[0].mxu0 %v1532
    %v1534 = vpop.f32.mrb[0].mxu0
    %v1535 = vadd.f32 %v1450, %v1534
    %v1536 = vpop.f32.mrb[0].mxu0
    %1537 = vmatprep.mubr.f32.mxu0 0.0
    %v1538 = vand.u32 %v1119, 4294901760
    %1539 = vmatmul.mubr.f32.gmra.mrb[0].mxu0 %v1538
    %v1540 = vpop.f32.mrb[0].mxu0
    %v1541 = vadd.f32 %v1458, %v1540
    %v1542 = vpop.f32.mrb[0].mxu0
    %1543 = vdwg.mxu0
    %1544 = vmatprep.subr.mxu0 0.0
    %v1545 = vand.u32 %v36, 4294901760
    %1546 = vmatpush1.msra.mxu0 %v1545
    %1547 = vmatprep.subr.mxu0 0.0
    %v1548 = vand.u32 %v37, 4294901760
    %1549 = vmatpush1.msra.mxu0 %v1548
    %1550 = vmatprep.subr.mxu0 0.0
    %1551 = vmatpush1.msra.mxu0 0.0
    %1552 = vmatprep.subr.mxu0 0.0
    %1553 = vmatpush1.msra.mxu0 0.0
    %1554 = vmatprep.subr.mxu0 0.0
    %1555 = vmatpush1.msra.mxu0 0.0
    %1556 = vmatprep.subr.mxu0 0.0
    %1557 = vmatpush1.msra.mxu0 0.0
    %1558 = vmatprep.subr.mxu0 0.0
    %1559 = vmatpush1.msra.mxu0 0.0
    %1560 = vmatprep.subr.mxu0 0.0
    %1561 = vmatpush1.msra.mxu0 0.0
    %1562 = vmatprep.subr.mxu0 0.0
    %1563 = vmatpush1.msra.mxu0 0.0
    %1564 = vmatprep.subr.mxu0 0.0
    %1565 = vmatpush1.msra.mxu0 0.0
    %1566 = vmatprep.subr.mxu0 0.0
    %1567 = vmatpush1.msra.mxu0 0.0
    %1568 = vmatprep.subr.mxu0 0.0
    %1569 = vmatpush1.msra.mxu0 0.0
    %1570 = vmatprep.subr.mxu0 0.0
    %1571 = vmatpush1.msra.mxu0 0.0
    %1572 = vmatprep.subr.mxu0 0.0
    %1573 = vmatpush1.msra.mxu0 0.0
    %1574 = vmatprep.subr.mxu0 0.0
    %1575 = vmatpush1.msra.mxu0 0.0
    %1576 = vmatprep.subr.mxu0 0.0
    %1577 = vmatpush1.msra.mxu0 0.0
    %1578 = vmatprep.subr.mxu0 0.0
    %1579 = vmatpush1.msra.mxu0 0.0
    %1580 = vmatprep.subr.mxu0 0.0
    %1581 = vmatpush1.msra.mxu0 0.0
    %1582 = vmatprep.subr.mxu0 0.0
    %1583 = vmatpush1.msra.mxu0 0.0
    %1584 = vmatprep.subr.mxu0 0.0
    %1585 = vmatpush1.msra.mxu0 0.0
    %1586 = vmatprep.subr.mxu0 0.0
    %1587 = vmatpush1.msra.mxu0 0.0
    %1588 = vmatprep.subr.mxu0 0.0
    %1589 = vmatpush1.msra.mxu0 0.0
    %1590 = vmatprep.subr.mxu0 0.0
    %1591 = vmatpush1.msra.mxu0 0.0
    %1592 = vmatprep.subr.mxu0 0.0
    %1593 = vmatpush1.msra.mxu0 0.0
    %1594 = vmatprep.subr.mxu0 0.0
    %1595 = vmatpush1.msra.mxu0 0.0
    %1596 = vmatprep.subr.mxu0 0.0
    %1597 = vmatpush1.msra.mxu0 0.0
    %1598 = vmatprep.subr.mxu0 0.0
    %1599 = vmatpush1.msra.mxu0 0.0
    %1600 = vmatprep.subr.mxu0 0.0
    %1601 = vmatpush1.msra.mxu0 0.0
    %1602 = vmatprep.subr.mxu0 0.0
    %1603 = vmatpush1.msra.mxu0 0.0
    %1604 = vmatprep.subr.mxu0 0.0
    %1605 = vmatpush1.msra.mxu0 0.0
    %1606 = vmatprep.subr.mxu0 0.0
    %1607 = vmatpush1.msra.mxu0 0.0
    %1608 = vmatprep.subr.mxu0 0.0
    %1609 = vmatpush1.msra.mxu0 0.0
    %1610 = vmatprep.mubr.f32.mxu0 0.0
    %v1611 = vand.u32 %v1116, 4294901760
    %1612 = vmatmul.mubr.f32.gmra.mrb[0].mxu0 %v1611
    %v1613 = vpop.f32.mrb[0].mxu0
    %v1614 = vadd.f32 %v1535, %v1613
    %v1615 = vpop.f32.mrb[0].mxu0
    %1616 = vmatprep.mubr.f32.mxu0 0.0
    %v1617 = vand.u32 %v1119, 4294901760
    %1618 = vmatmul.mubr.f32.gmra.mrb[0].mxu0 %v1617
    %v1619 = vpop.f32.mrb[0].mxu0
    %v1620 = vadd.f32 %v1541, %v1619
    %v1621 = vpop.f32.mrb[0].mxu0
    %1622 = vdwg.mxu0
    %v1624 = vsel %vm1114, %v1098, 0
    %v1627 = vsel %vm1114, %v1099, 0
    %1629 = vmatprep.subr.mxu0 0.0
    %v1630 = vand.u32 %v34, 4294901760
    %1631 = vmatpush1.msra.mxu0 %v1630
    %1632 = vmatprep.subr.mxu0 0.0
    %v1633 = vand.u32 %v35, 4294901760
    %1634 = vmatpush1.msra.mxu0 %v1633
    %1635 = vmatprep.subr.mxu0 0.0
    %1636 = vmatpush1.msra.mxu0 0.0
    %1637 = vmatprep.subr.mxu0 0.0
    %1638 = vmatpush1.msra.mxu0 0.0
    %1639 = vmatprep.subr.mxu0 0.0
    %1640 = vmatpush1.msra.mxu0 0.0
    %1641 = vmatprep.subr.mxu0 0.0
    %1642 = vmatpush1.msra.mxu0 0.0
    %1643 = vmatprep.subr.mxu0 0.0
    %1644 = vmatpush1.msra.mxu0 0.0
    %1645 = vmatprep.subr.mxu0 0.0
    %1646 = vmatpush1.msra.mxu0 0.0
    %1647 = vmatprep.subr.mxu0 0.0
    %1648 = vmatpush1.msra.mxu0 0.0
    %1649 = vmatprep.subr.mxu0 0.0
    %1650 = vmatpush1.msra.mxu0 0.0
    %1651 = vmatprep.subr.mxu0 0.0
    %1652 = vmatpush1.msra.mxu0 0.0
    %1653 = vmatprep.subr.mxu0 0.0
    %1654 = vmatpush1.msra.mxu0 0.0
    %1655 = vmatprep.subr.mxu0 0.0
    %1656 = vmatpush1.msra.mxu0 0.0
    %1657 = vmatprep.subr.mxu0 0.0
    %1658 = vmatpush1.msra.mxu0 0.0
    %1659 = vmatprep.subr.mxu0 0.0
    %1660 = vmatpush1.msra.mxu0 0.0
    %1661 = vmatprep.subr.mxu0 0.0
    %1662 = vmatpush1.msra.mxu0 0.0
    %1663 = vmatprep.subr.mxu0 0.0
    %1664 = vmatpush1.msra.mxu0 0.0
    %1665 = vmatprep.subr.mxu0 0.0
    %1666 = vmatpush1.msra.mxu0 0.0
    %1667 = vmatprep.subr.mxu0 0.0
    %1668 = vmatpush1.msra.mxu0 0.0
    %1669 = vmatprep.subr.mxu0 0.0
    %1670 = vmatpush1.msra.mxu0 0.0
    %1671 = vmatprep.subr.mxu0 0.0
    %1672 = vmatpush1.msra.mxu0 0.0
    %1673 = vmatprep.subr.mxu0 0.0
    %1674 = vmatpush1.msra.mxu0 0.0
    %1675 = vmatprep.subr.mxu0 0.0
    %1676 = vmatpush1.msra.mxu0 0.0
    %1677 = vmatprep.subr.mxu0 0.0
    %1678 = vmatpush1.msra.mxu0 0.0
    %1679 = vmatprep.subr.mxu0 0.0
    %1680 = vmatpush1.msra.mxu0 0.0
    %1681 = vmatprep.subr.mxu0 0.0
    %1682 = vmatpush1.msra.mxu0 0.0
    %1683 = vmatprep.subr.mxu0 0.0
    %1684 = vmatpush1.msra.mxu0 0.0
    %1685 = vmatprep.subr.mxu0 0.0
    %1686 = vmatpush1.msra.mxu0 0.0
    %1687 = vmatprep.subr.mxu0 0.0
    %1688 = vmatpush1.msra.mxu0 0.0
    %1689 = vmatprep.subr.mxu0 0.0
    %1690 = vmatpush1.msra.mxu0 0.0
    %1691 = vmatprep.subr.mxu0 0.0
    %1692 = vmatpush1.msra.mxu0 0.0
    %1693 = vmatprep.subr.mxu0 0.0
    %1694 = vmatpush1.msra.mxu0 0.0
    %1695 = vmatprep.mubr.f32.mxu0 0.0
    %v1696 = vand.u32 %v1624, 4294901760
    %v1697 = vsub.f32 %v1624, %v1696
    %v1698 = vand.u32 %v1697, 4294901760
    %v1699 = vsub.f32 %v1697, %v1698
    %v1700 = vand.u32 %v1699, 4294901760
    %1701 = vmatmul.mubr.f32.gmra.mrb[0].mxu0 %v1700
    %v1702 = vpop.f32.mrb[0].mxu0
    %v1703 = vadd.f32 %v1614, %v1702
    %v1704 = vpop.f32.mrb[0].mxu0
    %1705 = vmatprep.mubr.f32.mxu0 0.0
    %v1706 = vand.u32 %v1627, 4294901760
    %v1707 = vsub.f32 %v1627, %v1706
    %v1708 = vand.u32 %v1707, 4294901760
    %v1709 = vsub.f32 %v1707, %v1708
    %v1710 = vand.u32 %v1709, 4294901760
    %1711 = vmatmul.mubr.f32.gmra.mrb[0].mxu0 %v1710
    %v1712 = vpop.f32.mrb[0].mxu0
    %v1713 = vadd.f32 %v1620, %v1712
    %v1714 = vpop.f32.mrb[0].mxu0
    %1715 = vdwg.mxu0
    %1716 = vmatprep.subr.mxu0 0.0
    %v1717 = vand.u32 %v34, 4294901760
    %v1718 = vsub.f32 %v34, %v1717
    %v1719 = vand.u32 %v1718, 4294901760
    %v1720 = vsub.f32 %v1718, %v1719
    %v1721 = vand.u32 %v1720, 4294901760
    %1722 = vmatpush1.msra.mxu0 %v1721
    %1723 = vmatprep.subr.mxu0 0.0
    %v1724 = vand.u32 %v35, 4294901760
    %v1725 = vsub.f32 %v35, %v1724
    %v1726 = vand.u32 %v1725, 4294901760
    %v1727 = vsub.f32 %v1725, %v1726
    %v1728 = vand.u32 %v1727, 4294901760
    %1729 = vmatpush1.msra.mxu0 %v1728
    %1730 = vmatprep.subr.mxu0 0.0
    %1731 = vmatpush1.msra.mxu0 0.0
    %1732 = vmatprep.subr.mxu0 0.0
    %1733 = vmatpush1.msra.mxu0 0.0
    %1734 = vmatprep.subr.mxu0 0.0
    %1735 = vmatpush1.msra.mxu0 0.0
    %1736 = vmatprep.subr.mxu0 0.0
    %1737 = vmatpush1.msra.mxu0 0.0
    %1738 = vmatprep.subr.mxu0 0.0
    %1739 = vmatpush1.msra.mxu0 0.0
    %1740 = vmatprep.subr.mxu0 0.0
    %1741 = vmatpush1.msra.mxu0 0.0
    %1742 = vmatprep.subr.mxu0 0.0
    %1743 = vmatpush1.msra.mxu0 0.0
    %1744 = vmatprep.subr.mxu0 0.0
    %1745 = vmatpush1.msra.mxu0 0.0
    %1746 = vmatprep.subr.mxu0 0.0
    %1747 = vmatpush1.msra.mxu0 0.0
    %1748 = vmatprep.subr.mxu0 0.0
    %1749 = vmatpush1.msra.mxu0 0.0
    %1750 = vmatprep.subr.mxu0 0.0
    %1751 = vmatpush1.msra.mxu0 0.0
    %1752 = vmatprep.subr.mxu0 0.0
    %1753 = vmatpush1.msra.mxu0 0.0
    %1754 = vmatprep.subr.mxu0 0.0
    %1755 = vmatpush1.msra.mxu0 0.0
    %1756 = vmatprep.subr.mxu0 0.0
    %1757 = vmatpush1.msra.mxu0 0.0
    %1758 = vmatprep.subr.mxu0 0.0
    %1759 = vmatpush1.msra.mxu0 0.0
    %1760 = vmatprep.subr.mxu0 0.0
    %1761 = vmatpush1.msra.mxu0 0.0
    %1762 = vmatprep.subr.mxu0 0.0
    %1763 = vmatpush1.msra.mxu0 0.0
    %1764 = vmatprep.subr.mxu0 0.0
    %1765 = vmatpush1.msra.mxu0 0.0
    %1766 = vmatprep.subr.mxu0 0.0
    %1767 = vmatpush1.msra.mxu0 0.0
    %1768 = vmatprep.subr.mxu0 0.0
    %1769 = vmatpush1.msra.mxu0 0.0
    %1770 = vmatprep.subr.mxu0 0.0
    %1771 = vmatpush1.msra.mxu0 0.0
    %1772 = vmatprep.subr.mxu0 0.0
    %1773 = vmatpush1.msra.mxu0 0.0
    %1774 = vmatprep.subr.mxu0 0.0
    %1775 = vmatpush1.msra.mxu0 0.0
    %1776 = vmatprep.subr.mxu0 0.0
    %1777 = vmatpush1.msra.mxu0 0.0
    %1778 = vmatprep.subr.mxu0 0.0
    %1779 = vmatpush1.msra.mxu0 0.0
    %1780 = vmatprep.subr.mxu0 0.0
    %1781 = vmatpush1.msra.mxu0 0.0
    %1782 = vmatprep.subr.mxu0 0.0
    %1783 = vmatpush1.msra.mxu0 0.0
    %1784 = vmatprep.subr.mxu0 0.0
    %1785 = vmatpush1.msra.mxu0 0.0
    %1786 = vmatprep.subr.mxu0 0.0
    %1787 = vmatpush1.msra.mxu0 0.0
    %1788 = vmatprep.subr.mxu0 0.0
    %1789 = vmatpush1.msra.mxu0 0.0
    %1790 = vmatprep.mubr.f32.mxu0 0.0
    %v1791 = vand.u32 %v1624, 4294901760
    %1792 = vmatmul.mubr.f32.gmra.mrb[0].mxu0 %v1791
    %v1793 = vpop.f32.mrb[0].mxu0
    %v1794 = vadd.f32 %v1703, %v1793
    %v1795 = vpop.f32.mrb[0].mxu0
    %1796 = vmatprep.mubr.f32.mxu0 0.0
    %v1797 = vand.u32 %v1627, 4294901760
    %1798 = vmatmul.mubr.f32.gmra.mrb[0].mxu0 %v1797
    %v1799 = vpop.f32.mrb[0].mxu0
    %v1800 = vadd.f32 %v1713, %v1799
    %v1801 = vpop.f32.mrb[0].mxu0
    %1802 = vdwg.mxu0
    %1803 = vmatprep.subr.mxu0 0.0
    %v1804 = vand.u32 %v34, 4294901760
    %v1805 = vsub.f32 %v34, %v1804
    %1806 = vmatpush1.msra.mxu0 %v1805
    %1807 = vmatprep.subr.mxu0 0.0
    %v1808 = vand.u32 %v35, 4294901760
    %v1809 = vsub.f32 %v35, %v1808
    %1810 = vmatpush1.msra.mxu0 %v1809
    %1811 = vmatprep.subr.mxu0 0.0
    %1812 = vmatpush1.msra.mxu0 0.0
    %1813 = vmatprep.subr.mxu0 0.0
    %1814 = vmatpush1.msra.mxu0 0.0
    %1815 = vmatprep.subr.mxu0 0.0
    %1816 = vmatpush1.msra.mxu0 0.0
    %1817 = vmatprep.subr.mxu0 0.0
    %1818 = vmatpush1.msra.mxu0 0.0
    %1819 = vmatprep.subr.mxu0 0.0
    %1820 = vmatpush1.msra.mxu0 0.0
    %1821 = vmatprep.subr.mxu0 0.0
    %1822 = vmatpush1.msra.mxu0 0.0
    %1823 = vmatprep.subr.mxu0 0.0
    %1824 = vmatpush1.msra.mxu0 0.0
    %1825 = vmatprep.subr.mxu0 0.0
    %1826 = vmatpush1.msra.mxu0 0.0
    %1827 = vmatprep.subr.mxu0 0.0
    %1828 = vmatpush1.msra.mxu0 0.0
    %1829 = vmatprep.subr.mxu0 0.0
    %1830 = vmatpush1.msra.mxu0 0.0
    %1831 = vmatprep.subr.mxu0 0.0
    %1832 = vmatpush1.msra.mxu0 0.0
    %1833 = vmatprep.subr.mxu0 0.0
    %1834 = vmatpush1.msra.mxu0 0.0
    %1835 = vmatprep.subr.mxu0 0.0
    %1836 = vmatpush1.msra.mxu0 0.0
    %1837 = vmatprep.subr.mxu0 0.0
    %1838 = vmatpush1.msra.mxu0 0.0
    %1839 = vmatprep.subr.mxu0 0.0
    %1840 = vmatpush1.msra.mxu0 0.0
    %1841 = vmatprep.subr.mxu0 0.0
    %1842 = vmatpush1.msra.mxu0 0.0
    %1843 = vmatprep.subr.mxu0 0.0
    %1844 = vmatpush1.msra.mxu0 0.0
    %1845 = vmatprep.subr.mxu0 0.0
    %1846 = vmatpush1.msra.mxu0 0.0
    %1847 = vmatprep.subr.mxu0 0.0
    %1848 = vmatpush1.msra.mxu0 0.0
    %1849 = vmatprep.subr.mxu0 0.0
    %1850 = vmatpush1.msra.mxu0 0.0
    %1851 = vmatprep.subr.mxu0 0.0
    %1852 = vmatpush1.msra.mxu0 0.0
    %1853 = vmatprep.subr.mxu0 0.0
    %1854 = vmatpush1.msra.mxu0 0.0
    %1855 = vmatprep.subr.mxu0 0.0
    %1856 = vmatpush1.msra.mxu0 0.0
    %1857 = vmatprep.subr.mxu0 0.0
    %1858 = vmatpush1.msra.mxu0 0.0
    %1859 = vmatprep.subr.mxu0 0.0
    %1860 = vmatpush1.msra.mxu0 0.0
    %1861 = vmatprep.subr.mxu0 0.0
    %1862 = vmatpush1.msra.mxu0 0.0
    %1863 = vmatprep.subr.mxu0 0.0
    %1864 = vmatpush1.msra.mxu0 0.0
    %1865 = vmatprep.subr.mxu0 0.0
    %1866 = vmatpush1.msra.mxu0 0.0
    %1867 = vmatprep.subr.mxu0 0.0
    %1868 = vmatpush1.msra.mxu0 0.0
    %1869 = vmatprep.subr.mxu0 0.0
    %1870 = vmatpush1.msra.mxu0 0.0
    %1871 = vmatprep.mubr.f32.mxu0 0.0
    %v1872 = vand.u32 %v1624, 4294901760
    %v1873 = vsub.f32 %v1624, %v1872
    %1874 = vmatmul.mubr.f32.gmra.mrb[0].mxu0 %v1873
    %v1875 = vpop.f32.mrb[0].mxu0
    %v1876 = vadd.f32 %v1794, %v1875
    %v1877 = vpop.f32.mrb[0].mxu0
    %1878 = vmatprep.mubr.f32.mxu0 0.0
    %v1879 = vand.u32 %v1627, 4294901760
    %v1880 = vsub.f32 %v1627, %v1879
    %1881 = vmatmul.mubr.f32.gmra.mrb[0].mxu0 %v1880
    %v1882 = vpop.f32.mrb[0].mxu0
    %v1883 = vadd.f32 %v1800, %v1882
    %v1884 = vpop.f32.mrb[0].mxu0
    %1885 = vdwg.mxu0
    %1886 = vmatprep.subr.mxu0 0.0
    %v1887 = vand.u32 %v34, 4294901760
    %1888 = vmatpush1.msra.mxu0 %v1887
    %1889 = vmatprep.subr.mxu0 0.0
    %v1890 = vand.u32 %v35, 4294901760
    %1891 = vmatpush1.msra.mxu0 %v1890
    %1892 = vmatprep.subr.mxu0 0.0
    %1893 = vmatpush1.msra.mxu0 0.0
    %1894 = vmatprep.subr.mxu0 0.0
    %1895 = vmatpush1.msra.mxu0 0.0
    %1896 = vmatprep.subr.mxu0 0.0
    %1897 = vmatpush1.msra.mxu0 0.0
    %1898 = vmatprep.subr.mxu0 0.0
    %1899 = vmatpush1.msra.mxu0 0.0
    %1900 = vmatprep.subr.mxu0 0.0
    %1901 = vmatpush1.msra.mxu0 0.0
    %1902 = vmatprep.subr.mxu0 0.0
    %1903 = vmatpush1.msra.mxu0 0.0
    %1904 = vmatprep.subr.mxu0 0.0
    %1905 = vmatpush1.msra.mxu0 0.0
    %1906 = vmatprep.subr.mxu0 0.0
    %1907 = vmatpush1.msra.mxu0 0.0
    %1908 = vmatprep.subr.mxu0 0.0
    %1909 = vmatpush1.msra.mxu0 0.0
    %1910 = vmatprep.subr.mxu0 0.0
    %1911 = vmatpush1.msra.mxu0 0.0
    %1912 = vmatprep.subr.mxu0 0.0
    %1913 = vmatpush1.msra.mxu0 0.0
    %1914 = vmatprep.subr.mxu0 0.0
    %1915 = vmatpush1.msra.mxu0 0.0
    %1916 = vmatprep.subr.mxu0 0.0
    %1917 = vmatpush1.msra.mxu0 0.0
    %1918 = vmatprep.subr.mxu0 0.0
    %1919 = vmatpush1.msra.mxu0 0.0
    %1920 = vmatprep.subr.mxu0 0.0
    %1921 = vmatpush1.msra.mxu0 0.0
    %1922 = vmatprep.subr.mxu0 0.0
    %1923 = vmatpush1.msra.mxu0 0.0
    %1924 = vmatprep.subr.mxu0 0.0
    %1925 = vmatpush1.msra.mxu0 0.0
    %1926 = vmatprep.subr.mxu0 0.0
    %1927 = vmatpush1.msra.mxu0 0.0
    %1928 = vmatprep.subr.mxu0 0.0
    %1929 = vmatpush1.msra.mxu0 0.0
    %1930 = vmatprep.subr.mxu0 0.0
    %1931 = vmatpush1.msra.mxu0 0.0
    %1932 = vmatprep.subr.mxu0 0.0
    %1933 = vmatpush1.msra.mxu0 0.0
    %1934 = vmatprep.subr.mxu0 0.0
    %1935 = vmatpush1.msra.mxu0 0.0
    %1936 = vmatprep.subr.mxu0 0.0
    %1937 = vmatpush1.msra.mxu0 0.0
    %1938 = vmatprep.subr.mxu0 0.0
    %1939 = vmatpush1.msra.mxu0 0.0
    %1940 = vmatprep.subr.mxu0 0.0
    %1941 = vmatpush1.msra.mxu0 0.0
    %1942 = vmatprep.subr.mxu0 0.0
    %1943 = vmatpush1.msra.mxu0 0.0
    %1944 = vmatprep.subr.mxu0 0.0
    %1945 = vmatpush1.msra.mxu0 0.0
    %1946 = vmatprep.subr.mxu0 0.0
    %1947 = vmatpush1.msra.mxu0 0.0
    %1948 = vmatprep.subr.mxu0 0.0
    %1949 = vmatpush1.msra.mxu0 0.0
    %1950 = vmatprep.subr.mxu0 0.0
    %1951 = vmatpush1.msra.mxu0 0.0
    %1952 = vmatprep.mubr.f32.mxu0 0.0
    %v1953 = vand.u32 %v1624, 4294901760
    %v1954 = vsub.f32 %v1624, %v1953
    %v1955 = vand.u32 %v1954, 4294901760
    %1956 = vmatmul.mubr.f32.gmra.mrb[0].mxu0 %v1955
    %v1957 = vpop.f32.mrb[0].mxu0
    %v1958 = vadd.f32 %v1876, %v1957
    %v1959 = vpop.f32.mrb[0].mxu0
    %1960 = vmatprep.mubr.f32.mxu0 0.0
    %v1961 = vand.u32 %v1627, 4294901760
    %v1962 = vsub.f32 %v1627, %v1961
    %v1963 = vand.u32 %v1962, 4294901760
    %1964 = vmatmul.mubr.f32.gmra.mrb[0].mxu0 %v1963
    %v1965 = vpop.f32.mrb[0].mxu0
    %v1966 = vadd.f32 %v1883, %v1965
    %v1967 = vpop.f32.mrb[0].mxu0
    %1968 = vdwg.mxu0
    %1969 = vmatprep.subr.mxu0 0.0
    %v1970 = vand.u32 %v34, 4294901760
    %v1971 = vsub.f32 %v34, %v1970
    %v1972 = vand.u32 %v1971, 4294901760
    %1973 = vmatpush1.msra.mxu0 %v1972
    %1974 = vmatprep.subr.mxu0 0.0
    %v1975 = vand.u32 %v35, 4294901760
    %v1976 = vsub.f32 %v35, %v1975
    %v1977 = vand.u32 %v1976, 4294901760
    %1978 = vmatpush1.msra.mxu0 %v1977
    %1979 = vmatprep.subr.mxu0 0.0
    %1980 = vmatpush1.msra.mxu0 0.0
    %1981 = vmatprep.subr.mxu0 0.0
    %1982 = vmatpush1.msra.mxu0 0.0
    %1983 = vmatprep.subr.mxu0 0.0
    %1984 = vmatpush1.msra.mxu0 0.0
    %1985 = vmatprep.subr.mxu0 0.0
    %1986 = vmatpush1.msra.mxu0 0.0
    %1987 = vmatprep.subr.mxu0 0.0
    %1988 = vmatpush1.msra.mxu0 0.0
    %1989 = vmatprep.subr.mxu0 0.0
    %1990 = vmatpush1.msra.mxu0 0.0
    %1991 = vmatprep.subr.mxu0 0.0
    %1992 = vmatpush1.msra.mxu0 0.0
    %1993 = vmatprep.subr.mxu0 0.0
    %1994 = vmatpush1.msra.mxu0 0.0
    %1995 = vmatprep.subr.mxu0 0.0
    %1996 = vmatpush1.msra.mxu0 0.0
    %1997 = vmatprep.subr.mxu0 0.0
    %1998 = vmatpush1.msra.mxu0 0.0
    %1999 = vmatprep.subr.mxu0 0.0
    %2000 = vmatpush1.msra.mxu0 0.0
    %2001 = vmatprep.subr.mxu0 0.0
    %2002 = vmatpush1.msra.mxu0 0.0
    %2003 = vmatprep.subr.mxu0 0.0
    %2004 = vmatpush1.msra.mxu0 0.0
    %2005 = vmatprep.subr.mxu0 0.0
    %2006 = vmatpush1.msra.mxu0 0.0
    %2007 = vmatprep.subr.mxu0 0.0
    %2008 = vmatpush1.msra.mxu0 0.0
    %2009 = vmatprep.subr.mxu0 0.0
    %2010 = vmatpush1.msra.mxu0 0.0
    %2011 = vmatprep.subr.mxu0 0.0
    %2012 = vmatpush1.msra.mxu0 0.0
    %2013 = vmatprep.subr.mxu0 0.0
    %2014 = vmatpush1.msra.mxu0 0.0
    %2015 = vmatprep.subr.mxu0 0.0
    %2016 = vmatpush1.msra.mxu0 0.0
    %2017 = vmatprep.subr.mxu0 0.0
    %2018 = vmatpush1.msra.mxu0 0.0
    %2019 = vmatprep.subr.mxu0 0.0
    %2020 = vmatpush1.msra.mxu0 0.0
    %2021 = vmatprep.subr.mxu0 0.0
    %2022 = vmatpush1.msra.mxu0 0.0
    %2023 = vmatprep.subr.mxu0 0.0
    %2024 = vmatpush1.msra.mxu0 0.0
    %2025 = vmatprep.subr.mxu0 0.0
    %2026 = vmatpush1.msra.mxu0 0.0
    %2027 = vmatprep.subr.mxu0 0.0
    %2028 = vmatpush1.msra.mxu0 0.0
    %2029 = vmatprep.subr.mxu0 0.0
    %2030 = vmatpush1.msra.mxu0 0.0
    %2031 = vmatprep.subr.mxu0 0.0
    %2032 = vmatpush1.msra.mxu0 0.0
    %2033 = vmatprep.subr.mxu0 0.0
    %2034 = vmatpush1.msra.mxu0 0.0
    %2035 = vmatprep.subr.mxu0 0.0
    %2036 = vmatpush1.msra.mxu0 0.0
    %2037 = vmatprep.subr.mxu0 0.0
    %2038 = vmatpush1.msra.mxu0 0.0
    %2039 = vmatprep.mubr.f32.mxu0 0.0
    %v2040 = vand.u32 %v1624, 4294901760
    %2041 = vmatmul.mubr.f32.gmra.mrb[0].mxu0 %v2040
    %v2042 = vpop.f32.mrb[0].mxu0
    %v2043 = vadd.f32 %v1958, %v2042
    %v2044 = vpop.f32.mrb[0].mxu0
    %2045 = vmatprep.mubr.f32.mxu0 0.0
    %v2046 = vand.u32 %v1627, 4294901760
    %2047 = vmatmul.mubr.f32.gmra.mrb[0].mxu0 %v2046
    %v2048 = vpop.f32.mrb[0].mxu0
    %v2049 = vadd.f32 %v1966, %v2048
    %v2050 = vpop.f32.mrb[0].mxu0
    %2051 = vdwg.mxu0
    %2052 = vmatprep.subr.mxu0 0.0
    %v2053 = vand.u32 %v34, 4294901760
    %2054 = vmatpush1.msra.mxu0 %v2053
    %2055 = vmatprep.subr.mxu0 0.0
    %v2056 = vand.u32 %v35, 4294901760
    %2057 = vmatpush1.msra.mxu0 %v2056
    %2058 = vmatprep.subr.mxu0 0.0
    %2059 = vmatpush1.msra.mxu0 0.0
    %2060 = vmatprep.subr.mxu0 0.0
    %2061 = vmatpush1.msra.mxu0 0.0
    %2062 = vmatprep.subr.mxu0 0.0
    %2063 = vmatpush1.msra.mxu0 0.0
    %2064 = vmatprep.subr.mxu0 0.0
    %2065 = vmatpush1.msra.mxu0 0.0
    %2066 = vmatprep.subr.mxu0 0.0
    %2067 = vmatpush1.msra.mxu0 0.0
    %2068 = vmatprep.subr.mxu0 0.0
    %2069 = vmatpush1.msra.mxu0 0.0
    %2070 = vmatprep.subr.mxu0 0.0
    %2071 = vmatpush1.msra.mxu0 0.0
    %2072 = vmatprep.subr.mxu0 0.0
    %2073 = vmatpush1.msra.mxu0 0.0
    %2074 = vmatprep.subr.mxu0 0.0
    %2075 = vmatpush1.msra.mxu0 0.0
    %2076 = vmatprep.subr.mxu0 0.0
    %2077 = vmatpush1.msra.mxu0 0.0
    %2078 = vmatprep.subr.mxu0 0.0
    %2079 = vmatpush1.msra.mxu0 0.0
    %2080 = vmatprep.subr.mxu0 0.0
    %2081 = vmatpush1.msra.mxu0 0.0
    %2082 = vmatprep.subr.mxu0 0.0
    %2083 = vmatpush1.msra.mxu0 0.0
    %2084 = vmatprep.subr.mxu0 0.0
    %2085 = vmatpush1.msra.mxu0 0.0
    %2086 = vmatprep.subr.mxu0 0.0
    %2087 = vmatpush1.msra.mxu0 0.0
    %2088 = vmatprep.subr.mxu0 0.0
    %2089 = vmatpush1.msra.mxu0 0.0
    %2090 = vmatprep.subr.mxu0 0.0
    %2091 = vmatpush1.msra.mxu0 0.0
    %2092 = vmatprep.subr.mxu0 0.0
    %2093 = vmatpush1.msra.mxu0 0.0
    %2094 = vmatprep.subr.mxu0 0.0
    %2095 = vmatpush1.msra.mxu0 0.0
    %2096 = vmatprep.subr.mxu0 0.0
    %2097 = vmatpush1.msra.mxu0 0.0
    %2098 = vmatprep.subr.mxu0 0.0
    %2099 = vmatpush1.msra.mxu0 0.0
    %2100 = vmatprep.subr.mxu0 0.0
    %2101 = vmatpush1.msra.mxu0 0.0
    %2102 = vmatprep.subr.mxu0 0.0
    %2103 = vmatpush1.msra.mxu0 0.0
    %2104 = vmatprep.subr.mxu0 0.0
    %2105 = vmatpush1.msra.mxu0 0.0
    %2106 = vmatprep.subr.mxu0 0.0
    %2107 = vmatpush1.msra.mxu0 0.0
    %2108 = vmatprep.subr.mxu0 0.0
    %2109 = vmatpush1.msra.mxu0 0.0
    %2110 = vmatprep.subr.mxu0 0.0
    %2111 = vmatpush1.msra.mxu0 0.0
    %2112 = vmatprep.subr.mxu0 0.0
    %2113 = vmatpush1.msra.mxu0 0.0
    %2114 = vmatprep.subr.mxu0 0.0
    %2115 = vmatpush1.msra.mxu0 0.0
    %2116 = vmatprep.subr.mxu0 0.0
    %2117 = vmatpush1.msra.mxu0 0.0
    %2118 = vmatprep.mubr.f32.mxu0 0.0
    %v2119 = vand.u32 %v1624, 4294901760
    %2120 = vmatmul.mubr.f32.gmra.mrb[0].mxu0 %v2119
    %v2121 = vpop.f32.mrb[0].mxu0
    %v2122 = vadd.f32 %v2043, %v2121
    %v2123 = vpop.f32.mrb[0].mxu0
    %2124 = vmatprep.mubr.f32.mxu0 0.0
    %v2125 = vand.u32 %v1627, 4294901760
    %2126 = vmatmul.mubr.f32.gmra.mrb[0].mxu0 %v2125
    %v2127 = vpop.f32.mrb[0].mxu0
    %v2128 = vadd.f32 %v2049, %v2127
    %v2129 = vpop.f32.mrb[0].mxu0
    %2130 = vdwg.mxu0
    %v2131 = vlaneseq
    %v2132 = vshrl.u32 %v2131, 7
    %v2133 = vsub.s32 0, %v2132
    %v2134 = vrot.slane %v58, %v2133
    %v2135 = vadd.f32 %v2122, %v2134
    %v2136 = vadd.f32 %v2128, %v2134
    %v2137 = vmul.f32 %v2135, %v2135
    %v2138 = vmul.f32 %v2136, %v2136
    %vm2139 = vcmask 523264
    %v2140 = vsel %vm2139, %v2137, 0.0
    %2141 = vadd.xlane.f32.xlu0 %v2140
    %v2142 = vpop.xlane.xlu0 %2141
    %vm2143 = vcmask 521216
    %v2144 = vsel %vm2143, %v2138, 0.0
    %2145 = vadd.xlane.f32.xlu0 %v2144
    %v2146 = vpop.xlane.xlu0 %2145
    %v2147 = vmax.f32 %v2142, 1e-24
    %v2148 = vmax.f32 %v2146, 1e-24
    %v2149 = vrsqrt.pop %v2147
    %v2150 = vrsqrt.pop %v2148
    %v2151 = vmul.f32 %v2135, %v2149
    %v2152 = vmul.f32 %v2136, %v2150
    %v2153 = vmax.f32 %v2151, 0.0
    %v2154 = vmax.f32 %v2152, 0.0
    %v2155 = vld [vmem:[%s2] sm:$0xff]
    %v2156 = vld [vmem:[%s2 + $0x8] sm:$0x3f]
    %v2157 = vand.u32 %v2155, 1
    %v2158 = vand.u32 %v2156, 1
    %vm2159 = vcmp.eq.s32.totalorder %v2157, 0
    %vm2160 = vcmp.eq.s32.totalorder %v2158, 0
    %v2161 = vsel %vm2159, %v2153, 0.0
    %v2162 = vsel %vm2160, %v2154, 0.0
    %v2163 = vsel %vm2159, 0.0, %v2153
    %v2164 = vsel %vm2160, 0.0, %v2154
    %vm2165 = vcmask 113664
    %v2167 = vsel %vm2165, %v69, 0
    %v2170 = vsel %vm2165, %v70, 0
    %v2173 = vsel %vm2165, %v71, 0
    %v2176 = vsel %vm2165, %v72, 0
    %vm2178 = vcmask 1045504
    %v2180 = vsel %vm2178, %v2164, 0
    %2182 = vmatprep.subr.mxu0 0.0
    %v2183 = vand.u32 %v2163, 4294901760
    %2184 = vmatpush1.msra.mxu0 %v2183
    %2185 = vmatprep.subr.mxu0 0.0
    %v2186 = vand.u32 %v2180, 4294901760
    %2187 = vmatpush1.msra.mxu0 %v2186
    %2188 = vmatprep.subr.mxu0 0.0
    %2189 = vmatpush1.msra.mxu0 0.0
    %2190 = vmatprep.subr.mxu0 0.0
    %2191 = vmatpush1.msra.mxu0 0.0
    %2192 = vmatprep.subr.mxu0 0.0
    %2193 = vmatpush1.msra.mxu0 0.0
    %2194 = vmatprep.subr.mxu0 0.0
    %2195 = vmatpush1.msra.mxu0 0.0
    %2196 = vmatprep.subr.mxu0 0.0
    %2197 = vmatpush1.msra.mxu0 0.0
    %2198 = vmatprep.subr.mxu0 0.0
    %2199 = vmatpush1.msra.mxu0 0.0
    %2200 = vmatprep.subr.mxu0 0.0
    %2201 = vmatpush1.msra.mxu0 0.0
    %2202 = vmatprep.subr.mxu0 0.0
    %2203 = vmatpush1.msra.mxu0 0.0
    %2204 = vmatprep.subr.mxu0 0.0
    %2205 = vmatpush1.msra.mxu0 0.0
    %2206 = vmatprep.subr.mxu0 0.0
    %2207 = vmatpush1.msra.mxu0 0.0
    %2208 = vmatprep.subr.mxu0 0.0
    %2209 = vmatpush1.msra.mxu0 0.0
    %2210 = vmatprep.subr.mxu0 0.0
    %2211 = vmatpush1.msra.mxu0 0.0
    %2212 = vmatprep.subr.mxu0 0.0
    %2213 = vmatpush1.msra.mxu0 0.0
    %2214 = vmatprep.subr.mxu0 0.0
    %2215 = vmatpush1.msra.mxu0 0.0
    %2216 = vmatprep.subr.mxu0 0.0
    %2217 = vmatpush1.msra.mxu0 0.0
    %2218 = vmatprep.subr.mxu0 0.0
    %2219 = vmatpush1.msra.mxu0 0.0
    %2220 = vmatprep.subr.mxu0 0.0
    %2221 = vmatpush1.msra.mxu0 0.0
    %2222 = vmatprep.subr.mxu0 0.0
    %2223 = vmatpush1.msra.mxu0 0.0
    %2224 = vmatprep.subr.mxu0 0.0
    %2225 = vmatpush1.msra.mxu0 0.0
    %2226 = vmatprep.subr.mxu0 0.0
    %2227 = vmatpush1.msra.mxu0 0.0
    %2228 = vmatprep.subr.mxu0 0.0
    %2229 = vmatpush1.msra.mxu0 0.0
    %2230 = vmatprep.subr.mxu0 0.0
    %2231 = vmatpush1.msra.mxu0 0.0
    %2232 = vmatprep.subr.mxu0 0.0
    %2233 = vmatpush1.msra.mxu0 0.0
    %2234 = vmatprep.subr.mxu0 0.0
    %2235 = vmatpush1.msra.mxu0 0.0
    %2236 = vmatprep.subr.mxu0 0.0
    %2237 = vmatpush1.msra.mxu0 0.0
    %2238 = vmatprep.subr.mxu0 0.0
    %2239 = vmatpush1.msra.mxu0 0.0
    %2240 = vmatprep.subr.mxu0 0.0
    %2241 = vmatpush1.msra.mxu0 0.0
    %2242 = vmatprep.subr.mxu0 0.0
    %2243 = vmatpush1.msra.mxu0 0.0
    %2244 = vmatprep.subr.mxu0 0.0
    %2245 = vmatpush1.msra.mxu0 0.0
    %2246 = vmatprep.subr.mxu0 0.0
    %2247 = vmatpush1.msra.mxu0 0.0
    %2248 = vmatprep.mubr.f32.mxu0 0.0
    %v2249 = vand.u32 %v2167, 4294901760
    %v2250 = vsub.f32 %v2167, %v2249
    %v2251 = vand.u32 %v2250, 4294901760
    %v2252 = vsub.f32 %v2250, %v2251
    %v2253 = vand.u32 %v2252, 4294901760
    %2254 = vmatmul.mubr.f32.gmra.mrb[0].mxu0 %v2253
    %v2255 = vpop.f32.mrb[0].mxu0
    %v2256 = vadd.f32 0.0, %v2255
    %v2257 = vpop.f32.mrb[0].mxu0
    %2258 = vmatprep.mubr.f32.mxu0 0.0
    %v2259 = vand.u32 %v2170, 4294901760
    %v2260 = vsub.f32 %v2170, %v2259
    %v2261 = vand.u32 %v2260, 4294901760
    %v2262 = vsub.f32 %v2260, %v2261
    %v2263 = vand.u32 %v2262, 4294901760
    %2264 = vmatmul.mubr.f32.gmra.mrb[0].mxu0 %v2263
    %v2265 = vpop.f32.mrb[0].mxu0
    %v2266 = vadd.f32 0.0, %v2265
    %v2267 = vpop.f32.mrb[0].mxu0
    %2268 = vmatprep.mubr.f32.mxu0 0.0
    %v2269 = vand.u32 %v2173, 4294901760
    %v2270 = vsub.f32 %v2173, %v2269
    %v2271 = vand.u32 %v2270, 4294901760
    %v2272 = vsub.f32 %v2270, %v2271
    %v2273 = vand.u32 %v2272, 4294901760
    %2274 = vmatmul.mubr.f32.gmra.mrb[0].mxu0 %v2273
    %v2275 = vpop.f32.mrb[0].mxu0
    %v2276 = vadd.f32 0.0, %v2275
    %v2277 = vpop.f32.mrb[0].mxu0
    %2278 = vmatprep.mubr.f32.mxu0 0.0
    %v2279 = vand.u32 %v2176, 4294901760
    %v2280 = vsub.f32 %v2176, %v2279
    %v2281 = vand.u32 %v2280, 4294901760
    %v2282 = vsub.f32 %v2280, %v2281
    %v2283 = vand.u32 %v2282, 4294901760
    %2284 = vmatmul.mubr.f32.gmra.mrb[0].mxu0 %v2283
    %v2285 = vpop.f32.mrb[0].mxu0
    %v2286 = vadd.f32 0.0, %v2285
    %v2287 = vpop.f32.mrb[0].mxu0
    %2288 = vdwg.mxu0
    %2289 = vmatprep.subr.mxu0 0.0
    %v2290 = vand.u32 %v2163, 4294901760
    %v2291 = vsub.f32 %v2163, %v2290
    %v2292 = vand.u32 %v2291, 4294901760
    %v2293 = vsub.f32 %v2291, %v2292
    %v2294 = vand.u32 %v2293, 4294901760
    %2295 = vmatpush1.msra.mxu0 %v2294
    %2296 = vmatprep.subr.mxu0 0.0
    %v2297 = vand.u32 %v2180, 4294901760
    %v2298 = vsub.f32 %v2180, %v2297
    %v2299 = vand.u32 %v2298, 4294901760
    %v2300 = vsub.f32 %v2298, %v2299
    %v2301 = vand.u32 %v2300, 4294901760
    %2302 = vmatpush1.msra.mxu0 %v2301
    %2303 = vmatprep.subr.mxu0 0.0
    %2304 = vmatpush1.msra.mxu0 0.0
    %2305 = vmatprep.subr.mxu0 0.0
    %2306 = vmatpush1.msra.mxu0 0.0
    %2307 = vmatprep.subr.mxu0 0.0
    %2308 = vmatpush1.msra.mxu0 0.0
    %2309 = vmatprep.subr.mxu0 0.0
    %2310 = vmatpush1.msra.mxu0 0.0
    %2311 = vmatprep.subr.mxu0 0.0
    %2312 = vmatpush1.msra.mxu0 0.0
    %2313 = vmatprep.subr.mxu0 0.0
    %2314 = vmatpush1.msra.mxu0 0.0
    %2315 = vmatprep.subr.mxu0 0.0
    %2316 = vmatpush1.msra.mxu0 0.0
    %2317 = vmatprep.subr.mxu0 0.0
    %2318 = vmatpush1.msra.mxu0 0.0
    %2319 = vmatprep.subr.mxu0 0.0
    %2320 = vmatpush1.msra.mxu0 0.0
    %2321 = vmatprep.subr.mxu0 0.0
    %2322 = vmatpush1.msra.mxu0 0.0
    %2323 = vmatprep.subr.mxu0 0.0
    %2324 = vmatpush1.msra.mxu0 0.0
    %2325 = vmatprep.subr.mxu0 0.0
    %2326 = vmatpush1.msra.mxu0 0.0
    %2327 = vmatprep.subr.mxu0 0.0
    %2328 = vmatpush1.msra.mxu0 0.0
    %2329 = vmatprep.subr.mxu0 0.0
    %2330 = vmatpush1.msra.mxu0 0.0
    %2331 = vmatprep.subr.mxu0 0.0
    %2332 = vmatpush1.msra.mxu0 0.0
    %2333 = vmatprep.subr.mxu0 0.0
    %2334 = vmatpush1.msra.mxu0 0.0
    %2335 = vmatprep.subr.mxu0 0.0
    %2336 = vmatpush1.msra.mxu0 0.0
    %2337 = vmatprep.subr.mxu0 0.0
    %2338 = vmatpush1.msra.mxu0 0.0
    %2339 = vmatprep.subr.mxu0 0.0
    %2340 = vmatpush1.msra.mxu0 0.0
    %2341 = vmatprep.subr.mxu0 0.0
    %2342 = vmatpush1.msra.mxu0 0.0
    %2343 = vmatprep.subr.mxu0 0.0
    %2344 = vmatpush1.msra.mxu0 0.0
    %2345 = vmatprep.subr.mxu0 0.0
    %2346 = vmatpush1.msra.mxu0 0.0
    %2347 = vmatprep.subr.mxu0 0.0
    %2348 = vmatpush1.msra.mxu0 0.0
    %2349 = vmatprep.subr.mxu0 0.0
    %2350 = vmatpush1.msra.mxu0 0.0
    %2351 = vmatprep.subr.mxu0 0.0
    %2352 = vmatpush1.msra.mxu0 0.0
    %2353 = vmatprep.subr.mxu0 0.0
    %2354 = vmatpush1.msra.mxu0 0.0
    %2355 = vmatprep.subr.mxu0 0.0
    %2356 = vmatpush1.msra.mxu0 0.0
    %2357 = vmatprep.subr.mxu0 0.0
    %2358 = vmatpush1.msra.mxu0 0.0
    %2359 = vmatprep.subr.mxu0 0.0
    %2360 = vmatpush1.msra.mxu0 0.0
    %2361 = vmatprep.subr.mxu0 0.0
    %2362 = vmatpush1.msra.mxu0 0.0
    %2363 = vmatprep.mubr.f32.mxu0 0.0
    %v2364 = vand.u32 %v2167, 4294901760
    %2365 = vmatmul.mubr.f32.gmra.mrb[0].mxu0 %v2364
    %v2366 = vpop.f32.mrb[0].mxu0
    %v2367 = vadd.f32 %v2256, %v2366
    %v2368 = vpop.f32.mrb[0].mxu0
    %2369 = vmatprep.mubr.f32.mxu0 0.0
    %v2370 = vand.u32 %v2170, 4294901760
    %2371 = vmatmul.mubr.f32.gmra.mrb[0].mxu0 %v2370
    %v2372 = vpop.f32.mrb[0].mxu0
    %v2373 = vadd.f32 %v2266, %v2372
    %v2374 = vpop.f32.mrb[0].mxu0
    %2375 = vmatprep.mubr.f32.mxu0 0.0
    %v2376 = vand.u32 %v2173, 4294901760
    %2377 = vmatmul.mubr.f32.gmra.mrb[0].mxu0 %v2376
    %v2378 = vpop.f32.mrb[0].mxu0
    %v2379 = vadd.f32 %v2276, %v2378
    %v2380 = vpop.f32.mrb[0].mxu0
    %2381 = vmatprep.mubr.f32.mxu0 0.0
    %v2382 = vand.u32 %v2176, 4294901760
    %2383 = vmatmul.mubr.f32.gmra.mrb[0].mxu0 %v2382
    %v2384 = vpop.f32.mrb[0].mxu0
    %v2385 = vadd.f32 %v2286, %v2384
    %v2386 = vpop.f32.mrb[0].mxu0
    %2387 = vdwg.mxu0
    %2388 = vmatprep.subr.mxu0 0.0
    %v2389 = vand.u32 %v2163, 4294901760
    %v2390 = vsub.f32 %v2163, %v2389
    %2391 = vmatpush1.msra.mxu0 %v2390
    %2392 = vmatprep.subr.mxu0 0.0
    %v2393 = vand.u32 %v2180, 4294901760
    %v2394 = vsub.f32 %v2180, %v2393
    %2395 = vmatpush1.msra.mxu0 %v2394
    %2396 = vmatprep.subr.mxu0 0.0
    %2397 = vmatpush1.msra.mxu0 0.0
    %2398 = vmatprep.subr.mxu0 0.0
    %2399 = vmatpush1.msra.mxu0 0.0
    %2400 = vmatprep.subr.mxu0 0.0
    %2401 = vmatpush1.msra.mxu0 0.0
    %2402 = vmatprep.subr.mxu0 0.0
    %2403 = vmatpush1.msra.mxu0 0.0
    %2404 = vmatprep.subr.mxu0 0.0
    %2405 = vmatpush1.msra.mxu0 0.0
    %2406 = vmatprep.subr.mxu0 0.0
    %2407 = vmatpush1.msra.mxu0 0.0
    %2408 = vmatprep.subr.mxu0 0.0
    %2409 = vmatpush1.msra.mxu0 0.0
    %2410 = vmatprep.subr.mxu0 0.0
    %2411 = vmatpush1.msra.mxu0 0.0
    %2412 = vmatprep.subr.mxu0 0.0
    %2413 = vmatpush1.msra.mxu0 0.0
    %2414 = vmatprep.subr.mxu0 0.0
    %2415 = vmatpush1.msra.mxu0 0.0
    %2416 = vmatprep.subr.mxu0 0.0
    %2417 = vmatpush1.msra.mxu0 0.0
    %2418 = vmatprep.subr.mxu0 0.0
    %2419 = vmatpush1.msra.mxu0 0.0
    %2420 = vmatprep.subr.mxu0 0.0
    %2421 = vmatpush1.msra.mxu0 0.0
    %2422 = vmatprep.subr.mxu0 0.0
    %2423 = vmatpush1.msra.mxu0 0.0
    %2424 = vmatprep.subr.mxu0 0.0
    %2425 = vmatpush1.msra.mxu0 0.0
    %2426 = vmatprep.subr.mxu0 0.0
    %2427 = vmatpush1.msra.mxu0 0.0
    %2428 = vmatprep.subr.mxu0 0.0
    %2429 = vmatpush1.msra.mxu0 0.0
    %2430 = vmatprep.subr.mxu0 0.0
    %2431 = vmatpush1.msra.mxu0 0.0
    %2432 = vmatprep.subr.mxu0 0.0
    %2433 = vmatpush1.msra.mxu0 0.0
    %2434 = vmatprep.subr.mxu0 0.0
    %2435 = vmatpush1.msra.mxu0 0.0
    %2436 = vmatprep.subr.mxu0 0.0
    %2437 = vmatpush1.msra.mxu0 0.0
    %2438 = vmatprep.subr.mxu0 0.0
    %2439 = vmatpush1.msra.mxu0 0.0
    %2440 = vmatprep.subr.mxu0 0.0
    %2441 = vmatpush1.msra.mxu0 0.0
    %2442 = vmatprep.subr.mxu0 0.0
    %2443 = vmatpush1.msra.mxu0 0.0
    %2444 = vmatprep.subr.mxu0 0.0
    %2445 = vmatpush1.msra.mxu0 0.0
    %2446 = vmatprep.subr.mxu0 0.0
    %2447 = vmatpush1.msra.mxu0 0.0
    %2448 = vmatprep.subr.mxu0 0.0
    %2449 = vmatpush1.msra.mxu0 0.0
    %2450 = vmatprep.subr.mxu0 0.0
    %2451 = vmatpush1.msra.mxu0 0.0
    %2452 = vmatprep.subr.mxu0 0.0
    %2453 = vmatpush1.msra.mxu0 0.0
    %2454 = vmatprep.subr.mxu0 0.0
    %2455 = vmatpush1.msra.mxu0 0.0
    %2456 = vmatprep.mubr.f32.mxu0 0.0
    %v2457 = vand.u32 %v2167, 4294901760
    %v2458 = vsub.f32 %v2167, %v2457
    %2459 = vmatmul.mubr.f32.gmra.mrb[0].mxu0 %v2458
    %v2460 = vpop.f32.mrb[0].mxu0
    %v2461 = vadd.f32 %v2367, %v2460
    %v2462 = vpop.f32.mrb[0].mxu0
    %2463 = vmatprep.mubr.f32.mxu0 0.0
    %v2464 = vand.u32 %v2170, 4294901760
    %v2465 = vsub.f32 %v2170, %v2464
    %2466 = vmatmul.mubr.f32.gmra.mrb[0].mxu0 %v2465
    %v2467 = vpop.f32.mrb[0].mxu0
    %v2468 = vadd.f32 %v2373, %v2467
    %v2469 = vpop.f32.mrb[0].mxu0
    %2470 = vmatprep.mubr.f32.mxu0 0.0
    %v2471 = vand.u32 %v2173, 4294901760
    %v2472 = vsub.f32 %v2173, %v2471
    %2473 = vmatmul.mubr.f32.gmra.mrb[0].mxu0 %v2472
    %v2474 = vpop.f32.mrb[0].mxu0
    %v2475 = vadd.f32 %v2379, %v2474
    %v2476 = vpop.f32.mrb[0].mxu0
    %2477 = vmatprep.mubr.f32.mxu0 0.0
    %v2478 = vand.u32 %v2176, 4294901760
    %v2479 = vsub.f32 %v2176, %v2478
    %2480 = vmatmul.mubr.f32.gmra.mrb[0].mxu0 %v2479
    %v2481 = vpop.f32.mrb[0].mxu0
    %v2482 = vadd.f32 %v2385, %v2481
    %v2483 = vpop.f32.mrb[0].mxu0
    %2484 = vdwg.mxu0
    %2485 = vmatprep.subr.mxu0 0.0
    %v2486 = vand.u32 %v2163, 4294901760
    %2487 = vmatpush1.msra.mxu0 %v2486
    %2488 = vmatprep.subr.mxu0 0.0
    %v2489 = vand.u32 %v2180, 4294901760
    %2490 = vmatpush1.msra.mxu0 %v2489
    %2491 = vmatprep.subr.mxu0 0.0
    %2492 = vmatpush1.msra.mxu0 0.0
    %2493 = vmatprep.subr.mxu0 0.0
    %2494 = vmatpush1.msra.mxu0 0.0
    %2495 = vmatprep.subr.mxu0 0.0
    %2496 = vmatpush1.msra.mxu0 0.0
    %2497 = vmatprep.subr.mxu0 0.0
    %2498 = vmatpush1.msra.mxu0 0.0
    %2499 = vmatprep.subr.mxu0 0.0
    %2500 = vmatpush1.msra.mxu0 0.0
    %2501 = vmatprep.subr.mxu0 0.0
    %2502 = vmatpush1.msra.mxu0 0.0
    %2503 = vmatprep.subr.mxu0 0.0
    %2504 = vmatpush1.msra.mxu0 0.0
    %2505 = vmatprep.subr.mxu0 0.0
    %2506 = vmatpush1.msra.mxu0 0.0
    %2507 = vmatprep.subr.mxu0 0.0
    %2508 = vmatpush1.msra.mxu0 0.0
    %2509 = vmatprep.subr.mxu0 0.0
    %2510 = vmatpush1.msra.mxu0 0.0
    %2511 = vmatprep.subr.mxu0 0.0
    %2512 = vmatpush1.msra.mxu0 0.0
    %2513 = vmatprep.subr.mxu0 0.0
    %2514 = vmatpush1.msra.mxu0 0.0
    %2515 = vmatprep.subr.mxu0 0.0
    %2516 = vmatpush1.msra.mxu0 0.0
    %2517 = vmatprep.subr.mxu0 0.0
    %2518 = vmatpush1.msra.mxu0 0.0
    %2519 = vmatprep.subr.mxu0 0.0
    %2520 = vmatpush1.msra.mxu0 0.0
    %2521 = vmatprep.subr.mxu0 0.0
    %2522 = vmatpush1.msra.mxu0 0.0
    %2523 = vmatprep.subr.mxu0 0.0
    %2524 = vmatpush1.msra.mxu0 0.0
    %2525 = vmatprep.subr.mxu0 0.0
    %2526 = vmatpush1.msra.mxu0 0.0
    %2527 = vmatprep.subr.mxu0 0.0
    %2528 = vmatpush1.msra.mxu0 0.0
    %2529 = vmatprep.subr.mxu0 0.0
    %2530 = vmatpush1.msra.mxu0 0.0
    %2531 = vmatprep.subr.mxu0 0.0
    %2532 = vmatpush1.msra.mxu0 0.0
    %2533 = vmatprep.subr.mxu0 0.0
    %2534 = vmatpush1.msra.mxu0 0.0
    %2535 = vmatprep.subr.mxu0 0.0
    %2536 = vmatpush1.msra.mxu0 0.0
    %2537 = vmatprep.subr.mxu0 0.0
    %2538 = vmatpush1.msra.mxu0 0.0
    %2539 = vmatprep.subr.mxu0 0.0
    %2540 = vmatpush1.msra.mxu0 0.0
    %2541 = vmatprep.subr.mxu0 0.0
    %2542 = vmatpush1.msra.mxu0 0.0
    %2543 = vmatprep.subr.mxu0 0.0
    %2544 = vmatpush1.msra.mxu0 0.0
    %2545 = vmatprep.subr.mxu0 0.0
    %2546 = vmatpush1.msra.mxu0 0.0
    %2547 = vmatprep.subr.mxu0 0.0
    %2548 = vmatpush1.msra.mxu0 0.0
    %2549 = vmatprep.subr.mxu0 0.0
    %2550 = vmatpush1.msra.mxu0 0.0
    %2551 = vmatprep.mubr.f32.mxu0 0.0
    %v2552 = vand.u32 %v2167, 4294901760
    %v2553 = vsub.f32 %v2167, %v2552
    %v2554 = vand.u32 %v2553, 4294901760
    %2555 = vmatmul.mubr.f32.gmra.mrb[0].mxu0 %v2554
    %v2556 = vpop.f32.mrb[0].mxu0
    %v2557 = vadd.f32 %v2461, %v2556
    %v2558 = vpop.f32.mrb[0].mxu0
    %2559 = vmatprep.mubr.f32.mxu0 0.0
    %v2560 = vand.u32 %v2170, 4294901760
    %v2561 = vsub.f32 %v2170, %v2560
    %v2562 = vand.u32 %v2561, 4294901760
    %2563 = vmatmul.mubr.f32.gmra.mrb[0].mxu0 %v2562
    %v2564 = vpop.f32.mrb[0].mxu0
    %v2565 = vadd.f32 %v2468, %v2564
    %v2566 = vpop.f32.mrb[0].mxu0
    %2567 = vmatprep.mubr.f32.mxu0 0.0
    %v2568 = vand.u32 %v2173, 4294901760
    %v2569 = vsub.f32 %v2173, %v2568
    %v2570 = vand.u32 %v2569, 4294901760
    %2571 = vmatmul.mubr.f32.gmra.mrb[0].mxu0 %v2570
    %v2572 = vpop.f32.mrb[0].mxu0
    %v2573 = vadd.f32 %v2475, %v2572
    %v2574 = vpop.f32.mrb[0].mxu0
    %2575 = vmatprep.mubr.f32.mxu0 0.0
    %v2576 = vand.u32 %v2176, 4294901760
    %v2577 = vsub.f32 %v2176, %v2576
    %v2578 = vand.u32 %v2577, 4294901760
    %2579 = vmatmul.mubr.f32.gmra.mrb[0].mxu0 %v2578
    %v2580 = vpop.f32.mrb[0].mxu0
    %v2581 = vadd.f32 %v2482, %v2580
    %v2582 = vpop.f32.mrb[0].mxu0
    %2583 = vdwg.mxu0
    %2584 = vmatprep.subr.mxu0 0.0
    %v2585 = vand.u32 %v2163, 4294901760
    %v2586 = vsub.f32 %v2163, %v2585
    %v2587 = vand.u32 %v2586, 4294901760
    %2588 = vmatpush1.msra.mxu0 %v2587
    %2589 = vmatprep.subr.mxu0 0.0
    %v2590 = vand.u32 %v2180, 4294901760
    %v2591 = vsub.f32 %v2180, %v2590
    %v2592 = vand.u32 %v2591, 4294901760
    %2593 = vmatpush1.msra.mxu0 %v2592
    %2594 = vmatprep.subr.mxu0 0.0
    %2595 = vmatpush1.msra.mxu0 0.0
    %2596 = vmatprep.subr.mxu0 0.0
    %2597 = vmatpush1.msra.mxu0 0.0
    %2598 = vmatprep.subr.mxu0 0.0
    %2599 = vmatpush1.msra.mxu0 0.0
    %2600 = vmatprep.subr.mxu0 0.0
    %2601 = vmatpush1.msra.mxu0 0.0
    %2602 = vmatprep.subr.mxu0 0.0
    %2603 = vmatpush1.msra.mxu0 0.0
    %2604 = vmatprep.subr.mxu0 0.0
    %2605 = vmatpush1.msra.mxu0 0.0
    %2606 = vmatprep.subr.mxu0 0.0
    %2607 = vmatpush1.msra.mxu0 0.0
    %2608 = vmatprep.subr.mxu0 0.0
    %2609 = vmatpush1.msra.mxu0 0.0
    %2610 = vmatprep.subr.mxu0 0.0
    %2611 = vmatpush1.msra.mxu0 0.0
    %2612 = vmatprep.subr.mxu0 0.0
    %2613 = vmatpush1.msra.mxu0 0.0
    %2614 = vmatprep.subr.mxu0 0.0
    %2615 = vmatpush1.msra.mxu0 0.0
    %2616 = vmatprep.subr.mxu0 0.0
    %2617 = vmatpush1.msra.mxu0 0.0
    %2618 = vmatprep.subr.mxu0 0.0
    %2619 = vmatpush1.msra.mxu0 0.0
    %2620 = vmatprep.subr.mxu0 0.0
    %2621 = vmatpush1.msra.mxu0 0.0
    %2622 = vmatprep.subr.mxu0 0.0
    %2623 = vmatpush1.msra.mxu0 0.0
    %2624 = vmatprep.subr.mxu0 0.0
    %2625 = vmatpush1.msra.mxu0 0.0
    %2626 = vmatprep.subr.mxu0 0.0
    %2627 = vmatpush1.msra.mxu0 0.0
    %2628 = vmatprep.subr.mxu0 0.0
    %2629 = vmatpush1.msra.mxu0 0.0
    %2630 = vmatprep.subr.mxu0 0.0
    %2631 = vmatpush1.msra.mxu0 0.0
    %2632 = vmatprep.subr.mxu0 0.0
    %2633 = vmatpush1.msra.mxu0 0.0
    %2634 = vmatprep.subr.mxu0 0.0
    %2635 = vmatpush1.msra.mxu0 0.0
    %2636 = vmatprep.subr.mxu0 0.0
    %2637 = vmatpush1.msra.mxu0 0.0
    %2638 = vmatprep.subr.mxu0 0.0
    %2639 = vmatpush1.msra.mxu0 0.0
    %2640 = vmatprep.subr.mxu0 0.0
    %2641 = vmatpush1.msra.mxu0 0.0
    %2642 = vmatprep.subr.mxu0 0.0
    %2643 = vmatpush1.msra.mxu0 0.0
    %2644 = vmatprep.subr.mxu0 0.0
    %2645 = vmatpush1.msra.mxu0 0.0
    %2646 = vmatprep.subr.mxu0 0.0
    %2647 = vmatpush1.msra.mxu0 0.0
    %2648 = vmatprep.subr.mxu0 0.0
    %2649 = vmatpush1.msra.mxu0 0.0
    %2650 = vmatprep.subr.mxu0 0.0
    %2651 = vmatpush1.msra.mxu0 0.0
    %2652 = vmatprep.subr.mxu0 0.0
    %2653 = vmatpush1.msra.mxu0 0.0
    %2654 = vmatprep.mubr.f32.mxu0 0.0
    %v2655 = vand.u32 %v2167, 4294901760
    %2656 = vmatmul.mubr.f32.gmra.mrb[0].mxu0 %v2655
    %v2657 = vpop.f32.mrb[0].mxu0
    %v2658 = vadd.f32 %v2557, %v2657
    %v2659 = vpop.f32.mrb[0].mxu0
    %2660 = vmatprep.mubr.f32.mxu0 0.0
    %v2661 = vand.u32 %v2170, 4294901760
    %2662 = vmatmul.mubr.f32.gmra.mrb[0].mxu0 %v2661
    %v2663 = vpop.f32.mrb[0].mxu0
    %v2664 = vadd.f32 %v2565, %v2663
    %v2665 = vpop.f32.mrb[0].mxu0
    %2666 = vmatprep.mubr.f32.mxu0 0.0
    %v2667 = vand.u32 %v2173, 4294901760
    %2668 = vmatmul.mubr.f32.gmra.mrb[0].mxu0 %v2667
    %v2669 = vpop.f32.mrb[0].mxu0
    %v2670 = vadd.f32 %v2573, %v2669
    %v2671 = vpop.f32.mrb[0].mxu0
    %2672 = vmatprep.mubr.f32.mxu0 0.0
    %v2673 = vand.u32 %v2176, 4294901760
    %2674 = vmatmul.mubr.f32.gmra.mrb[0].mxu0 %v2673
    %v2675 = vpop.f32.mrb[0].mxu0
    %v2676 = vadd.f32 %v2581, %v2675
    %v2677 = vpop.f32.mrb[0].mxu0
    %2678 = vdwg.mxu0
    %2679 = vmatprep.subr.mxu0 0.0
    %v2680 = vand.u32 %v2163, 4294901760
    %2681 = vmatpush1.msra.mxu0 %v2680
    %2682 = vmatprep.subr.mxu0 0.0
    %v2683 = vand.u32 %v2180, 4294901760
    %2684 = vmatpush1.msra.mxu0 %v2683
    %2685 = vmatprep.subr.mxu0 0.0
    %2686 = vmatpush1.msra.mxu0 0.0
    %2687 = vmatprep.subr.mxu0 0.0
    %2688 = vmatpush1.msra.mxu0 0.0
    %2689 = vmatprep.subr.mxu0 0.0
    %2690 = vmatpush1.msra.mxu0 0.0
    %2691 = vmatprep.subr.mxu0 0.0
    %2692 = vmatpush1.msra.mxu0 0.0
    %2693 = vmatprep.subr.mxu0 0.0
    %2694 = vmatpush1.msra.mxu0 0.0
    %2695 = vmatprep.subr.mxu0 0.0
    %2696 = vmatpush1.msra.mxu0 0.0
    %2697 = vmatprep.subr.mxu0 0.0
    %2698 = vmatpush1.msra.mxu0 0.0
    %2699 = vmatprep.subr.mxu0 0.0
    %2700 = vmatpush1.msra.mxu0 0.0
    %2701 = vmatprep.subr.mxu0 0.0
    %2702 = vmatpush1.msra.mxu0 0.0
    %2703 = vmatprep.subr.mxu0 0.0
    %2704 = vmatpush1.msra.mxu0 0.0
    %2705 = vmatprep.subr.mxu0 0.0
    %2706 = vmatpush1.msra.mxu0 0.0
    %2707 = vmatprep.subr.mxu0 0.0
    %2708 = vmatpush1.msra.mxu0 0.0
    %2709 = vmatprep.subr.mxu0 0.0
    %2710 = vmatpush1.msra.mxu0 0.0
    %2711 = vmatprep.subr.mxu0 0.0
    %2712 = vmatpush1.msra.mxu0 0.0
    %2713 = vmatprep.subr.mxu0 0.0
    %2714 = vmatpush1.msra.mxu0 0.0
    %2715 = vmatprep.subr.mxu0 0.0
    %2716 = vmatpush1.msra.mxu0 0.0
    %2717 = vmatprep.subr.mxu0 0.0
    %2718 = vmatpush1.msra.mxu0 0.0
    %2719 = vmatprep.subr.mxu0 0.0
    %2720 = vmatpush1.msra.mxu0 0.0
    %2721 = vmatprep.subr.mxu0 0.0
    %2722 = vmatpush1.msra.mxu0 0.0
    %2723 = vmatprep.subr.mxu0 0.0
    %2724 = vmatpush1.msra.mxu0 0.0
    %2725 = vmatprep.subr.mxu0 0.0
    %2726 = vmatpush1.msra.mxu0 0.0
    %2727 = vmatprep.subr.mxu0 0.0
    %2728 = vmatpush1.msra.mxu0 0.0
    %2729 = vmatprep.subr.mxu0 0.0
    %2730 = vmatpush1.msra.mxu0 0.0
    %2731 = vmatprep.subr.mxu0 0.0
    %2732 = vmatpush1.msra.mxu0 0.0
    %2733 = vmatprep.subr.mxu0 0.0
    %2734 = vmatpush1.msra.mxu0 0.0
    %2735 = vmatprep.subr.mxu0 0.0
    %2736 = vmatpush1.msra.mxu0 0.0
    %2737 = vmatprep.subr.mxu0 0.0
    %2738 = vmatpush1.msra.mxu0 0.0
    %2739 = vmatprep.subr.mxu0 0.0
    %2740 = vmatpush1.msra.mxu0 0.0
    %2741 = vmatprep.subr.mxu0 0.0
    %2742 = vmatpush1.msra.mxu0 0.0
    %2743 = vmatprep.subr.mxu0 0.0
    %2744 = vmatpush1.msra.mxu0 0.0
    %2745 = vmatprep.mubr.f32.mxu0 0.0
    %v2746 = vand.u32 %v2167, 4294901760
    %2747 = vmatmul.mubr.f32.gmra.mrb[0].mxu0 %v2746
    %v2748 = vpop.f32.mrb[0].mxu0
    %v2749 = vadd.f32 %v2658, %v2748
    %v2750 = vpop.f32.mrb[0].mxu0
    %2751 = vmatprep.mubr.f32.mxu0 0.0
    %v2752 = vand.u32 %v2170, 4294901760
    %2753 = vmatmul.mubr.f32.gmra.mrb[0].mxu0 %v2752
    %v2754 = vpop.f32.mrb[0].mxu0
    %v2755 = vadd.f32 %v2664, %v2754
    %v2756 = vpop.f32.mrb[0].mxu0
    %2757 = vmatprep.mubr.f32.mxu0 0.0
    %v2758 = vand.u32 %v2173, 4294901760
    %2759 = vmatmul.mubr.f32.gmra.mrb[0].mxu0 %v2758
    %v2760 = vpop.f32.mrb[0].mxu0
    %v2761 = vadd.f32 %v2670, %v2760
    %v2762 = vpop.f32.mrb[0].mxu0
    %2763 = vmatprep.mubr.f32.mxu0 0.0
    %v2764 = vand.u32 %v2176, 4294901760
    %2765 = vmatmul.mubr.f32.gmra.mrb[0].mxu0 %v2764
    %v2766 = vpop.f32.mrb[0].mxu0
    %v2767 = vadd.f32 %v2676, %v2766
    %v2768 = vpop.f32.mrb[0].mxu0
    %2769 = vdwg.mxu0
    %v2771 = vsel %vm2165, %v65, 0
    %v2774 = vsel %vm2165, %v66, 0
    %v2777 = vsel %vm2165, %v67, 0
    %v2780 = vsel %vm2165, %v68, 0
    %v2783 = vsel %vm2178, %v2162, 0
    %2785 = vmatprep.subr.mxu0 0.0
    %v2786 = vand.u32 %v2161, 4294901760
    %2787 = vmatpush1.msra.mxu0 %v2786
    %2788 = vmatprep.subr.mxu0 0.0
    %v2789 = vand.u32 %v2783, 4294901760
    %2790 = vmatpush1.msra.mxu0 %v2789
    %2791 = vmatprep.subr.mxu0 0.0
    %2792 = vmatpush1.msra.mxu0 0.0
    %2793 = vmatprep.subr.mxu0 0.0
    %2794 = vmatpush1.msra.mxu0 0.0
    %2795 = vmatprep.subr.mxu0 0.0
    %2796 = vmatpush1.msra.mxu0 0.0
    %2797 = vmatprep.subr.mxu0 0.0
    %2798 = vmatpush1.msra.mxu0 0.0
    %2799 = vmatprep.subr.mxu0 0.0
    %2800 = vmatpush1.msra.mxu0 0.0
    %2801 = vmatprep.subr.mxu0 0.0
    %2802 = vmatpush1.msra.mxu0 0.0
    %2803 = vmatprep.subr.mxu0 0.0
    %2804 = vmatpush1.msra.mxu0 0.0
    %2805 = vmatprep.subr.mxu0 0.0
    %2806 = vmatpush1.msra.mxu0 0.0
    %2807 = vmatprep.subr.mxu0 0.0
    %2808 = vmatpush1.msra.mxu0 0.0
    %2809 = vmatprep.subr.mxu0 0.0
    %2810 = vmatpush1.msra.mxu0 0.0
    %2811 = vmatprep.subr.mxu0 0.0
    %2812 = vmatpush1.msra.mxu0 0.0
    %2813 = vmatprep.subr.mxu0 0.0
    %2814 = vmatpush1.msra.mxu0 0.0
    %2815 = vmatprep.subr.mxu0 0.0
    %2816 = vmatpush1.msra.mxu0 0.0
    %2817 = vmatprep.subr.mxu0 0.0
    %2818 = vmatpush1.msra.mxu0 0.0
    %2819 = vmatprep.subr.mxu0 0.0
    %2820 = vmatpush1.msra.mxu0 0.0
    %2821 = vmatprep.subr.mxu0 0.0
    %2822 = vmatpush1.msra.mxu0 0.0
    %2823 = vmatprep.subr.mxu0 0.0
    %2824 = vmatpush1.msra.mxu0 0.0
    %2825 = vmatprep.subr.mxu0 0.0
    %2826 = vmatpush1.msra.mxu0 0.0
    %2827 = vmatprep.subr.mxu0 0.0
    %2828 = vmatpush1.msra.mxu0 0.0
    %2829 = vmatprep.subr.mxu0 0.0
    %2830 = vmatpush1.msra.mxu0 0.0
    %2831 = vmatprep.subr.mxu0 0.0
    %2832 = vmatpush1.msra.mxu0 0.0
    %2833 = vmatprep.subr.mxu0 0.0
    %2834 = vmatpush1.msra.mxu0 0.0
    %2835 = vmatprep.subr.mxu0 0.0
    %2836 = vmatpush1.msra.mxu0 0.0
    %2837 = vmatprep.subr.mxu0 0.0
    %2838 = vmatpush1.msra.mxu0 0.0
    %2839 = vmatprep.subr.mxu0 0.0
    %2840 = vmatpush1.msra.mxu0 0.0
    %2841 = vmatprep.subr.mxu0 0.0
    %2842 = vmatpush1.msra.mxu0 0.0
    %2843 = vmatprep.subr.mxu0 0.0
    %2844 = vmatpush1.msra.mxu0 0.0
    %2845 = vmatprep.subr.mxu0 0.0
    %2846 = vmatpush1.msra.mxu0 0.0
    %2847 = vmatprep.subr.mxu0 0.0
    %2848 = vmatpush1.msra.mxu0 0.0
    %2849 = vmatprep.subr.mxu0 0.0
    %2850 = vmatpush1.msra.mxu0 0.0
    %2851 = vmatprep.mubr.f32.mxu0 0.0
    %v2852 = vand.u32 %v2771, 4294901760
    %v2853 = vsub.f32 %v2771, %v2852
    %v2854 = vand.u32 %v2853, 4294901760
    %v2855 = vsub.f32 %v2853, %v2854
    %v2856 = vand.u32 %v2855, 4294901760
    %2857 = vmatmul.mubr.f32.gmra.mrb[0].mxu0 %v2856
    %v2858 = vpop.f32.mrb[0].mxu0
    %v2859 = vadd.f32 %v2749, %v2858
    %v2860 = vpop.f32.mrb[0].mxu0
    %2861 = vmatprep.mubr.f32.mxu0 0.0
    %v2862 = vand.u32 %v2774, 4294901760
    %v2863 = vsub.f32 %v2774, %v2862
    %v2864 = vand.u32 %v2863, 4294901760
    %v2865 = vsub.f32 %v2863, %v2864
    %v2866 = vand.u32 %v2865, 4294901760
    %2867 = vmatmul.mubr.f32.gmra.mrb[0].mxu0 %v2866
    %v2868 = vpop.f32.mrb[0].mxu0
    %v2869 = vadd.f32 %v2755, %v2868
    %v2870 = vpop.f32.mrb[0].mxu0
    %2871 = vmatprep.mubr.f32.mxu0 0.0
    %v2872 = vand.u32 %v2777, 4294901760
    %v2873 = vsub.f32 %v2777, %v2872
    %v2874 = vand.u32 %v2873, 4294901760
    %v2875 = vsub.f32 %v2873, %v2874
    %v2876 = vand.u32 %v2875, 4294901760
    %2877 = vmatmul.mubr.f32.gmra.mrb[0].mxu0 %v2876
    %v2878 = vpop.f32.mrb[0].mxu0
    %v2879 = vadd.f32 %v2761, %v2878
    %v2880 = vpop.f32.mrb[0].mxu0
    %2881 = vmatprep.mubr.f32.mxu0 0.0
    %v2882 = vand.u32 %v2780, 4294901760
    %v2883 = vsub.f32 %v2780, %v2882
    %v2884 = vand.u32 %v2883, 4294901760
    %v2885 = vsub.f32 %v2883, %v2884
    %v2886 = vand.u32 %v2885, 4294901760
    %2887 = vmatmul.mubr.f32.gmra.mrb[0].mxu0 %v2886
    %v2888 = vpop.f32.mrb[0].mxu0
    %v2889 = vadd.f32 %v2767, %v2888
    %v2890 = vpop.f32.mrb[0].mxu0
    %2891 = vdwg.mxu0
    %2892 = vmatprep.subr.mxu0 0.0
    %v2893 = vand.u32 %v2161, 4294901760
    %v2894 = vsub.f32 %v2161, %v2893
    %v2895 = vand.u32 %v2894, 4294901760
    %v2896 = vsub.f32 %v2894, %v2895
    %v2897 = vand.u32 %v2896, 4294901760
    %2898 = vmatpush1.msra.mxu0 %v2897
    %2899 = vmatprep.subr.mxu0 0.0
    %v2900 = vand.u32 %v2783, 4294901760
    %v2901 = vsub.f32 %v2783, %v2900
    %v2902 = vand.u32 %v2901, 4294901760
    %v2903 = vsub.f32 %v2901, %v2902
    %v2904 = vand.u32 %v2903, 4294901760
    %2905 = vmatpush1.msra.mxu0 %v2904
    %2906 = vmatprep.subr.mxu0 0.0
    %2907 = vmatpush1.msra.mxu0 0.0
    %2908 = vmatprep.subr.mxu0 0.0
    %2909 = vmatpush1.msra.mxu0 0.0
    %2910 = vmatprep.subr.mxu0 0.0
    %2911 = vmatpush1.msra.mxu0 0.0
    %2912 = vmatprep.subr.mxu0 0.0
    %2913 = vmatpush1.msra.mxu0 0.0
    %2914 = vmatprep.subr.mxu0 0.0
    %2915 = vmatpush1.msra.mxu0 0.0
    %2916 = vmatprep.subr.mxu0 0.0
    %2917 = vmatpush1.msra.mxu0 0.0
    %2918 = vmatprep.subr.mxu0 0.0
    %2919 = vmatpush1.msra.mxu0 0.0
    %2920 = vmatprep.subr.mxu0 0.0
    %2921 = vmatpush1.msra.mxu0 0.0
    %2922 = vmatprep.subr.mxu0 0.0
    %2923 = vmatpush1.msra.mxu0 0.0
    %2924 = vmatprep.subr.mxu0 0.0
    %2925 = vmatpush1.msra.mxu0 0.0
    %2926 = vmatprep.subr.mxu0 0.0
    %2927 = vmatpush1.msra.mxu0 0.0
    %2928 = vmatprep.subr.mxu0 0.0
    %2929 = vmatpush1.msra.mxu0 0.0
    %2930 = vmatprep.subr.mxu0 0.0
    %2931 = vmatpush1.msra.mxu0 0.0
    %2932 = vmatprep.subr.mxu0 0.0
    %2933 = vmatpush1.msra.mxu0 0.0
    %2934 = vmatprep.subr.mxu0 0.0
    %2935 = vmatpush1.msra.mxu0 0.0
    %2936 = vmatprep.subr.mxu0 0.0
    %2937 = vmatpush1.msra.mxu0 0.0
    %2938 = vmatprep.subr.mxu0 0.0
    %2939 = vmatpush1.msra.mxu0 0.0
    %2940 = vmatprep.subr.mxu0 0.0
    %2941 = vmatpush1.msra.mxu0 0.0
    %2942 = vmatprep.subr.mxu0 0.0
    %2943 = vmatpush1.msra.mxu0 0.0
    %2944 = vmatprep.subr.mxu0 0.0
    %2945 = vmatpush1.msra.mxu0 0.0
    %2946 = vmatprep.subr.mxu0 0.0
    %2947 = vmatpush1.msra.mxu0 0.0
    %2948 = vmatprep.subr.mxu0 0.0
    %2949 = vmatpush1.msra.mxu0 0.0
    %2950 = vmatprep.subr.mxu0 0.0
    %2951 = vmatpush1.msra.mxu0 0.0
    %2952 = vmatprep.subr.mxu0 0.0
    %2953 = vmatpush1.msra.mxu0 0.0
    %2954 = vmatprep.subr.mxu0 0.0
    %2955 = vmatpush1.msra.mxu0 0.0
    %2956 = vmatprep.subr.mxu0 0.0
    %2957 = vmatpush1.msra.mxu0 0.0
    %2958 = vmatprep.subr.mxu0 0.0
    %2959 = vmatpush1.msra.mxu0 0.0
    %2960 = vmatprep.subr.mxu0 0.0
    %2961 = vmatpush1.msra.mxu0 0.0
    %2962 = vmatprep.subr.mxu0 0.0
    %2963 = vmatpush1.msra.mxu0 0.0
    %2964 = vmatprep.subr.mxu0 0.0
    %2965 = vmatpush1.msra.mxu0 0.0
    %2966 = vmatprep.mubr.f32.mxu0 0.0
    %v2967 = vand.u32 %v2771, 4294901760
    %2968 = vmatmul.mubr.f32.gmra.mrb[0].mxu0 %v2967
    %v2969 = vpop.f32.mrb[0].mxu0
    %v2970 = vadd.f32 %v2859, %v2969
    %v2971 = vpop.f32.mrb[0].mxu0
    %2972 = vmatprep.mubr.f32.mxu0 0.0
    %v2973 = vand.u32 %v2774, 4294901760
    %2974 = vmatmul.mubr.f32.gmra.mrb[0].mxu0 %v2973
    %v2975 = vpop.f32.mrb[0].mxu0
    %v2976 = vadd.f32 %v2869, %v2975
    %v2977 = vpop.f32.mrb[0].mxu0
    %2978 = vmatprep.mubr.f32.mxu0 0.0
    %v2979 = vand.u32 %v2777, 4294901760
    %2980 = vmatmul.mubr.f32.gmra.mrb[0].mxu0 %v2979
    %v2981 = vpop.f32.mrb[0].mxu0
    %v2982 = vadd.f32 %v2879, %v2981
    %v2983 = vpop.f32.mrb[0].mxu0
    %2984 = vmatprep.mubr.f32.mxu0 0.0
    %v2985 = vand.u32 %v2780, 4294901760
    %2986 = vmatmul.mubr.f32.gmra.mrb[0].mxu0 %v2985
    %v2987 = vpop.f32.mrb[0].mxu0
    %v2988 = vadd.f32 %v2889, %v2987
    %v2989 = vpop.f32.mrb[0].mxu0
    %2990 = vdwg.mxu0
    %2991 = vmatprep.subr.mxu0 0.0
    %v2992 = vand.u32 %v2161, 4294901760
    %v2993 = vsub.f32 %v2161, %v2992
    %2994 = vmatpush1.msra.mxu0 %v2993
    %2995 = vmatprep.subr.mxu0 0.0
    %v2996 = vand.u32 %v2783, 4294901760
    %v2997 = vsub.f32 %v2783, %v2996
    %2998 = vmatpush1.msra.mxu0 %v2997
    %2999 = vmatprep.subr.mxu0 0.0
    %3000 = vmatpush1.msra.mxu0 0.0
    %3001 = vmatprep.subr.mxu0 0.0
    %3002 = vmatpush1.msra.mxu0 0.0
    %3003 = vmatprep.subr.mxu0 0.0
    %3004 = vmatpush1.msra.mxu0 0.0
    %3005 = vmatprep.subr.mxu0 0.0
    %3006 = vmatpush1.msra.mxu0 0.0
    %3007 = vmatprep.subr.mxu0 0.0
    %3008 = vmatpush1.msra.mxu0 0.0
    %3009 = vmatprep.subr.mxu0 0.0
    %3010 = vmatpush1.msra.mxu0 0.0
    %3011 = vmatprep.subr.mxu0 0.0
    %3012 = vmatpush1.msra.mxu0 0.0
    %3013 = vmatprep.subr.mxu0 0.0
    %3014 = vmatpush1.msra.mxu0 0.0
    %3015 = vmatprep.subr.mxu0 0.0
    %3016 = vmatpush1.msra.mxu0 0.0
    %3017 = vmatprep.subr.mxu0 0.0
    %3018 = vmatpush1.msra.mxu0 0.0
    %3019 = vmatprep.subr.mxu0 0.0
    %3020 = vmatpush1.msra.mxu0 0.0
    %3021 = vmatprep.subr.mxu0 0.0
    %3022 = vmatpush1.msra.mxu0 0.0
    %3023 = vmatprep.subr.mxu0 0.0
    %3024 = vmatpush1.msra.mxu0 0.0
    %3025 = vmatprep.subr.mxu0 0.0
    %3026 = vmatpush1.msra.mxu0 0.0
    %3027 = vmatprep.subr.mxu0 0.0
    %3028 = vmatpush1.msra.mxu0 0.0
    %3029 = vmatprep.subr.mxu0 0.0
    %3030 = vmatpush1.msra.mxu0 0.0
    %3031 = vmatprep.subr.mxu0 0.0
    %3032 = vmatpush1.msra.mxu0 0.0
    %3033 = vmatprep.subr.mxu0 0.0
    %3034 = vmatpush1.msra.mxu0 0.0
    %3035 = vmatprep.subr.mxu0 0.0
    %3036 = vmatpush1.msra.mxu0 0.0
    %3037 = vmatprep.subr.mxu0 0.0
    %3038 = vmatpush1.msra.mxu0 0.0
    %3039 = vmatprep.subr.mxu0 0.0
    %3040 = vmatpush1.msra.mxu0 0.0
    %3041 = vmatprep.subr.mxu0 0.0
    %3042 = vmatpush1.msra.mxu0 0.0
    %3043 = vmatprep.subr.mxu0 0.0
    %3044 = vmatpush1.msra.mxu0 0.0
    %3045 = vmatprep.subr.mxu0 0.0
    %3046 = vmatpush1.msra.mxu0 0.0
    %3047 = vmatprep.subr.mxu0 0.0
    %3048 = vmatpush1.msra.mxu0 0.0
    %3049 = vmatprep.subr.mxu0 0.0
    %3050 = vmatpush1.msra.mxu0 0.0
    %3051 = vmatprep.subr.mxu0 0.0
    %3052 = vmatpush1.msra.mxu0 0.0
    %3053 = vmatprep.subr.mxu0 0.0
    %3054 = vmatpush1.msra.mxu0 0.0
    %3055 = vmatprep.subr.mxu0 0.0
    %3056 = vmatpush1.msra.mxu0 0.0
    %3057 = vmatprep.subr.mxu0 0.0
    %3058 = vmatpush1.msra.mxu0 0.0
    %3059 = vmatprep.mubr.f32.mxu0 0.0
    %v3060 = vand.u32 %v2771, 4294901760
    %v3061 = vsub.f32 %v2771, %v3060
    %3062 = vmatmul.mubr.f32.gmra.mrb[0].mxu0 %v3061
    %v3063 = vpop.f32.mrb[0].mxu0
    %v3064 = vadd.f32 %v2970, %v3063
    %v3065 = vpop.f32.mrb[0].mxu0
    %3066 = vmatprep.mubr.f32.mxu0 0.0
    %v3067 = vand.u32 %v2774, 4294901760
    %v3068 = vsub.f32 %v2774, %v3067
    %3069 = vmatmul.mubr.f32.gmra.mrb[0].mxu0 %v3068
    %v3070 = vpop.f32.mrb[0].mxu0
    %v3071 = vadd.f32 %v2976, %v3070
    %v3072 = vpop.f32.mrb[0].mxu0
    %3073 = vmatprep.mubr.f32.mxu0 0.0
    %v3074 = vand.u32 %v2777, 4294901760
    %v3075 = vsub.f32 %v2777, %v3074
    %3076 = vmatmul.mubr.f32.gmra.mrb[0].mxu0 %v3075
    %v3077 = vpop.f32.mrb[0].mxu0
    %v3078 = vadd.f32 %v2982, %v3077
    %v3079 = vpop.f32.mrb[0].mxu0
    %3080 = vmatprep.mubr.f32.mxu0 0.0
    %v3081 = vand.u32 %v2780, 4294901760
    %v3082 = vsub.f32 %v2780, %v3081
    %3083 = vmatmul.mubr.f32.gmra.mrb[0].mxu0 %v3082
    %v3084 = vpop.f32.mrb[0].mxu0
    %v3085 = vadd.f32 %v2988, %v3084
    %v3086 = vpop.f32.mrb[0].mxu0
    %3087 = vdwg.mxu0
    %3088 = vmatprep.subr.mxu0 0.0
    %v3089 = vand.u32 %v2161, 4294901760
    %3090 = vmatpush1.msra.mxu0 %v3089
    %3091 = vmatprep.subr.mxu0 0.0
    %v3092 = vand.u32 %v2783, 4294901760
    %3093 = vmatpush1.msra.mxu0 %v3092
    %3094 = vmatprep.subr.mxu0 0.0
    %3095 = vmatpush1.msra.mxu0 0.0
    %3096 = vmatprep.subr.mxu0 0.0
    %3097 = vmatpush1.msra.mxu0 0.0
    %3098 = vmatprep.subr.mxu0 0.0
    %3099 = vmatpush1.msra.mxu0 0.0
    %3100 = vmatprep.subr.mxu0 0.0
    %3101 = vmatpush1.msra.mxu0 0.0
    %3102 = vmatprep.subr.mxu0 0.0
    %3103 = vmatpush1.msra.mxu0 0.0
    %3104 = vmatprep.subr.mxu0 0.0
    %3105 = vmatpush1.msra.mxu0 0.0
    %3106 = vmatprep.subr.mxu0 0.0
    %3107 = vmatpush1.msra.mxu0 0.0
    %3108 = vmatprep.subr.mxu0 0.0
    %3109 = vmatpush1.msra.mxu0 0.0
    %3110 = vmatprep.subr.mxu0 0.0
    %3111 = vmatpush1.msra.mxu0 0.0
    %3112 = vmatprep.subr.mxu0 0.0
    %3113 = vmatpush1.msra.mxu0 0.0
    %3114 = vmatprep.subr.mxu0 0.0
    %3115 = vmatpush1.msra.mxu0 0.0
    %3116 = vmatprep.subr.mxu0 0.0
    %3117 = vmatpush1.msra.mxu0 0.0
    %3118 = vmatprep.subr.mxu0 0.0
    %3119 = vmatpush1.msra.mxu0 0.0
    %3120 = vmatprep.subr.mxu0 0.0
    %3121 = vmatpush1.msra.mxu0 0.0
    %3122 = vmatprep.subr.mxu0 0.0
    %3123 = vmatpush1.msra.mxu0 0.0
    %3124 = vmatprep.subr.mxu0 0.0
    %3125 = vmatpush1.msra.mxu0 0.0
    %3126 = vmatprep.subr.mxu0 0.0
    %3127 = vmatpush1.msra.mxu0 0.0
    %3128 = vmatprep.subr.mxu0 0.0
    %3129 = vmatpush1.msra.mxu0 0.0
    %3130 = vmatprep.subr.mxu0 0.0
    %3131 = vmatpush1.msra.mxu0 0.0
    %3132 = vmatprep.subr.mxu0 0.0
    %3133 = vmatpush1.msra.mxu0 0.0
    %3134 = vmatprep.subr.mxu0 0.0
    %3135 = vmatpush1.msra.mxu0 0.0
    %3136 = vmatprep.subr.mxu0 0.0
    %3137 = vmatpush1.msra.mxu0 0.0
    %3138 = vmatprep.subr.mxu0 0.0
    %3139 = vmatpush1.msra.mxu0 0.0
    %3140 = vmatprep.subr.mxu0 0.0
    %3141 = vmatpush1.msra.mxu0 0.0
    %3142 = vmatprep.subr.mxu0 0.0
    %3143 = vmatpush1.msra.mxu0 0.0
    %3144 = vmatprep.subr.mxu0 0.0
    %3145 = vmatpush1.msra.mxu0 0.0
    %3146 = vmatprep.subr.mxu0 0.0
    %3147 = vmatpush1.msra.mxu0 0.0
    %3148 = vmatprep.subr.mxu0 0.0
    %3149 = vmatpush1.msra.mxu0 0.0
    %3150 = vmatprep.subr.mxu0 0.0
    %3151 = vmatpush1.msra.mxu0 0.0
    %3152 = vmatprep.subr.mxu0 0.0
    %3153 = vmatpush1.msra.mxu0 0.0
    %3154 = vmatprep.mubr.f32.mxu0 0.0
    %v3155 = vand.u32 %v2771, 4294901760
    %v3156 = vsub.f32 %v2771, %v3155
    %v3157 = vand.u32 %v3156, 4294901760
    %3158 = vmatmul.mubr.f32.gmra.mrb[0].mxu0 %v3157
    %v3159 = vpop.f32.mrb[0].mxu0
    %v3160 = vadd.f32 %v3064, %v3159
    %v3161 = vpop.f32.mrb[0].mxu0
    %3162 = vmatprep.mubr.f32.mxu0 0.0
    %v3163 = vand.u32 %v2774, 4294901760
    %v3164 = vsub.f32 %v2774, %v3163
    %v3165 = vand.u32 %v3164, 4294901760
    %3166 = vmatmul.mubr.f32.gmra.mrb[0].mxu0 %v3165
    %v3167 = vpop.f32.mrb[0].mxu0
    %v3168 = vadd.f32 %v3071, %v3167
    %v3169 = vpop.f32.mrb[0].mxu0
    %3170 = vmatprep.mubr.f32.mxu0 0.0
    %v3171 = vand.u32 %v2777, 4294901760
    %v3172 = vsub.f32 %v2777, %v3171
    %v3173 = vand.u32 %v3172, 4294901760
    %3174 = vmatmul.mubr.f32.gmra.mrb[0].mxu0 %v3173
    %v3175 = vpop.f32.mrb[0].mxu0
    %v3176 = vadd.f32 %v3078, %v3175
    %v3177 = vpop.f32.mrb[0].mxu0
    %3178 = vmatprep.mubr.f32.mxu0 0.0
    %v3179 = vand.u32 %v2780, 4294901760
    %v3180 = vsub.f32 %v2780, %v3179
    %v3181 = vand.u32 %v3180, 4294901760
    %3182 = vmatmul.mubr.f32.gmra.mrb[0].mxu0 %v3181
    %v3183 = vpop.f32.mrb[0].mxu0
    %v3184 = vadd.f32 %v3085, %v3183
    %v3185 = vpop.f32.mrb[0].mxu0
    %3186 = vdwg.mxu0
    %3187 = vmatprep.subr.mxu0 0.0
    %v3188 = vand.u32 %v2161, 4294901760
    %v3189 = vsub.f32 %v2161, %v3188
    %v3190 = vand.u32 %v3189, 4294901760
    %3191 = vmatpush1.msra.mxu0 %v3190
    %3192 = vmatprep.subr.mxu0 0.0
    %v3193 = vand.u32 %v2783, 4294901760
    %v3194 = vsub.f32 %v2783, %v3193
    %v3195 = vand.u32 %v3194, 4294901760
    %3196 = vmatpush1.msra.mxu0 %v3195
    %3197 = vmatprep.subr.mxu0 0.0
    %3198 = vmatpush1.msra.mxu0 0.0
    %3199 = vmatprep.subr.mxu0 0.0
    %3200 = vmatpush1.msra.mxu0 0.0
    %3201 = vmatprep.subr.mxu0 0.0
    %3202 = vmatpush1.msra.mxu0 0.0
    %3203 = vmatprep.subr.mxu0 0.0
    %3204 = vmatpush1.msra.mxu0 0.0
    %3205 = vmatprep.subr.mxu0 0.0
    %3206 = vmatpush1.msra.mxu0 0.0
    %3207 = vmatprep.subr.mxu0 0.0
    %3208 = vmatpush1.msra.mxu0 0.0
    %3209 = vmatprep.subr.mxu0 0.0
    %3210 = vmatpush1.msra.mxu0 0.0
    %3211 = vmatprep.subr.mxu0 0.0
    %3212 = vmatpush1.msra.mxu0 0.0
    %3213 = vmatprep.subr.mxu0 0.0
    %3214 = vmatpush1.msra.mxu0 0.0
    %3215 = vmatprep.subr.mxu0 0.0
    %3216 = vmatpush1.msra.mxu0 0.0
    %3217 = vmatprep.subr.mxu0 0.0
    %3218 = vmatpush1.msra.mxu0 0.0
    %3219 = vmatprep.subr.mxu0 0.0
    %3220 = vmatpush1.msra.mxu0 0.0
    %3221 = vmatprep.subr.mxu0 0.0
    %3222 = vmatpush1.msra.mxu0 0.0
    %3223 = vmatprep.subr.mxu0 0.0
    %3224 = vmatpush1.msra.mxu0 0.0
    %3225 = vmatprep.subr.mxu0 0.0
    %3226 = vmatpush1.msra.mxu0 0.0
    %3227 = vmatprep.subr.mxu0 0.0
    %3228 = vmatpush1.msra.mxu0 0.0
    %3229 = vmatprep.subr.mxu0 0.0
    %3230 = vmatpush1.msra.mxu0 0.0
    %3231 = vmatprep.subr.mxu0 0.0
    %3232 = vmatpush1.msra.mxu0 0.0
    %3233 = vmatprep.subr.mxu0 0.0
    %3234 = vmatpush1.msra.mxu0 0.0
    %3235 = vmatprep.subr.mxu0 0.0
    %3236 = vmatpush1.msra.mxu0 0.0
    %3237 = vmatprep.subr.mxu0 0.0
    %3238 = vmatpush1.msra.mxu0 0.0
    %3239 = vmatprep.subr.mxu0 0.0
    %3240 = vmatpush1.msra.mxu0 0.0
    %3241 = vmatprep.subr.mxu0 0.0
    %3242 = vmatpush1.msra.mxu0 0.0
    %3243 = vmatprep.subr.mxu0 0.0
    %3244 = vmatpush1.msra.mxu0 0.0
    %3245 = vmatprep.subr.mxu0 0.0
    %3246 = vmatpush1.msra.mxu0 0.0
    %3247 = vmatprep.subr.mxu0 0.0
    %3248 = vmatpush1.msra.mxu0 0.0
    %3249 = vmatprep.subr.mxu0 0.0
    %3250 = vmatpush1.msra.mxu0 0.0
    %3251 = vmatprep.subr.mxu0 0.0
    %3252 = vmatpush1.msra.mxu0 0.0
    %3253 = vmatprep.subr.mxu0 0.0
    %3254 = vmatpush1.msra.mxu0 0.0
    %3255 = vmatprep.subr.mxu0 0.0
    %3256 = vmatpush1.msra.mxu0 0.0
    %3257 = vmatprep.mubr.f32.mxu0 0.0
    %v3258 = vand.u32 %v2771, 4294901760
    %3259 = vmatmul.mubr.f32.gmra.mrb[0].mxu0 %v3258
    %v3260 = vpop.f32.mrb[0].mxu0
    %v3261 = vadd.f32 %v3160, %v3260
    %v3262 = vpop.f32.mrb[0].mxu0
    %3263 = vmatprep.mubr.f32.mxu0 0.0
    %v3264 = vand.u32 %v2774, 4294901760
    %3265 = vmatmul.mubr.f32.gmra.mrb[0].mxu0 %v3264
    %v3266 = vpop.f32.mrb[0].mxu0
    %v3267 = vadd.f32 %v3168, %v3266
    %v3268 = vpop.f32.mrb[0].mxu0
    %3269 = vmatprep.mubr.f32.mxu0 0.0
    %v3270 = vand.u32 %v2777, 4294901760
    %3271 = vmatmul.mubr.f32.gmra.mrb[0].mxu0 %v3270
    %v3272 = vpop.f32.mrb[0].mxu0
    %v3273 = vadd.f32 %v3176, %v3272
    %v3274 = vpop.f32.mrb[0].mxu0
    %3275 = vmatprep.mubr.f32.mxu0 0.0
    %v3276 = vand.u32 %v2780, 4294901760
    %3277 = vmatmul.mubr.f32.gmra.mrb[0].mxu0 %v3276
    %v3278 = vpop.f32.mrb[0].mxu0
    %v3279 = vadd.f32 %v3184, %v3278
    %v3280 = vpop.f32.mrb[0].mxu0
    %3281 = vdwg.mxu0
    %3282 = vmatprep.subr.mxu0 0.0
    %v3283 = vand.u32 %v2161, 4294901760
    %3284 = vmatpush1.msra.mxu0 %v3283
    %3285 = vmatprep.subr.mxu0 0.0
    %v3286 = vand.u32 %v2783, 4294901760
    %3287 = vmatpush1.msra.mxu0 %v3286
    %3288 = vmatprep.subr.mxu0 0.0
    %3289 = vmatpush1.msra.mxu0 0.0
    %3290 = vmatprep.subr.mxu0 0.0
    %3291 = vmatpush1.msra.mxu0 0.0
    %3292 = vmatprep.subr.mxu0 0.0
    %3293 = vmatpush1.msra.mxu0 0.0
    %3294 = vmatprep.subr.mxu0 0.0
    %3295 = vmatpush1.msra.mxu0 0.0
    %3296 = vmatprep.subr.mxu0 0.0
    %3297 = vmatpush1.msra.mxu0 0.0
    %3298 = vmatprep.subr.mxu0 0.0
    %3299 = vmatpush1.msra.mxu0 0.0
    %3300 = vmatprep.subr.mxu0 0.0
    %3301 = vmatpush1.msra.mxu0 0.0
    %3302 = vmatprep.subr.mxu0 0.0
    %3303 = vmatpush1.msra.mxu0 0.0
    %3304 = vmatprep.subr.mxu0 0.0
    %3305 = vmatpush1.msra.mxu0 0.0
    %3306 = vmatprep.subr.mxu0 0.0
    %3307 = vmatpush1.msra.mxu0 0.0
    %3308 = vmatprep.subr.mxu0 0.0
    %3309 = vmatpush1.msra.mxu0 0.0
    %3310 = vmatprep.subr.mxu0 0.0
    %3311 = vmatpush1.msra.mxu0 0.0
    %3312 = vmatprep.subr.mxu0 0.0
    %3313 = vmatpush1.msra.mxu0 0.0
    %3314 = vmatprep.subr.mxu0 0.0
    %3315 = vmatpush1.msra.mxu0 0.0
    %3316 = vmatprep.subr.mxu0 0.0
    %3317 = vmatpush1.msra.mxu0 0.0
    %3318 = vmatprep.subr.mxu0 0.0
    %3319 = vmatpush1.msra.mxu0 0.0
    %3320 = vmatprep.subr.mxu0 0.0
    %3321 = vmatpush1.msra.mxu0 0.0
    %3322 = vmatprep.subr.mxu0 0.0
    %3323 = vmatpush1.msra.mxu0 0.0
    %3324 = vmatprep.subr.mxu0 0.0
    %3325 = vmatpush1.msra.mxu0 0.0
    %3326 = vmatprep.subr.mxu0 0.0
    %3327 = vmatpush1.msra.mxu0 0.0
    %3328 = vmatprep.subr.mxu0 0.0
    %3329 = vmatpush1.msra.mxu0 0.0
    %3330 = vmatprep.subr.mxu0 0.0
    %3331 = vmatpush1.msra.mxu0 0.0
    %3332 = vmatprep.subr.mxu0 0.0
    %3333 = vmatpush1.msra.mxu0 0.0
    %3334 = vmatprep.subr.mxu0 0.0
    %3335 = vmatpush1.msra.mxu0 0.0
    %3336 = vmatprep.subr.mxu0 0.0
    %3337 = vmatpush1.msra.mxu0 0.0
    %3338 = vmatprep.subr.mxu0 0.0
    %3339 = vmatpush1.msra.mxu0 0.0
    %3340 = vmatprep.subr.mxu0 0.0
    %3341 = vmatpush1.msra.mxu0 0.0
    %3342 = vmatprep.subr.mxu0 0.0
    %3343 = vmatpush1.msra.mxu0 0.0
    %3344 = vmatprep.subr.mxu0 0.0
    %3345 = vmatpush1.msra.mxu0 0.0
    %3346 = vmatprep.subr.mxu0 0.0
    %3347 = vmatpush1.msra.mxu0 0.0
    %3348 = vmatprep.mubr.f32.mxu0 0.0
    %v3349 = vand.u32 %v2771, 4294901760
    %3350 = vmatmul.mubr.f32.gmra.mrb[0].mxu0 %v3349
    %v3351 = vpop.f32.mrb[0].mxu0
    %v3352 = vadd.f32 %v3261, %v3351
    %v3353 = vpop.f32.mrb[0].mxu0
    %3354 = vmatprep.mubr.f32.mxu0 0.0
    %v3355 = vand.u32 %v2774, 4294901760
    %3356 = vmatmul.mubr.f32.gmra.mrb[0].mxu0 %v3355
    %v3357 = vpop.f32.mrb[0].mxu0
    %v3358 = vadd.f32 %v3267, %v3357
    %v3359 = vpop.f32.mrb[0].mxu0
    %3360 = vmatprep.mubr.f32.mxu0 0.0
    %v3361 = vand.u32 %v2777, 4294901760
    %3362 = vmatmul.mubr.f32.gmra.mrb[0].mxu0 %v3361
    %v3363 = vpop.f32.mrb[0].mxu0
    %v3364 = vadd.f32 %v3273, %v3363
    %v3365 = vpop.f32.mrb[0].mxu0
    %3366 = vmatprep.mubr.f32.mxu0 0.0
    %v3367 = vand.u32 %v2780, 4294901760
    %3368 = vmatmul.mubr.f32.gmra.mrb[0].mxu0 %v3367
    %v3369 = vpop.f32.mrb[0].mxu0
    %v3370 = vadd.f32 %v3279, %v3369
    %v3371 = vpop.f32.mrb[0].mxu0
    %3372 = vdwg.mxu0
    %v3374 = vsel %vm2165, %v73, 0
    %v3377 = vsel %vm2165, %v74, 0
    %v3380 = vsel %vm2165, %v75, 0
    %v3383 = vsel %vm2165, %v76, 0
    %3385 = vmatprep.subr.mxu0 0.0
    %v3386 = vand.u32 %v2161, 4294901760
    %3387 = vmatpush1.msra.mxu0 %v3386
    %3388 = vmatprep.subr.mxu0 0.0
    %v3389 = vand.u32 %v2783, 4294901760
    %3390 = vmatpush1.msra.mxu0 %v3389
    %3391 = vmatprep.subr.mxu0 0.0
    %3392 = vmatpush1.msra.mxu0 0.0
    %3393 = vmatprep.subr.mxu0 0.0
    %3394 = vmatpush1.msra.mxu0 0.0
    %3395 = vmatprep.subr.mxu0 0.0
    %3396 = vmatpush1.msra.mxu0 0.0
    %3397 = vmatprep.subr.mxu0 0.0
    %3398 = vmatpush1.msra.mxu0 0.0
    %3399 = vmatprep.subr.mxu0 0.0
    %3400 = vmatpush1.msra.mxu0 0.0
    %3401 = vmatprep.subr.mxu0 0.0
    %3402 = vmatpush1.msra.mxu0 0.0
    %3403 = vmatprep.subr.mxu0 0.0
    %3404 = vmatpush1.msra.mxu0 0.0
    %3405 = vmatprep.subr.mxu0 0.0
    %3406 = vmatpush1.msra.mxu0 0.0
    %3407 = vmatprep.subr.mxu0 0.0
    %3408 = vmatpush1.msra.mxu0 0.0
    %3409 = vmatprep.subr.mxu0 0.0
    %3410 = vmatpush1.msra.mxu0 0.0
    %3411 = vmatprep.subr.mxu0 0.0
    %3412 = vmatpush1.msra.mxu0 0.0
    %3413 = vmatprep.subr.mxu0 0.0
    %3414 = vmatpush1.msra.mxu0 0.0
    %3415 = vmatprep.subr.mxu0 0.0
    %3416 = vmatpush1.msra.mxu0 0.0
    %3417 = vmatprep.subr.mxu0 0.0
    %3418 = vmatpush1.msra.mxu0 0.0
    %3419 = vmatprep.subr.mxu0 0.0
    %3420 = vmatpush1.msra.mxu0 0.0
    %3421 = vmatprep.subr.mxu0 0.0
    %3422 = vmatpush1.msra.mxu0 0.0
    %3423 = vmatprep.subr.mxu0 0.0
    %3424 = vmatpush1.msra.mxu0 0.0
    %3425 = vmatprep.subr.mxu0 0.0
    %3426 = vmatpush1.msra.mxu0 0.0
    %3427 = vmatprep.subr.mxu0 0.0
    %3428 = vmatpush1.msra.mxu0 0.0
    %3429 = vmatprep.subr.mxu0 0.0
    %3430 = vmatpush1.msra.mxu0 0.0
    %3431 = vmatprep.subr.mxu0 0.0
    %3432 = vmatpush1.msra.mxu0 0.0
    %3433 = vmatprep.subr.mxu0 0.0
    %3434 = vmatpush1.msra.mxu0 0.0
    %3435 = vmatprep.subr.mxu0 0.0
    %3436 = vmatpush1.msra.mxu0 0.0
    %3437 = vmatprep.subr.mxu0 0.0
    %3438 = vmatpush1.msra.mxu0 0.0
    %3439 = vmatprep.subr.mxu0 0.0
    %3440 = vmatpush1.msra.mxu0 0.0
    %3441 = vmatprep.subr.mxu0 0.0
    %3442 = vmatpush1.msra.mxu0 0.0
    %3443 = vmatprep.subr.mxu0 0.0
    %3444 = vmatpush1.msra.mxu0 0.0
    %3445 = vmatprep.subr.mxu0 0.0
    %3446 = vmatpush1.msra.mxu0 0.0
    %3447 = vmatprep.subr.mxu0 0.0
    %3448 = vmatpush1.msra.mxu0 0.0
    %3449 = vmatprep.subr.mxu0 0.0
    %3450 = vmatpush1.msra.mxu0 0.0
    %3451 = vmatprep.mubr.f32.mxu0 0.0
    %v3452 = vand.u32 %v3374, 4294901760
    %v3453 = vsub.f32 %v3374, %v3452
    %v3454 = vand.u32 %v3453, 4294901760
    %v3455 = vsub.f32 %v3453, %v3454
    %v3456 = vand.u32 %v3455, 4294901760
    %3457 = vmatmul.mubr.f32.gmra.mrb[0].mxu0 %v3456
    %v3458 = vpop.f32.mrb[0].mxu0
    %v3459 = vadd.f32 0.0, %v3458
    %v3460 = vpop.f32.mrb[0].mxu0
    %3461 = vmatprep.mubr.f32.mxu0 0.0
    %v3462 = vand.u32 %v3377, 4294901760
    %v3463 = vsub.f32 %v3377, %v3462
    %v3464 = vand.u32 %v3463, 4294901760
    %v3465 = vsub.f32 %v3463, %v3464
    %v3466 = vand.u32 %v3465, 4294901760
    %3467 = vmatmul.mubr.f32.gmra.mrb[0].mxu0 %v3466
    %v3468 = vpop.f32.mrb[0].mxu0
    %v3469 = vadd.f32 0.0, %v3468
    %v3470 = vpop.f32.mrb[0].mxu0
    %3471 = vmatprep.mubr.f32.mxu0 0.0
    %v3472 = vand.u32 %v3380, 4294901760
    %v3473 = vsub.f32 %v3380, %v3472
    %v3474 = vand.u32 %v3473, 4294901760
    %v3475 = vsub.f32 %v3473, %v3474
    %v3476 = vand.u32 %v3475, 4294901760
    %3477 = vmatmul.mubr.f32.gmra.mrb[0].mxu0 %v3476
    %v3478 = vpop.f32.mrb[0].mxu0
    %v3479 = vadd.f32 0.0, %v3478
    %v3480 = vpop.f32.mrb[0].mxu0
    %3481 = vmatprep.mubr.f32.mxu0 0.0
    %v3482 = vand.u32 %v3383, 4294901760
    %v3483 = vsub.f32 %v3383, %v3482
    %v3484 = vand.u32 %v3483, 4294901760
    %v3485 = vsub.f32 %v3483, %v3484
    %v3486 = vand.u32 %v3485, 4294901760
    %3487 = vmatmul.mubr.f32.gmra.mrb[0].mxu0 %v3486
    %v3488 = vpop.f32.mrb[0].mxu0
    %v3489 = vadd.f32 0.0, %v3488
    %v3490 = vpop.f32.mrb[0].mxu0
    %3491 = vdwg.mxu0
    %3492 = vmatprep.subr.mxu0 0.0
    %v3493 = vand.u32 %v2161, 4294901760
    %v3494 = vsub.f32 %v2161, %v3493
    %v3495 = vand.u32 %v3494, 4294901760
    %v3496 = vsub.f32 %v3494, %v3495
    %v3497 = vand.u32 %v3496, 4294901760
    %3498 = vmatpush1.msra.mxu0 %v3497
    %3499 = vmatprep.subr.mxu0 0.0
    %v3500 = vand.u32 %v2783, 4294901760
    %v3501 = vsub.f32 %v2783, %v3500
    %v3502 = vand.u32 %v3501, 4294901760
    %v3503 = vsub.f32 %v3501, %v3502
    %v3504 = vand.u32 %v3503, 4294901760
    %3505 = vmatpush1.msra.mxu0 %v3504
    %3506 = vmatprep.subr.mxu0 0.0
    %3507 = vmatpush1.msra.mxu0 0.0
    %3508 = vmatprep.subr.mxu0 0.0
    %3509 = vmatpush1.msra.mxu0 0.0
    %3510 = vmatprep.subr.mxu0 0.0
    %3511 = vmatpush1.msra.mxu0 0.0
    %3512 = vmatprep.subr.mxu0 0.0
    %3513 = vmatpush1.msra.mxu0 0.0
    %3514 = vmatprep.subr.mxu0 0.0
    %3515 = vmatpush1.msra.mxu0 0.0
    %3516 = vmatprep.subr.mxu0 0.0
    %3517 = vmatpush1.msra.mxu0 0.0
    %3518 = vmatprep.subr.mxu0 0.0
    %3519 = vmatpush1.msra.mxu0 0.0
    %3520 = vmatprep.subr.mxu0 0.0
    %3521 = vmatpush1.msra.mxu0 0.0
    %3522 = vmatprep.subr.mxu0 0.0
    %3523 = vmatpush1.msra.mxu0 0.0
    %3524 = vmatprep.subr.mxu0 0.0
    %3525 = vmatpush1.msra.mxu0 0.0
    %3526 = vmatprep.subr.mxu0 0.0
    %3527 = vmatpush1.msra.mxu0 0.0
    %3528 = vmatprep.subr.mxu0 0.0
    %3529 = vmatpush1.msra.mxu0 0.0
    %3530 = vmatprep.subr.mxu0 0.0
    %3531 = vmatpush1.msra.mxu0 0.0
    %3532 = vmatprep.subr.mxu0 0.0
    %3533 = vmatpush1.msra.mxu0 0.0
    %3534 = vmatprep.subr.mxu0 0.0
    %3535 = vmatpush1.msra.mxu0 0.0
    %3536 = vmatprep.subr.mxu0 0.0
    %3537 = vmatpush1.msra.mxu0 0.0
    %3538 = vmatprep.subr.mxu0 0.0
    %3539 = vmatpush1.msra.mxu0 0.0
    %3540 = vmatprep.subr.mxu0 0.0
    %3541 = vmatpush1.msra.mxu0 0.0
    %3542 = vmatprep.subr.mxu0 0.0
    %3543 = vmatpush1.msra.mxu0 0.0
    %3544 = vmatprep.subr.mxu0 0.0
    %3545 = vmatpush1.msra.mxu0 0.0
    %3546 = vmatprep.subr.mxu0 0.0
    %3547 = vmatpush1.msra.mxu0 0.0
    %3548 = vmatprep.subr.mxu0 0.0
    %3549 = vmatpush1.msra.mxu0 0.0
    %3550 = vmatprep.subr.mxu0 0.0
    %3551 = vmatpush1.msra.mxu0 0.0
    %3552 = vmatprep.subr.mxu0 0.0
    %3553 = vmatpush1.msra.mxu0 0.0
    %3554 = vmatprep.subr.mxu0 0.0
    %3555 = vmatpush1.msra.mxu0 0.0
    %3556 = vmatprep.subr.mxu0 0.0
    %3557 = vmatpush1.msra.mxu0 0.0
    %3558 = vmatprep.subr.mxu0 0.0
    %3559 = vmatpush1.msra.mxu0 0.0
    %3560 = vmatprep.subr.mxu0 0.0
    %3561 = vmatpush1.msra.mxu0 0.0
    %3562 = vmatprep.subr.mxu0 0.0
    %3563 = vmatpush1.msra.mxu0 0.0
    %3564 = vmatprep.subr.mxu0 0.0
    %3565 = vmatpush1.msra.mxu0 0.0
    %3566 = vmatprep.mubr.f32.mxu0 0.0
    %v3567 = vand.u32 %v3374, 4294901760
    %3568 = vmatmul.mubr.f32.gmra.mrb[0].mxu0 %v3567
    %v3569 = vpop.f32.mrb[0].mxu0
    %v3570 = vadd.f32 %v3459, %v3569
    %v3571 = vpop.f32.mrb[0].mxu0
    %3572 = vmatprep.mubr.f32.mxu0 0.0
    %v3573 = vand.u32 %v3377, 4294901760
    %3574 = vmatmul.mubr.f32.gmra.mrb[0].mxu0 %v3573
    %v3575 = vpop.f32.mrb[0].mxu0
    %v3576 = vadd.f32 %v3469, %v3575
    %v3577 = vpop.f32.mrb[0].mxu0
    %3578 = vmatprep.mubr.f32.mxu0 0.0
    %v3579 = vand.u32 %v3380, 4294901760
    %3580 = vmatmul.mubr.f32.gmra.mrb[0].mxu0 %v3579
    %v3581 = vpop.f32.mrb[0].mxu0
    %v3582 = vadd.f32 %v3479, %v3581
    %v3583 = vpop.f32.mrb[0].mxu0
    %3584 = vmatprep.mubr.f32.mxu0 0.0
    %v3585 = vand.u32 %v3383, 4294901760
    %3586 = vmatmul.mubr.f32.gmra.mrb[0].mxu0 %v3585
    %v3587 = vpop.f32.mrb[0].mxu0
    %v3588 = vadd.f32 %v3489, %v3587
    %v3589 = vpop.f32.mrb[0].mxu0
    %3590 = vdwg.mxu0
    %3591 = vmatprep.subr.mxu0 0.0
    %v3592 = vand.u32 %v2161, 4294901760
    %v3593 = vsub.f32 %v2161, %v3592
    %3594 = vmatpush1.msra.mxu0 %v3593
    %3595 = vmatprep.subr.mxu0 0.0
    %v3596 = vand.u32 %v2783, 4294901760
    %v3597 = vsub.f32 %v2783, %v3596
    %3598 = vmatpush1.msra.mxu0 %v3597
    %3599 = vmatprep.subr.mxu0 0.0
    %3600 = vmatpush1.msra.mxu0 0.0
    %3601 = vmatprep.subr.mxu0 0.0
    %3602 = vmatpush1.msra.mxu0 0.0
    %3603 = vmatprep.subr.mxu0 0.0
    %3604 = vmatpush1.msra.mxu0 0.0
    %3605 = vmatprep.subr.mxu0 0.0
    %3606 = vmatpush1.msra.mxu0 0.0
    %3607 = vmatprep.subr.mxu0 0.0
    %3608 = vmatpush1.msra.mxu0 0.0
    %3609 = vmatprep.subr.mxu0 0.0
    %3610 = vmatpush1.msra.mxu0 0.0
    %3611 = vmatprep.subr.mxu0 0.0
    %3612 = vmatpush1.msra.mxu0 0.0
    %3613 = vmatprep.subr.mxu0 0.0
    %3614 = vmatpush1.msra.mxu0 0.0
    %3615 = vmatprep.subr.mxu0 0.0
    %3616 = vmatpush1.msra.mxu0 0.0
    %3617 = vmatprep.subr.mxu0 0.0
    %3618 = vmatpush1.msra.mxu0 0.0
    %3619 = vmatprep.subr.mxu0 0.0
    %3620 = vmatpush1.msra.mxu0 0.0
    %3621 = vmatprep.subr.mxu0 0.0
    %3622 = vmatpush1.msra.mxu0 0.0
    %3623 = vmatprep.subr.mxu0 0.0
    %3624 = vmatpush1.msra.mxu0 0.0
    %3625 = vmatprep.subr.mxu0 0.0
    %3626 = vmatpush1.msra.mxu0 0.0
    %3627 = vmatprep.subr.mxu0 0.0
    %3628 = vmatpush1.msra.mxu0 0.0
    %3629 = vmatprep.subr.mxu0 0.0
    %3630 = vmatpush1.msra.mxu0 0.0
    %3631 = vmatprep.subr.mxu0 0.0
    %3632 = vmatpush1.msra.mxu0 0.0
    %3633 = vmatprep.subr.mxu0 0.0
    %3634 = vmatpush1.msra.mxu0 0.0
    %3635 = vmatprep.subr.mxu0 0.0
    %3636 = vmatpush1.msra.mxu0 0.0
    %3637 = vmatprep.subr.mxu0 0.0
    %3638 = vmatpush1.msra.mxu0 0.0
    %3639 = vmatprep.subr.mxu0 0.0
    %3640 = vmatpush1.msra.mxu0 0.0
    %3641 = vmatprep.subr.mxu0 0.0
    %3642 = vmatpush1.msra.mxu0 0.0
    %3643 = vmatprep.subr.mxu0 0.0
    %3644 = vmatpush1.msra.mxu0 0.0
    %3645 = vmatprep.subr.mxu0 0.0
    %3646 = vmatpush1.msra.mxu0 0.0
    %3647 = vmatprep.subr.mxu0 0.0
    %3648 = vmatpush1.msra.mxu0 0.0
    %3649 = vmatprep.subr.mxu0 0.0
    %3650 = vmatpush1.msra.mxu0 0.0
    %3651 = vmatprep.subr.mxu0 0.0
    %3652 = vmatpush1.msra.mxu0 0.0
    %3653 = vmatprep.subr.mxu0 0.0
    %3654 = vmatpush1.msra.mxu0 0.0
    %3655 = vmatprep.subr.mxu0 0.0
    %3656 = vmatpush1.msra.mxu0 0.0
    %3657 = vmatprep.subr.mxu0 0.0
    %3658 = vmatpush1.msra.mxu0 0.0
    %3659 = vmatprep.mubr.f32.mxu0 0.0
    %v3660 = vand.u32 %v3374, 4294901760
    %v3661 = vsub.f32 %v3374, %v3660
    %3662 = vmatmul.mubr.f32.gmra.mrb[0].mxu0 %v3661
    %v3663 = vpop.f32.mrb[0].mxu0
    %v3664 = vadd.f32 %v3570, %v3663
    %v3665 = vpop.f32.mrb[0].mxu0
    %3666 = vmatprep.mubr.f32.mxu0 0.0
    %v3667 = vand.u32 %v3377, 4294901760
    %v3668 = vsub.f32 %v3377, %v3667
    %3669 = vmatmul.mubr.f32.gmra.mrb[0].mxu0 %v3668
    %v3670 = vpop.f32.mrb[0].mxu0
    %v3671 = vadd.f32 %v3576, %v3670
    %v3672 = vpop.f32.mrb[0].mxu0
    %3673 = vmatprep.mubr.f32.mxu0 0.0
    %v3674 = vand.u32 %v3380, 4294901760
    %v3675 = vsub.f32 %v3380, %v3674
    %3676 = vmatmul.mubr.f32.gmra.mrb[0].mxu0 %v3675
    %v3677 = vpop.f32.mrb[0].mxu0
    %v3678 = vadd.f32 %v3582, %v3677
    %v3679 = vpop.f32.mrb[0].mxu0
    %3680 = vmatprep.mubr.f32.mxu0 0.0
    %v3681 = vand.u32 %v3383, 4294901760
    %v3682 = vsub.f32 %v3383, %v3681
    %3683 = vmatmul.mubr.f32.gmra.mrb[0].mxu0 %v3682
    %v3684 = vpop.f32.mrb[0].mxu0
    %v3685 = vadd.f32 %v3588, %v3684
    %v3686 = vpop.f32.mrb[0].mxu0
    %3687 = vdwg.mxu0
    %3688 = vmatprep.subr.mxu0 0.0
    %v3689 = vand.u32 %v2161, 4294901760
    %3690 = vmatpush1.msra.mxu0 %v3689
    %3691 = vmatprep.subr.mxu0 0.0
    %v3692 = vand.u32 %v2783, 4294901760
    %3693 = vmatpush1.msra.mxu0 %v3692
    %3694 = vmatprep.subr.mxu0 0.0
    %3695 = vmatpush1.msra.mxu0 0.0
    %3696 = vmatprep.subr.mxu0 0.0
    %3697 = vmatpush1.msra.mxu0 0.0
    %3698 = vmatprep.subr.mxu0 0.0
    %3699 = vmatpush1.msra.mxu0 0.0
    %3700 = vmatprep.subr.mxu0 0.0
    %3701 = vmatpush1.msra.mxu0 0.0
    %3702 = vmatprep.subr.mxu0 0.0
    %3703 = vmatpush1.msra.mxu0 0.0
    %3704 = vmatprep.subr.mxu0 0.0
    %3705 = vmatpush1.msra.mxu0 0.0
    %3706 = vmatprep.subr.mxu0 0.0
    %3707 = vmatpush1.msra.mxu0 0.0
    %3708 = vmatprep.subr.mxu0 0.0
    %3709 = vmatpush1.msra.mxu0 0.0
    %3710 = vmatprep.subr.mxu0 0.0
    %3711 = vmatpush1.msra.mxu0 0.0
    %3712 = vmatprep.subr.mxu0 0.0
    %3713 = vmatpush1.msra.mxu0 0.0
    %3714 = vmatprep.subr.mxu0 0.0
    %3715 = vmatpush1.msra.mxu0 0.0
    %3716 = vmatprep.subr.mxu0 0.0
    %3717 = vmatpush1.msra.mxu0 0.0
    %3718 = vmatprep.subr.mxu0 0.0
    %3719 = vmatpush1.msra.mxu0 0.0
    %3720 = vmatprep.subr.mxu0 0.0
    %3721 = vmatpush1.msra.mxu0 0.0
    %3722 = vmatprep.subr.mxu0 0.0
    %3723 = vmatpush1.msra.mxu0 0.0
    %3724 = vmatprep.subr.mxu0 0.0
    %3725 = vmatpush1.msra.mxu0 0.0
    %3726 = vmatprep.subr.mxu0 0.0
    %3727 = vmatpush1.msra.mxu0 0.0
    %3728 = vmatprep.subr.mxu0 0.0
    %3729 = vmatpush1.msra.mxu0 0.0
    %3730 = vmatprep.subr.mxu0 0.0
    %3731 = vmatpush1.msra.mxu0 0.0
    %3732 = vmatprep.subr.mxu0 0.0
    %3733 = vmatpush1.msra.mxu0 0.0
    %3734 = vmatprep.subr.mxu0 0.0
    %3735 = vmatpush1.msra.mxu0 0.0
    %3736 = vmatprep.subr.mxu0 0.0
    %3737 = vmatpush1.msra.mxu0 0.0
    %3738 = vmatprep.subr.mxu0 0.0
    %3739 = vmatpush1.msra.mxu0 0.0
    %3740 = vmatprep.subr.mxu0 0.0
    %3741 = vmatpush1.msra.mxu0 0.0
    %3742 = vmatprep.subr.mxu0 0.0
    %3743 = vmatpush1.msra.mxu0 0.0
    %3744 = vmatprep.subr.mxu0 0.0
    %3745 = vmatpush1.msra.mxu0 0.0
    %3746 = vmatprep.subr.mxu0 0.0
    %3747 = vmatpush1.msra.mxu0 0.0
    %3748 = vmatprep.subr.mxu0 0.0
    %3749 = vmatpush1.msra.mxu0 0.0
    %3750 = vmatprep.subr.mxu0 0.0
    %3751 = vmatpush1.msra.mxu0 0.0
    %3752 = vmatprep.subr.mxu0 0.0
    %3753 = vmatpush1.msra.mxu0 0.0
    %3754 = vmatprep.mubr.f32.mxu0 0.0
    %v3755 = vand.u32 %v3374, 4294901760
    %v3756 = vsub.f32 %v3374, %v3755
    %v3757 = vand.u32 %v3756, 4294901760
    %3758 = vmatmul.mubr.f32.gmra.mrb[0].mxu0 %v3757
    %v3759 = vpop.f32.mrb[0].mxu0
    %v3760 = vadd.f32 %v3664, %v3759
    %v3761 = vpop.f32.mrb[0].mxu0
    %3762 = vmatprep.mubr.f32.mxu0 0.0
    %v3763 = vand.u32 %v3377, 4294901760
    %v3764 = vsub.f32 %v3377, %v3763
    %v3765 = vand.u32 %v3764, 4294901760
    %3766 = vmatmul.mubr.f32.gmra.mrb[0].mxu0 %v3765
    %v3767 = vpop.f32.mrb[0].mxu0
    %v3768 = vadd.f32 %v3671, %v3767
    %v3769 = vpop.f32.mrb[0].mxu0
    %3770 = vmatprep.mubr.f32.mxu0 0.0
    %v3771 = vand.u32 %v3380, 4294901760
    %v3772 = vsub.f32 %v3380, %v3771
    %v3773 = vand.u32 %v3772, 4294901760
    %3774 = vmatmul.mubr.f32.gmra.mrb[0].mxu0 %v3773
    %v3775 = vpop.f32.mrb[0].mxu0
    %v3776 = vadd.f32 %v3678, %v3775
    %v3777 = vpop.f32.mrb[0].mxu0
    %3778 = vmatprep.mubr.f32.mxu0 0.0
    %v3779 = vand.u32 %v3383, 4294901760
    %v3780 = vsub.f32 %v3383, %v3779
    %v3781 = vand.u32 %v3780, 4294901760
    %3782 = vmatmul.mubr.f32.gmra.mrb[0].mxu0 %v3781
    %v3783 = vpop.f32.mrb[0].mxu0
    %v3784 = vadd.f32 %v3685, %v3783
    %v3785 = vpop.f32.mrb[0].mxu0
    %3786 = vdwg.mxu0
    %3787 = vmatprep.subr.mxu0 0.0
    %v3788 = vand.u32 %v2161, 4294901760
    %v3789 = vsub.f32 %v2161, %v3788
    %v3790 = vand.u32 %v3789, 4294901760
    %3791 = vmatpush1.msra.mxu0 %v3790
    %3792 = vmatprep.subr.mxu0 0.0
    %v3793 = vand.u32 %v2783, 4294901760
    %v3794 = vsub.f32 %v2783, %v3793
    %v3795 = vand.u32 %v3794, 4294901760
    %3796 = vmatpush1.msra.mxu0 %v3795
    %3797 = vmatprep.subr.mxu0 0.0
    %3798 = vmatpush1.msra.mxu0 0.0
    %3799 = vmatprep.subr.mxu0 0.0
    %3800 = vmatpush1.msra.mxu0 0.0
    %3801 = vmatprep.subr.mxu0 0.0
    %3802 = vmatpush1.msra.mxu0 0.0
    %3803 = vmatprep.subr.mxu0 0.0
    %3804 = vmatpush1.msra.mxu0 0.0
    %3805 = vmatprep.subr.mxu0 0.0
    %3806 = vmatpush1.msra.mxu0 0.0
    %3807 = vmatprep.subr.mxu0 0.0
    %3808 = vmatpush1.msra.mxu0 0.0
    %3809 = vmatprep.subr.mxu0 0.0
    %3810 = vmatpush1.msra.mxu0 0.0
    %3811 = vmatprep.subr.mxu0 0.0
    %3812 = vmatpush1.msra.mxu0 0.0
    %3813 = vmatprep.subr.mxu0 0.0
    %3814 = vmatpush1.msra.mxu0 0.0
    %3815 = vmatprep.subr.mxu0 0.0
    %3816 = vmatpush1.msra.mxu0 0.0
    %3817 = vmatprep.subr.mxu0 0.0
    %3818 = vmatpush1.msra.mxu0 0.0
    %3819 = vmatprep.subr.mxu0 0.0
    %3820 = vmatpush1.msra.mxu0 0.0
    %3821 = vmatprep.subr.mxu0 0.0
    %3822 = vmatpush1.msra.mxu0 0.0
    %3823 = vmatprep.subr.mxu0 0.0
    %3824 = vmatpush1.msra.mxu0 0.0
    %3825 = vmatprep.subr.mxu0 0.0
    %3826 = vmatpush1.msra.mxu0 0.0
    %3827 = vmatprep.subr.mxu0 0.0
    %3828 = vmatpush1.msra.mxu0 0.0
    %3829 = vmatprep.subr.mxu0 0.0
    %3830 = vmatpush1.msra.mxu0 0.0
    %3831 = vmatprep.subr.mxu0 0.0
    %3832 = vmatpush1.msra.mxu0 0.0
    %3833 = vmatprep.subr.mxu0 0.0
    %3834 = vmatpush1.msra.mxu0 0.0
    %3835 = vmatprep.subr.mxu0 0.0
    %3836 = vmatpush1.msra.mxu0 0.0
    %3837 = vmatprep.subr.mxu0 0.0
    %3838 = vmatpush1.msra.mxu0 0.0
    %3839 = vmatprep.subr.mxu0 0.0
    %3840 = vmatpush1.msra.mxu0 0.0
    %3841 = vmatprep.subr.mxu0 0.0
    %3842 = vmatpush1.msra.mxu0 0.0
    %3843 = vmatprep.subr.mxu0 0.0
    %3844 = vmatpush1.msra.mxu0 0.0
    %3845 = vmatprep.subr.mxu0 0.0
    %3846 = vmatpush1.msra.mxu0 0.0
    %3847 = vmatprep.subr.mxu0 0.0
    %3848 = vmatpush1.msra.mxu0 0.0
    %3849 = vmatprep.subr.mxu0 0.0
    %3850 = vmatpush1.msra.mxu0 0.0
    %3851 = vmatprep.subr.mxu0 0.0
    %3852 = vmatpush1.msra.mxu0 0.0
    %3853 = vmatprep.subr.mxu0 0.0
    %3854 = vmatpush1.msra.mxu0 0.0
    %3855 = vmatprep.subr.mxu0 0.0
    %3856 = vmatpush1.msra.mxu0 0.0
    %3857 = vmatprep.mubr.f32.mxu0 0.0
    %v3858 = vand.u32 %v3374, 4294901760
    %3859 = vmatmul.mubr.f32.gmra.mrb[0].mxu0 %v3858
    %v3860 = vpop.f32.mrb[0].mxu0
    %v3861 = vadd.f32 %v3760, %v3860
    %v3862 = vpop.f32.mrb[0].mxu0
    %3863 = vmatprep.mubr.f32.mxu0 0.0
    %v3864 = vand.u32 %v3377, 4294901760
    %3865 = vmatmul.mubr.f32.gmra.mrb[0].mxu0 %v3864
    %v3866 = vpop.f32.mrb[0].mxu0
    %v3867 = vadd.f32 %v3768, %v3866
    %v3868 = vpop.f32.mrb[0].mxu0
    %3869 = vmatprep.mubr.f32.mxu0 0.0
    %v3870 = vand.u32 %v3380, 4294901760
    %3871 = vmatmul.mubr.f32.gmra.mrb[0].mxu0 %v3870
    %v3872 = vpop.f32.mrb[0].mxu0
    %v3873 = vadd.f32 %v3776, %v3872
    %v3874 = vpop.f32.mrb[0].mxu0
    %3875 = vmatprep.mubr.f32.mxu0 0.0
    %v3876 = vand.u32 %v3383, 4294901760
    %3877 = vmatmul.mubr.f32.gmra.mrb[0].mxu0 %v3876
    %v3878 = vpop.f32.mrb[0].mxu0
    %v3879 = vadd.f32 %v3784, %v3878
    %v3880 = vpop.f32.mrb[0].mxu0
    %3881 = vdwg.mxu0
    %3882 = vmatprep.subr.mxu0 0.0
    %v3883 = vand.u32 %v2161, 4294901760
    %3884 = vmatpush1.msra.mxu0 %v3883
    %3885 = vmatprep.subr.mxu0 0.0
    %v3886 = vand.u32 %v2783, 4294901760
    %3887 = vmatpush1.msra.mxu0 %v3886
    %3888 = vmatprep.subr.mxu0 0.0
    %3889 = vmatpush1.msra.mxu0 0.0
    %3890 = vmatprep.subr.mxu0 0.0
    %3891 = vmatpush1.msra.mxu0 0.0
    %3892 = vmatprep.subr.mxu0 0.0
    %3893 = vmatpush1.msra.mxu0 0.0
    %3894 = vmatprep.subr.mxu0 0.0
    %3895 = vmatpush1.msra.mxu0 0.0
    %3896 = vmatprep.subr.mxu0 0.0
    %3897 = vmatpush1.msra.mxu0 0.0
    %3898 = vmatprep.subr.mxu0 0.0
    %3899 = vmatpush1.msra.mxu0 0.0
    %3900 = vmatprep.subr.mxu0 0.0
    %3901 = vmatpush1.msra.mxu0 0.0
    %3902 = vmatprep.subr.mxu0 0.0
    %3903 = vmatpush1.msra.mxu0 0.0
    %3904 = vmatprep.subr.mxu0 0.0
    %3905 = vmatpush1.msra.mxu0 0.0
    %3906 = vmatprep.subr.mxu0 0.0
    %3907 = vmatpush1.msra.mxu0 0.0
    %3908 = vmatprep.subr.mxu0 0.0
    %3909 = vmatpush1.msra.mxu0 0.0
    %3910 = vmatprep.subr.mxu0 0.0
    %3911 = vmatpush1.msra.mxu0 0.0
    %3912 = vmatprep.subr.mxu0 0.0
    %3913 = vmatpush1.msra.mxu0 0.0
    %3914 = vmatprep.subr.mxu0 0.0
    %3915 = vmatpush1.msra.mxu0 0.0
    %3916 = vmatprep.subr.mxu0 0.0
    %3917 = vmatpush1.msra.mxu0 0.0
    %3918 = vmatprep.subr.mxu0 0.0
    %3919 = vmatpush1.msra.mxu0 0.0
    %3920 = vmatprep.subr.mxu0 0.0
    %3921 = vmatpush1.msra.mxu0 0.0
    %3922 = vmatprep.subr.mxu0 0.0
    %3923 = vmatpush1.msra.mxu0 0.0
    %3924 = vmatprep.subr.mxu0 0.0
    %3925 = vmatpush1.msra.mxu0 0.0
    %3926 = vmatprep.subr.mxu0 0.0
    %3927 = vmatpush1.msra.mxu0 0.0
    %3928 = vmatprep.subr.mxu0 0.0
    %3929 = vmatpush1.msra.mxu0 0.0
    %3930 = vmatprep.subr.mxu0 0.0
    %3931 = vmatpush1.msra.mxu0 0.0
    %3932 = vmatprep.subr.mxu0 0.0
    %3933 = vmatpush1.msra.mxu0 0.0
    %3934 = vmatprep.subr.mxu0 0.0
    %3935 = vmatpush1.msra.mxu0 0.0
    %3936 = vmatprep.subr.mxu0 0.0
    %3937 = vmatpush1.msra.mxu0 0.0
    %3938 = vmatprep.subr.mxu0 0.0
    %3939 = vmatpush1.msra.mxu0 0.0
    %3940 = vmatprep.subr.mxu0 0.0
    %3941 = vmatpush1.msra.mxu0 0.0
    %3942 = vmatprep.subr.mxu0 0.0
    %3943 = vmatpush1.msra.mxu0 0.0
    %3944 = vmatprep.subr.mxu0 0.0
    %3945 = vmatpush1.msra.mxu0 0.0
    %3946 = vmatprep.subr.mxu0 0.0
    %3947 = vmatpush1.msra.mxu0 0.0
    %3948 = vmatprep.mubr.f32.mxu0 0.0
    %v3949 = vand.u32 %v3374, 4294901760
    %3950 = vmatmul.mubr.f32.gmra.mrb[0].mxu0 %v3949
    %v3951 = vpop.f32.mrb[0].mxu0
    %v3952 = vadd.f32 %v3861, %v3951
    %v3953 = vpop.f32.mrb[0].mxu0
    %3954 = vmatprep.mubr.f32.mxu0 0.0
    %v3955 = vand.u32 %v3377, 4294901760
    %3956 = vmatmul.mubr.f32.gmra.mrb[0].mxu0 %v3955
    %v3957 = vpop.f32.mrb[0].mxu0
    %v3958 = vadd.f32 %v3867, %v3957
    %v3959 = vpop.f32.mrb[0].mxu0
    %3960 = vmatprep.mubr.f32.mxu0 0.0
    %v3961 = vand.u32 %v3380, 4294901760
    %3962 = vmatmul.mubr.f32.gmra.mrb[0].mxu0 %v3961
    %v3963 = vpop.f32.mrb[0].mxu0
    %v3964 = vadd.f32 %v3873, %v3963
    %v3965 = vpop.f32.mrb[0].mxu0
    %3966 = vmatprep.mubr.f32.mxu0 0.0
    %v3967 = vand.u32 %v3383, 4294901760
    %3968 = vmatmul.mubr.f32.gmra.mrb[0].mxu0 %v3967
    %v3969 = vpop.f32.mrb[0].mxu0
    %v3970 = vadd.f32 %v3879, %v3969
    %v3971 = vpop.f32.mrb[0].mxu0
    %3972 = vdwg.mxu0
    %3973 = vmatprep.subr.mxu0 0.0
    %v3974 = vand.u32 %v2163, 4294901760
    %3975 = vmatpush1.msra.mxu0 %v3974
    %3976 = vmatprep.subr.mxu0 0.0
    %v3977 = vand.u32 %v2180, 4294901760
    %3978 = vmatpush1.msra.mxu0 %v3977
    %3979 = vmatprep.subr.mxu0 0.0
    %3980 = vmatpush1.msra.mxu0 0.0
    %3981 = vmatprep.subr.mxu0 0.0
    %3982 = vmatpush1.msra.mxu0 0.0
    %3983 = vmatprep.subr.mxu0 0.0
    %3984 = vmatpush1.msra.mxu0 0.0
    %3985 = vmatprep.subr.mxu0 0.0
    %3986 = vmatpush1.msra.mxu0 0.0
    %3987 = vmatprep.subr.mxu0 0.0
    %3988 = vmatpush1.msra.mxu0 0.0
    %3989 = vmatprep.subr.mxu0 0.0
    %3990 = vmatpush1.msra.mxu0 0.0
    %3991 = vmatprep.subr.mxu0 0.0
    %3992 = vmatpush1.msra.mxu0 0.0
    %3993 = vmatprep.subr.mxu0 0.0
    %3994 = vmatpush1.msra.mxu0 0.0
    %3995 = vmatprep.subr.mxu0 0.0
    %3996 = vmatpush1.msra.mxu0 0.0
    %3997 = vmatprep.subr.mxu0 0.0
    %3998 = vmatpush1.msra.mxu0 0.0
    %3999 = vmatprep.subr.mxu0 0.0
    %4000 = vmatpush1.msra.mxu0 0.0
    %4001 = vmatprep.subr.mxu0 0.0
    %4002 = vmatpush1.msra.mxu0 0.0
    %4003 = vmatprep.subr.mxu0 0.0
    %4004 = vmatpush1.msra.mxu0 0.0
    %4005 = vmatprep.subr.mxu0 0.0
    %4006 = vmatpush1.msra.mxu0 0.0
    %4007 = vmatprep.subr.mxu0 0.0
    %4008 = vmatpush1.msra.mxu0 0.0
    %4009 = vmatprep.subr.mxu0 0.0
    %4010 = vmatpush1.msra.mxu0 0.0
    %4011 = vmatprep.subr.mxu0 0.0
    %4012 = vmatpush1.msra.mxu0 0.0
    %4013 = vmatprep.subr.mxu0 0.0
    %4014 = vmatpush1.msra.mxu0 0.0
    %4015 = vmatprep.subr.mxu0 0.0
    %4016 = vmatpush1.msra.mxu0 0.0
    %4017 = vmatprep.subr.mxu0 0.0
    %4018 = vmatpush1.msra.mxu0 0.0
    %4019 = vmatprep.subr.mxu0 0.0
    %4020 = vmatpush1.msra.mxu0 0.0
    %4021 = vmatprep.subr.mxu0 0.0
    %4022 = vmatpush1.msra.mxu0 0.0
    %4023 = vmatprep.subr.mxu0 0.0
    %4024 = vmatpush1.msra.mxu0 0.0
    %4025 = vmatprep.subr.mxu0 0.0
    %4026 = vmatpush1.msra.mxu0 0.0
    %4027 = vmatprep.subr.mxu0 0.0
    %4028 = vmatpush1.msra.mxu0 0.0
    %4029 = vmatprep.subr.mxu0 0.0
    %4030 = vmatpush1.msra.mxu0 0.0
    %4031 = vmatprep.subr.mxu0 0.0
    %4032 = vmatpush1.msra.mxu0 0.0
    %4033 = vmatprep.subr.mxu0 0.0
    %4034 = vmatpush1.msra.mxu0 0.0
    %4035 = vmatprep.subr.mxu0 0.0
    %4036 = vmatpush1.msra.mxu0 0.0
    %4037 = vmatprep.subr.mxu0 0.0
    %4038 = vmatpush1.msra.mxu0 0.0
    %4039 = vmatprep.mubr.f32.mxu0 0.0
    %v4040 = vand.u32 %v2771, 4294901760
    %v4041 = vsub.f32 %v2771, %v4040
    %v4042 = vand.u32 %v4041, 4294901760
    %v4043 = vsub.f32 %v4041, %v4042
    %v4044 = vand.u32 %v4043, 4294901760
    %4045 = vmatmul.mubr.f32.gmra.mrb[0].mxu0 %v4044
    %v4046 = vpop.f32.mrb[0].mxu0
    %v4047 = vadd.f32 %v3952, %v4046
    %v4048 = vpop.f32.mrb[0].mxu0
    %4049 = vmatprep.mubr.f32.mxu0 0.0
    %v4050 = vand.u32 %v2774, 4294901760
    %v4051 = vsub.f32 %v2774, %v4050
    %v4052 = vand.u32 %v4051, 4294901760
    %v4053 = vsub.f32 %v4051, %v4052
    %v4054 = vand.u32 %v4053, 4294901760
    %4055 = vmatmul.mubr.f32.gmra.mrb[0].mxu0 %v4054
    %v4056 = vpop.f32.mrb[0].mxu0
    %v4057 = vadd.f32 %v3958, %v4056
    %v4058 = vpop.f32.mrb[0].mxu0
    %4059 = vmatprep.mubr.f32.mxu0 0.0
    %v4060 = vand.u32 %v2777, 4294901760
    %v4061 = vsub.f32 %v2777, %v4060
    %v4062 = vand.u32 %v4061, 4294901760
    %v4063 = vsub.f32 %v4061, %v4062
    %v4064 = vand.u32 %v4063, 4294901760
    %4065 = vmatmul.mubr.f32.gmra.mrb[0].mxu0 %v4064
    %v4066 = vpop.f32.mrb[0].mxu0
    %v4067 = vadd.f32 %v3964, %v4066
    %v4068 = vpop.f32.mrb[0].mxu0
    %4069 = vmatprep.mubr.f32.mxu0 0.0
    %v4070 = vand.u32 %v2780, 4294901760
    %v4071 = vsub.f32 %v2780, %v4070
    %v4072 = vand.u32 %v4071, 4294901760
    %v4073 = vsub.f32 %v4071, %v4072
    %v4074 = vand.u32 %v4073, 4294901760
    %4075 = vmatmul.mubr.f32.gmra.mrb[0].mxu0 %v4074
    %v4076 = vpop.f32.mrb[0].mxu0
    %v4077 = vadd.f32 %v3970, %v4076
    %v4078 = vpop.f32.mrb[0].mxu0
    %4079 = vdwg.mxu0
    %4080 = vmatprep.subr.mxu0 0.0
    %v4081 = vand.u32 %v2163, 4294901760
    %v4082 = vsub.f32 %v2163, %v4081
    %v4083 = vand.u32 %v4082, 4294901760
    %v4084 = vsub.f32 %v4082, %v4083
    %v4085 = vand.u32 %v4084, 4294901760
    %4086 = vmatpush1.msra.mxu0 %v4085
    %4087 = vmatprep.subr.mxu0 0.0
    %v4088 = vand.u32 %v2180, 4294901760
    %v4089 = vsub.f32 %v2180, %v4088
    %v4090 = vand.u32 %v4089, 4294901760
    %v4091 = vsub.f32 %v4089, %v4090
    %v4092 = vand.u32 %v4091, 4294901760
    %4093 = vmatpush1.msra.mxu0 %v4092
    %4094 = vmatprep.subr.mxu0 0.0
    %4095 = vmatpush1.msra.mxu0 0.0
    %4096 = vmatprep.subr.mxu0 0.0
    %4097 = vmatpush1.msra.mxu0 0.0
    %4098 = vmatprep.subr.mxu0 0.0
    %4099 = vmatpush1.msra.mxu0 0.0
    %4100 = vmatprep.subr.mxu0 0.0
    %4101 = vmatpush1.msra.mxu0 0.0
    %4102 = vmatprep.subr.mxu0 0.0
    %4103 = vmatpush1.msra.mxu0 0.0
    %4104 = vmatprep.subr.mxu0 0.0
    %4105 = vmatpush1.msra.mxu0 0.0
    %4106 = vmatprep.subr.mxu0 0.0
    %4107 = vmatpush1.msra.mxu0 0.0
    %4108 = vmatprep.subr.mxu0 0.0
    %4109 = vmatpush1.msra.mxu0 0.0
    %4110 = vmatprep.subr.mxu0 0.0
    %4111 = vmatpush1.msra.mxu0 0.0
    %4112 = vmatprep.subr.mxu0 0.0
    %4113 = vmatpush1.msra.mxu0 0.0
    %4114 = vmatprep.subr.mxu0 0.0
    %4115 = vmatpush1.msra.mxu0 0.0
    %4116 = vmatprep.subr.mxu0 0.0
    %4117 = vmatpush1.msra.mxu0 0.0
    %4118 = vmatprep.subr.mxu0 0.0
    %4119 = vmatpush1.msra.mxu0 0.0
    %4120 = vmatprep.subr.mxu0 0.0
    %4121 = vmatpush1.msra.mxu0 0.0
    %4122 = vmatprep.subr.mxu0 0.0
    %4123 = vmatpush1.msra.mxu0 0.0
    %4124 = vmatprep.subr.mxu0 0.0
    %4125 = vmatpush1.msra.mxu0 0.0
    %4126 = vmatprep.subr.mxu0 0.0
    %4127 = vmatpush1.msra.mxu0 0.0
    %4128 = vmatprep.subr.mxu0 0.0
    %4129 = vmatpush1.msra.mxu0 0.0
    %4130 = vmatprep.subr.mxu0 0.0
    %4131 = vmatpush1.msra.mxu0 0.0
    %4132 = vmatprep.subr.mxu0 0.0
    %4133 = vmatpush1.msra.mxu0 0.0
    %4134 = vmatprep.subr.mxu0 0.0
    %4135 = vmatpush1.msra.mxu0 0.0
    %4136 = vmatprep.subr.mxu0 0.0
    %4137 = vmatpush1.msra.mxu0 0.0
    %4138 = vmatprep.subr.mxu0 0.0
    %4139 = vmatpush1.msra.mxu0 0.0
    %4140 = vmatprep.subr.mxu0 0.0
    %4141 = vmatpush1.msra.mxu0 0.0
    %4142 = vmatprep.subr.mxu0 0.0
    %4143 = vmatpush1.msra.mxu0 0.0
    %4144 = vmatprep.subr.mxu0 0.0
    %4145 = vmatpush1.msra.mxu0 0.0
    %4146 = vmatprep.subr.mxu0 0.0
    %4147 = vmatpush1.msra.mxu0 0.0
    %4148 = vmatprep.subr.mxu0 0.0
    %4149 = vmatpush1.msra.mxu0 0.0
    %4150 = vmatprep.subr.mxu0 0.0
    %4151 = vmatpush1.msra.mxu0 0.0
    %4152 = vmatprep.subr.mxu0 0.0
    %4153 = vmatpush1.msra.mxu0 0.0
    %4154 = vmatprep.mubr.f32.mxu0 0.0
    %v4155 = vand.u32 %v2771, 4294901760
    %4156 = vmatmul.mubr.f32.gmra.mrb[0].mxu0 %v4155
    %v4157 = vpop.f32.mrb[0].mxu0
    %v4158 = vadd.f32 %v4047, %v4157
    %v4159 = vpop.f32.mrb[0].mxu0
    %4160 = vmatprep.mubr.f32.mxu0 0.0
    %v4161 = vand.u32 %v2774, 4294901760
    %4162 = vmatmul.mubr.f32.gmra.mrb[0].mxu0 %v4161
    %v4163 = vpop.f32.mrb[0].mxu0
    %v4164 = vadd.f32 %v4057, %v4163
    %v4165 = vpop.f32.mrb[0].mxu0
    %4166 = vmatprep.mubr.f32.mxu0 0.0
    %v4167 = vand.u32 %v2777, 4294901760
    %4168 = vmatmul.mubr.f32.gmra.mrb[0].mxu0 %v4167
    %v4169 = vpop.f32.mrb[0].mxu0
    %v4170 = vadd.f32 %v4067, %v4169
    %v4171 = vpop.f32.mrb[0].mxu0
    %4172 = vmatprep.mubr.f32.mxu0 0.0
    %v4173 = vand.u32 %v2780, 4294901760
    %4174 = vmatmul.mubr.f32.gmra.mrb[0].mxu0 %v4173
    %v4175 = vpop.f32.mrb[0].mxu0
    %v4176 = vadd.f32 %v4077, %v4175
    %v4177 = vpop.f32.mrb[0].mxu0
    %4178 = vdwg.mxu0
    %4179 = vmatprep.subr.mxu0 0.0
    %v4180 = vand.u32 %v2163, 4294901760
    %v4181 = vsub.f32 %v2163, %v4180
    %4182 = vmatpush1.msra.mxu0 %v4181
    %4183 = vmatprep.subr.mxu0 0.0
    %v4184 = vand.u32 %v2180, 4294901760
    %v4185 = vsub.f32 %v2180, %v4184
    %4186 = vmatpush1.msra.mxu0 %v4185
    %4187 = vmatprep.subr.mxu0 0.0
    %4188 = vmatpush1.msra.mxu0 0.0
    %4189 = vmatprep.subr.mxu0 0.0
    %4190 = vmatpush1.msra.mxu0 0.0
    %4191 = vmatprep.subr.mxu0 0.0
    %4192 = vmatpush1.msra.mxu0 0.0
    %4193 = vmatprep.subr.mxu0 0.0
    %4194 = vmatpush1.msra.mxu0 0.0
    %4195 = vmatprep.subr.mxu0 0.0
    %4196 = vmatpush1.msra.mxu0 0.0
    %4197 = vmatprep.subr.mxu0 0.0
    %4198 = vmatpush1.msra.mxu0 0.0
    %4199 = vmatprep.subr.mxu0 0.0
    %4200 = vmatpush1.msra.mxu0 0.0
    %4201 = vmatprep.subr.mxu0 0.0
    %4202 = vmatpush1.msra.mxu0 0.0
    %4203 = vmatprep.subr.mxu0 0.0
    %4204 = vmatpush1.msra.mxu0 0.0
    %4205 = vmatprep.subr.mxu0 0.0
    %4206 = vmatpush1.msra.mxu0 0.0
    %4207 = vmatprep.subr.mxu0 0.0
    %4208 = vmatpush1.msra.mxu0 0.0
    %4209 = vmatprep.subr.mxu0 0.0
    %4210 = vmatpush1.msra.mxu0 0.0
    %4211 = vmatprep.subr.mxu0 0.0
    %4212 = vmatpush1.msra.mxu0 0.0
    %4213 = vmatprep.subr.mxu0 0.0
    %4214 = vmatpush1.msra.mxu0 0.0
    %4215 = vmatprep.subr.mxu0 0.0
    %4216 = vmatpush1.msra.mxu0 0.0
    %4217 = vmatprep.subr.mxu0 0.0
    %4218 = vmatpush1.msra.mxu0 0.0
    %4219 = vmatprep.subr.mxu0 0.0
    %4220 = vmatpush1.msra.mxu0 0.0
    %4221 = vmatprep.subr.mxu0 0.0
    %4222 = vmatpush1.msra.mxu0 0.0
    %4223 = vmatprep.subr.mxu0 0.0
    %4224 = vmatpush1.msra.mxu0 0.0
    %4225 = vmatprep.subr.mxu0 0.0
    %4226 = vmatpush1.msra.mxu0 0.0
    %4227 = vmatprep.subr.mxu0 0.0
    %4228 = vmatpush1.msra.mxu0 0.0
    %4229 = vmatprep.subr.mxu0 0.0
    %4230 = vmatpush1.msra.mxu0 0.0
    %4231 = vmatprep.subr.mxu0 0.0
    %4232 = vmatpush1.msra.mxu0 0.0
    %4233 = vmatprep.subr.mxu0 0.0
    %4234 = vmatpush1.msra.mxu0 0.0
    %4235 = vmatprep.subr.mxu0 0.0
    %4236 = vmatpush1.msra.mxu0 0.0
    %4237 = vmatprep.subr.mxu0 0.0
    %4238 = vmatpush1.msra.mxu0 0.0
    %4239 = vmatprep.subr.mxu0 0.0
    %4240 = vmatpush1.msra.mxu0 0.0
    %4241 = vmatprep.subr.mxu0 0.0
    %4242 = vmatpush1.msra.mxu0 0.0
    %4243 = vmatprep.subr.mxu0 0.0
    %4244 = vmatpush1.msra.mxu0 0.0
    %4245 = vmatprep.subr.mxu0 0.0
    %4246 = vmatpush1.msra.mxu0 0.0
    %4247 = vmatprep.mubr.f32.mxu0 0.0
    %v4248 = vand.u32 %v2771, 4294901760
    %v4249 = vsub.f32 %v2771, %v4248
    %4250 = vmatmul.mubr.f32.gmra.mrb[0].mxu0 %v4249
    %v4251 = vpop.f32.mrb[0].mxu0
    %v4252 = vadd.f32 %v4158, %v4251
    %v4253 = vpop.f32.mrb[0].mxu0
    %4254 = vmatprep.mubr.f32.mxu0 0.0
    %v4255 = vand.u32 %v2774, 4294901760
    %v4256 = vsub.f32 %v2774, %v4255
    %4257 = vmatmul.mubr.f32.gmra.mrb[0].mxu0 %v4256
    %v4258 = vpop.f32.mrb[0].mxu0
    %v4259 = vadd.f32 %v4164, %v4258
    %v4260 = vpop.f32.mrb[0].mxu0
    %4261 = vmatprep.mubr.f32.mxu0 0.0
    %v4262 = vand.u32 %v2777, 4294901760
    %v4263 = vsub.f32 %v2777, %v4262
    %4264 = vmatmul.mubr.f32.gmra.mrb[0].mxu0 %v4263
    %v4265 = vpop.f32.mrb[0].mxu0
    %v4266 = vadd.f32 %v4170, %v4265
    %v4267 = vpop.f32.mrb[0].mxu0
    %4268 = vmatprep.mubr.f32.mxu0 0.0
    %v4269 = vand.u32 %v2780, 4294901760
    %v4270 = vsub.f32 %v2780, %v4269
    %4271 = vmatmul.mubr.f32.gmra.mrb[0].mxu0 %v4270
    %v4272 = vpop.f32.mrb[0].mxu0
    %v4273 = vadd.f32 %v4176, %v4272
    %v4274 = vpop.f32.mrb[0].mxu0
    %4275 = vdwg.mxu0
    %4276 = vmatprep.subr.mxu0 0.0
    %v4277 = vand.u32 %v2163, 4294901760
    %4278 = vmatpush1.msra.mxu0 %v4277
    %4279 = vmatprep.subr.mxu0 0.0
    %v4280 = vand.u32 %v2180, 4294901760
    %4281 = vmatpush1.msra.mxu0 %v4280
    %4282 = vmatprep.subr.mxu0 0.0
    %4283 = vmatpush1.msra.mxu0 0.0
    %4284 = vmatprep.subr.mxu0 0.0
    %4285 = vmatpush1.msra.mxu0 0.0
    %4286 = vmatprep.subr.mxu0 0.0
    %4287 = vmatpush1.msra.mxu0 0.0
    %4288 = vmatprep.subr.mxu0 0.0
    %4289 = vmatpush1.msra.mxu0 0.0
    %4290 = vmatprep.subr.mxu0 0.0
    %4291 = vmatpush1.msra.mxu0 0.0
    %4292 = vmatprep.subr.mxu0 0.0
    %4293 = vmatpush1.msra.mxu0 0.0
    %4294 = vmatprep.subr.mxu0 0.0
    %4295 = vmatpush1.msra.mxu0 0.0
    %4296 = vmatprep.subr.mxu0 0.0
    %4297 = vmatpush1.msra.mxu0 0.0
    %4298 = vmatprep.subr.mxu0 0.0
    %4299 = vmatpush1.msra.mxu0 0.0
    %4300 = vmatprep.subr.mxu0 0.0
    %4301 = vmatpush1.msra.mxu0 0.0
    %4302 = vmatprep.subr.mxu0 0.0
    %4303 = vmatpush1.msra.mxu0 0.0
    %4304 = vmatprep.subr.mxu0 0.0
    %4305 = vmatpush1.msra.mxu0 0.0
    %4306 = vmatprep.subr.mxu0 0.0
    %4307 = vmatpush1.msra.mxu0 0.0
    %4308 = vmatprep.subr.mxu0 0.0
    %4309 = vmatpush1.msra.mxu0 0.0
    %4310 = vmatprep.subr.mxu0 0.0
    %4311 = vmatpush1.msra.mxu0 0.0
    %4312 = vmatprep.subr.mxu0 0.0
    %4313 = vmatpush1.msra.mxu0 0.0
    %4314 = vmatprep.subr.mxu0 0.0
    %4315 = vmatpush1.msra.mxu0 0.0
    %4316 = vmatprep.subr.mxu0 0.0
    %4317 = vmatpush1.msra.mxu0 0.0
    %4318 = vmatprep.subr.mxu0 0.0
    %4319 = vmatpush1.msra.mxu0 0.0
    %4320 = vmatprep.subr.mxu0 0.0
    %4321 = vmatpush1.msra.mxu0 0.0
    %4322 = vmatprep.subr.mxu0 0.0
    %4323 = vmatpush1.msra.mxu0 0.0
    %4324 = vmatprep.subr.mxu0 0.0
    %4325 = vmatpush1.msra.mxu0 0.0
    %4326 = vmatprep.subr.mxu0 0.0
    %4327 = vmatpush1.msra.mxu0 0.0
    %4328 = vmatprep.subr.mxu0 0.0
    %4329 = vmatpush1.msra.mxu0 0.0
    %4330 = vmatprep.subr.mxu0 0.0
    %4331 = vmatpush1.msra.mxu0 0.0
    %4332 = vmatprep.subr.mxu0 0.0
    %4333 = vmatpush1.msra.mxu0 0.0
    %4334 = vmatprep.subr.mxu0 0.0
    %4335 = vmatpush1.msra.mxu0 0.0
    %4336 = vmatprep.subr.mxu0 0.0
    %4337 = vmatpush1.msra.mxu0 0.0
    %4338 = vmatprep.subr.mxu0 0.0
    %4339 = vmatpush1.msra.mxu0 0.0
    %4340 = vmatprep.subr.mxu0 0.0
    %4341 = vmatpush1.msra.mxu0 0.0
    %4342 = vmatprep.mubr.f32.mxu0 0.0
    %v4343 = vand.u32 %v2771, 4294901760
    %v4344 = vsub.f32 %v2771, %v4343
    %v4345 = vand.u32 %v4344, 4294901760
    %4346 = vmatmul.mubr.f32.gmra.mrb[0].mxu0 %v4345
    %v4347 = vpop.f32.mrb[0].mxu0
    %v4348 = vadd.f32 %v4252, %v4347
    %v4349 = vpop.f32.mrb[0].mxu0
    %4350 = vmatprep.mubr.f32.mxu0 0.0
    %v4351 = vand.u32 %v2774, 4294901760
    %v4352 = vsub.f32 %v2774, %v4351
    %v4353 = vand.u32 %v4352, 4294901760
    %4354 = vmatmul.mubr.f32.gmra.mrb[0].mxu0 %v4353
    %v4355 = vpop.f32.mrb[0].mxu0
    %v4356 = vadd.f32 %v4259, %v4355
    %v4357 = vpop.f32.mrb[0].mxu0
    %4358 = vmatprep.mubr.f32.mxu0 0.0
    %v4359 = vand.u32 %v2777, 4294901760
    %v4360 = vsub.f32 %v2777, %v4359
    %v4361 = vand.u32 %v4360, 4294901760
    %4362 = vmatmul.mubr.f32.gmra.mrb[0].mxu0 %v4361
    %v4363 = vpop.f32.mrb[0].mxu0
    %v4364 = vadd.f32 %v4266, %v4363
    %v4365 = vpop.f32.mrb[0].mxu0
    %4366 = vmatprep.mubr.f32.mxu0 0.0
    %v4367 = vand.u32 %v2780, 4294901760
    %v4368 = vsub.f32 %v2780, %v4367
    %v4369 = vand.u32 %v4368, 4294901760
    %4370 = vmatmul.mubr.f32.gmra.mrb[0].mxu0 %v4369
    %v4371 = vpop.f32.mrb[0].mxu0
    %v4372 = vadd.f32 %v4273, %v4371
    %v4373 = vpop.f32.mrb[0].mxu0
    %4374 = vdwg.mxu0
    %4375 = vmatprep.subr.mxu0 0.0
    %v4376 = vand.u32 %v2163, 4294901760
    %v4377 = vsub.f32 %v2163, %v4376
    %v4378 = vand.u32 %v4377, 4294901760
    %4379 = vmatpush1.msra.mxu0 %v4378
    %4380 = vmatprep.subr.mxu0 0.0
    %v4381 = vand.u32 %v2180, 4294901760
    %v4382 = vsub.f32 %v2180, %v4381
    %v4383 = vand.u32 %v4382, 4294901760
    %4384 = vmatpush1.msra.mxu0 %v4383
    %4385 = vmatprep.subr.mxu0 0.0
    %4386 = vmatpush1.msra.mxu0 0.0
    %4387 = vmatprep.subr.mxu0 0.0
    %4388 = vmatpush1.msra.mxu0 0.0
    %4389 = vmatprep.subr.mxu0 0.0
    %4390 = vmatpush1.msra.mxu0 0.0
    %4391 = vmatprep.subr.mxu0 0.0
    %4392 = vmatpush1.msra.mxu0 0.0
    %4393 = vmatprep.subr.mxu0 0.0
    %4394 = vmatpush1.msra.mxu0 0.0
    %4395 = vmatprep.subr.mxu0 0.0
    %4396 = vmatpush1.msra.mxu0 0.0
    %4397 = vmatprep.subr.mxu0 0.0
    %4398 = vmatpush1.msra.mxu0 0.0
    %4399 = vmatprep.subr.mxu0 0.0
    %4400 = vmatpush1.msra.mxu0 0.0
    %4401 = vmatprep.subr.mxu0 0.0
    %4402 = vmatpush1.msra.mxu0 0.0
    %4403 = vmatprep.subr.mxu0 0.0
    %4404 = vmatpush1.msra.mxu0 0.0
    %4405 = vmatprep.subr.mxu0 0.0
    %4406 = vmatpush1.msra.mxu0 0.0
    %4407 = vmatprep.subr.mxu0 0.0
    %4408 = vmatpush1.msra.mxu0 0.0
    %4409 = vmatprep.subr.mxu0 0.0
    %4410 = vmatpush1.msra.mxu0 0.0
    %4411 = vmatprep.subr.mxu0 0.0
    %4412 = vmatpush1.msra.mxu0 0.0
    %4413 = vmatprep.subr.mxu0 0.0
    %4414 = vmatpush1.msra.mxu0 0.0
    %4415 = vmatprep.subr.mxu0 0.0
    %4416 = vmatpush1.msra.mxu0 0.0
    %4417 = vmatprep.subr.mxu0 0.0
    %4418 = vmatpush1.msra.mxu0 0.0
    %4419 = vmatprep.subr.mxu0 0.0
    %4420 = vmatpush1.msra.mxu0 0.0
    %4421 = vmatprep.subr.mxu0 0.0
    %4422 = vmatpush1.msra.mxu0 0.0
    %4423 = vmatprep.subr.mxu0 0.0
    %4424 = vmatpush1.msra.mxu0 0.0
    %4425 = vmatprep.subr.mxu0 0.0
    %4426 = vmatpush1.msra.mxu0 0.0
    %4427 = vmatprep.subr.mxu0 0.0
    %4428 = vmatpush1.msra.mxu0 0.0
    %4429 = vmatprep.subr.mxu0 0.0
    %4430 = vmatpush1.msra.mxu0 0.0
    %4431 = vmatprep.subr.mxu0 0.0
    %4432 = vmatpush1.msra.mxu0 0.0
    %4433 = vmatprep.subr.mxu0 0.0
    %4434 = vmatpush1.msra.mxu0 0.0
    %4435 = vmatprep.subr.mxu0 0.0
    %4436 = vmatpush1.msra.mxu0 0.0
    %4437 = vmatprep.subr.mxu0 0.0
    %4438 = vmatpush1.msra.mxu0 0.0
    %4439 = vmatprep.subr.mxu0 0.0
    %4440 = vmatpush1.msra.mxu0 0.0
    %4441 = vmatprep.subr.mxu0 0.0
    %4442 = vmatpush1.msra.mxu0 0.0
    %4443 = vmatprep.subr.mxu0 0.0
    %4444 = vmatpush1.msra.mxu0 0.0
    %4445 = vmatprep.mubr.f32.mxu0 0.0
    %v4446 = vand.u32 %v2771, 4294901760
    %4447 = vmatmul.mubr.f32.gmra.mrb[0].mxu0 %v4446
    %v4448 = vpop.f32.mrb[0].mxu0
    %v4449 = vadd.f32 %v4348, %v4448
    %v4450 = vpop.f32.mrb[0].mxu0
    %4451 = vmatprep.mubr.f32.mxu0 0.0
    %v4452 = vand.u32 %v2774, 4294901760
    %4453 = vmatmul.mubr.f32.gmra.mrb[0].mxu0 %v4452
    %v4454 = vpop.f32.mrb[0].mxu0
    %v4455 = vadd.f32 %v4356, %v4454
    %v4456 = vpop.f32.mrb[0].mxu0
    %4457 = vmatprep.mubr.f32.mxu0 0.0
    %v4458 = vand.u32 %v2777, 4294901760
    %4459 = vmatmul.mubr.f32.gmra.mrb[0].mxu0 %v4458
    %v4460 = vpop.f32.mrb[0].mxu0
    %v4461 = vadd.f32 %v4364, %v4460
    %v4462 = vpop.f32.mrb[0].mxu0
    %4463 = vmatprep.mubr.f32.mxu0 0.0
    %v4464 = vand.u32 %v2780, 4294901760
    %4465 = vmatmul.mubr.f32.gmra.mrb[0].mxu0 %v4464
    %v4466 = vpop.f32.mrb[0].mxu0
    %v4467 = vadd.f32 %v4372, %v4466
    %v4468 = vpop.f32.mrb[0].mxu0
    %4469 = vdwg.mxu0
    %4470 = vmatprep.subr.mxu0 0.0
    %v4471 = vand.u32 %v2163, 4294901760
    %4472 = vmatpush1.msra.mxu0 %v4471
    %4473 = vmatprep.subr.mxu0 0.0
    %v4474 = vand.u32 %v2180, 4294901760
    %4475 = vmatpush1.msra.mxu0 %v4474
    %4476 = vmatprep.subr.mxu0 0.0
    %4477 = vmatpush1.msra.mxu0 0.0
    %4478 = vmatprep.subr.mxu0 0.0
    %4479 = vmatpush1.msra.mxu0 0.0
    %4480 = vmatprep.subr.mxu0 0.0
    %4481 = vmatpush1.msra.mxu0 0.0
    %4482 = vmatprep.subr.mxu0 0.0
    %4483 = vmatpush1.msra.mxu0 0.0
    %4484 = vmatprep.subr.mxu0 0.0
    %4485 = vmatpush1.msra.mxu0 0.0
    %4486 = vmatprep.subr.mxu0 0.0
    %4487 = vmatpush1.msra.mxu0 0.0
    %4488 = vmatprep.subr.mxu0 0.0
    %4489 = vmatpush1.msra.mxu0 0.0
    %4490 = vmatprep.subr.mxu0 0.0
    %4491 = vmatpush1.msra.mxu0 0.0
    %4492 = vmatprep.subr.mxu0 0.0
    %4493 = vmatpush1.msra.mxu0 0.0
    %4494 = vmatprep.subr.mxu0 0.0
    %4495 = vmatpush1.msra.mxu0 0.0
    %4496 = vmatprep.subr.mxu0 0.0
    %4497 = vmatpush1.msra.mxu0 0.0
    %4498 = vmatprep.subr.mxu0 0.0
    %4499 = vmatpush1.msra.mxu0 0.0
    %4500 = vmatprep.subr.mxu0 0.0
    %4501 = vmatpush1.msra.mxu0 0.0
    %4502 = vmatprep.subr.mxu0 0.0
    %4503 = vmatpush1.msra.mxu0 0.0
    %4504 = vmatprep.subr.mxu0 0.0
    %4505 = vmatpush1.msra.mxu0 0.0
    %4506 = vmatprep.subr.mxu0 0.0
    %4507 = vmatpush1.msra.mxu0 0.0
    %4508 = vmatprep.subr.mxu0 0.0
    %4509 = vmatpush1.msra.mxu0 0.0
    %4510 = vmatprep.subr.mxu0 0.0
    %4511 = vmatpush1.msra.mxu0 0.0
    %4512 = vmatprep.subr.mxu0 0.0
    %4513 = vmatpush1.msra.mxu0 0.0
    %4514 = vmatprep.subr.mxu0 0.0
    %4515 = vmatpush1.msra.mxu0 0.0
    %4516 = vmatprep.subr.mxu0 0.0
    %4517 = vmatpush1.msra.mxu0 0.0
    %4518 = vmatprep.subr.mxu0 0.0
    %4519 = vmatpush1.msra.mxu0 0.0
    %4520 = vmatprep.subr.mxu0 0.0
    %4521 = vmatpush1.msra.mxu0 0.0
    %4522 = vmatprep.subr.mxu0 0.0
    %4523 = vmatpush1.msra.mxu0 0.0
    %4524 = vmatprep.subr.mxu0 0.0
    %4525 = vmatpush1.msra.mxu0 0.0
    %4526 = vmatprep.subr.mxu0 0.0
    %4527 = vmatpush1.msra.mxu0 0.0
    %4528 = vmatprep.subr.mxu0 0.0
    %4529 = vmatpush1.msra.mxu0 0.0
    %4530 = vmatprep.subr.mxu0 0.0
    %4531 = vmatpush1.msra.mxu0 0.0
    %4532 = vmatprep.subr.mxu0 0.0
    %4533 = vmatpush1.msra.mxu0 0.0
    %4534 = vmatprep.subr.mxu0 0.0
    %4535 = vmatpush1.msra.mxu0 0.0
    %4536 = vmatprep.mubr.f32.mxu0 0.0
    %v4537 = vand.u32 %v2771, 4294901760
    %4538 = vmatmul.mubr.f32.gmra.mrb[0].mxu0 %v4537
    %v4539 = vpop.f32.mrb[0].mxu0
    %v4540 = vadd.f32 %v4449, %v4539
    %v4541 = vpop.f32.mrb[0].mxu0
    %4542 = vmatprep.mubr.f32.mxu0 0.0
    %v4543 = vand.u32 %v2774, 4294901760
    %4544 = vmatmul.mubr.f32.gmra.mrb[0].mxu0 %v4543
    %v4545 = vpop.f32.mrb[0].mxu0
    %v4546 = vadd.f32 %v4455, %v4545
    %v4547 = vpop.f32.mrb[0].mxu0
    %4548 = vmatprep.mubr.f32.mxu0 0.0
    %v4549 = vand.u32 %v2777, 4294901760
    %4550 = vmatmul.mubr.f32.gmra.mrb[0].mxu0 %v4549
    %v4551 = vpop.f32.mrb[0].mxu0
    %v4552 = vadd.f32 %v4461, %v4551
    %v4553 = vpop.f32.mrb[0].mxu0
    %4554 = vmatprep.mubr.f32.mxu0 0.0
    %v4555 = vand.u32 %v2780, 4294901760
    %4556 = vmatmul.mubr.f32.gmra.mrb[0].mxu0 %v4555
    %v4557 = vpop.f32.mrb[0].mxu0
    %v4558 = vadd.f32 %v4467, %v4557
    %v4559 = vpop.f32.mrb[0].mxu0
    %4560 = vdwg.mxu0
    %v4562 = vsel %vm2139, %v3352, 0
    %v4565 = vsel %vm2139, %v3358, 0
    %v4568 = vsel %vm2139, %v3364, 0
    %v4571 = vsel %vm2139, %v3370, 0
    %4573 = vmatprep.subr.mxu0 0.0
    %v4574 = vand.u32 %v46, 4294901760
    %4575 = vmatpush1.msra.mxu0 %v4574
    %4576 = vmatprep.subr.mxu0 0.0
    %v4577 = vand.u32 %v47, 4294901760
    %4578 = vmatpush1.msra.mxu0 %v4577
    %4579 = vmatprep.subr.mxu0 0.0
    %v4580 = vand.u32 %v48, 4294901760
    %4581 = vmatpush1.msra.mxu0 %v4580
    %4582 = vmatprep.subr.mxu0 0.0
    %v4583 = vand.u32 %v49, 4294901760
    %4584 = vmatpush1.msra.mxu0 %v4583
    %4585 = vmatprep.subr.mxu0 0.0
    %v4586 = vand.u32 %v50, 4294901760
    %4587 = vmatpush1.msra.mxu0 %v4586
    %4588 = vmatprep.subr.mxu0 0.0
    %v4589 = vand.u32 %v51, 4294901760
    %4590 = vmatpush1.msra.mxu0 %v4589
    %4591 = vmatprep.subr.mxu0 0.0
    %v4592 = vand.u32 %v52, 4294901760
    %4593 = vmatpush1.msra.mxu0 %v4592
    %4594 = vmatprep.subr.mxu0 0.0
    %v4595 = vand.u32 %v53, 4294901760
    %4596 = vmatpush1.msra.mxu0 %v4595
    %4597 = vmatprep.subr.mxu0 0.0
    %4598 = vmatpush1.msra.mxu0 0.0
    %4599 = vmatprep.subr.mxu0 0.0
    %4600 = vmatpush1.msra.mxu0 0.0
    %4601 = vmatprep.subr.mxu0 0.0
    %4602 = vmatpush1.msra.mxu0 0.0
    %4603 = vmatprep.subr.mxu0 0.0
    %4604 = vmatpush1.msra.mxu0 0.0
    %4605 = vmatprep.subr.mxu0 0.0
    %4606 = vmatpush1.msra.mxu0 0.0
    %4607 = vmatprep.subr.mxu0 0.0
    %4608 = vmatpush1.msra.mxu0 0.0
    %4609 = vmatprep.subr.mxu0 0.0
    %4610 = vmatpush1.msra.mxu0 0.0
    %4611 = vmatprep.subr.mxu0 0.0
    %4612 = vmatpush1.msra.mxu0 0.0
    %4613 = vmatprep.subr.mxu0 0.0
    %4614 = vmatpush1.msra.mxu0 0.0
    %4615 = vmatprep.subr.mxu0 0.0
    %4616 = vmatpush1.msra.mxu0 0.0
    %4617 = vmatprep.subr.mxu0 0.0
    %4618 = vmatpush1.msra.mxu0 0.0
    %4619 = vmatprep.subr.mxu0 0.0
    %4620 = vmatpush1.msra.mxu0 0.0
    %4621 = vmatprep.subr.mxu0 0.0
    %4622 = vmatpush1.msra.mxu0 0.0
    %4623 = vmatprep.subr.mxu0 0.0
    %4624 = vmatpush1.msra.mxu0 0.0
    %4625 = vmatprep.subr.mxu0 0.0
    %4626 = vmatpush1.msra.mxu0 0.0
    %4627 = vmatprep.subr.mxu0 0.0
    %4628 = vmatpush1.msra.mxu0 0.0
    %4629 = vmatprep.subr.mxu0 0.0
    %4630 = vmatpush1.msra.mxu0 0.0
    %4631 = vmatprep.subr.mxu0 0.0
    %4632 = vmatpush1.msra.mxu0 0.0
    %4633 = vmatprep.subr.mxu0 0.0
    %4634 = vmatpush1.msra.mxu0 0.0
    %4635 = vmatprep.subr.mxu0 0.0
    %4636 = vmatpush1.msra.mxu0 0.0
    %4637 = vmatprep.subr.mxu0 0.0
    %4638 = vmatpush1.msra.mxu0 0.0
    %4639 = vmatprep.subr.mxu0 0.0
    %4640 = vmatpush1.msra.mxu0 0.0
    %4641 = vmatprep.subr.mxu0 0.0
    %4642 = vmatpush1.msra.mxu0 0.0
    %4643 = vmatprep.subr.mxu0 0.0
    %4644 = vmatpush1.msra.mxu0 0.0
    %4645 = vmatprep.mubr.f32.mxu0 0.0
    %v4646 = vand.u32 %v4562, 4294901760
    %v4647 = vsub.f32 %v4562, %v4646
    %v4648 = vand.u32 %v4647, 4294901760
    %v4649 = vsub.f32 %v4647, %v4648
    %v4650 = vand.u32 %v4649, 4294901760
    %4651 = vmatmul.mubr.f32.gmra.mrb[0].mxu0 %v4650
    %v4652 = vpop.f32.mrb[0].mxu0
    %v4653 = vadd.f32 0.0, %v4652
    %v4654 = vpop.f32.mrb[0].mxu0
    %4655 = vmatprep.mubr.f32.mxu0 0.0
    %v4656 = vand.u32 %v4565, 4294901760
    %v4657 = vsub.f32 %v4565, %v4656
    %v4658 = vand.u32 %v4657, 4294901760
    %v4659 = vsub.f32 %v4657, %v4658
    %v4660 = vand.u32 %v4659, 4294901760
    %4661 = vmatmul.mubr.f32.gmra.mrb[0].mxu0 %v4660
    %v4662 = vpop.f32.mrb[0].mxu0
    %v4663 = vadd.f32 0.0, %v4662
    %v4664 = vpop.f32.mrb[0].mxu0
    %4665 = vmatprep.mubr.f32.mxu0 0.0
    %v4666 = vand.u32 %v4568, 4294901760
    %v4667 = vsub.f32 %v4568, %v4666
    %v4668 = vand.u32 %v4667, 4294901760
    %v4669 = vsub.f32 %v4667, %v4668
    %v4670 = vand.u32 %v4669, 4294901760
    %4671 = vmatmul.mubr.f32.gmra.mrb[0].mxu0 %v4670
    %v4672 = vpop.f32.mrb[0].mxu0
    %v4673 = vadd.f32 0.0, %v4672
    %v4674 = vpop.f32.mrb[0].mxu0
    %4675 = vmatprep.mubr.f32.mxu0 0.0
    %v4676 = vand.u32 %v4571, 4294901760
    %v4677 = vsub.f32 %v4571, %v4676
    %v4678 = vand.u32 %v4677, 4294901760
    %v4679 = vsub.f32 %v4677, %v4678
    %v4680 = vand.u32 %v4679, 4294901760
    %4681 = vmatmul.mubr.f32.gmra.mrb[0].mxu0 %v4680
    %v4682 = vpop.f32.mrb[0].mxu0
    %v4683 = vadd.f32 0.0, %v4682
    %v4684 = vpop.f32.mrb[0].mxu0
    %4685 = vdwg.mxu0
    %4686 = vmatprep.subr.mxu0 0.0
    %v4687 = vand.u32 %v46, 4294901760
    %v4688 = vsub.f32 %v46, %v4687
    %v4689 = vand.u32 %v4688, 4294901760
    %v4690 = vsub.f32 %v4688, %v4689
    %v4691 = vand.u32 %v4690, 4294901760
    %4692 = vmatpush1.msra.mxu0 %v4691
    %4693 = vmatprep.subr.mxu0 0.0
    %v4694 = vand.u32 %v47, 4294901760
    %v4695 = vsub.f32 %v47, %v4694
    %v4696 = vand.u32 %v4695, 4294901760
    %v4697 = vsub.f32 %v4695, %v4696
    %v4698 = vand.u32 %v4697, 4294901760
    %4699 = vmatpush1.msra.mxu0 %v4698
    %4700 = vmatprep.subr.mxu0 0.0
    %v4701 = vand.u32 %v48, 4294901760
    %v4702 = vsub.f32 %v48, %v4701
    %v4703 = vand.u32 %v4702, 4294901760
    %v4704 = vsub.f32 %v4702, %v4703
    %v4705 = vand.u32 %v4704, 4294901760
    %4706 = vmatpush1.msra.mxu0 %v4705
    %4707 = vmatprep.subr.mxu0 0.0
    %v4708 = vand.u32 %v49, 4294901760
    %v4709 = vsub.f32 %v49, %v4708
    %v4710 = vand.u32 %v4709, 4294901760
    %v4711 = vsub.f32 %v4709, %v4710
    %v4712 = vand.u32 %v4711, 4294901760
    %4713 = vmatpush1.msra.mxu0 %v4712
    %4714 = vmatprep.subr.mxu0 0.0
    %v4715 = vand.u32 %v50, 4294901760
    %v4716 = vsub.f32 %v50, %v4715
    %v4717 = vand.u32 %v4716, 4294901760
    %v4718 = vsub.f32 %v4716, %v4717
    %v4719 = vand.u32 %v4718, 4294901760
    %4720 = vmatpush1.msra.mxu0 %v4719
    %4721 = vmatprep.subr.mxu0 0.0
    %v4722 = vand.u32 %v51, 4294901760
    %v4723 = vsub.f32 %v51, %v4722
    %v4724 = vand.u32 %v4723, 4294901760
    %v4725 = vsub.f32 %v4723, %v4724
    %v4726 = vand.u32 %v4725, 4294901760
    %4727 = vmatpush1.msra.mxu0 %v4726
    %4728 = vmatprep.subr.mxu0 0.0
    %v4729 = vand.u32 %v52, 4294901760
    %v4730 = vsub.f32 %v52, %v4729
    %v4731 = vand.u32 %v4730, 4294901760
    %v4732 = vsub.f32 %v4730, %v4731
    %v4733 = vand.u32 %v4732, 4294901760
    %4734 = vmatpush1.msra.mxu0 %v4733
    %4735 = vmatprep.subr.mxu0 0.0
    %v4736 = vand.u32 %v53, 4294901760
    %v4737 = vsub.f32 %v53, %v4736
    %v4738 = vand.u32 %v4737, 4294901760
    %v4739 = vsub.f32 %v4737, %v4738
    %v4740 = vand.u32 %v4739, 4294901760
    %4741 = vmatpush1.msra.mxu0 %v4740
    %4742 = vmatprep.subr.mxu0 0.0
    %4743 = vmatpush1.msra.mxu0 0.0
    %4744 = vmatprep.subr.mxu0 0.0
    %4745 = vmatpush1.msra.mxu0 0.0
    %4746 = vmatprep.subr.mxu0 0.0
    %4747 = vmatpush1.msra.mxu0 0.0
    %4748 = vmatprep.subr.mxu0 0.0
    %4749 = vmatpush1.msra.mxu0 0.0
    %4750 = vmatprep.subr.mxu0 0.0
    %4751 = vmatpush1.msra.mxu0 0.0
    %4752 = vmatprep.subr.mxu0 0.0
    %4753 = vmatpush1.msra.mxu0 0.0
    %4754 = vmatprep.subr.mxu0 0.0
    %4755 = vmatpush1.msra.mxu0 0.0
    %4756 = vmatprep.subr.mxu0 0.0
    %4757 = vmatpush1.msra.mxu0 0.0
    %4758 = vmatprep.subr.mxu0 0.0
    %4759 = vmatpush1.msra.mxu0 0.0
    %4760 = vmatprep.subr.mxu0 0.0
    %4761 = vmatpush1.msra.mxu0 0.0
    %4762 = vmatprep.subr.mxu0 0.0
    %4763 = vmatpush1.msra.mxu0 0.0
    %4764 = vmatprep.subr.mxu0 0.0
    %4765 = vmatpush1.msra.mxu0 0.0
    %4766 = vmatprep.subr.mxu0 0.0
    %4767 = vmatpush1.msra.mxu0 0.0
    %4768 = vmatprep.subr.mxu0 0.0
    %4769 = vmatpush1.msra.mxu0 0.0
    %4770 = vmatprep.subr.mxu0 0.0
    %4771 = vmatpush1.msra.mxu0 0.0
    %4772 = vmatprep.subr.mxu0 0.0
    %4773 = vmatpush1.msra.mxu0 0.0
    %4774 = vmatprep.subr.mxu0 0.0
    %4775 = vmatpush1.msra.mxu0 0.0
    %4776 = vmatprep.subr.mxu0 0.0
    %4777 = vmatpush1.msra.mxu0 0.0
    %4778 = vmatprep.subr.mxu0 0.0
    %4779 = vmatpush1.msra.mxu0 0.0
    %4780 = vmatprep.subr.mxu0 0.0
    %4781 = vmatpush1.msra.mxu0 0.0
    %4782 = vmatprep.subr.mxu0 0.0
    %4783 = vmatpush1.msra.mxu0 0.0
    %4784 = vmatprep.subr.mxu0 0.0
    %4785 = vmatpush1.msra.mxu0 0.0
    %4786 = vmatprep.subr.mxu0 0.0
    %4787 = vmatpush1.msra.mxu0 0.0
    %4788 = vmatprep.subr.mxu0 0.0
    %4789 = vmatpush1.msra.mxu0 0.0
    %4790 = vmatprep.mubr.f32.mxu0 0.0
    %v4791 = vand.u32 %v4562, 4294901760
    %4792 = vmatmul.mubr.f32.gmra.mrb[0].mxu0 %v4791
    %v4793 = vpop.f32.mrb[0].mxu0
    %v4794 = vadd.f32 %v4653, %v4793
    %v4795 = vpop.f32.mrb[0].mxu0
    %4796 = vmatprep.mubr.f32.mxu0 0.0
    %v4797 = vand.u32 %v4565, 4294901760
    %4798 = vmatmul.mubr.f32.gmra.mrb[0].mxu0 %v4797
    %v4799 = vpop.f32.mrb[0].mxu0
    %v4800 = vadd.f32 %v4663, %v4799
    %v4801 = vpop.f32.mrb[0].mxu0
    %4802 = vmatprep.mubr.f32.mxu0 0.0
    %v4803 = vand.u32 %v4568, 4294901760
    %4804 = vmatmul.mubr.f32.gmra.mrb[0].mxu0 %v4803
    %v4805 = vpop.f32.mrb[0].mxu0
    %v4806 = vadd.f32 %v4673, %v4805
    %v4807 = vpop.f32.mrb[0].mxu0
    %4808 = vmatprep.mubr.f32.mxu0 0.0
    %v4809 = vand.u32 %v4571, 4294901760
    %4810 = vmatmul.mubr.f32.gmra.mrb[0].mxu0 %v4809
    %v4811 = vpop.f32.mrb[0].mxu0
    %v4812 = vadd.f32 %v4683, %v4811
    %v4813 = vpop.f32.mrb[0].mxu0
    %4814 = vdwg.mxu0
    %4815 = vmatprep.subr.mxu0 0.0
    %v4816 = vand.u32 %v46, 4294901760
    %v4817 = vsub.f32 %v46, %v4816
    %4818 = vmatpush1.msra.mxu0 %v4817
    %4819 = vmatprep.subr.mxu0 0.0
    %v4820 = vand.u32 %v47, 4294901760
    %v4821 = vsub.f32 %v47, %v4820
    %4822 = vmatpush1.msra.mxu0 %v4821
    %4823 = vmatprep.subr.mxu0 0.0
    %v4824 = vand.u32 %v48, 4294901760
    %v4825 = vsub.f32 %v48, %v4824
    %4826 = vmatpush1.msra.mxu0 %v4825
    %4827 = vmatprep.subr.mxu0 0.0
    %v4828 = vand.u32 %v49, 4294901760
    %v4829 = vsub.f32 %v49, %v4828
    %4830 = vmatpush1.msra.mxu0 %v4829
    %4831 = vmatprep.subr.mxu0 0.0
    %v4832 = vand.u32 %v50, 4294901760
    %v4833 = vsub.f32 %v50, %v4832
    %4834 = vmatpush1.msra.mxu0 %v4833
    %4835 = vmatprep.subr.mxu0 0.0
    %v4836 = vand.u32 %v51, 4294901760
    %v4837 = vsub.f32 %v51, %v4836
    %4838 = vmatpush1.msra.mxu0 %v4837
    %4839 = vmatprep.subr.mxu0 0.0
    %v4840 = vand.u32 %v52, 4294901760
    %v4841 = vsub.f32 %v52, %v4840
    %4842 = vmatpush1.msra.mxu0 %v4841
    %4843 = vmatprep.subr.mxu0 0.0
    %v4844 = vand.u32 %v53, 4294901760
    %v4845 = vsub.f32 %v53, %v4844
    %4846 = vmatpush1.msra.mxu0 %v4845
    %4847 = vmatprep.subr.mxu0 0.0
    %4848 = vmatpush1.msra.mxu0 0.0
    %4849 = vmatprep.subr.mxu0 0.0
    %4850 = vmatpush1.msra.mxu0 0.0
    %4851 = vmatprep.subr.mxu0 0.0
    %4852 = vmatpush1.msra.mxu0 0.0
    %4853 = vmatprep.subr.mxu0 0.0
    %4854 = vmatpush1.msra.mxu0 0.0
    %4855 = vmatprep.subr.mxu0 0.0
    %4856 = vmatpush1.msra.mxu0 0.0
    %4857 = vmatprep.subr.mxu0 0.0
    %4858 = vmatpush1.msra.mxu0 0.0
    %4859 = vmatprep.subr.mxu0 0.0
    %4860 = vmatpush1.msra.mxu0 0.0
    %4861 = vmatprep.subr.mxu0 0.0
    %4862 = vmatpush1.msra.mxu0 0.0
    %4863 = vmatprep.subr.mxu0 0.0
    %4864 = vmatpush1.msra.mxu0 0.0
    %4865 = vmatprep.subr.mxu0 0.0
    %4866 = vmatpush1.msra.mxu0 0.0
    %4867 = vmatprep.subr.mxu0 0.0
    %4868 = vmatpush1.msra.mxu0 0.0
    %4869 = vmatprep.subr.mxu0 0.0
    %4870 = vmatpush1.msra.mxu0 0.0
    %4871 = vmatprep.subr.mxu0 0.0
    %4872 = vmatpush1.msra.mxu0 0.0
    %4873 = vmatprep.subr.mxu0 0.0
    %4874 = vmatpush1.msra.mxu0 0.0
    %4875 = vmatprep.subr.mxu0 0.0
    %4876 = vmatpush1.msra.mxu0 0.0
    %4877 = vmatprep.subr.mxu0 0.0
    %4878 = vmatpush1.msra.mxu0 0.0
    %4879 = vmatprep.subr.mxu0 0.0
    %4880 = vmatpush1.msra.mxu0 0.0
    %4881 = vmatprep.subr.mxu0 0.0
    %4882 = vmatpush1.msra.mxu0 0.0
    %4883 = vmatprep.subr.mxu0 0.0
    %4884 = vmatpush1.msra.mxu0 0.0
    %4885 = vmatprep.subr.mxu0 0.0
    %4886 = vmatpush1.msra.mxu0 0.0
    %4887 = vmatprep.subr.mxu0 0.0
    %4888 = vmatpush1.msra.mxu0 0.0
    %4889 = vmatprep.subr.mxu0 0.0
    %4890 = vmatpush1.msra.mxu0 0.0
    %4891 = vmatprep.subr.mxu0 0.0
    %4892 = vmatpush1.msra.mxu0 0.0
    %4893 = vmatprep.subr.mxu0 0.0
    %4894 = vmatpush1.msra.mxu0 0.0
    %4895 = vmatprep.mubr.f32.mxu0 0.0
    %v4896 = vand.u32 %v4562, 4294901760
    %v4897 = vsub.f32 %v4562, %v4896
    %4898 = vmatmul.mubr.f32.gmra.mrb[0].mxu0 %v4897
    %v4899 = vpop.f32.mrb[0].mxu0
    %v4900 = vadd.f32 %v4794, %v4899
    %v4901 = vpop.f32.mrb[0].mxu0
    %4902 = vmatprep.mubr.f32.mxu0 0.0
    %v4903 = vand.u32 %v4565, 4294901760
    %v4904 = vsub.f32 %v4565, %v4903
    %4905 = vmatmul.mubr.f32.gmra.mrb[0].mxu0 %v4904
    %v4906 = vpop.f32.mrb[0].mxu0
    %v4907 = vadd.f32 %v4800, %v4906
    %v4908 = vpop.f32.mrb[0].mxu0
    %4909 = vmatprep.mubr.f32.mxu0 0.0
    %v4910 = vand.u32 %v4568, 4294901760
    %v4911 = vsub.f32 %v4568, %v4910
    %4912 = vmatmul.mubr.f32.gmra.mrb[0].mxu0 %v4911
    %v4913 = vpop.f32.mrb[0].mxu0
    %v4914 = vadd.f32 %v4806, %v4913
    %v4915 = vpop.f32.mrb[0].mxu0
    %4916 = vmatprep.mubr.f32.mxu0 0.0
    %v4917 = vand.u32 %v4571, 4294901760
    %v4918 = vsub.f32 %v4571, %v4917
    %4919 = vmatmul.mubr.f32.gmra.mrb[0].mxu0 %v4918
    %v4920 = vpop.f32.mrb[0].mxu0
    %v4921 = vadd.f32 %v4812, %v4920
    %v4922 = vpop.f32.mrb[0].mxu0
    %4923 = vdwg.mxu0
    %4924 = vmatprep.subr.mxu0 0.0
    %v4925 = vand.u32 %v46, 4294901760
    %4926 = vmatpush1.msra.mxu0 %v4925
    %4927 = vmatprep.subr.mxu0 0.0
    %v4928 = vand.u32 %v47, 4294901760
    %4929 = vmatpush1.msra.mxu0 %v4928
    %4930 = vmatprep.subr.mxu0 0.0
    %v4931 = vand.u32 %v48, 4294901760
    %4932 = vmatpush1.msra.mxu0 %v4931
    %4933 = vmatprep.subr.mxu0 0.0
    %v4934 = vand.u32 %v49, 4294901760
    %4935 = vmatpush1.msra.mxu0 %v4934
    %4936 = vmatprep.subr.mxu0 0.0
    %v4937 = vand.u32 %v50, 4294901760
    %4938 = vmatpush1.msra.mxu0 %v4937
    %4939 = vmatprep.subr.mxu0 0.0
    %v4940 = vand.u32 %v51, 4294901760
    %4941 = vmatpush1.msra.mxu0 %v4940
    %4942 = vmatprep.subr.mxu0 0.0
    %v4943 = vand.u32 %v52, 4294901760
    %4944 = vmatpush1.msra.mxu0 %v4943
    %4945 = vmatprep.subr.mxu0 0.0
    %v4946 = vand.u32 %v53, 4294901760
    %4947 = vmatpush1.msra.mxu0 %v4946
    %4948 = vmatprep.subr.mxu0 0.0
    %4949 = vmatpush1.msra.mxu0 0.0
    %4950 = vmatprep.subr.mxu0 0.0
    %4951 = vmatpush1.msra.mxu0 0.0
    %4952 = vmatprep.subr.mxu0 0.0
    %4953 = vmatpush1.msra.mxu0 0.0
    %4954 = vmatprep.subr.mxu0 0.0
    %4955 = vmatpush1.msra.mxu0 0.0
    %4956 = vmatprep.subr.mxu0 0.0
    %4957 = vmatpush1.msra.mxu0 0.0
    %4958 = vmatprep.subr.mxu0 0.0
    %4959 = vmatpush1.msra.mxu0 0.0
    %4960 = vmatprep.subr.mxu0 0.0
    %4961 = vmatpush1.msra.mxu0 0.0
    %4962 = vmatprep.subr.mxu0 0.0
    %4963 = vmatpush1.msra.mxu0 0.0
    %4964 = vmatprep.subr.mxu0 0.0
    %4965 = vmatpush1.msra.mxu0 0.0
    %4966 = vmatprep.subr.mxu0 0.0
    %4967 = vmatpush1.msra.mxu0 0.0
    %4968 = vmatprep.subr.mxu0 0.0
    %4969 = vmatpush1.msra.mxu0 0.0
    %4970 = vmatprep.subr.mxu0 0.0
    %4971 = vmatpush1.msra.mxu0 0.0
    %4972 = vmatprep.subr.mxu0 0.0
    %4973 = vmatpush1.msra.mxu0 0.0
    %4974 = vmatprep.subr.mxu0 0.0
    %4975 = vmatpush1.msra.mxu0 0.0
    %4976 = vmatprep.subr.mxu0 0.0
    %4977 = vmatpush1.msra.mxu0 0.0
    %4978 = vmatprep.subr.mxu0 0.0
    %4979 = vmatpush1.msra.mxu0 0.0
    %4980 = vmatprep.subr.mxu0 0.0
    %4981 = vmatpush1.msra.mxu0 0.0
    %4982 = vmatprep.subr.mxu0 0.0
    %4983 = vmatpush1.msra.mxu0 0.0
    %4984 = vmatprep.subr.mxu0 0.0
    %4985 = vmatpush1.msra.mxu0 0.0
    %4986 = vmatprep.subr.mxu0 0.0
    %4987 = vmatpush1.msra.mxu0 0.0
    %4988 = vmatprep.subr.mxu0 0.0
    %4989 = vmatpush1.msra.mxu0 0.0
    %4990 = vmatprep.subr.mxu0 0.0
    %4991 = vmatpush1.msra.mxu0 0.0
    %4992 = vmatprep.subr.mxu0 0.0
    %4993 = vmatpush1.msra.mxu0 0.0
    %4994 = vmatprep.subr.mxu0 0.0
    %4995 = vmatpush1.msra.mxu0 0.0
    %4996 = vmatprep.mubr.f32.mxu0 0.0
    %v4997 = vand.u32 %v4562, 4294901760
    %v4998 = vsub.f32 %v4562, %v4997
    %v4999 = vand.u32 %v4998, 4294901760
    %5000 = vmatmul.mubr.f32.gmra.mrb[0].mxu0 %v4999
    %v5001 = vpop.f32.mrb[0].mxu0
    %v5002 = vadd.f32 %v4900, %v5001
    %v5003 = vpop.f32.mrb[0].mxu0
    %5004 = vmatprep.mubr.f32.mxu0 0.0
    %v5005 = vand.u32 %v4565, 4294901760
    %v5006 = vsub.f32 %v4565, %v5005
    %v5007 = vand.u32 %v5006, 4294901760
    %5008 = vmatmul.mubr.f32.gmra.mrb[0].mxu0 %v5007
    %v5009 = vpop.f32.mrb[0].mxu0
    %v5010 = vadd.f32 %v4907, %v5009
    %v5011 = vpop.f32.mrb[0].mxu0
    %5012 = vmatprep.mubr.f32.mxu0 0.0
    %v5013 = vand.u32 %v4568, 4294901760
    %v5014 = vsub.f32 %v4568, %v5013
    %v5015 = vand.u32 %v5014, 4294901760
    %5016 = vmatmul.mubr.f32.gmra.mrb[0].mxu0 %v5015
    %v5017 = vpop.f32.mrb[0].mxu0
    %v5018 = vadd.f32 %v4914, %v5017
    %v5019 = vpop.f32.mrb[0].mxu0
    %5020 = vmatprep.mubr.f32.mxu0 0.0
    %v5021 = vand.u32 %v4571, 4294901760
    %v5022 = vsub.f32 %v4571, %v5021
    %v5023 = vand.u32 %v5022, 4294901760
    %5024 = vmatmul.mubr.f32.gmra.mrb[0].mxu0 %v5023
    %v5025 = vpop.f32.mrb[0].mxu0
    %v5026 = vadd.f32 %v4921, %v5025
    %v5027 = vpop.f32.mrb[0].mxu0
    %5028 = vdwg.mxu0
    %5029 = vmatprep.subr.mxu0 0.0
    %v5030 = vand.u32 %v46, 4294901760
    %v5031 = vsub.f32 %v46, %v5030
    %v5032 = vand.u32 %v5031, 4294901760
    %5033 = vmatpush1.msra.mxu0 %v5032
    %5034 = vmatprep.subr.mxu0 0.0
    %v5035 = vand.u32 %v47, 4294901760
    %v5036 = vsub.f32 %v47, %v5035
    %v5037 = vand.u32 %v5036, 4294901760
    %5038 = vmatpush1.msra.mxu0 %v5037
    %5039 = vmatprep.subr.mxu0 0.0
    %v5040 = vand.u32 %v48, 4294901760
    %v5041 = vsub.f32 %v48, %v5040
    %v5042 = vand.u32 %v5041, 4294901760
    %5043 = vmatpush1.msra.mxu0 %v5042
    %5044 = vmatprep.subr.mxu0 0.0
    %v5045 = vand.u32 %v49, 4294901760
    %v5046 = vsub.f32 %v49, %v5045
    %v5047 = vand.u32 %v5046, 4294901760
    %5048 = vmatpush1.msra.mxu0 %v5047
    %5049 = vmatprep.subr.mxu0 0.0
    %v5050 = vand.u32 %v50, 4294901760
    %v5051 = vsub.f32 %v50, %v5050
    %v5052 = vand.u32 %v5051, 4294901760
    %5053 = vmatpush1.msra.mxu0 %v5052
    %5054 = vmatprep.subr.mxu0 0.0
    %v5055 = vand.u32 %v51, 4294901760
    %v5056 = vsub.f32 %v51, %v5055
    %v5057 = vand.u32 %v5056, 4294901760
    %5058 = vmatpush1.msra.mxu0 %v5057
    %5059 = vmatprep.subr.mxu0 0.0
    %v5060 = vand.u32 %v52, 4294901760
    %v5061 = vsub.f32 %v52, %v5060
    %v5062 = vand.u32 %v5061, 4294901760
    %5063 = vmatpush1.msra.mxu0 %v5062
    %5064 = vmatprep.subr.mxu0 0.0
    %v5065 = vand.u32 %v53, 4294901760
    %v5066 = vsub.f32 %v53, %v5065
    %v5067 = vand.u32 %v5066, 4294901760
    %5068 = vmatpush1.msra.mxu0 %v5067
    %5069 = vmatprep.subr.mxu0 0.0
    %5070 = vmatpush1.msra.mxu0 0.0
    %5071 = vmatprep.subr.mxu0 0.0
    %5072 = vmatpush1.msra.mxu0 0.0
    %5073 = vmatprep.subr.mxu0 0.0
    %5074 = vmatpush1.msra.mxu0 0.0
    %5075 = vmatprep.subr.mxu0 0.0
    %5076 = vmatpush1.msra.mxu0 0.0
    %5077 = vmatprep.subr.mxu0 0.0
    %5078 = vmatpush1.msra.mxu0 0.0
    %5079 = vmatprep.subr.mxu0 0.0
    %5080 = vmatpush1.msra.mxu0 0.0
    %5081 = vmatprep.subr.mxu0 0.0
    %5082 = vmatpush1.msra.mxu0 0.0
    %5083 = vmatprep.subr.mxu0 0.0
    %5084 = vmatpush1.msra.mxu0 0.0
    %5085 = vmatprep.subr.mxu0 0.0
    %5086 = vmatpush1.msra.mxu0 0.0
    %5087 = vmatprep.subr.mxu0 0.0
    %5088 = vmatpush1.msra.mxu0 0.0
    %5089 = vmatprep.subr.mxu0 0.0
    %5090 = vmatpush1.msra.mxu0 0.0
    %5091 = vmatprep.subr.mxu0 0.0
    %5092 = vmatpush1.msra.mxu0 0.0
    %5093 = vmatprep.subr.mxu0 0.0
    %5094 = vmatpush1.msra.mxu0 0.0
    %5095 = vmatprep.subr.mxu0 0.0
    %5096 = vmatpush1.msra.mxu0 0.0
    %5097 = vmatprep.subr.mxu0 0.0
    %5098 = vmatpush1.msra.mxu0 0.0
    %5099 = vmatprep.subr.mxu0 0.0
    %5100 = vmatpush1.msra.mxu0 0.0
    %5101 = vmatprep.subr.mxu0 0.0
    %5102 = vmatpush1.msra.mxu0 0.0
    %5103 = vmatprep.subr.mxu0 0.0
    %5104 = vmatpush1.msra.mxu0 0.0
    %5105 = vmatprep.subr.mxu0 0.0
    %5106 = vmatpush1.msra.mxu0 0.0
    %5107 = vmatprep.subr.mxu0 0.0
    %5108 = vmatpush1.msra.mxu0 0.0
    %5109 = vmatprep.subr.mxu0 0.0
    %5110 = vmatpush1.msra.mxu0 0.0
    %5111 = vmatprep.subr.mxu0 0.0
    %5112 = vmatpush1.msra.mxu0 0.0
    %5113 = vmatprep.subr.mxu0 0.0
    %5114 = vmatpush1.msra.mxu0 0.0
    %5115 = vmatprep.subr.mxu0 0.0
    %5116 = vmatpush1.msra.mxu0 0.0
    %5117 = vmatprep.mubr.f32.mxu0 0.0
    %v5118 = vand.u32 %v4562, 4294901760
    %5119 = vmatmul.mubr.f32.gmra.mrb[0].mxu0 %v5118
    %v5120 = vpop.f32.mrb[0].mxu0
    %v5121 = vadd.f32 %v5002, %v5120
    %v5122 = vpop.f32.mrb[0].mxu0
    %5123 = vmatprep.mubr.f32.mxu0 0.0
    %v5124 = vand.u32 %v4565, 4294901760
    %5125 = vmatmul.mubr.f32.gmra.mrb[0].mxu0 %v5124
    %v5126 = vpop.f32.mrb[0].mxu0
    %v5127 = vadd.f32 %v5010, %v5126
    %v5128 = vpop.f32.mrb[0].mxu0
    %5129 = vmatprep.mubr.f32.mxu0 0.0
    %v5130 = vand.u32 %v4568, 4294901760
    %5131 = vmatmul.mubr.f32.gmra.mrb[0].mxu0 %v5130
    %v5132 = vpop.f32.mrb[0].mxu0
    %v5133 = vadd.f32 %v5018, %v5132
    %v5134 = vpop.f32.mrb[0].mxu0
    %5135 = vmatprep.mubr.f32.mxu0 0.0
    %v5136 = vand.u32 %v4571, 4294901760
    %5137 = vmatmul.mubr.f32.gmra.mrb[0].mxu0 %v5136
    %v5138 = vpop.f32.mrb[0].mxu0
    %v5139 = vadd.f32 %v5026, %v5138
    %v5140 = vpop.f32.mrb[0].mxu0
    %5141 = vdwg.mxu0
    %5142 = vmatprep.subr.mxu0 0.0
    %v5143 = vand.u32 %v46, 4294901760
    %5144 = vmatpush1.msra.mxu0 %v5143
    %5145 = vmatprep.subr.mxu0 0.0
    %v5146 = vand.u32 %v47, 4294901760
    %5147 = vmatpush1.msra.mxu0 %v5146
    %5148 = vmatprep.subr.mxu0 0.0
    %v5149 = vand.u32 %v48, 4294901760
    %5150 = vmatpush1.msra.mxu0 %v5149
    %5151 = vmatprep.subr.mxu0 0.0
    %v5152 = vand.u32 %v49, 4294901760
    %5153 = vmatpush1.msra.mxu0 %v5152
    %5154 = vmatprep.subr.mxu0 0.0
    %v5155 = vand.u32 %v50, 4294901760
    %5156 = vmatpush1.msra.mxu0 %v5155
    %5157 = vmatprep.subr.mxu0 0.0
    %v5158 = vand.u32 %v51, 4294901760
    %5159 = vmatpush1.msra.mxu0 %v5158
    %5160 = vmatprep.subr.mxu0 0.0
    %v5161 = vand.u32 %v52, 4294901760
    %5162 = vmatpush1.msra.mxu0 %v5161
    %5163 = vmatprep.subr.mxu0 0.0
    %v5164 = vand.u32 %v53, 4294901760
    %5165 = vmatpush1.msra.mxu0 %v5164
    %5166 = vmatprep.subr.mxu0 0.0
    %5167 = vmatpush1.msra.mxu0 0.0
    %5168 = vmatprep.subr.mxu0 0.0
    %5169 = vmatpush1.msra.mxu0 0.0
    %5170 = vmatprep.subr.mxu0 0.0
    %5171 = vmatpush1.msra.mxu0 0.0
    %5172 = vmatprep.subr.mxu0 0.0
    %5173 = vmatpush1.msra.mxu0 0.0
    %5174 = vmatprep.subr.mxu0 0.0
    %5175 = vmatpush1.msra.mxu0 0.0
    %5176 = vmatprep.subr.mxu0 0.0
    %5177 = vmatpush1.msra.mxu0 0.0
    %5178 = vmatprep.subr.mxu0 0.0
    %5179 = vmatpush1.msra.mxu0 0.0
    %5180 = vmatprep.subr.mxu0 0.0
    %5181 = vmatpush1.msra.mxu0 0.0
    %5182 = vmatprep.subr.mxu0 0.0
    %5183 = vmatpush1.msra.mxu0 0.0
    %5184 = vmatprep.subr.mxu0 0.0
    %5185 = vmatpush1.msra.mxu0 0.0
    %5186 = vmatprep.subr.mxu0 0.0
    %5187 = vmatpush1.msra.mxu0 0.0
    %5188 = vmatprep.subr.mxu0 0.0
    %5189 = vmatpush1.msra.mxu0 0.0
    %5190 = vmatprep.subr.mxu0 0.0
    %5191 = vmatpush1.msra.mxu0 0.0
    %5192 = vmatprep.subr.mxu0 0.0
    %5193 = vmatpush1.msra.mxu0 0.0
    %5194 = vmatprep.subr.mxu0 0.0
    %5195 = vmatpush1.msra.mxu0 0.0
    %5196 = vmatprep.subr.mxu0 0.0
    %5197 = vmatpush1.msra.mxu0 0.0
    %5198 = vmatprep.subr.mxu0 0.0
    %5199 = vmatpush1.msra.mxu0 0.0
    %5200 = vmatprep.subr.mxu0 0.0
    %5201 = vmatpush1.msra.mxu0 0.0
    %5202 = vmatprep.subr.mxu0 0.0
    %5203 = vmatpush1.msra.mxu0 0.0
    %5204 = vmatprep.subr.mxu0 0.0
    %5205 = vmatpush1.msra.mxu0 0.0
    %5206 = vmatprep.subr.mxu0 0.0
    %5207 = vmatpush1.msra.mxu0 0.0
    %5208 = vmatprep.subr.mxu0 0.0
    %5209 = vmatpush1.msra.mxu0 0.0
    %5210 = vmatprep.subr.mxu0 0.0
    %5211 = vmatpush1.msra.mxu0 0.0
    %5212 = vmatprep.subr.mxu0 0.0
    %5213 = vmatpush1.msra.mxu0 0.0
    %5214 = vmatprep.mubr.f32.mxu0 0.0
    %v5215 = vand.u32 %v4562, 4294901760
    %5216 = vmatmul.mubr.f32.gmra.mrb[0].mxu0 %v5215
    %v5217 = vpop.f32.mrb[0].mxu0
    %v5218 = vadd.f32 %v5121, %v5217
    %v5219 = vpop.f32.mrb[0].mxu0
    %5220 = vmatprep.mubr.f32.mxu0 0.0
    %v5221 = vand.u32 %v4565, 4294901760
    %5222 = vmatmul.mubr.f32.gmra.mrb[0].mxu0 %v5221
    %v5223 = vpop.f32.mrb[0].mxu0
    %v5224 = vadd.f32 %v5127, %v5223
    %v5225 = vpop.f32.mrb[0].mxu0
    %5226 = vmatprep.mubr.f32.mxu0 0.0
    %v5227 = vand.u32 %v4568, 4294901760
    %5228 = vmatmul.mubr.f32.gmra.mrb[0].mxu0 %v5227
    %v5229 = vpop.f32.mrb[0].mxu0
    %v5230 = vadd.f32 %v5133, %v5229
    %v5231 = vpop.f32.mrb[0].mxu0
    %5232 = vmatprep.mubr.f32.mxu0 0.0
    %v5233 = vand.u32 %v4571, 4294901760
    %5234 = vmatmul.mubr.f32.gmra.mrb[0].mxu0 %v5233
    %v5235 = vpop.f32.mrb[0].mxu0
    %v5236 = vadd.f32 %v5139, %v5235
    %v5237 = vpop.f32.mrb[0].mxu0
    %5238 = vdwg.mxu0
    %v5240 = vsel %vm2139, %v4540, 0
    %v5243 = vsel %vm2139, %v4546, 0
    %v5246 = vsel %vm2139, %v4552, 0
    %v5249 = vsel %vm2139, %v4558, 0
    %5251 = vmatprep.subr.mxu0 0.0
    %v5252 = vand.u32 %v38, 4294901760
    %5253 = vmatpush1.msra.mxu0 %v5252
    %5254 = vmatprep.subr.mxu0 0.0
    %v5255 = vand.u32 %v39, 4294901760
    %5256 = vmatpush1.msra.mxu0 %v5255
    %5257 = vmatprep.subr.mxu0 0.0
    %v5258 = vand.u32 %v40, 4294901760
    %5259 = vmatpush1.msra.mxu0 %v5258
    %5260 = vmatprep.subr.mxu0 0.0
    %v5261 = vand.u32 %v41, 4294901760
    %5262 = vmatpush1.msra.mxu0 %v5261
    %5263 = vmatprep.subr.mxu0 0.0
    %v5264 = vand.u32 %v42, 4294901760
    %5265 = vmatpush1.msra.mxu0 %v5264
    %5266 = vmatprep.subr.mxu0 0.0
    %v5267 = vand.u32 %v43, 4294901760
    %5268 = vmatpush1.msra.mxu0 %v5267
    %5269 = vmatprep.subr.mxu0 0.0
    %v5270 = vand.u32 %v44, 4294901760
    %5271 = vmatpush1.msra.mxu0 %v5270
    %5272 = vmatprep.subr.mxu0 0.0
    %v5273 = vand.u32 %v45, 4294901760
    %5274 = vmatpush1.msra.mxu0 %v5273
    %5275 = vmatprep.subr.mxu0 0.0
    %5276 = vmatpush1.msra.mxu0 0.0
    %5277 = vmatprep.subr.mxu0 0.0
    %5278 = vmatpush1.msra.mxu0 0.0
    %5279 = vmatprep.subr.mxu0 0.0
    %5280 = vmatpush1.msra.mxu0 0.0
    %5281 = vmatprep.subr.mxu0 0.0
    %5282 = vmatpush1.msra.mxu0 0.0
    %5283 = vmatprep.subr.mxu0 0.0
    %5284 = vmatpush1.msra.mxu0 0.0
    %5285 = vmatprep.subr.mxu0 0.0
    %5286 = vmatpush1.msra.mxu0 0.0
    %5287 = vmatprep.subr.mxu0 0.0
    %5288 = vmatpush1.msra.mxu0 0.0
    %5289 = vmatprep.subr.mxu0 0.0
    %5290 = vmatpush1.msra.mxu0 0.0
    %5291 = vmatprep.subr.mxu0 0.0
    %5292 = vmatpush1.msra.mxu0 0.0
    %5293 = vmatprep.subr.mxu0 0.0
    %5294 = vmatpush1.msra.mxu0 0.0
    %5295 = vmatprep.subr.mxu0 0.0
    %5296 = vmatpush1.msra.mxu0 0.0
    %5297 = vmatprep.subr.mxu0 0.0
    %5298 = vmatpush1.msra.mxu0 0.0
    %5299 = vmatprep.subr.mxu0 0.0
    %5300 = vmatpush1.msra.mxu0 0.0
    %5301 = vmatprep.subr.mxu0 0.0
    %5302 = vmatpush1.msra.mxu0 0.0
    %5303 = vmatprep.subr.mxu0 0.0
    %5304 = vmatpush1.msra.mxu0 0.0
    %5305 = vmatprep.subr.mxu0 0.0
    %5306 = vmatpush1.msra.mxu0 0.0
    %5307 = vmatprep.subr.mxu0 0.0
    %5308 = vmatpush1.msra.mxu0 0.0
    %5309 = vmatprep.subr.mxu0 0.0
    %5310 = vmatpush1.msra.mxu0 0.0
    %5311 = vmatprep.subr.mxu0 0.0
    %5312 = vmatpush1.msra.mxu0 0.0
    %5313 = vmatprep.subr.mxu0 0.0
    %5314 = vmatpush1.msra.mxu0 0.0
    %5315 = vmatprep.subr.mxu0 0.0
    %5316 = vmatpush1.msra.mxu0 0.0
    %5317 = vmatprep.subr.mxu0 0.0
    %5318 = vmatpush1.msra.mxu0 0.0
    %5319 = vmatprep.subr.mxu0 0.0
    %5320 = vmatpush1.msra.mxu0 0.0
    %5321 = vmatprep.subr.mxu0 0.0
    %5322 = vmatpush1.msra.mxu0 0.0
    %5323 = vmatprep.mubr.f32.mxu0 0.0
    %v5324 = vand.u32 %v5240, 4294901760
    %v5325 = vsub.f32 %v5240, %v5324
    %v5326 = vand.u32 %v5325, 4294901760
    %v5327 = vsub.f32 %v5325, %v5326
    %v5328 = vand.u32 %v5327, 4294901760
    %5329 = vmatmul.mubr.f32.gmra.mrb[0].mxu0 %v5328
    %v5330 = vpop.f32.mrb[0].mxu0
    %v5331 = vadd.f32 %v5218, %v5330
    %v5332 = vpop.f32.mrb[0].mxu0
    %5333 = vmatprep.mubr.f32.mxu0 0.0
    %v5334 = vand.u32 %v5243, 4294901760
    %v5335 = vsub.f32 %v5243, %v5334
    %v5336 = vand.u32 %v5335, 4294901760
    %v5337 = vsub.f32 %v5335, %v5336
    %v5338 = vand.u32 %v5337, 4294901760
    %5339 = vmatmul.mubr.f32.gmra.mrb[0].mxu0 %v5338
    %v5340 = vpop.f32.mrb[0].mxu0
    %v5341 = vadd.f32 %v5224, %v5340
    %v5342 = vpop.f32.mrb[0].mxu0
    %5343 = vmatprep.mubr.f32.mxu0 0.0
    %v5344 = vand.u32 %v5246, 4294901760
    %v5345 = vsub.f32 %v5246, %v5344
    %v5346 = vand.u32 %v5345, 4294901760
    %v5347 = vsub.f32 %v5345, %v5346
    %v5348 = vand.u32 %v5347, 4294901760
    %5349 = vmatmul.mubr.f32.gmra.mrb[0].mxu0 %v5348
    %v5350 = vpop.f32.mrb[0].mxu0
    %v5351 = vadd.f32 %v5230, %v5350
    %v5352 = vpop.f32.mrb[0].mxu0
    %5353 = vmatprep.mubr.f32.mxu0 0.0
    %v5354 = vand.u32 %v5249, 4294901760
    %v5355 = vsub.f32 %v5249, %v5354
    %v5356 = vand.u32 %v5355, 4294901760
    %v5357 = vsub.f32 %v5355, %v5356
    %v5358 = vand.u32 %v5357, 4294901760
    %5359 = vmatmul.mubr.f32.gmra.mrb[0].mxu0 %v5358
    %v5360 = vpop.f32.mrb[0].mxu0
    %v5361 = vadd.f32 %v5236, %v5360
    %v5362 = vpop.f32.mrb[0].mxu0
    %5363 = vdwg.mxu0
    %5364 = vmatprep.subr.mxu0 0.0
    %v5365 = vand.u32 %v38, 4294901760
    %v5366 = vsub.f32 %v38, %v5365
    %v5367 = vand.u32 %v5366, 4294901760
    %v5368 = vsub.f32 %v5366, %v5367
    %v5369 = vand.u32 %v5368, 4294901760
    %5370 = vmatpush1.msra.mxu0 %v5369
    %5371 = vmatprep.subr.mxu0 0.0
    %v5372 = vand.u32 %v39, 4294901760
    %v5373 = vsub.f32 %v39, %v5372
    %v5374 = vand.u32 %v5373, 4294901760
    %v5375 = vsub.f32 %v5373, %v5374
    %v5376 = vand.u32 %v5375, 4294901760
    %5377 = vmatpush1.msra.mxu0 %v5376
    %5378 = vmatprep.subr.mxu0 0.0
    %v5379 = vand.u32 %v40, 4294901760
    %v5380 = vsub.f32 %v40, %v5379
    %v5381 = vand.u32 %v5380, 4294901760
    %v5382 = vsub.f32 %v5380, %v5381
    %v5383 = vand.u32 %v5382, 4294901760
    %5384 = vmatpush1.msra.mxu0 %v5383
    %5385 = vmatprep.subr.mxu0 0.0
    %v5386 = vand.u32 %v41, 4294901760
    %v5387 = vsub.f32 %v41, %v5386
    %v5388 = vand.u32 %v5387, 4294901760
    %v5389 = vsub.f32 %v5387, %v5388
    %v5390 = vand.u32 %v5389, 4294901760
    %5391 = vmatpush1.msra.mxu0 %v5390
    %5392 = vmatprep.subr.mxu0 0.0
    %v5393 = vand.u32 %v42, 4294901760
    %v5394 = vsub.f32 %v42, %v5393
    %v5395 = vand.u32 %v5394, 4294901760
    %v5396 = vsub.f32 %v5394, %v5395
    %v5397 = vand.u32 %v5396, 4294901760
    %5398 = vmatpush1.msra.mxu0 %v5397
    %5399 = vmatprep.subr.mxu0 0.0
    %v5400 = vand.u32 %v43, 4294901760
    %v5401 = vsub.f32 %v43, %v5400
    %v5402 = vand.u32 %v5401, 4294901760
    %v5403 = vsub.f32 %v5401, %v5402
    %v5404 = vand.u32 %v5403, 4294901760
    %5405 = vmatpush1.msra.mxu0 %v5404
    %5406 = vmatprep.subr.mxu0 0.0
    %v5407 = vand.u32 %v44, 4294901760
    %v5408 = vsub.f32 %v44, %v5407
    %v5409 = vand.u32 %v5408, 4294901760
    %v5410 = vsub.f32 %v5408, %v5409
    %v5411 = vand.u32 %v5410, 4294901760
    %5412 = vmatpush1.msra.mxu0 %v5411
    %5413 = vmatprep.subr.mxu0 0.0
    %v5414 = vand.u32 %v45, 4294901760
    %v5415 = vsub.f32 %v45, %v5414
    %v5416 = vand.u32 %v5415, 4294901760
    %v5417 = vsub.f32 %v5415, %v5416
    %v5418 = vand.u32 %v5417, 4294901760
    %5419 = vmatpush1.msra.mxu0 %v5418
    %5420 = vmatprep.subr.mxu0 0.0
    %5421 = vmatpush1.msra.mxu0 0.0
    %5422 = vmatprep.subr.mxu0 0.0
    %5423 = vmatpush1.msra.mxu0 0.0
    %5424 = vmatprep.subr.mxu0 0.0
    %5425 = vmatpush1.msra.mxu0 0.0
    %5426 = vmatprep.subr.mxu0 0.0
    %5427 = vmatpush1.msra.mxu0 0.0
    %5428 = vmatprep.subr.mxu0 0.0
    %5429 = vmatpush1.msra.mxu0 0.0
    %5430 = vmatprep.subr.mxu0 0.0
    %5431 = vmatpush1.msra.mxu0 0.0
    %5432 = vmatprep.subr.mxu0 0.0
    %5433 = vmatpush1.msra.mxu0 0.0
    %5434 = vmatprep.subr.mxu0 0.0
    %5435 = vmatpush1.msra.mxu0 0.0
    %5436 = vmatprep.subr.mxu0 0.0
    %5437 = vmatpush1.msra.mxu0 0.0
    %5438 = vmatprep.subr.mxu0 0.0
    %5439 = vmatpush1.msra.mxu0 0.0
    %5440 = vmatprep.subr.mxu0 0.0
    %5441 = vmatpush1.msra.mxu0 0.0
    %5442 = vmatprep.subr.mxu0 0.0
    %5443 = vmatpush1.msra.mxu0 0.0
    %5444 = vmatprep.subr.mxu0 0.0
    %5445 = vmatpush1.msra.mxu0 0.0
    %5446 = vmatprep.subr.mxu0 0.0
    %5447 = vmatpush1.msra.mxu0 0.0
    %5448 = vmatprep.subr.mxu0 0.0
    %5449 = vmatpush1.msra.mxu0 0.0
    %5450 = vmatprep.subr.mxu0 0.0
    %5451 = vmatpush1.msra.mxu0 0.0
    %5452 = vmatprep.subr.mxu0 0.0
    %5453 = vmatpush1.msra.mxu0 0.0
    %5454 = vmatprep.subr.mxu0 0.0
    %5455 = vmatpush1.msra.mxu0 0.0
    %5456 = vmatprep.subr.mxu0 0.0
    %5457 = vmatpush1.msra.mxu0 0.0
    %5458 = vmatprep.subr.mxu0 0.0
    %5459 = vmatpush1.msra.mxu0 0.0
    %5460 = vmatprep.subr.mxu0 0.0
    %5461 = vmatpush1.msra.mxu0 0.0
    %5462 = vmatprep.subr.mxu0 0.0
    %5463 = vmatpush1.msra.mxu0 0.0
    %5464 = vmatprep.subr.mxu0 0.0
    %5465 = vmatpush1.msra.mxu0 0.0
    %5466 = vmatprep.subr.mxu0 0.0
    %5467 = vmatpush1.msra.mxu0 0.0
    %5468 = vmatprep.mubr.f32.mxu0 0.0
    %v5469 = vand.u32 %v5240, 4294901760
    %5470 = vmatmul.mubr.f32.gmra.mrb[0].mxu0 %v5469
    %v5471 = vpop.f32.mrb[0].mxu0
    %v5472 = vadd.f32 %v5331, %v5471
    %v5473 = vpop.f32.mrb[0].mxu0
    %5474 = vmatprep.mubr.f32.mxu0 0.0
    %v5475 = vand.u32 %v5243, 4294901760
    %5476 = vmatmul.mubr.f32.gmra.mrb[0].mxu0 %v5475
    %v5477 = vpop.f32.mrb[0].mxu0
    %v5478 = vadd.f32 %v5341, %v5477
    %v5479 = vpop.f32.mrb[0].mxu0
    %5480 = vmatprep.mubr.f32.mxu0 0.0
    %v5481 = vand.u32 %v5246, 4294901760
    %5482 = vmatmul.mubr.f32.gmra.mrb[0].mxu0 %v5481
    %v5483 = vpop.f32.mrb[0].mxu0
    %v5484 = vadd.f32 %v5351, %v5483
    %v5485 = vpop.f32.mrb[0].mxu0
    %5486 = vmatprep.mubr.f32.mxu0 0.0
    %v5487 = vand.u32 %v5249, 4294901760
    %5488 = vmatmul.mubr.f32.gmra.mrb[0].mxu0 %v5487
    %v5489 = vpop.f32.mrb[0].mxu0
    %v5490 = vadd.f32 %v5361, %v5489
    %v5491 = vpop.f32.mrb[0].mxu0
    %5492 = vdwg.mxu0
    %5493 = vmatprep.subr.mxu0 0.0
    %v5494 = vand.u32 %v38, 4294901760
    %v5495 = vsub.f32 %v38, %v5494
    %5496 = vmatpush1.msra.mxu0 %v5495
    %5497 = vmatprep.subr.mxu0 0.0
    %v5498 = vand.u32 %v39, 4294901760
    %v5499 = vsub.f32 %v39, %v5498
    %5500 = vmatpush1.msra.mxu0 %v5499
    %5501 = vmatprep.subr.mxu0 0.0
    %v5502 = vand.u32 %v40, 4294901760
    %v5503 = vsub.f32 %v40, %v5502
    %5504 = vmatpush1.msra.mxu0 %v5503
    %5505 = vmatprep.subr.mxu0 0.0
    %v5506 = vand.u32 %v41, 4294901760
    %v5507 = vsub.f32 %v41, %v5506
    %5508 = vmatpush1.msra.mxu0 %v5507
    %5509 = vmatprep.subr.mxu0 0.0
    %v5510 = vand.u32 %v42, 4294901760
    %v5511 = vsub.f32 %v42, %v5510
    %5512 = vmatpush1.msra.mxu0 %v5511
    %5513 = vmatprep.subr.mxu0 0.0
    %v5514 = vand.u32 %v43, 4294901760
    %v5515 = vsub.f32 %v43, %v5514
    %5516 = vmatpush1.msra.mxu0 %v5515
    %5517 = vmatprep.subr.mxu0 0.0
    %v5518 = vand.u32 %v44, 4294901760
    %v5519 = vsub.f32 %v44, %v5518
    %5520 = vmatpush1.msra.mxu0 %v5519
    %5521 = vmatprep.subr.mxu0 0.0
    %v5522 = vand.u32 %v45, 4294901760
    %v5523 = vsub.f32 %v45, %v5522
    %5524 = vmatpush1.msra.mxu0 %v5523
    %5525 = vmatprep.subr.mxu0 0.0
    %5526 = vmatpush1.msra.mxu0 0.0
    %5527 = vmatprep.subr.mxu0 0.0
    %5528 = vmatpush1.msra.mxu0 0.0
    %5529 = vmatprep.subr.mxu0 0.0
    %5530 = vmatpush1.msra.mxu0 0.0
    %5531 = vmatprep.subr.mxu0 0.0
    %5532 = vmatpush1.msra.mxu0 0.0
    %5533 = vmatprep.subr.mxu0 0.0
    %5534 = vmatpush1.msra.mxu0 0.0
    %5535 = vmatprep.subr.mxu0 0.0
    %5536 = vmatpush1.msra.mxu0 0.0
    %5537 = vmatprep.subr.mxu0 0.0
    %5538 = vmatpush1.msra.mxu0 0.0
    %5539 = vmatprep.subr.mxu0 0.0
    %5540 = vmatpush1.msra.mxu0 0.0
    %5541 = vmatprep.subr.mxu0 0.0
    %5542 = vmatpush1.msra.mxu0 0.0
    %5543 = vmatprep.subr.mxu0 0.0
    %5544 = vmatpush1.msra.mxu0 0.0
    %5545 = vmatprep.subr.mxu0 0.0
    %5546 = vmatpush1.msra.mxu0 0.0
    %5547 = vmatprep.subr.mxu0 0.0
    %5548 = vmatpush1.msra.mxu0 0.0
    %5549 = vmatprep.subr.mxu0 0.0
    %5550 = vmatpush1.msra.mxu0 0.0
    %5551 = vmatprep.subr.mxu0 0.0
    %5552 = vmatpush1.msra.mxu0 0.0
    %5553 = vmatprep.subr.mxu0 0.0
    %5554 = vmatpush1.msra.mxu0 0.0
    %5555 = vmatprep.subr.mxu0 0.0
    %5556 = vmatpush1.msra.mxu0 0.0
    %5557 = vmatprep.subr.mxu0 0.0
    %5558 = vmatpush1.msra.mxu0 0.0
    %5559 = vmatprep.subr.mxu0 0.0
    %5560 = vmatpush1.msra.mxu0 0.0
    %5561 = vmatprep.subr.mxu0 0.0
    %5562 = vmatpush1.msra.mxu0 0.0
    %5563 = vmatprep.subr.mxu0 0.0
    %5564 = vmatpush1.msra.mxu0 0.0
    %5565 = vmatprep.subr.mxu0 0.0
    %5566 = vmatpush1.msra.mxu0 0.0
    %5567 = vmatprep.subr.mxu0 0.0
    %5568 = vmatpush1.msra.mxu0 0.0
    %5569 = vmatprep.subr.mxu0 0.0
    %5570 = vmatpush1.msra.mxu0 0.0
    %5571 = vmatprep.subr.mxu0 0.0
    %5572 = vmatpush1.msra.mxu0 0.0
    %5573 = vmatprep.mubr.f32.mxu0 0.0
    %v5574 = vand.u32 %v5240, 4294901760
    %v5575 = vsub.f32 %v5240, %v5574
    %5576 = vmatmul.mubr.f32.gmra.mrb[0].mxu0 %v5575
    %v5577 = vpop.f32.mrb[0].mxu0
    %v5578 = vadd.f32 %v5472, %v5577
    %v5579 = vpop.f32.mrb[0].mxu0
    %5580 = vmatprep.mubr.f32.mxu0 0.0
    %v5581 = vand.u32 %v5243, 4294901760
    %v5582 = vsub.f32 %v5243, %v5581
    %5583 = vmatmul.mubr.f32.gmra.mrb[0].mxu0 %v5582
    %v5584 = vpop.f32.mrb[0].mxu0
    %v5585 = vadd.f32 %v5478, %v5584
    %v5586 = vpop.f32.mrb[0].mxu0
    %5587 = vmatprep.mubr.f32.mxu0 0.0
    %v5588 = vand.u32 %v5246, 4294901760
    %v5589 = vsub.f32 %v5246, %v5588
    %5590 = vmatmul.mubr.f32.gmra.mrb[0].mxu0 %v5589
    %v5591 = vpop.f32.mrb[0].mxu0
    %v5592 = vadd.f32 %v5484, %v5591
    %v5593 = vpop.f32.mrb[0].mxu0
    %5594 = vmatprep.mubr.f32.mxu0 0.0
    %v5595 = vand.u32 %v5249, 4294901760
    %v5596 = vsub.f32 %v5249, %v5595
    %5597 = vmatmul.mubr.f32.gmra.mrb[0].mxu0 %v5596
    %v5598 = vpop.f32.mrb[0].mxu0
    %v5599 = vadd.f32 %v5490, %v5598
    %v5600 = vpop.f32.mrb[0].mxu0
    %5601 = vdwg.mxu0
    %5602 = vmatprep.subr.mxu0 0.0
    %v5603 = vand.u32 %v38, 4294901760
    %5604 = vmatpush1.msra.mxu0 %v5603
    %5605 = vmatprep.subr.mxu0 0.0
    %v5606 = vand.u32 %v39, 4294901760
    %5607 = vmatpush1.msra.mxu0 %v5606
    %5608 = vmatprep.subr.mxu0 0.0
    %v5609 = vand.u32 %v40, 4294901760
    %5610 = vmatpush1.msra.mxu0 %v5609
    %5611 = vmatprep.subr.mxu0 0.0
    %v5612 = vand.u32 %v41, 4294901760
    %5613 = vmatpush1.msra.mxu0 %v5612
    %5614 = vmatprep.subr.mxu0 0.0
    %v5615 = vand.u32 %v42, 4294901760
    %5616 = vmatpush1.msra.mxu0 %v5615
    %5617 = vmatprep.subr.mxu0 0.0
    %v5618 = vand.u32 %v43, 4294901760
    %5619 = vmatpush1.msra.mxu0 %v5618
    %5620 = vmatprep.subr.mxu0 0.0
    %v5621 = vand.u32 %v44, 4294901760
    %5622 = vmatpush1.msra.mxu0 %v5621
    %5623 = vmatprep.subr.mxu0 0.0
    %v5624 = vand.u32 %v45, 4294901760
    %5625 = vmatpush1.msra.mxu0 %v5624
    %5626 = vmatprep.subr.mxu0 0.0
    %5627 = vmatpush1.msra.mxu0 0.0
    %5628 = vmatprep.subr.mxu0 0.0
    %5629 = vmatpush1.msra.mxu0 0.0
    %5630 = vmatprep.subr.mxu0 0.0
    %5631 = vmatpush1.msra.mxu0 0.0
    %5632 = vmatprep.subr.mxu0 0.0
    %5633 = vmatpush1.msra.mxu0 0.0
    %5634 = vmatprep.subr.mxu0 0.0
    %5635 = vmatpush1.msra.mxu0 0.0
    %5636 = vmatprep.subr.mxu0 0.0
    %5637 = vmatpush1.msra.mxu0 0.0
    %5638 = vmatprep.subr.mxu0 0.0
    %5639 = vmatpush1.msra.mxu0 0.0
    %5640 = vmatprep.subr.mxu0 0.0
    %5641 = vmatpush1.msra.mxu0 0.0
    %5642 = vmatprep.subr.mxu0 0.0
    %5643 = vmatpush1.msra.mxu0 0.0
    %5644 = vmatprep.subr.mxu0 0.0
    %5645 = vmatpush1.msra.mxu0 0.0
    %5646 = vmatprep.subr.mxu0 0.0
    %5647 = vmatpush1.msra.mxu0 0.0
    %5648 = vmatprep.subr.mxu0 0.0
    %5649 = vmatpush1.msra.mxu0 0.0
    %5650 = vmatprep.subr.mxu0 0.0
    %5651 = vmatpush1.msra.mxu0 0.0
    %5652 = vmatprep.subr.mxu0 0.0
    %5653 = vmatpush1.msra.mxu0 0.0
    %5654 = vmatprep.subr.mxu0 0.0
    %5655 = vmatpush1.msra.mxu0 0.0
    %5656 = vmatprep.subr.mxu0 0.0
    %5657 = vmatpush1.msra.mxu0 0.0
    %5658 = vmatprep.subr.mxu0 0.0
    %5659 = vmatpush1.msra.mxu0 0.0
    %5660 = vmatprep.subr.mxu0 0.0
    %5661 = vmatpush1.msra.mxu0 0.0
    %5662 = vmatprep.subr.mxu0 0.0
    %5663 = vmatpush1.msra.mxu0 0.0
    %5664 = vmatprep.subr.mxu0 0.0
    %5665 = vmatpush1.msra.mxu0 0.0
    %5666 = vmatprep.subr.mxu0 0.0
    %5667 = vmatpush1.msra.mxu0 0.0
    %5668 = vmatprep.subr.mxu0 0.0
    %5669 = vmatpush1.msra.mxu0 0.0
    %5670 = vmatprep.subr.mxu0 0.0
    %5671 = vmatpush1.msra.mxu0 0.0
    %5672 = vmatprep.subr.mxu0 0.0
    %5673 = vmatpush1.msra.mxu0 0.0
    %5674 = vmatprep.mubr.f32.mxu0 0.0
    %v5675 = vand.u32 %v5240, 4294901760
    %v5676 = vsub.f32 %v5240, %v5675
    %v5677 = vand.u32 %v5676, 4294901760
    %5678 = vmatmul.mubr.f32.gmra.mrb[0].mxu0 %v5677
    %v5679 = vpop.f32.mrb[0].mxu0
    %v5680 = vadd.f32 %v5578, %v5679
    %v5681 = vpop.f32.mrb[0].mxu0
    %5682 = vmatprep.mubr.f32.mxu0 0.0
    %v5683 = vand.u32 %v5243, 4294901760
    %v5684 = vsub.f32 %v5243, %v5683
    %v5685 = vand.u32 %v5684, 4294901760
    %5686 = vmatmul.mubr.f32.gmra.mrb[0].mxu0 %v5685
    %v5687 = vpop.f32.mrb[0].mxu0
    %v5688 = vadd.f32 %v5585, %v5687
    %v5689 = vpop.f32.mrb[0].mxu0
    %5690 = vmatprep.mubr.f32.mxu0 0.0
    %v5691 = vand.u32 %v5246, 4294901760
    %v5692 = vsub.f32 %v5246, %v5691
    %v5693 = vand.u32 %v5692, 4294901760
    %5694 = vmatmul.mubr.f32.gmra.mrb[0].mxu0 %v5693
    %v5695 = vpop.f32.mrb[0].mxu0
    %v5696 = vadd.f32 %v5592, %v5695
    %v5697 = vpop.f32.mrb[0].mxu0
    %5698 = vmatprep.mubr.f32.mxu0 0.0
    %v5699 = vand.u32 %v5249, 4294901760
    %v5700 = vsub.f32 %v5249, %v5699
    %v5701 = vand.u32 %v5700, 4294901760
    %5702 = vmatmul.mubr.f32.gmra.mrb[0].mxu0 %v5701
    %v5703 = vpop.f32.mrb[0].mxu0
    %v5704 = vadd.f32 %v5599, %v5703
    %v5705 = vpop.f32.mrb[0].mxu0
    %5706 = vdwg.mxu0
    %5707 = vmatprep.subr.mxu0 0.0
    %v5708 = vand.u32 %v38, 4294901760
    %v5709 = vsub.f32 %v38, %v5708
    %v5710 = vand.u32 %v5709, 4294901760
    %5711 = vmatpush1.msra.mxu0 %v5710
    %5712 = vmatprep.subr.mxu0 0.0
    %v5713 = vand.u32 %v39, 4294901760
    %v5714 = vsub.f32 %v39, %v5713
    %v5715 = vand.u32 %v5714, 4294901760
    %5716 = vmatpush1.msra.mxu0 %v5715
    %5717 = vmatprep.subr.mxu0 0.0
    %v5718 = vand.u32 %v40, 4294901760
    %v5719 = vsub.f32 %v40, %v5718
    %v5720 = vand.u32 %v5719, 4294901760
    %5721 = vmatpush1.msra.mxu0 %v5720
    %5722 = vmatprep.subr.mxu0 0.0
    %v5723 = vand.u32 %v41, 4294901760
    %v5724 = vsub.f32 %v41, %v5723
    %v5725 = vand.u32 %v5724, 4294901760
    %5726 = vmatpush1.msra.mxu0 %v5725
    %5727 = vmatprep.subr.mxu0 0.0
    %v5728 = vand.u32 %v42, 4294901760
    %v5729 = vsub.f32 %v42, %v5728
    %v5730 = vand.u32 %v5729, 4294901760
    %5731 = vmatpush1.msra.mxu0 %v5730
    %5732 = vmatprep.subr.mxu0 0.0
    %v5733 = vand.u32 %v43, 4294901760
    %v5734 = vsub.f32 %v43, %v5733
    %v5735 = vand.u32 %v5734, 4294901760
    %5736 = vmatpush1.msra.mxu0 %v5735
    %5737 = vmatprep.subr.mxu0 0.0
    %v5738 = vand.u32 %v44, 4294901760
    %v5739 = vsub.f32 %v44, %v5738
    %v5740 = vand.u32 %v5739, 4294901760
    %5741 = vmatpush1.msra.mxu0 %v5740
    %5742 = vmatprep.subr.mxu0 0.0
    %v5743 = vand.u32 %v45, 4294901760
    %v5744 = vsub.f32 %v45, %v5743
    %v5745 = vand.u32 %v5744, 4294901760
    %5746 = vmatpush1.msra.mxu0 %v5745
    %5747 = vmatprep.subr.mxu0 0.0
    %5748 = vmatpush1.msra.mxu0 0.0
    %5749 = vmatprep.subr.mxu0 0.0
    %5750 = vmatpush1.msra.mxu0 0.0
    %5751 = vmatprep.subr.mxu0 0.0
    %5752 = vmatpush1.msra.mxu0 0.0
    %5753 = vmatprep.subr.mxu0 0.0
    %5754 = vmatpush1.msra.mxu0 0.0
    %5755 = vmatprep.subr.mxu0 0.0
    %5756 = vmatpush1.msra.mxu0 0.0
    %5757 = vmatprep.subr.mxu0 0.0
    %5758 = vmatpush1.msra.mxu0 0.0
    %5759 = vmatprep.subr.mxu0 0.0
    %5760 = vmatpush1.msra.mxu0 0.0
    %5761 = vmatprep.subr.mxu0 0.0
    %5762 = vmatpush1.msra.mxu0 0.0
    %5763 = vmatprep.subr.mxu0 0.0
    %5764 = vmatpush1.msra.mxu0 0.0
    %5765 = vmatprep.subr.mxu0 0.0
    %5766 = vmatpush1.msra.mxu0 0.0
    %5767 = vmatprep.subr.mxu0 0.0
    %5768 = vmatpush1.msra.mxu0 0.0
    %5769 = vmatprep.subr.mxu0 0.0
    %5770 = vmatpush1.msra.mxu0 0.0
    %5771 = vmatprep.subr.mxu0 0.0
    %5772 = vmatpush1.msra.mxu0 0.0
    %5773 = vmatprep.subr.mxu0 0.0
    %5774 = vmatpush1.msra.mxu0 0.0
    %5775 = vmatprep.subr.mxu0 0.0
    %5776 = vmatpush1.msra.mxu0 0.0
    %5777 = vmatprep.subr.mxu0 0.0
    %5778 = vmatpush1.msra.mxu0 0.0
    %5779 = vmatprep.subr.mxu0 0.0
    %5780 = vmatpush1.msra.mxu0 0.0
    %5781 = vmatprep.subr.mxu0 0.0
    %5782 = vmatpush1.msra.mxu0 0.0
    %5783 = vmatprep.subr.mxu0 0.0
    %5784 = vmatpush1.msra.mxu0 0.0
    %5785 = vmatprep.subr.mxu0 0.0
    %5786 = vmatpush1.msra.mxu0 0.0
    %5787 = vmatprep.subr.mxu0 0.0
    %5788 = vmatpush1.msra.mxu0 0.0
    %5789 = vmatprep.subr.mxu0 0.0
    %5790 = vmatpush1.msra.mxu0 0.0
    %5791 = vmatprep.subr.mxu0 0.0
    %5792 = vmatpush1.msra.mxu0 0.0
    %5793 = vmatprep.subr.mxu0 0.0
    %5794 = vmatpush1.msra.mxu0 0.0
    %5795 = vmatprep.mubr.f32.mxu0 0.0
    %v5796 = vand.u32 %v5240, 4294901760
    %5797 = vmatmul.mubr.f32.gmra.mrb[0].mxu0 %v5796
    %v5798 = vpop.f32.mrb[0].mxu0
    %v5799 = vadd.f32 %v5680, %v5798
    %v5800 = vpop.f32.mrb[0].mxu0
    %5801 = vmatprep.mubr.f32.mxu0 0.0
    %v5802 = vand.u32 %v5243, 4294901760
    %5803 = vmatmul.mubr.f32.gmra.mrb[0].mxu0 %v5802
    %v5804 = vpop.f32.mrb[0].mxu0
    %v5805 = vadd.f32 %v5688, %v5804
    %v5806 = vpop.f32.mrb[0].mxu0
    %5807 = vmatprep.mubr.f32.mxu0 0.0
    %v5808 = vand.u32 %v5246, 4294901760
    %5809 = vmatmul.mubr.f32.gmra.mrb[0].mxu0 %v5808
    %v5810 = vpop.f32.mrb[0].mxu0
    %v5811 = vadd.f32 %v5696, %v5810
    %v5812 = vpop.f32.mrb[0].mxu0
    %5813 = vmatprep.mubr.f32.mxu0 0.0
    %v5814 = vand.u32 %v5249, 4294901760
    %5815 = vmatmul.mubr.f32.gmra.mrb[0].mxu0 %v5814
    %v5816 = vpop.f32.mrb[0].mxu0
    %v5817 = vadd.f32 %v5704, %v5816
    %v5818 = vpop.f32.mrb[0].mxu0
    %5819 = vdwg.mxu0
    %5820 = vmatprep.subr.mxu0 0.0
    %v5821 = vand.u32 %v38, 4294901760
    %5822 = vmatpush1.msra.mxu0 %v5821
    %5823 = vmatprep.subr.mxu0 0.0
    %v5824 = vand.u32 %v39, 4294901760
    %5825 = vmatpush1.msra.mxu0 %v5824
    %5826 = vmatprep.subr.mxu0 0.0
    %v5827 = vand.u32 %v40, 4294901760
    %5828 = vmatpush1.msra.mxu0 %v5827
    %5829 = vmatprep.subr.mxu0 0.0
    %v5830 = vand.u32 %v41, 4294901760
    %5831 = vmatpush1.msra.mxu0 %v5830
    %5832 = vmatprep.subr.mxu0 0.0
    %v5833 = vand.u32 %v42, 4294901760
    %5834 = vmatpush1.msra.mxu0 %v5833
    %5835 = vmatprep.subr.mxu0 0.0
    %v5836 = vand.u32 %v43, 4294901760
    %5837 = vmatpush1.msra.mxu0 %v5836
    %5838 = vmatprep.subr.mxu0 0.0
    %v5839 = vand.u32 %v44, 4294901760
    %5840 = vmatpush1.msra.mxu0 %v5839
    %5841 = vmatprep.subr.mxu0 0.0
    %v5842 = vand.u32 %v45, 4294901760
    %5843 = vmatpush1.msra.mxu0 %v5842
    %5844 = vmatprep.subr.mxu0 0.0
    %5845 = vmatpush1.msra.mxu0 0.0
    %5846 = vmatprep.subr.mxu0 0.0
    %5847 = vmatpush1.msra.mxu0 0.0
    %5848 = vmatprep.subr.mxu0 0.0
    %5849 = vmatpush1.msra.mxu0 0.0
    %5850 = vmatprep.subr.mxu0 0.0
    %5851 = vmatpush1.msra.mxu0 0.0
    %5852 = vmatprep.subr.mxu0 0.0
    %5853 = vmatpush1.msra.mxu0 0.0
    %5854 = vmatprep.subr.mxu0 0.0
    %5855 = vmatpush1.msra.mxu0 0.0
    %5856 = vmatprep.subr.mxu0 0.0
    %5857 = vmatpush1.msra.mxu0 0.0
    %5858 = vmatprep.subr.mxu0 0.0
    %5859 = vmatpush1.msra.mxu0 0.0
    %5860 = vmatprep.subr.mxu0 0.0
    %5861 = vmatpush1.msra.mxu0 0.0
    %5862 = vmatprep.subr.mxu0 0.0
    %5863 = vmatpush1.msra.mxu0 0.0
    %5864 = vmatprep.subr.mxu0 0.0
    %5865 = vmatpush1.msra.mxu0 0.0
    %5866 = vmatprep.subr.mxu0 0.0
    %5867 = vmatpush1.msra.mxu0 0.0
    %5868 = vmatprep.subr.mxu0 0.0
    %5869 = vmatpush1.msra.mxu0 0.0
    %5870 = vmatprep.subr.mxu0 0.0
    %5871 = vmatpush1.msra.mxu0 0.0
    %5872 = vmatprep.subr.mxu0 0.0
    %5873 = vmatpush1.msra.mxu0 0.0
    %5874 = vmatprep.subr.mxu0 0.0
    %5875 = vmatpush1.msra.mxu0 0.0
    %5876 = vmatprep.subr.mxu0 0.0
    %5877 = vmatpush1.msra.mxu0 0.0
    %5878 = vmatprep.subr.mxu0 0.0
    %5879 = vmatpush1.msra.mxu0 0.0
    %5880 = vmatprep.subr.mxu0 0.0
    %5881 = vmatpush1.msra.mxu0 0.0
    %5882 = vmatprep.subr.mxu0 0.0
    %5883 = vmatpush1.msra.mxu0 0.0
    %5884 = vmatprep.subr.mxu0 0.0
    %5885 = vmatpush1.msra.mxu0 0.0
    %5886 = vmatprep.subr.mxu0 0.0
    %5887 = vmatpush1.msra.mxu0 0.0
    %5888 = vmatprep.subr.mxu0 0.0
    %5889 = vmatpush1.msra.mxu0 0.0
    %5890 = vmatprep.subr.mxu0 0.0
    %5891 = vmatpush1.msra.mxu0 0.0
    %5892 = vmatprep.mubr.f32.mxu0 0.0
    %v5893 = vand.u32 %v5240, 4294901760
    %5894 = vmatmul.mubr.f32.gmra.mrb[0].mxu0 %v5893
    %v5895 = vpop.f32.mrb[0].mxu0
    %v5896 = vadd.f32 %v5799, %v5895
    %v5897 = vpop.f32.mrb[0].mxu0
    %5898 = vmatprep.mubr.f32.mxu0 0.0
    %v5899 = vand.u32 %v5243, 4294901760
    %5900 = vmatmul.mubr.f32.gmra.mrb[0].mxu0 %v5899
    %v5901 = vpop.f32.mrb[0].mxu0
    %v5902 = vadd.f32 %v5805, %v5901
    %v5903 = vpop.f32.mrb[0].mxu0
    %5904 = vmatprep.mubr.f32.mxu0 0.0
    %v5905 = vand.u32 %v5246, 4294901760
    %5906 = vmatmul.mubr.f32.gmra.mrb[0].mxu0 %v5905
    %v5907 = vpop.f32.mrb[0].mxu0
    %v5908 = vadd.f32 %v5811, %v5907
    %v5909 = vpop.f32.mrb[0].mxu0
    %5910 = vmatprep.mubr.f32.mxu0 0.0
    %v5911 = vand.u32 %v5249, 4294901760
    %5912 = vmatmul.mubr.f32.gmra.mrb[0].mxu0 %v5911
    %v5913 = vpop.f32.mrb[0].mxu0
    %v5914 = vadd.f32 %v5817, %v5913
    %v5915 = vpop.f32.mrb[0].mxu0
    %5916 = vdwg.mxu0
    %v5917 = vlaneseq
    %v5918 = vshrl.u32 %v5917, 7
    %v5919 = vsub.s32 0, %v5918
    %v5920 = vrot.slane %v59, %v5919
    %v5921 = vadd.f32 %v5896, %v5920
    %v5922 = vadd.f32 %v5902, %v5920
    %v5923 = vadd.f32 %v5908, %v5920
    %v5924 = vadd.f32 %v5914, %v5920
    %v5925 = vmul.f32 %v5921, %v5921
    %v5926 = vmul.f32 %v5922, %v5922
    %v5927 = vmul.f32 %v5923, %v5923
    %v5928 = vmul.f32 %v5924, %v5924
    %vm5929 = vcmask 261120
    %v5930 = vsel %vm5929, %v5925, 0.0
    %5931 = vadd.xlane.f32.xlu0 %v5930
    %v5932 = vpop.xlane.xlu0 %5931
    %v5933 = vsel %vm5929, %v5926, 0.0
    %5934 = vadd.xlane.f32.xlu0 %v5933
    %v5935 = vpop.xlane.xlu0 %5934
    %v5936 = vsel %vm5929, %v5927, 0.0
    %5937 = vadd.xlane.f32.xlu0 %v5936
    %v5938 = vpop.xlane.xlu0 %5937
    %vm5939 = vcmask 254976
    %v5940 = vsel %vm5939, %v5928, 0.0
    %5941 = vadd.xlane.f32.xlu0 %v5940
    %v5942 = vpop.xlane.xlu0 %5941
    %v5943 = vmax.f32 %v5932, 1e-24
    %v5944 = vmax.f32 %v5935, 1e-24
    %v5945 = vmax.f32 %v5938, 1e-24
    %v5946 = vmax.f32 %v5942, 1e-24
    %v5947 = vrsqrt.pop %v5943
    %v5948 = vrsqrt.pop %v5944
    %v5949 = vrsqrt.pop %v5945
    %v5950 = vrsqrt.pop %v5946
    %v5951 = vmul.f32 %v5921, %v5947
    %v5952 = vmul.f32 %v5922, %v5948
    %v5953 = vmul.f32 %v5923, %v5949
    %v5954 = vmul.f32 %v5924, %v5950
    %v5955 = vmax.f32 %v5951, 0.0
    %v5956 = vmax.f32 %v5952, 0.0
    %v5957 = vmax.f32 %v5953, 0.0
    %v5958 = vmax.f32 %v5954, 0.0
    %v5959 = vld [vmem:[%s3] sm:$0xff]
    %v5960 = vld [vmem:[%s3 + $0x8] sm:$0xff]
    %v5961 = vld [vmem:[%s3 + $0x10] sm:$0xff]
    %v5962 = vld [vmem:[%s3 + $0x18] sm:$0x3]
    %v5963 = vand.u32 %v5959, 1
    %v5964 = vand.u32 %v5960, 1
    %v5965 = vand.u32 %v5961, 1
    %v5966 = vand.u32 %v5962, 1
    %vm5967 = vcmp.eq.s32.totalorder %v5963, 0
    %vm5968 = vcmp.eq.s32.totalorder %v5964, 0
    %vm5969 = vcmp.eq.s32.totalorder %v5965, 0
    %vm5970 = vcmp.eq.s32.totalorder %v5966, 0
    %v5971 = vsel %vm5967, %v5955, 0.0
    %v5972 = vsel %vm5968, %v5956, 0.0
    %v5973 = vsel %vm5969, %v5957, 0.0
    %v5974 = vsel %vm5970, %v5958, 0.0
    %v5975 = vsel %vm5967, 0.0, %v5955
    %v5976 = vsel %vm5968, 0.0, %v5956
    %v5977 = vsel %vm5969, 0.0, %v5957
    %v5978 = vsel %vm5970, 0.0, %v5958
    %vm5979 = vcmask 211968
    %v5981 = vsel %vm5979, %v83, 0
    %v5984 = vsel %vm5979, %v84, 0
    %v5987 = vsel %vm5979, %v85, 0
    %v5990 = vsel %vm5979, %v86, 0
    %v5993 = vsel %vm5979, %v87, 0
    %v5996 = vsel %vm5979, %v88, 0
    %v5999 = vsel %vm99, %v5978, 0
    %6001 = vmatprep.subr.mxu0 0.0
    %v6002 = vand.u32 %v5975, 4294901760
    %6003 = vmatpush1.msra.mxu0 %v6002
    %6004 = vmatprep.subr.mxu0 0.0
    %v6005 = vand.u32 %v5976, 4294901760
    %6006 = vmatpush1.msra.mxu0 %v6005
    %6007 = vmatprep.subr.mxu0 0.0
    %v6008 = vand.u32 %v5977, 4294901760
    %6009 = vmatpush1.msra.mxu0 %v6008
    %6010 = vmatprep.subr.mxu0 0.0
    %v6011 = vand.u32 %v5999, 4294901760
    %6012 = vmatpush1.msra.mxu0 %v6011
    %6013 = vmatprep.subr.mxu0 0.0
    %6014 = vmatpush1.msra.mxu0 0.0
    %6015 = vmatprep.subr.mxu0 0.0
    %6016 = vmatpush1.msra.mxu0 0.0
    %6017 = vmatprep.subr.mxu0 0.0
    %6018 = vmatpush1.msra.mxu0 0.0
    %6019 = vmatprep.subr.mxu0 0.0
    %6020 = vmatpush1.msra.mxu0 0.0
    %6021 = vmatprep.subr.mxu0 0.0
    %6022 = vmatpush1.msra.mxu0 0.0
    %6023 = vmatprep.subr.mxu0 0.0
    %6024 = vmatpush1.msra.mxu0 0.0
    %6025 = vmatprep.subr.mxu0 0.0
    %6026 = vmatpush1.msra.mxu0 0.0
    %6027 = vmatprep.subr.mxu0 0.0
    %6028 = vmatpush1.msra.mxu0 0.0
    %6029 = vmatprep.subr.mxu0 0.0
    %6030 = vmatpush1.msra.mxu0 0.0
    %6031 = vmatprep.subr.mxu0 0.0
    %6032 = vmatpush1.msra.mxu0 0.0
    %6033 = vmatprep.subr.mxu0 0.0
    %6034 = vmatpush1.msra.mxu0 0.0
    %6035 = vmatprep.subr.mxu0 0.0
    %6036 = vmatpush1.msra.mxu0 0.0
    %6037 = vmatprep.subr.mxu0 0.0
    %6038 = vmatpush1.msra.mxu0 0.0
    %6039 = vmatprep.subr.mxu0 0.0
    %6040 = vmatpush1.msra.mxu0 0.0
    %6041 = vmatprep.subr.mxu0 0.0
    %6042 = vmatpush1.msra.mxu0 0.0
    %6043 = vmatprep.subr.mxu0 0.0
    %6044 = vmatpush1.msra.mxu0 0.0
    %6045 = vmatprep.subr.mxu0 0.0
    %6046 = vmatpush1.msra.mxu0 0.0
    %6047 = vmatprep.subr.mxu0 0.0
    %6048 = vmatpush1.msra.mxu0 0.0
    %6049 = vmatprep.subr.mxu0 0.0
    %6050 = vmatpush1.msra.mxu0 0.0
    %6051 = vmatprep.subr.mxu0 0.0
    %6052 = vmatpush1.msra.mxu0 0.0
    %6053 = vmatprep.subr.mxu0 0.0
    %6054 = vmatpush1.msra.mxu0 0.0
    %6055 = vmatprep.subr.mxu0 0.0
    %6056 = vmatpush1.msra.mxu0 0.0
    %6057 = vmatprep.subr.mxu0 0.0
    %6058 = vmatpush1.msra.mxu0 0.0
    %6059 = vmatprep.subr.mxu0 0.0
    %6060 = vmatpush1.msra.mxu0 0.0
    %6061 = vmatprep.subr.mxu0 0.0
    %6062 = vmatpush1.msra.mxu0 0.0
    %6063 = vmatprep.subr.mxu0 0.0
    %6064 = vmatpush1.msra.mxu0 0.0
    %6065 = vmatprep.subr.mxu0 0.0
    %6066 = vmatpush1.msra.mxu0 0.0
    %6067 = vmatprep.subr.mxu0 0.0
    %6068 = vmatpush1.msra.mxu0 0.0
    %6069 = vmatprep.mubr.f32.mxu0 0.0
    %v6070 = vand.u32 %v5981, 4294901760
    %v6071 = vsub.f32 %v5981, %v6070
    %v6072 = vand.u32 %v6071, 4294901760
    %v6073 = vsub.f32 %v6071, %v6072
    %v6074 = vand.u32 %v6073, 4294901760
    %6075 = vmatmul.mubr.f32.gmra.mrb[0].mxu0 %v6074
    %v6076 = vpop.f32.mrb[0].mxu0
    %v6077 = vadd.f32 0.0, %v6076
    %v6078 = vpop.f32.mrb[0].mxu0
    %6079 = vmatprep.mubr.f32.mxu0 0.0
    %v6080 = vand.u32 %v5984, 4294901760
    %v6081 = vsub.f32 %v5984, %v6080
    %v6082 = vand.u32 %v6081, 4294901760
    %v6083 = vsub.f32 %v6081, %v6082
    %v6084 = vand.u32 %v6083, 4294901760
    %6085 = vmatmul.mubr.f32.gmra.mrb[0].mxu0 %v6084
    %v6086 = vpop.f32.mrb[0].mxu0
    %v6087 = vadd.f32 0.0, %v6086
    %v6088 = vpop.f32.mrb[0].mxu0
    %6089 = vmatprep.mubr.f32.mxu0 0.0
    %v6090 = vand.u32 %v5987, 4294901760
    %v6091 = vsub.f32 %v5987, %v6090
    %v6092 = vand.u32 %v6091, 4294901760
    %v6093 = vsub.f32 %v6091, %v6092
    %v6094 = vand.u32 %v6093, 4294901760
    %6095 = vmatmul.mubr.f32.gmra.mrb[0].mxu0 %v6094
    %v6096 = vpop.f32.mrb[0].mxu0
    %v6097 = vadd.f32 0.0, %v6096
    %v6098 = vpop.f32.mrb[0].mxu0
    %6099 = vmatprep.mubr.f32.mxu0 0.0
    %v6100 = vand.u32 %v5990, 4294901760
    %v6101 = vsub.f32 %v5990, %v6100
    %v6102 = vand.u32 %v6101, 4294901760
    %v6103 = vsub.f32 %v6101, %v6102
    %v6104 = vand.u32 %v6103, 4294901760
    %6105 = vmatmul.mubr.f32.gmra.mrb[0].mxu0 %v6104
    %v6106 = vpop.f32.mrb[0].mxu0
    %v6107 = vadd.f32 0.0, %v6106
    %v6108 = vpop.f32.mrb[0].mxu0
    %6109 = vmatprep.mubr.f32.mxu0 0.0
    %v6110 = vand.u32 %v5993, 4294901760
    %v6111 = vsub.f32 %v5993, %v6110
    %v6112 = vand.u32 %v6111, 4294901760
    %v6113 = vsub.f32 %v6111, %v6112
    %v6114 = vand.u32 %v6113, 4294901760
    %6115 = vmatmul.mubr.f32.gmra.mrb[0].mxu0 %v6114
    %v6116 = vpop.f32.mrb[0].mxu0
    %v6117 = vadd.f32 0.0, %v6116
    %v6118 = vpop.f32.mrb[0].mxu0
    %6119 = vmatprep.mubr.f32.mxu0 0.0
    %v6120 = vand.u32 %v5996, 4294901760
    %v6121 = vsub.f32 %v5996, %v6120
    %v6122 = vand.u32 %v6121, 4294901760
    %v6123 = vsub.f32 %v6121, %v6122
    %v6124 = vand.u32 %v6123, 4294901760
    %6125 = vmatmul.mubr.f32.gmra.mrb[0].mxu0 %v6124
    %v6126 = vpop.f32.mrb[0].mxu0
    %v6127 = vadd.f32 0.0, %v6126
    %v6128 = vpop.f32.mrb[0].mxu0
    %6129 = vdwg.mxu0
    %6130 = vmatprep.subr.mxu0 0.0
    %v6131 = vand.u32 %v5975, 4294901760
    %v6132 = vsub.f32 %v5975, %v6131
    %v6133 = vand.u32 %v6132, 4294901760
    %v6134 = vsub.f32 %v6132, %v6133
    %v6135 = vand.u32 %v6134, 4294901760
    %6136 = vmatpush1.msra.mxu0 %v6135
    %6137 = vmatprep.subr.mxu0 0.0
    %v6138 = vand.u32 %v5976, 4294901760
    %v6139 = vsub.f32 %v5976, %v6138
    %v6140 = vand.u32 %v6139, 4294901760
    %v6141 = vsub.f32 %v6139, %v6140
    %v6142 = vand.u32 %v6141, 4294901760
    %6143 = vmatpush1.msra.mxu0 %v6142
    %6144 = vmatprep.subr.mxu0 0.0
    %v6145 = vand.u32 %v5977, 4294901760
    %v6146 = vsub.f32 %v5977, %v6145
    %v6147 = vand.u32 %v6146, 4294901760
    %v6148 = vsub.f32 %v6146, %v6147
    %v6149 = vand.u32 %v6148, 4294901760
    %6150 = vmatpush1.msra.mxu0 %v6149
    %6151 = vmatprep.subr.mxu0 0.0
    %v6152 = vand.u32 %v5999, 4294901760
    %v6153 = vsub.f32 %v5999, %v6152
    %v6154 = vand.u32 %v6153, 4294901760
    %v6155 = vsub.f32 %v6153, %v6154
    %v6156 = vand.u32 %v6155, 4294901760
    %6157 = vmatpush1.msra.mxu0 %v6156
    %6158 = vmatprep.subr.mxu0 0.0
    %6159 = vmatpush1.msra.mxu0 0.0
    %6160 = vmatprep.subr.mxu0 0.0
    %6161 = vmatpush1.msra.mxu0 0.0
    %6162 = vmatprep.subr.mxu0 0.0
    %6163 = vmatpush1.msra.mxu0 0.0
    %6164 = vmatprep.subr.mxu0 0.0
    %6165 = vmatpush1.msra.mxu0 0.0
    %6166 = vmatprep.subr.mxu0 0.0
    %6167 = vmatpush1.msra.mxu0 0.0
    %6168 = vmatprep.subr.mxu0 0.0
    %6169 = vmatpush1.msra.mxu0 0.0
    %6170 = vmatprep.subr.mxu0 0.0
    %6171 = vmatpush1.msra.mxu0 0.0
    %6172 = vmatprep.subr.mxu0 0.0
    %6173 = vmatpush1.msra.mxu0 0.0
    %6174 = vmatprep.subr.mxu0 0.0
    %6175 = vmatpush1.msra.mxu0 0.0
    %6176 = vmatprep.subr.mxu0 0.0
    %6177 = vmatpush1.msra.mxu0 0.0
    %6178 = vmatprep.subr.mxu0 0.0
    %6179 = vmatpush1.msra.mxu0 0.0
    %6180 = vmatprep.subr.mxu0 0.0
    %6181 = vmatpush1.msra.mxu0 0.0
    %6182 = vmatprep.subr.mxu0 0.0
    %6183 = vmatpush1.msra.mxu0 0.0
    %6184 = vmatprep.subr.mxu0 0.0
    %6185 = vmatpush1.msra.mxu0 0.0
    %6186 = vmatprep.subr.mxu0 0.0
    %6187 = vmatpush1.msra.mxu0 0.0
    %6188 = vmatprep.subr.mxu0 0.0
    %6189 = vmatpush1.msra.mxu0 0.0
    %6190 = vmatprep.subr.mxu0 0.0
    %6191 = vmatpush1.msra.mxu0 0.0
    %6192 = vmatprep.subr.mxu0 0.0
    %6193 = vmatpush1.msra.mxu0 0.0
    %6194 = vmatprep.subr.mxu0 0.0
    %6195 = vmatpush1.msra.mxu0 0.0
    %6196 = vmatprep.subr.mxu0 0.0
    %6197 = vmatpush1.msra.mxu0 0.0
    %6198 = vmatprep.subr.mxu0 0.0
    %6199 = vmatpush1.msra.mxu0 0.0
    %6200 = vmatprep.subr.mxu0 0.0
    %6201 = vmatpush1.msra.mxu0 0.0
    %6202 = vmatprep.subr.mxu0 0.0
    %6203 = vmatpush1.msra.mxu0 0.0
    %6204 = vmatprep.subr.mxu0 0.0
    %6205 = vmatpush1.msra.mxu0 0.0
    %6206 = vmatprep.subr.mxu0 0.0
    %6207 = vmatpush1.msra.mxu0 0.0
    %6208 = vmatprep.subr.mxu0 0.0
    %6209 = vmatpush1.msra.mxu0 0.0
    %6210 = vmatprep.subr.mxu0 0.0
    %6211 = vmatpush1.msra.mxu0 0.0
    %6212 = vmatprep.subr.mxu0 0.0
    %6213 = vmatpush1.msra.mxu0 0.0
    %6214 = vmatprep.mubr.f32.mxu0 0.0
    %v6215 = vand.u32 %v5981, 4294901760
    %6216 = vmatmul.mubr.f32.gmra.mrb[0].mxu0 %v6215
    %v6217 = vpop.f32.mrb[0].mxu0
    %v6218 = vadd.f32 %v6077, %v6217
    %v6219 = vpop.f32.mrb[0].mxu0
    %6220 = vmatprep.mubr.f32.mxu0 0.0
    %v6221 = vand.u32 %v5984, 4294901760
    %6222 = vmatmul.mubr.f32.gmra.mrb[0].mxu0 %v6221
    %v6223 = vpop.f32.mrb[0].mxu0
    %v6224 = vadd.f32 %v6087, %v6223
    %v6225 = vpop.f32.mrb[0].mxu0
    %6226 = vmatprep.mubr.f32.mxu0 0.0
    %v6227 = vand.u32 %v5987, 4294901760
    %6228 = vmatmul.mubr.f32.gmra.mrb[0].mxu0 %v6227
    %v6229 = vpop.f32.mrb[0].mxu0
    %v6230 = vadd.f32 %v6097, %v6229
    %v6231 = vpop.f32.mrb[0].mxu0
    %6232 = vmatprep.mubr.f32.mxu0 0.0
    %v6233 = vand.u32 %v5990, 4294901760
    %6234 = vmatmul.mubr.f32.gmra.mrb[0].mxu0 %v6233
    %v6235 = vpop.f32.mrb[0].mxu0
    %v6236 = vadd.f32 %v6107, %v6235
    %v6237 = vpop.f32.mrb[0].mxu0
    %6238 = vmatprep.mubr.f32.mxu0 0.0
    %v6239 = vand.u32 %v5993, 4294901760
    %6240 = vmatmul.mubr.f32.gmra.mrb[0].mxu0 %v6239
    %v6241 = vpop.f32.mrb[0].mxu0
    %v6242 = vadd.f32 %v6117, %v6241
    %v6243 = vpop.f32.mrb[0].mxu0
    %6244 = vmatprep.mubr.f32.mxu0 0.0
    %v6245 = vand.u32 %v5996, 4294901760
    %6246 = vmatmul.mubr.f32.gmra.mrb[0].mxu0 %v6245
    %v6247 = vpop.f32.mrb[0].mxu0
    %v6248 = vadd.f32 %v6127, %v6247
    %v6249 = vpop.f32.mrb[0].mxu0
    %6250 = vdwg.mxu0
    %6251 = vmatprep.subr.mxu0 0.0
    %v6252 = vand.u32 %v5975, 4294901760
    %v6253 = vsub.f32 %v5975, %v6252
    %6254 = vmatpush1.msra.mxu0 %v6253
    %6255 = vmatprep.subr.mxu0 0.0
    %v6256 = vand.u32 %v5976, 4294901760
    %v6257 = vsub.f32 %v5976, %v6256
    %6258 = vmatpush1.msra.mxu0 %v6257
    %6259 = vmatprep.subr.mxu0 0.0
    %v6260 = vand.u32 %v5977, 4294901760
    %v6261 = vsub.f32 %v5977, %v6260
    %6262 = vmatpush1.msra.mxu0 %v6261
    %6263 = vmatprep.subr.mxu0 0.0
    %v6264 = vand.u32 %v5999, 4294901760
    %v6265 = vsub.f32 %v5999, %v6264
    %6266 = vmatpush1.msra.mxu0 %v6265
    %6267 = vmatprep.subr.mxu0 0.0
    %6268 = vmatpush1.msra.mxu0 0.0
    %6269 = vmatprep.subr.mxu0 0.0
    %6270 = vmatpush1.msra.mxu0 0.0
    %6271 = vmatprep.subr.mxu0 0.0
    %6272 = vmatpush1.msra.mxu0 0.0
    %6273 = vmatprep.subr.mxu0 0.0
    %6274 = vmatpush1.msra.mxu0 0.0
    %6275 = vmatprep.subr.mxu0 0.0
    %6276 = vmatpush1.msra.mxu0 0.0
    %6277 = vmatprep.subr.mxu0 0.0
    %6278 = vmatpush1.msra.mxu0 0.0
    %6279 = vmatprep.subr.mxu0 0.0
    %6280 = vmatpush1.msra.mxu0 0.0
    %6281 = vmatprep.subr.mxu0 0.0
    %6282 = vmatpush1.msra.mxu0 0.0
    %6283 = vmatprep.subr.mxu0 0.0
    %6284 = vmatpush1.msra.mxu0 0.0
    %6285 = vmatprep.subr.mxu0 0.0
    %6286 = vmatpush1.msra.mxu0 0.0
    %6287 = vmatprep.subr.mxu0 0.0
    %6288 = vmatpush1.msra.mxu0 0.0
    %6289 = vmatprep.subr.mxu0 0.0
    %6290 = vmatpush1.msra.mxu0 0.0
    %6291 = vmatprep.subr.mxu0 0.0
    %6292 = vmatpush1.msra.mxu0 0.0
    %6293 = vmatprep.subr.mxu0 0.0
    %6294 = vmatpush1.msra.mxu0 0.0
    %6295 = vmatprep.subr.mxu0 0.0
    %6296 = vmatpush1.msra.mxu0 0.0
    %6297 = vmatprep.subr.mxu0 0.0
    %6298 = vmatpush1.msra.mxu0 0.0
    %6299 = vmatprep.subr.mxu0 0.0
    %6300 = vmatpush1.msra.mxu0 0.0
    %6301 = vmatprep.subr.mxu0 0.0
    %6302 = vmatpush1.msra.mxu0 0.0
    %6303 = vmatprep.subr.mxu0 0.0
    %6304 = vmatpush1.msra.mxu0 0.0
    %6305 = vmatprep.subr.mxu0 0.0
    %6306 = vmatpush1.msra.mxu0 0.0
    %6307 = vmatprep.subr.mxu0 0.0
    %6308 = vmatpush1.msra.mxu0 0.0
    %6309 = vmatprep.subr.mxu0 0.0
    %6310 = vmatpush1.msra.mxu0 0.0
    %6311 = vmatprep.subr.mxu0 0.0
    %6312 = vmatpush1.msra.mxu0 0.0
    %6313 = vmatprep.subr.mxu0 0.0
    %6314 = vmatpush1.msra.mxu0 0.0
    %6315 = vmatprep.subr.mxu0 0.0
    %6316 = vmatpush1.msra.mxu0 0.0
    %6317 = vmatprep.subr.mxu0 0.0
    %6318 = vmatpush1.msra.mxu0 0.0
    %6319 = vmatprep.subr.mxu0 0.0
    %6320 = vmatpush1.msra.mxu0 0.0
    %6321 = vmatprep.subr.mxu0 0.0
    %6322 = vmatpush1.msra.mxu0 0.0
    %6323 = vmatprep.mubr.f32.mxu0 0.0
    %v6324 = vand.u32 %v5981, 4294901760
    %v6325 = vsub.f32 %v5981, %v6324
    %6326 = vmatmul.mubr.f32.gmra.mrb[0].mxu0 %v6325
    %v6327 = vpop.f32.mrb[0].mxu0
    %v6328 = vadd.f32 %v6218, %v6327
    %v6329 = vpop.f32.mrb[0].mxu0
    %6330 = vmatprep.mubr.f32.mxu0 0.0
    %v6331 = vand.u32 %v5984, 4294901760
    %v6332 = vsub.f32 %v5984, %v6331
    %6333 = vmatmul.mubr.f32.gmra.mrb[0].mxu0 %v6332
    %v6334 = vpop.f32.mrb[0].mxu0
    %v6335 = vadd.f32 %v6224, %v6334
    %v6336 = vpop.f32.mrb[0].mxu0
    %6337 = vmatprep.mubr.f32.mxu0 0.0
    %v6338 = vand.u32 %v5987, 4294901760
    %v6339 = vsub.f32 %v5987, %v6338
    %6340 = vmatmul.mubr.f32.gmra.mrb[0].mxu0 %v6339
    %v6341 = vpop.f32.mrb[0].mxu0
    %v6342 = vadd.f32 %v6230, %v6341
    %v6343 = vpop.f32.mrb[0].mxu0
    %6344 = vmatprep.mubr.f32.mxu0 0.0
    %v6345 = vand.u32 %v5990, 4294901760
    %v6346 = vsub.f32 %v5990, %v6345
    %6347 = vmatmul.mubr.f32.gmra.mrb[0].mxu0 %v6346
    %v6348 = vpop.f32.mrb[0].mxu0
    %v6349 = vadd.f32 %v6236, %v6348
    %v6350 = vpop.f32.mrb[0].mxu0
    %6351 = vmatprep.mubr.f32.mxu0 0.0
    %v6352 = vand.u32 %v5993, 4294901760
    %v6353 = vsub.f32 %v5993, %v6352
    %6354 = vmatmul.mubr.f32.gmra.mrb[0].mxu0 %v6353
    %v6355 = vpop.f32.mrb[0].mxu0
    %v6356 = vadd.f32 %v6242, %v6355
    %v6357 = vpop.f32.mrb[0].mxu0
    %6358 = vmatprep.mubr.f32.mxu0 0.0
    %v6359 = vand.u32 %v5996, 4294901760
    %v6360 = vsub.f32 %v5996, %v6359
    %6361 = vmatmul.mubr.f32.gmra.mrb[0].mxu0 %v6360
    %v6362 = vpop.f32.mrb[0].mxu0
    %v6363 = vadd.f32 %v6248, %v6362
    %v6364 = vpop.f32.mrb[0].mxu0
    %6365 = vdwg.mxu0
    %6366 = vmatprep.subr.mxu0 0.0
    %v6367 = vand.u32 %v5975, 4294901760
    %6368 = vmatpush1.msra.mxu0 %v6367
    %6369 = vmatprep.subr.mxu0 0.0
    %v6370 = vand.u32 %v5976, 4294901760
    %6371 = vmatpush1.msra.mxu0 %v6370
    %6372 = vmatprep.subr.mxu0 0.0
    %v6373 = vand.u32 %v5977, 4294901760
    %6374 = vmatpush1.msra.mxu0 %v6373
    %6375 = vmatprep.subr.mxu0 0.0
    %v6376 = vand.u32 %v5999, 4294901760
    %6377 = vmatpush1.msra.mxu0 %v6376
    %6378 = vmatprep.subr.mxu0 0.0
    %6379 = vmatpush1.msra.mxu0 0.0
    %6380 = vmatprep.subr.mxu0 0.0
    %6381 = vmatpush1.msra.mxu0 0.0
    %6382 = vmatprep.subr.mxu0 0.0
    %6383 = vmatpush1.msra.mxu0 0.0
    %6384 = vmatprep.subr.mxu0 0.0
    %6385 = vmatpush1.msra.mxu0 0.0
    %6386 = vmatprep.subr.mxu0 0.0
    %6387 = vmatpush1.msra.mxu0 0.0
    %6388 = vmatprep.subr.mxu0 0.0
    %6389 = vmatpush1.msra.mxu0 0.0
    %6390 = vmatprep.subr.mxu0 0.0
    %6391 = vmatpush1.msra.mxu0 0.0
    %6392 = vmatprep.subr.mxu0 0.0
    %6393 = vmatpush1.msra.mxu0 0.0
    %6394 = vmatprep.subr.mxu0 0.0
    %6395 = vmatpush1.msra.mxu0 0.0
    %6396 = vmatprep.subr.mxu0 0.0
    %6397 = vmatpush1.msra.mxu0 0.0
    %6398 = vmatprep.subr.mxu0 0.0
    %6399 = vmatpush1.msra.mxu0 0.0
    %6400 = vmatprep.subr.mxu0 0.0
    %6401 = vmatpush1.msra.mxu0 0.0
    %6402 = vmatprep.subr.mxu0 0.0
    %6403 = vmatpush1.msra.mxu0 0.0
    %6404 = vmatprep.subr.mxu0 0.0
    %6405 = vmatpush1.msra.mxu0 0.0
    %6406 = vmatprep.subr.mxu0 0.0
    %6407 = vmatpush1.msra.mxu0 0.0
    %6408 = vmatprep.subr.mxu0 0.0
    %6409 = vmatpush1.msra.mxu0 0.0
    %6410 = vmatprep.subr.mxu0 0.0
    %6411 = vmatpush1.msra.mxu0 0.0
    %6412 = vmatprep.subr.mxu0 0.0
    %6413 = vmatpush1.msra.mxu0 0.0
    %6414 = vmatprep.subr.mxu0 0.0
    %6415 = vmatpush1.msra.mxu0 0.0
    %6416 = vmatprep.subr.mxu0 0.0
    %6417 = vmatpush1.msra.mxu0 0.0
    %6418 = vmatprep.subr.mxu0 0.0
    %6419 = vmatpush1.msra.mxu0 0.0
    %6420 = vmatprep.subr.mxu0 0.0
    %6421 = vmatpush1.msra.mxu0 0.0
    %6422 = vmatprep.subr.mxu0 0.0
    %6423 = vmatpush1.msra.mxu0 0.0
    %6424 = vmatprep.subr.mxu0 0.0
    %6425 = vmatpush1.msra.mxu0 0.0
    %6426 = vmatprep.subr.mxu0 0.0
    %6427 = vmatpush1.msra.mxu0 0.0
    %6428 = vmatprep.subr.mxu0 0.0
    %6429 = vmatpush1.msra.mxu0 0.0
    %6430 = vmatprep.subr.mxu0 0.0
    %6431 = vmatpush1.msra.mxu0 0.0
    %6432 = vmatprep.subr.mxu0 0.0
    %6433 = vmatpush1.msra.mxu0 0.0
    %6434 = vmatprep.mubr.f32.mxu0 0.0
    %v6435 = vand.u32 %v5981, 4294901760
    %v6436 = vsub.f32 %v5981, %v6435
    %v6437 = vand.u32 %v6436, 4294901760
    %6438 = vmatmul.mubr.f32.gmra.mrb[0].mxu0 %v6437
    %v6439 = vpop.f32.mrb[0].mxu0
    %v6440 = vadd.f32 %v6328, %v6439
    %v6441 = vpop.f32.mrb[0].mxu0
    %6442 = vmatprep.mubr.f32.mxu0 0.0
    %v6443 = vand.u32 %v5984, 4294901760
    %v6444 = vsub.f32 %v5984, %v6443
    %v6445 = vand.u32 %v6444, 4294901760
    %6446 = vmatmul.mubr.f32.gmra.mrb[0].mxu0 %v6445
    %v6447 = vpop.f32.mrb[0].mxu0
    %v6448 = vadd.f32 %v6335, %v6447
    %v6449 = vpop.f32.mrb[0].mxu0
    %6450 = vmatprep.mubr.f32.mxu0 0.0
    %v6451 = vand.u32 %v5987, 4294901760
    %v6452 = vsub.f32 %v5987, %v6451
    %v6453 = vand.u32 %v6452, 4294901760
    %6454 = vmatmul.mubr.f32.gmra.mrb[0].mxu0 %v6453
    %v6455 = vpop.f32.mrb[0].mxu0
    %v6456 = vadd.f32 %v6342, %v6455
    %v6457 = vpop.f32.mrb[0].mxu0
    %6458 = vmatprep.mubr.f32.mxu0 0.0
    %v6459 = vand.u32 %v5990, 4294901760
    %v6460 = vsub.f32 %v5990, %v6459
    %v6461 = vand.u32 %v6460, 4294901760
    %6462 = vmatmul.mubr.f32.gmra.mrb[0].mxu0 %v6461
    %v6463 = vpop.f32.mrb[0].mxu0
    %v6464 = vadd.f32 %v6349, %v6463
    %v6465 = vpop.f32.mrb[0].mxu0
    %6466 = vmatprep.mubr.f32.mxu0 0.0
    %v6467 = vand.u32 %v5993, 4294901760
    %v6468 = vsub.f32 %v5993, %v6467
    %v6469 = vand.u32 %v6468, 4294901760
    %6470 = vmatmul.mubr.f32.gmra.mrb[0].mxu0 %v6469
    %v6471 = vpop.f32.mrb[0].mxu0
    %v6472 = vadd.f32 %v6356, %v6471
    %v6473 = vpop.f32.mrb[0].mxu0
    %6474 = vmatprep.mubr.f32.mxu0 0.0
    %v6475 = vand.u32 %v5996, 4294901760
    %v6476 = vsub.f32 %v5996, %v6475
    %v6477 = vand.u32 %v6476, 4294901760
    %6478 = vmatmul.mubr.f32.gmra.mrb[0].mxu0 %v6477
    %v6479 = vpop.f32.mrb[0].mxu0
    %v6480 = vadd.f32 %v6363, %v6479
    %v6481 = vpop.f32.mrb[0].mxu0
    %6482 = vdwg.mxu0
    %6483 = vmatprep.subr.mxu0 0.0
    %v6484 = vand.u32 %v5975, 4294901760
    %v6485 = vsub.f32 %v5975, %v6484
    %v6486 = vand.u32 %v6485, 4294901760
    %6487 = vmatpush1.msra.mxu0 %v6486
    %6488 = vmatprep.subr.mxu0 0.0
    %v6489 = vand.u32 %v5976, 4294901760
    %v6490 = vsub.f32 %v5976, %v6489
    %v6491 = vand.u32 %v6490, 4294901760
    %6492 = vmatpush1.msra.mxu0 %v6491
    %6493 = vmatprep.subr.mxu0 0.0
    %v6494 = vand.u32 %v5977, 4294901760
    %v6495 = vsub.f32 %v5977, %v6494
    %v6496 = vand.u32 %v6495, 4294901760
    %6497 = vmatpush1.msra.mxu0 %v6496
    %6498 = vmatprep.subr.mxu0 0.0
    %v6499 = vand.u32 %v5999, 4294901760
    %v6500 = vsub.f32 %v5999, %v6499
    %v6501 = vand.u32 %v6500, 4294901760
    %6502 = vmatpush1.msra.mxu0 %v6501
    %6503 = vmatprep.subr.mxu0 0.0
    %6504 = vmatpush1.msra.mxu0 0.0
    %6505 = vmatprep.subr.mxu0 0.0
    %6506 = vmatpush1.msra.mxu0 0.0
    %6507 = vmatprep.subr.mxu0 0.0
    %6508 = vmatpush1.msra.mxu0 0.0
    %6509 = vmatprep.subr.mxu0 0.0
    %6510 = vmatpush1.msra.mxu0 0.0
    %6511 = vmatprep.subr.mxu0 0.0
    %6512 = vmatpush1.msra.mxu0 0.0
    %6513 = vmatprep.subr.mxu0 0.0
    %6514 = vmatpush1.msra.mxu0 0.0
    %6515 = vmatprep.subr.mxu0 0.0
    %6516 = vmatpush1.msra.mxu0 0.0
    %6517 = vmatprep.subr.mxu0 0.0
    %6518 = vmatpush1.msra.mxu0 0.0
    %6519 = vmatprep.subr.mxu0 0.0
    %6520 = vmatpush1.msra.mxu0 0.0
    %6521 = vmatprep.subr.mxu0 0.0
    %6522 = vmatpush1.msra.mxu0 0.0
    %6523 = vmatprep.subr.mxu0 0.0
    %6524 = vmatpush1.msra.mxu0 0.0
    %6525 = vmatprep.subr.mxu0 0.0
    %6526 = vmatpush1.msra.mxu0 0.0
    %6527 = vmatprep.subr.mxu0 0.0
    %6528 = vmatpush1.msra.mxu0 0.0
    %6529 = vmatprep.subr.mxu0 0.0
    %6530 = vmatpush1.msra.mxu0 0.0
    %6531 = vmatprep.subr.mxu0 0.0
    %6532 = vmatpush1.msra.mxu0 0.0
    %6533 = vmatprep.subr.mxu0 0.0
    %6534 = vmatpush1.msra.mxu0 0.0
    %6535 = vmatprep.subr.mxu0 0.0
    %6536 = vmatpush1.msra.mxu0 0.0
    %6537 = vmatprep.subr.mxu0 0.0
    %6538 = vmatpush1.msra.mxu0 0.0
    %6539 = vmatprep.subr.mxu0 0.0
    %6540 = vmatpush1.msra.mxu0 0.0
    %6541 = vmatprep.subr.mxu0 0.0
    %6542 = vmatpush1.msra.mxu0 0.0
    %6543 = vmatprep.subr.mxu0 0.0
    %6544 = vmatpush1.msra.mxu0 0.0
    %6545 = vmatprep.subr.mxu0 0.0
    %6546 = vmatpush1.msra.mxu0 0.0
    %6547 = vmatprep.subr.mxu0 0.0
    %6548 = vmatpush1.msra.mxu0 0.0
    %6549 = vmatprep.subr.mxu0 0.0
    %6550 = vmatpush1.msra.mxu0 0.0
    %6551 = vmatprep.subr.mxu0 0.0
    %6552 = vmatpush1.msra.mxu0 0.0
    %6553 = vmatprep.subr.mxu0 0.0
    %6554 = vmatpush1.msra.mxu0 0.0
    %6555 = vmatprep.subr.mxu0 0.0
    %6556 = vmatpush1.msra.mxu0 0.0
    %6557 = vmatprep.subr.mxu0 0.0
    %6558 = vmatpush1.msra.mxu0 0.0
    %6559 = vmatprep.mubr.f32.mxu0 0.0
    %v6560 = vand.u32 %v5981, 4294901760
    %6561 = vmatmul.mubr.f32.gmra.mrb[0].mxu0 %v6560
    %v6562 = vpop.f32.mrb[0].mxu0
    %v6563 = vadd.f32 %v6440, %v6562
    %v6564 = vpop.f32.mrb[0].mxu0
    %6565 = vmatprep.mubr.f32.mxu0 0.0
    %v6566 = vand.u32 %v5984, 4294901760
    %6567 = vmatmul.mubr.f32.gmra.mrb[0].mxu0 %v6566
    %v6568 = vpop.f32.mrb[0].mxu0
    %v6569 = vadd.f32 %v6448, %v6568
    %v6570 = vpop.f32.mrb[0].mxu0
    %6571 = vmatprep.mubr.f32.mxu0 0.0
    %v6572 = vand.u32 %v5987, 4294901760
    %6573 = vmatmul.mubr.f32.gmra.mrb[0].mxu0 %v6572
    %v6574 = vpop.f32.mrb[0].mxu0
    %v6575 = vadd.f32 %v6456, %v6574
    %v6576 = vpop.f32.mrb[0].mxu0
    %6577 = vmatprep.mubr.f32.mxu0 0.0
    %v6578 = vand.u32 %v5990, 4294901760
    %6579 = vmatmul.mubr.f32.gmra.mrb[0].mxu0 %v6578
    %v6580 = vpop.f32.mrb[0].mxu0
    %v6581 = vadd.f32 %v6464, %v6580
    %v6582 = vpop.f32.mrb[0].mxu0
    %6583 = vmatprep.mubr.f32.mxu0 0.0
    %v6584 = vand.u32 %v5993, 4294901760
    %6585 = vmatmul.mubr.f32.gmra.mrb[0].mxu0 %v6584
    %v6586 = vpop.f32.mrb[0].mxu0
    %v6587 = vadd.f32 %v6472, %v6586
    %v6588 = vpop.f32.mrb[0].mxu0
    %6589 = vmatprep.mubr.f32.mxu0 0.0
    %v6590 = vand.u32 %v5996, 4294901760
    %6591 = vmatmul.mubr.f32.gmra.mrb[0].mxu0 %v6590
    %v6592 = vpop.f32.mrb[0].mxu0
    %v6593 = vadd.f32 %v6480, %v6592
    %v6594 = vpop.f32.mrb[0].mxu0
    %6595 = vdwg.mxu0
    %6596 = vmatprep.subr.mxu0 0.0
    %v6597 = vand.u32 %v5975, 4294901760
    %6598 = vmatpush1.msra.mxu0 %v6597
    %6599 = vmatprep.subr.mxu0 0.0
    %v6600 = vand.u32 %v5976, 4294901760
    %6601 = vmatpush1.msra.mxu0 %v6600
    %6602 = vmatprep.subr.mxu0 0.0
    %v6603 = vand.u32 %v5977, 4294901760
    %6604 = vmatpush1.msra.mxu0 %v6603
    %6605 = vmatprep.subr.mxu0 0.0
    %v6606 = vand.u32 %v5999, 4294901760
    %6607 = vmatpush1.msra.mxu0 %v6606
    %6608 = vmatprep.subr.mxu0 0.0
    %6609 = vmatpush1.msra.mxu0 0.0
    %6610 = vmatprep.subr.mxu0 0.0
    %6611 = vmatpush1.msra.mxu0 0.0
    %6612 = vmatprep.subr.mxu0 0.0
    %6613 = vmatpush1.msra.mxu0 0.0
    %6614 = vmatprep.subr.mxu0 0.0
    %6615 = vmatpush1.msra.mxu0 0.0
    %6616 = vmatprep.subr.mxu0 0.0
    %6617 = vmatpush1.msra.mxu0 0.0
    %6618 = vmatprep.subr.mxu0 0.0
    %6619 = vmatpush1.msra.mxu0 0.0
    %6620 = vmatprep.subr.mxu0 0.0
    %6621 = vmatpush1.msra.mxu0 0.0
    %6622 = vmatprep.subr.mxu0 0.0
    %6623 = vmatpush1.msra.mxu0 0.0
    %6624 = vmatprep.subr.mxu0 0.0
    %6625 = vmatpush1.msra.mxu0 0.0
    %6626 = vmatprep.subr.mxu0 0.0
    %6627 = vmatpush1.msra.mxu0 0.0
    %6628 = vmatprep.subr.mxu0 0.0
    %6629 = vmatpush1.msra.mxu0 0.0
    %6630 = vmatprep.subr.mxu0 0.0
    %6631 = vmatpush1.msra.mxu0 0.0
    %6632 = vmatprep.subr.mxu0 0.0
    %6633 = vmatpush1.msra.mxu0 0.0
    %6634 = vmatprep.subr.mxu0 0.0
    %6635 = vmatpush1.msra.mxu0 0.0
    %6636 = vmatprep.subr.mxu0 0.0
    %6637 = vmatpush1.msra.mxu0 0.0
    %6638 = vmatprep.subr.mxu0 0.0
    %6639 = vmatpush1.msra.mxu0 0.0
    %6640 = vmatprep.subr.mxu0 0.0
    %6641 = vmatpush1.msra.mxu0 0.0
    %6642 = vmatprep.subr.mxu0 0.0
    %6643 = vmatpush1.msra.mxu0 0.0
    %6644 = vmatprep.subr.mxu0 0.0
    %6645 = vmatpush1.msra.mxu0 0.0
    %6646 = vmatprep.subr.mxu0 0.0
    %6647 = vmatpush1.msra.mxu0 0.0
    %6648 = vmatprep.subr.mxu0 0.0
    %6649 = vmatpush1.msra.mxu0 0.0
    %6650 = vmatprep.subr.mxu0 0.0
    %6651 = vmatpush1.msra.mxu0 0.0
    %6652 = vmatprep.subr.mxu0 0.0
    %6653 = vmatpush1.msra.mxu0 0.0
    %6654 = vmatprep.subr.mxu0 0.0
    %6655 = vmatpush1.msra.mxu0 0.0
    %6656 = vmatprep.subr.mxu0 0.0
    %6657 = vmatpush1.msra.mxu0 0.0
    %6658 = vmatprep.subr.mxu0 0.0
    %6659 = vmatpush1.msra.mxu0 0.0
    %6660 = vmatprep.subr.mxu0 0.0
    %6661 = vmatpush1.msra.mxu0 0.0
    %6662 = vmatprep.subr.mxu0 0.0
    %6663 = vmatpush1.msra.mxu0 0.0
    %6664 = vmatprep.mubr.f32.mxu0 0.0
    %v6665 = vand.u32 %v5981, 4294901760
    %6666 = vmatmul.mubr.f32.gmra.mrb[0].mxu0 %v6665
    %v6667 = vpop.f32.mrb[0].mxu0
    %v6668 = vadd.f32 %v6563, %v6667
    %v6669 = vpop.f32.mrb[0].mxu0
    %6670 = vmatprep.mubr.f32.mxu0 0.0
    %v6671 = vand.u32 %v5984, 4294901760
    %6672 = vmatmul.mubr.f32.gmra.mrb[0].mxu0 %v6671
    %v6673 = vpop.f32.mrb[0].mxu0
    %v6674 = vadd.f32 %v6569, %v6673
    %v6675 = vpop.f32.mrb[0].mxu0
    %6676 = vmatprep.mubr.f32.mxu0 0.0
    %v6677 = vand.u32 %v5987, 4294901760
    %6678 = vmatmul.mubr.f32.gmra.mrb[0].mxu0 %v6677
    %v6679 = vpop.f32.mrb[0].mxu0
    %v6680 = vadd.f32 %v6575, %v6679
    %v6681 = vpop.f32.mrb[0].mxu0
    %6682 = vmatprep.mubr.f32.mxu0 0.0
    %v6683 = vand.u32 %v5990, 4294901760
    %6684 = vmatmul.mubr.f32.gmra.mrb[0].mxu0 %v6683
    %v6685 = vpop.f32.mrb[0].mxu0
    %v6686 = vadd.f32 %v6581, %v6685
    %v6687 = vpop.f32.mrb[0].mxu0
    %6688 = vmatprep.mubr.f32.mxu0 0.0
    %v6689 = vand.u32 %v5993, 4294901760
    %6690 = vmatmul.mubr.f32.gmra.mrb[0].mxu0 %v6689
    %v6691 = vpop.f32.mrb[0].mxu0
    %v6692 = vadd.f32 %v6587, %v6691
    %v6693 = vpop.f32.mrb[0].mxu0
    %6694 = vmatprep.mubr.f32.mxu0 0.0
    %v6695 = vand.u32 %v5996, 4294901760
    %6696 = vmatmul.mubr.f32.gmra.mrb[0].mxu0 %v6695
    %v6697 = vpop.f32.mrb[0].mxu0
    %v6698 = vadd.f32 %v6593, %v6697
    %v6699 = vpop.f32.mrb[0].mxu0
    %6700 = vdwg.mxu0
    %v6702 = vsel %vm5979, %v77, 0
    %v6705 = vsel %vm5979, %v78, 0
    %v6708 = vsel %vm5979, %v79, 0
    %v6711 = vsel %vm5979, %v80, 0
    %v6714 = vsel %vm5979, %v81, 0
    %v6717 = vsel %vm5979, %v82, 0
    %v6720 = vsel %vm99, %v5974, 0
    %6722 = vmatprep.subr.mxu0 0.0
    %v6723 = vand.u32 %v5971, 4294901760
    %6724 = vmatpush1.msra.mxu0 %v6723
    %6725 = vmatprep.subr.mxu0 0.0
    %v6726 = vand.u32 %v5972, 4294901760
    %6727 = vmatpush1.msra.mxu0 %v6726
    %6728 = vmatprep.subr.mxu0 0.0
    %v6729 = vand.u32 %v5973, 4294901760
    %6730 = vmatpush1.msra.mxu0 %v6729
    %6731 = vmatprep.subr.mxu0 0.0
    %v6732 = vand.u32 %v6720, 4294901760
    %6733 = vmatpush1.msra.mxu0 %v6732
    %6734 = vmatprep.subr.mxu0 0.0
    %6735 = vmatpush1.msra.mxu0 0.0
    %6736 = vmatprep.subr.mxu0 0.0
    %6737 = vmatpush1.msra.mxu0 0.0
    %6738 = vmatprep.subr.mxu0 0.0
    %6739 = vmatpush1.msra.mxu0 0.0
    %6740 = vmatprep.subr.mxu0 0.0
    %6741 = vmatpush1.msra.mxu0 0.0
    %6742 = vmatprep.subr.mxu0 0.0
    %6743 = vmatpush1.msra.mxu0 0.0
    %6744 = vmatprep.subr.mxu0 0.0
    %6745 = vmatpush1.msra.mxu0 0.0
    %6746 = vmatprep.subr.mxu0 0.0
    %6747 = vmatpush1.msra.mxu0 0.0
    %6748 = vmatprep.subr.mxu0 0.0
    %6749 = vmatpush1.msra.mxu0 0.0
    %6750 = vmatprep.subr.mxu0 0.0
    %6751 = vmatpush1.msra.mxu0 0.0
    %6752 = vmatprep.subr.mxu0 0.0
    %6753 = vmatpush1.msra.mxu0 0.0
    %6754 = vmatprep.subr.mxu0 0.0
    %6755 = vmatpush1.msra.mxu0 0.0
    %6756 = vmatprep.subr.mxu0 0.0
    %6757 = vmatpush1.msra.mxu0 0.0
    %6758 = vmatprep.subr.mxu0 0.0
    %6759 = vmatpush1.msra.mxu0 0.0
    %6760 = vmatprep.subr.mxu0 0.0
    %6761 = vmatpush1.msra.mxu0 0.0
    %6762 = vmatprep.subr.mxu0 0.0
    %6763 = vmatpush1.msra.mxu0 0.0
    %6764 = vmatprep.subr.mxu0 0.0
    %6765 = vmatpush1.msra.mxu0 0.0
    %6766 = vmatprep.subr.mxu0 0.0
    %6767 = vmatpush1.msra.mxu0 0.0
    %6768 = vmatprep.subr.mxu0 0.0
    %6769 = vmatpush1.msra.mxu0 0.0
    %6770 = vmatprep.subr.mxu0 0.0
    %6771 = vmatpush1.msra.mxu0 0.0
    %6772 = vmatprep.subr.mxu0 0.0
    %6773 = vmatpush1.msra.mxu0 0.0
    %6774 = vmatprep.subr.mxu0 0.0
    %6775 = vmatpush1.msra.mxu0 0.0
    %6776 = vmatprep.subr.mxu0 0.0
    %6777 = vmatpush1.msra.mxu0 0.0
    %6778 = vmatprep.subr.mxu0 0.0
    %6779 = vmatpush1.msra.mxu0 0.0
    %6780 = vmatprep.subr.mxu0 0.0
    %6781 = vmatpush1.msra.mxu0 0.0
    %6782 = vmatprep.subr.mxu0 0.0
    %6783 = vmatpush1.msra.mxu0 0.0
    %6784 = vmatprep.subr.mxu0 0.0
    %6785 = vmatpush1.msra.mxu0 0.0
    %6786 = vmatprep.subr.mxu0 0.0
    %6787 = vmatpush1.msra.mxu0 0.0
    %6788 = vmatprep.subr.mxu0 0.0
    %6789 = vmatpush1.msra.mxu0 0.0
    %6790 = vmatprep.mubr.f32.mxu0 0.0
    %v6791 = vand.u32 %v6702, 4294901760
    %v6792 = vsub.f32 %v6702, %v6791
    %v6793 = vand.u32 %v6792, 4294901760
    %v6794 = vsub.f32 %v6792, %v6793
    %v6795 = vand.u32 %v6794, 4294901760
    %6796 = vmatmul.mubr.f32.gmra.mrb[0].mxu0 %v6795
    %v6797 = vpop.f32.mrb[0].mxu0
    %v6798 = vadd.f32 %v6668, %v6797
    %v6799 = vpop.f32.mrb[0].mxu0
    %6800 = vmatprep.mubr.f32.mxu0 0.0
    %v6801 = vand.u32 %v6705, 4294901760
    %v6802 = vsub.f32 %v6705, %v6801
    %v6803 = vand.u32 %v6802, 4294901760
    %v6804 = vsub.f32 %v6802, %v6803
    %v6805 = vand.u32 %v6804, 4294901760
    %6806 = vmatmul.mubr.f32.gmra.mrb[0].mxu0 %v6805
    %v6807 = vpop.f32.mrb[0].mxu0
    %v6808 = vadd.f32 %v6674, %v6807
    %v6809 = vpop.f32.mrb[0].mxu0
    %6810 = vmatprep.mubr.f32.mxu0 0.0
    %v6811 = vand.u32 %v6708, 4294901760
    %v6812 = vsub.f32 %v6708, %v6811
    %v6813 = vand.u32 %v6812, 4294901760
    %v6814 = vsub.f32 %v6812, %v6813
    %v6815 = vand.u32 %v6814, 4294901760
    %6816 = vmatmul.mubr.f32.gmra.mrb[0].mxu0 %v6815
    %v6817 = vpop.f32.mrb[0].mxu0
    %v6818 = vadd.f32 %v6680, %v6817
    %v6819 = vpop.f32.mrb[0].mxu0
    %6820 = vmatprep.mubr.f32.mxu0 0.0
    %v6821 = vand.u32 %v6711, 4294901760
    %v6822 = vsub.f32 %v6711, %v6821
    %v6823 = vand.u32 %v6822, 4294901760
    %v6824 = vsub.f32 %v6822, %v6823
    %v6825 = vand.u32 %v6824, 4294901760
    %6826 = vmatmul.mubr.f32.gmra.mrb[0].mxu0 %v6825
    %v6827 = vpop.f32.mrb[0].mxu0
    %v6828 = vadd.f32 %v6686, %v6827
    %v6829 = vpop.f32.mrb[0].mxu0
    %6830 = vmatprep.mubr.f32.mxu0 0.0
    %v6831 = vand.u32 %v6714, 4294901760
    %v6832 = vsub.f32 %v6714, %v6831
    %v6833 = vand.u32 %v6832, 4294901760
    %v6834 = vsub.f32 %v6832, %v6833
    %v6835 = vand.u32 %v6834, 4294901760
    %6836 = vmatmul.mubr.f32.gmra.mrb[0].mxu0 %v6835
    %v6837 = vpop.f32.mrb[0].mxu0
    %v6838 = vadd.f32 %v6692, %v6837
    %v6839 = vpop.f32.mrb[0].mxu0
    %6840 = vmatprep.mubr.f32.mxu0 0.0
    %v6841 = vand.u32 %v6717, 4294901760
    %v6842 = vsub.f32 %v6717, %v6841
    %v6843 = vand.u32 %v6842, 4294901760
    %v6844 = vsub.f32 %v6842, %v6843
    %v6845 = vand.u32 %v6844, 4294901760
    %6846 = vmatmul.mubr.f32.gmra.mrb[0].mxu0 %v6845
    %v6847 = vpop.f32.mrb[0].mxu0
    %v6848 = vadd.f32 %v6698, %v6847
    %v6849 = vpop.f32.mrb[0].mxu0
    %6850 = vdwg.mxu0
    %6851 = vmatprep.subr.mxu0 0.0
    %v6852 = vand.u32 %v5971, 4294901760
    %v6853 = vsub.f32 %v5971, %v6852
    %v6854 = vand.u32 %v6853, 4294901760
    %v6855 = vsub.f32 %v6853, %v6854
    %v6856 = vand.u32 %v6855, 4294901760
    %6857 = vmatpush1.msra.mxu0 %v6856
    %6858 = vmatprep.subr.mxu0 0.0
    %v6859 = vand.u32 %v5972, 4294901760
    %v6860 = vsub.f32 %v5972, %v6859
    %v6861 = vand.u32 %v6860, 4294901760
    %v6862 = vsub.f32 %v6860, %v6861
    %v6863 = vand.u32 %v6862, 4294901760
    %6864 = vmatpush1.msra.mxu0 %v6863
    %6865 = vmatprep.subr.mxu0 0.0
    %v6866 = vand.u32 %v5973, 4294901760
    %v6867 = vsub.f32 %v5973, %v6866
    %v6868 = vand.u32 %v6867, 4294901760
    %v6869 = vsub.f32 %v6867, %v6868
    %v6870 = vand.u32 %v6869, 4294901760
    %6871 = vmatpush1.msra.mxu0 %v6870
    %6872 = vmatprep.subr.mxu0 0.0
    %v6873 = vand.u32 %v6720, 4294901760
    %v6874 = vsub.f32 %v6720, %v6873
    %v6875 = vand.u32 %v6874, 4294901760
    %v6876 = vsub.f32 %v6874, %v6875
    %v6877 = vand.u32 %v6876, 4294901760
    %6878 = vmatpush1.msra.mxu0 %v6877
    %6879 = vmatprep.subr.mxu0 0.0
    %6880 = vmatpush1.msra.mxu0 0.0
    %6881 = vmatprep.subr.mxu0 0.0
    %6882 = vmatpush1.msra.mxu0 0.0
    %6883 = vmatprep.subr.mxu0 0.0
    %6884 = vmatpush1.msra.mxu0 0.0
    %6885 = vmatprep.subr.mxu0 0.0
    %6886 = vmatpush1.msra.mxu0 0.0
    %6887 = vmatprep.subr.mxu0 0.0
    %6888 = vmatpush1.msra.mxu0 0.0
    %6889 = vmatprep.subr.mxu0 0.0
    %6890 = vmatpush1.msra.mxu0 0.0
    %6891 = vmatprep.subr.mxu0 0.0
    %6892 = vmatpush1.msra.mxu0 0.0
    %6893 = vmatprep.subr.mxu0 0.0
    %6894 = vmatpush1.msra.mxu0 0.0
    %6895 = vmatprep.subr.mxu0 0.0
    %6896 = vmatpush1.msra.mxu0 0.0
    %6897 = vmatprep.subr.mxu0 0.0
    %6898 = vmatpush1.msra.mxu0 0.0
    %6899 = vmatprep.subr.mxu0 0.0
    %6900 = vmatpush1.msra.mxu0 0.0
    %6901 = vmatprep.subr.mxu0 0.0
    %6902 = vmatpush1.msra.mxu0 0.0
    %6903 = vmatprep.subr.mxu0 0.0
    %6904 = vmatpush1.msra.mxu0 0.0
    %6905 = vmatprep.subr.mxu0 0.0
    %6906 = vmatpush1.msra.mxu0 0.0
    %6907 = vmatprep.subr.mxu0 0.0
    %6908 = vmatpush1.msra.mxu0 0.0
    %6909 = vmatprep.subr.mxu0 0.0
    %6910 = vmatpush1.msra.mxu0 0.0
    %6911 = vmatprep.subr.mxu0 0.0
    %6912 = vmatpush1.msra.mxu0 0.0
    %6913 = vmatprep.subr.mxu0 0.0
    %6914 = vmatpush1.msra.mxu0 0.0
    %6915 = vmatprep.subr.mxu0 0.0
    %6916 = vmatpush1.msra.mxu0 0.0
    %6917 = vmatprep.subr.mxu0 0.0
    %6918 = vmatpush1.msra.mxu0 0.0
    %6919 = vmatprep.subr.mxu0 0.0
    %6920 = vmatpush1.msra.mxu0 0.0
    %6921 = vmatprep.subr.mxu0 0.0
    %6922 = vmatpush1.msra.mxu0 0.0
    %6923 = vmatprep.subr.mxu0 0.0
    %6924 = vmatpush1.msra.mxu0 0.0
    %6925 = vmatprep.subr.mxu0 0.0
    %6926 = vmatpush1.msra.mxu0 0.0
    %6927 = vmatprep.subr.mxu0 0.0
    %6928 = vmatpush1.msra.mxu0 0.0
    %6929 = vmatprep.subr.mxu0 0.0
    %6930 = vmatpush1.msra.mxu0 0.0
    %6931 = vmatprep.subr.mxu0 0.0
    %6932 = vmatpush1.msra.mxu0 0.0
    %6933 = vmatprep.subr.mxu0 0.0
    %6934 = vmatpush1.msra.mxu0 0.0
    %6935 = vmatprep.mubr.f32.mxu0 0.0
    %v6936 = vand.u32 %v6702, 4294901760
    %6937 = vmatmul.mubr.f32.gmra.mrb[0].mxu0 %v6936
    %v6938 = vpop.f32.mrb[0].mxu0
    %v6939 = vadd.f32 %v6798, %v6938
    %v6940 = vpop.f32.mrb[0].mxu0
    %6941 = vmatprep.mubr.f32.mxu0 0.0
    %v6942 = vand.u32 %v6705, 4294901760
    %6943 = vmatmul.mubr.f32.gmra.mrb[0].mxu0 %v6942
    %v6944 = vpop.f32.mrb[0].mxu0
    %v6945 = vadd.f32 %v6808, %v6944
    %v6946 = vpop.f32.mrb[0].mxu0
    %6947 = vmatprep.mubr.f32.mxu0 0.0
    %v6948 = vand.u32 %v6708, 4294901760
    %6949 = vmatmul.mubr.f32.gmra.mrb[0].mxu0 %v6948
    %v6950 = vpop.f32.mrb[0].mxu0
    %v6951 = vadd.f32 %v6818, %v6950
    %v6952 = vpop.f32.mrb[0].mxu0
    %6953 = vmatprep.mubr.f32.mxu0 0.0
    %v6954 = vand.u32 %v6711, 4294901760
    %6955 = vmatmul.mubr.f32.gmra.mrb[0].mxu0 %v6954
    %v6956 = vpop.f32.mrb[0].mxu0
    %v6957 = vadd.f32 %v6828, %v6956
    %v6958 = vpop.f32.mrb[0].mxu0
    %6959 = vmatprep.mubr.f32.mxu0 0.0
    %v6960 = vand.u32 %v6714, 4294901760
    %6961 = vmatmul.mubr.f32.gmra.mrb[0].mxu0 %v6960
    %v6962 = vpop.f32.mrb[0].mxu0
    %v6963 = vadd.f32 %v6838, %v6962
    %v6964 = vpop.f32.mrb[0].mxu0
    %6965 = vmatprep.mubr.f32.mxu0 0.0
    %v6966 = vand.u32 %v6717, 4294901760
    %6967 = vmatmul.mubr.f32.gmra.mrb[0].mxu0 %v6966
    %v6968 = vpop.f32.mrb[0].mxu0
    %v6969 = vadd.f32 %v6848, %v6968
    %v6970 = vpop.f32.mrb[0].mxu0
    %6971 = vdwg.mxu0
    %6972 = vmatprep.subr.mxu0 0.0
    %v6973 = vand.u32 %v5971, 4294901760
    %v6974 = vsub.f32 %v5971, %v6973
    %6975 = vmatpush1.msra.mxu0 %v6974
    %6976 = vmatprep.subr.mxu0 0.0
    %v6977 = vand.u32 %v5972, 4294901760
    %v6978 = vsub.f32 %v5972, %v6977
    %6979 = vmatpush1.msra.mxu0 %v6978
    %6980 = vmatprep.subr.mxu0 0.0
    %v6981 = vand.u32 %v5973, 4294901760
    %v6982 = vsub.f32 %v5973, %v6981
    %6983 = vmatpush1.msra.mxu0 %v6982
    %6984 = vmatprep.subr.mxu0 0.0
    %v6985 = vand.u32 %v6720, 4294901760
    %v6986 = vsub.f32 %v6720, %v6985
    %6987 = vmatpush1.msra.mxu0 %v6986
    %6988 = vmatprep.subr.mxu0 0.0
    %6989 = vmatpush1.msra.mxu0 0.0
    %6990 = vmatprep.subr.mxu0 0.0
    %6991 = vmatpush1.msra.mxu0 0.0
    %6992 = vmatprep.subr.mxu0 0.0
    %6993 = vmatpush1.msra.mxu0 0.0
    %6994 = vmatprep.subr.mxu0 0.0
    %6995 = vmatpush1.msra.mxu0 0.0
    %6996 = vmatprep.subr.mxu0 0.0
    %6997 = vmatpush1.msra.mxu0 0.0
    %6998 = vmatprep.subr.mxu0 0.0
    %6999 = vmatpush1.msra.mxu0 0.0
    %7000 = vmatprep.subr.mxu0 0.0
    %7001 = vmatpush1.msra.mxu0 0.0
    %7002 = vmatprep.subr.mxu0 0.0
    %7003 = vmatpush1.msra.mxu0 0.0
    %7004 = vmatprep.subr.mxu0 0.0
    %7005 = vmatpush1.msra.mxu0 0.0
    %7006 = vmatprep.subr.mxu0 0.0
    %7007 = vmatpush1.msra.mxu0 0.0
    %7008 = vmatprep.subr.mxu0 0.0
    %7009 = vmatpush1.msra.mxu0 0.0
    %7010 = vmatprep.subr.mxu0 0.0
    %7011 = vmatpush1.msra.mxu0 0.0
    %7012 = vmatprep.subr.mxu0 0.0
    %7013 = vmatpush1.msra.mxu0 0.0
    %7014 = vmatprep.subr.mxu0 0.0
    %7015 = vmatpush1.msra.mxu0 0.0
    %7016 = vmatprep.subr.mxu0 0.0
    %7017 = vmatpush1.msra.mxu0 0.0
    %7018 = vmatprep.subr.mxu0 0.0
    %7019 = vmatpush1.msra.mxu0 0.0
    %7020 = vmatprep.subr.mxu0 0.0
    %7021 = vmatpush1.msra.mxu0 0.0
    %7022 = vmatprep.subr.mxu0 0.0
    %7023 = vmatpush1.msra.mxu0 0.0
    %7024 = vmatprep.subr.mxu0 0.0
    %7025 = vmatpush1.msra.mxu0 0.0
    %7026 = vmatprep.subr.mxu0 0.0
    %7027 = vmatpush1.msra.mxu0 0.0
    %7028 = vmatprep.subr.mxu0 0.0
    %7029 = vmatpush1.msra.mxu0 0.0
    %7030 = vmatprep.subr.mxu0 0.0
    %7031 = vmatpush1.msra.mxu0 0.0
    %7032 = vmatprep.subr.mxu0 0.0
    %7033 = vmatpush1.msra.mxu0 0.0
    %7034 = vmatprep.subr.mxu0 0.0
    %7035 = vmatpush1.msra.mxu0 0.0
    %7036 = vmatprep.subr.mxu0 0.0
    %7037 = vmatpush1.msra.mxu0 0.0
    %7038 = vmatprep.subr.mxu0 0.0
    %7039 = vmatpush1.msra.mxu0 0.0
    %7040 = vmatprep.subr.mxu0 0.0
    %7041 = vmatpush1.msra.mxu0 0.0
    %7042 = vmatprep.subr.mxu0 0.0
    %7043 = vmatpush1.msra.mxu0 0.0
    %7044 = vmatprep.mubr.f32.mxu0 0.0
    %v7045 = vand.u32 %v6702, 4294901760
    %v7046 = vsub.f32 %v6702, %v7045
    %7047 = vmatmul.mubr.f32.gmra.mrb[0].mxu0 %v7046
    %v7048 = vpop.f32.mrb[0].mxu0
    %v7049 = vadd.f32 %v6939, %v7048
    %v7050 = vpop.f32.mrb[0].mxu0
    %7051 = vmatprep.mubr.f32.mxu0 0.0
    %v7052 = vand.u32 %v6705, 4294901760
    %v7053 = vsub.f32 %v6705, %v7052
    %7054 = vmatmul.mubr.f32.gmra.mrb[0].mxu0 %v7053
    %v7055 = vpop.f32.mrb[0].mxu0
    %v7056 = vadd.f32 %v6945, %v7055
    %v7057 = vpop.f32.mrb[0].mxu0
    %7058 = vmatprep.mubr.f32.mxu0 0.0
    %v7059 = vand.u32 %v6708, 4294901760
    %v7060 = vsub.f32 %v6708, %v7059
    %7061 = vmatmul.mubr.f32.gmra.mrb[0].mxu0 %v7060
    %v7062 = vpop.f32.mrb[0].mxu0
    %v7063 = vadd.f32 %v6951, %v7062
    %v7064 = vpop.f32.mrb[0].mxu0
    %7065 = vmatprep.mubr.f32.mxu0 0.0
    %v7066 = vand.u32 %v6711, 4294901760
    %v7067 = vsub.f32 %v6711, %v7066
    %7068 = vmatmul.mubr.f32.gmra.mrb[0].mxu0 %v7067
    %v7069 = vpop.f32.mrb[0].mxu0
    %v7070 = vadd.f32 %v6957, %v7069
    %v7071 = vpop.f32.mrb[0].mxu0
    %7072 = vmatprep.mubr.f32.mxu0 0.0
    %v7073 = vand.u32 %v6714, 4294901760
    %v7074 = vsub.f32 %v6714, %v7073
    %7075 = vmatmul.mubr.f32.gmra.mrb[0].mxu0 %v7074
    %v7076 = vpop.f32.mrb[0].mxu0
    %v7077 = vadd.f32 %v6963, %v7076
    %v7078 = vpop.f32.mrb[0].mxu0
    %7079 = vmatprep.mubr.f32.mxu0 0.0
    %v7080 = vand.u32 %v6717, 4294901760
    %v7081 = vsub.f32 %v6717, %v7080
    %7082 = vmatmul.mubr.f32.gmra.mrb[0].mxu0 %v7081
    %v7083 = vpop.f32.mrb[0].mxu0
    %v7084 = vadd.f32 %v6969, %v7083
    %v7085 = vpop.f32.mrb[0].mxu0
    %7086 = vdwg.mxu0
    %7087 = vmatprep.subr.mxu0 0.0
    %v7088 = vand.u32 %v5971, 4294901760
    %7089 = vmatpush1.msra.mxu0 %v7088
    %7090 = vmatprep.subr.mxu0 0.0
    %v7091 = vand.u32 %v5972, 4294901760
    %7092 = vmatpush1.msra.mxu0 %v7091
    %7093 = vmatprep.subr.mxu0 0.0
    %v7094 = vand.u32 %v5973, 4294901760
    %7095 = vmatpush1.msra.mxu0 %v7094
    %7096 = vmatprep.subr.mxu0 0.0
    %v7097 = vand.u32 %v6720, 4294901760
    %7098 = vmatpush1.msra.mxu0 %v7097
    %7099 = vmatprep.subr.mxu0 0.0
    %7100 = vmatpush1.msra.mxu0 0.0
    %7101 = vmatprep.subr.mxu0 0.0
    %7102 = vmatpush1.msra.mxu0 0.0
    %7103 = vmatprep.subr.mxu0 0.0
    %7104 = vmatpush1.msra.mxu0 0.0
    %7105 = vmatprep.subr.mxu0 0.0
    %7106 = vmatpush1.msra.mxu0 0.0
    %7107 = vmatprep.subr.mxu0 0.0
    %7108 = vmatpush1.msra.mxu0 0.0
    %7109 = vmatprep.subr.mxu0 0.0
    %7110 = vmatpush1.msra.mxu0 0.0
    %7111 = vmatprep.subr.mxu0 0.0
    %7112 = vmatpush1.msra.mxu0 0.0
    %7113 = vmatprep.subr.mxu0 0.0
    %7114 = vmatpush1.msra.mxu0 0.0
    %7115 = vmatprep.subr.mxu0 0.0
    %7116 = vmatpush1.msra.mxu0 0.0
    %7117 = vmatprep.subr.mxu0 0.0
    %7118 = vmatpush1.msra.mxu0 0.0
    %7119 = vmatprep.subr.mxu0 0.0
    %7120 = vmatpush1.msra.mxu0 0.0
    %7121 = vmatprep.subr.mxu0 0.0
    %7122 = vmatpush1.msra.mxu0 0.0
    %7123 = vmatprep.subr.mxu0 0.0
    %7124 = vmatpush1.msra.mxu0 0.0
    %7125 = vmatprep.subr.mxu0 0.0
    %7126 = vmatpush1.msra.mxu0 0.0
    %7127 = vmatprep.subr.mxu0 0.0
    %7128 = vmatpush1.msra.mxu0 0.0
    %7129 = vmatprep.subr.mxu0 0.0
    %7130 = vmatpush1.msra.mxu0 0.0
    %7131 = vmatprep.subr.mxu0 0.0
    %7132 = vmatpush1.msra.mxu0 0.0
    %7133 = vmatprep.subr.mxu0 0.0
    %7134 = vmatpush1.msra.mxu0 0.0
    %7135 = vmatprep.subr.mxu0 0.0
    %7136 = vmatpush1.msra.mxu0 0.0
    %7137 = vmatprep.subr.mxu0 0.0
    %7138 = vmatpush1.msra.mxu0 0.0
    %7139 = vmatprep.subr.mxu0 0.0
    %7140 = vmatpush1.msra.mxu0 0.0
    %7141 = vmatprep.subr.mxu0 0.0
    %7142 = vmatpush1.msra.mxu0 0.0
    %7143 = vmatprep.subr.mxu0 0.0
    %7144 = vmatpush1.msra.mxu0 0.0
    %7145 = vmatprep.subr.mxu0 0.0
    %7146 = vmatpush1.msra.mxu0 0.0
    %7147 = vmatprep.subr.mxu0 0.0
    %7148 = vmatpush1.msra.mxu0 0.0
    %7149 = vmatprep.subr.mxu0 0.0
    %7150 = vmatpush1.msra.mxu0 0.0
    %7151 = vmatprep.subr.mxu0 0.0
    %7152 = vmatpush1.msra.mxu0 0.0
    %7153 = vmatprep.subr.mxu0 0.0
    %7154 = vmatpush1.msra.mxu0 0.0
    %7155 = vmatprep.mubr.f32.mxu0 0.0
    %v7156 = vand.u32 %v6702, 4294901760
    %v7157 = vsub.f32 %v6702, %v7156
    %v7158 = vand.u32 %v7157, 4294901760
    %7159 = vmatmul.mubr.f32.gmra.mrb[0].mxu0 %v7158
    %v7160 = vpop.f32.mrb[0].mxu0
    %v7161 = vadd.f32 %v7049, %v7160
    %v7162 = vpop.f32.mrb[0].mxu0
    %7163 = vmatprep.mubr.f32.mxu0 0.0
    %v7164 = vand.u32 %v6705, 4294901760
    %v7165 = vsub.f32 %v6705, %v7164
    %v7166 = vand.u32 %v7165, 4294901760
    %7167 = vmatmul.mubr.f32.gmra.mrb[0].mxu0 %v7166
    %v7168 = vpop.f32.mrb[0].mxu0
    %v7169 = vadd.f32 %v7056, %v7168
    %v7170 = vpop.f32.mrb[0].mxu0
    %7171 = vmatprep.mubr.f32.mxu0 0.0
    %v7172 = vand.u32 %v6708, 4294901760
    %v7173 = vsub.f32 %v6708, %v7172
    %v7174 = vand.u32 %v7173, 4294901760
    %7175 = vmatmul.mubr.f32.gmra.mrb[0].mxu0 %v7174
    %v7176 = vpop.f32.mrb[0].mxu0
    %v7177 = vadd.f32 %v7063, %v7176
    %v7178 = vpop.f32.mrb[0].mxu0
    %7179 = vmatprep.mubr.f32.mxu0 0.0
    %v7180 = vand.u32 %v6711, 4294901760
    %v7181 = vsub.f32 %v6711, %v7180
    %v7182 = vand.u32 %v7181, 4294901760
    %7183 = vmatmul.mubr.f32.gmra.mrb[0].mxu0 %v7182
    %v7184 = vpop.f32.mrb[0].mxu0
    %v7185 = vadd.f32 %v7070, %v7184
    %v7186 = vpop.f32.mrb[0].mxu0
    %7187 = vmatprep.mubr.f32.mxu0 0.0
    %v7188 = vand.u32 %v6714, 4294901760
    %v7189 = vsub.f32 %v6714, %v7188
    %v7190 = vand.u32 %v7189, 4294901760
    %7191 = vmatmul.mubr.f32.gmra.mrb[0].mxu0 %v7190
    %v7192 = vpop.f32.mrb[0].mxu0
    %v7193 = vadd.f32 %v7077, %v7192
    %v7194 = vpop.f32.mrb[0].mxu0
    %7195 = vmatprep.mubr.f32.mxu0 0.0
    %v7196 = vand.u32 %v6717, 4294901760
    %v7197 = vsub.f32 %v6717, %v7196
    %v7198 = vand.u32 %v7197, 4294901760
    %7199 = vmatmul.mubr.f32.gmra.mrb[0].mxu0 %v7198
    %v7200 = vpop.f32.mrb[0].mxu0
    %v7201 = vadd.f32 %v7084, %v7200
    %v7202 = vpop.f32.mrb[0].mxu0
    %7203 = vdwg.mxu0
    %7204 = vmatprep.subr.mxu0 0.0
    %v7205 = vand.u32 %v5971, 4294901760
    %v7206 = vsub.f32 %v5971, %v7205
    %v7207 = vand.u32 %v7206, 4294901760
    %7208 = vmatpush1.msra.mxu0 %v7207
    %7209 = vmatprep.subr.mxu0 0.0
    %v7210 = vand.u32 %v5972, 4294901760
    %v7211 = vsub.f32 %v5972, %v7210
    %v7212 = vand.u32 %v7211, 4294901760
    %7213 = vmatpush1.msra.mxu0 %v7212
    %7214 = vmatprep.subr.mxu0 0.0
    %v7215 = vand.u32 %v5973, 4294901760
    %v7216 = vsub.f32 %v5973, %v7215
    %v7217 = vand.u32 %v7216, 4294901760
    %7218 = vmatpush1.msra.mxu0 %v7217
    %7219 = vmatprep.subr.mxu0 0.0
    %v7220 = vand.u32 %v6720, 4294901760
    %v7221 = vsub.f32 %v6720, %v7220
    %v7222 = vand.u32 %v7221, 4294901760
    %7223 = vmatpush1.msra.mxu0 %v7222
    %7224 = vmatprep.subr.mxu0 0.0
    %7225 = vmatpush1.msra.mxu0 0.0
    %7226 = vmatprep.subr.mxu0 0.0
    %7227 = vmatpush1.msra.mxu0 0.0
    %7228 = vmatprep.subr.mxu0 0.0
    %7229 = vmatpush1.msra.mxu0 0.0
    %7230 = vmatprep.subr.mxu0 0.0
    %7231 = vmatpush1.msra.mxu0 0.0
    %7232 = vmatprep.subr.mxu0 0.0
    %7233 = vmatpush1.msra.mxu0 0.0
    %7234 = vmatprep.subr.mxu0 0.0
    %7235 = vmatpush1.msra.mxu0 0.0
    %7236 = vmatprep.subr.mxu0 0.0
    %7237 = vmatpush1.msra.mxu0 0.0
    %7238 = vmatprep.subr.mxu0 0.0
    %7239 = vmatpush1.msra.mxu0 0.0
    %7240 = vmatprep.subr.mxu0 0.0
    %7241 = vmatpush1.msra.mxu0 0.0
    %7242 = vmatprep.subr.mxu0 0.0
    %7243 = vmatpush1.msra.mxu0 0.0
    %7244 = vmatprep.subr.mxu0 0.0
    %7245 = vmatpush1.msra.mxu0 0.0
    %7246 = vmatprep.subr.mxu0 0.0
    %7247 = vmatpush1.msra.mxu0 0.0
    %7248 = vmatprep.subr.mxu0 0.0
    %7249 = vmatpush1.msra.mxu0 0.0
    %7250 = vmatprep.subr.mxu0 0.0
    %7251 = vmatpush1.msra.mxu0 0.0
    %7252 = vmatprep.subr.mxu0 0.0
    %7253 = vmatpush1.msra.mxu0 0.0
    %7254 = vmatprep.subr.mxu0 0.0
    %7255 = vmatpush1.msra.mxu0 0.0
    %7256 = vmatprep.subr.mxu0 0.0
    %7257 = vmatpush1.msra.mxu0 0.0
    %7258 = vmatprep.subr.mxu0 0.0
    %7259 = vmatpush1.msra.mxu0 0.0
    %7260 = vmatprep.subr.mxu0 0.0
    %7261 = vmatpush1.msra.mxu0 0.0
    %7262 = vmatprep.subr.mxu0 0.0
    %7263 = vmatpush1.msra.mxu0 0.0
    %7264 = vmatprep.subr.mxu0 0.0
    %7265 = vmatpush1.msra.mxu0 0.0
    %7266 = vmatprep.subr.mxu0 0.0
    %7267 = vmatpush1.msra.mxu0 0.0
    %7268 = vmatprep.subr.mxu0 0.0
    %7269 = vmatpush1.msra.mxu0 0.0
    %7270 = vmatprep.subr.mxu0 0.0
    %7271 = vmatpush1.msra.mxu0 0.0
    %7272 = vmatprep.subr.mxu0 0.0
    %7273 = vmatpush1.msra.mxu0 0.0
    %7274 = vmatprep.subr.mxu0 0.0
    %7275 = vmatpush1.msra.mxu0 0.0
    %7276 = vmatprep.subr.mxu0 0.0
    %7277 = vmatpush1.msra.mxu0 0.0
    %7278 = vmatprep.subr.mxu0 0.0
    %7279 = vmatpush1.msra.mxu0 0.0
    %7280 = vmatprep.mubr.f32.mxu0 0.0
    %v7281 = vand.u32 %v6702, 4294901760
    %7282 = vmatmul.mubr.f32.gmra.mrb[0].mxu0 %v7281
    %v7283 = vpop.f32.mrb[0].mxu0
    %v7284 = vadd.f32 %v7161, %v7283
    %v7285 = vpop.f32.mrb[0].mxu0
    %7286 = vmatprep.mubr.f32.mxu0 0.0
    %v7287 = vand.u32 %v6705, 4294901760
    %7288 = vmatmul.mubr.f32.gmra.mrb[0].mxu0 %v7287
    %v7289 = vpop.f32.mrb[0].mxu0
    %v7290 = vadd.f32 %v7169, %v7289
    %v7291 = vpop.f32.mrb[0].mxu0
    %7292 = vmatprep.mubr.f32.mxu0 0.0
    %v7293 = vand.u32 %v6708, 4294901760
    %7294 = vmatmul.mubr.f32.gmra.mrb[0].mxu0 %v7293
    %v7295 = vpop.f32.mrb[0].mxu0
    %v7296 = vadd.f32 %v7177, %v7295
    %v7297 = vpop.f32.mrb[0].mxu0
    %7298 = vmatprep.mubr.f32.mxu0 0.0
    %v7299 = vand.u32 %v6711, 4294901760
    %7300 = vmatmul.mubr.f32.gmra.mrb[0].mxu0 %v7299
    %v7301 = vpop.f32.mrb[0].mxu0
    %v7302 = vadd.f32 %v7185, %v7301
    %v7303 = vpop.f32.mrb[0].mxu0
    %7304 = vmatprep.mubr.f32.mxu0 0.0
    %v7305 = vand.u32 %v6714, 4294901760
    %7306 = vmatmul.mubr.f32.gmra.mrb[0].mxu0 %v7305
    %v7307 = vpop.f32.mrb[0].mxu0
    %v7308 = vadd.f32 %v7193, %v7307
    %v7309 = vpop.f32.mrb[0].mxu0
    %7310 = vmatprep.mubr.f32.mxu0 0.0
    %v7311 = vand.u32 %v6717, 4294901760
    %7312 = vmatmul.mubr.f32.gmra.mrb[0].mxu0 %v7311
    %v7313 = vpop.f32.mrb[0].mxu0
    %v7314 = vadd.f32 %v7201, %v7313
    %v7315 = vpop.f32.mrb[0].mxu0
    %7316 = vdwg.mxu0
    %7317 = vmatprep.subr.mxu0 0.0
    %v7318 = vand.u32 %v5971, 4294901760
    %7319 = vmatpush1.msra.mxu0 %v7318
    %7320 = vmatprep.subr.mxu0 0.0
    %v7321 = vand.u32 %v5972, 4294901760
    %7322 = vmatpush1.msra.mxu0 %v7321
    %7323 = vmatprep.subr.mxu0 0.0
    %v7324 = vand.u32 %v5973, 4294901760
    %7325 = vmatpush1.msra.mxu0 %v7324
    %7326 = vmatprep.subr.mxu0 0.0
    %v7327 = vand.u32 %v6720, 4294901760
    %7328 = vmatpush1.msra.mxu0 %v7327
    %7329 = vmatprep.subr.mxu0 0.0
    %7330 = vmatpush1.msra.mxu0 0.0
    %7331 = vmatprep.subr.mxu0 0.0
    %7332 = vmatpush1.msra.mxu0 0.0
    %7333 = vmatprep.subr.mxu0 0.0
    %7334 = vmatpush1.msra.mxu0 0.0
    %7335 = vmatprep.subr.mxu0 0.0
    %7336 = vmatpush1.msra.mxu0 0.0
    %7337 = vmatprep.subr.mxu0 0.0
    %7338 = vmatpush1.msra.mxu0 0.0
    %7339 = vmatprep.subr.mxu0 0.0
    %7340 = vmatpush1.msra.mxu0 0.0
    %7341 = vmatprep.subr.mxu0 0.0
    %7342 = vmatpush1.msra.mxu0 0.0
    %7343 = vmatprep.subr.mxu0 0.0
    %7344 = vmatpush1.msra.mxu0 0.0
    %7345 = vmatprep.subr.mxu0 0.0
    %7346 = vmatpush1.msra.mxu0 0.0
    %7347 = vmatprep.subr.mxu0 0.0
    %7348 = vmatpush1.msra.mxu0 0.0
    %7349 = vmatprep.subr.mxu0 0.0
    %7350 = vmatpush1.msra.mxu0 0.0
    %7351 = vmatprep.subr.mxu0 0.0
    %7352 = vmatpush1.msra.mxu0 0.0
    %7353 = vmatprep.subr.mxu0 0.0
    %7354 = vmatpush1.msra.mxu0 0.0
    %7355 = vmatprep.subr.mxu0 0.0
    %7356 = vmatpush1.msra.mxu0 0.0
    %7357 = vmatprep.subr.mxu0 0.0
    %7358 = vmatpush1.msra.mxu0 0.0
    %7359 = vmatprep.subr.mxu0 0.0
    %7360 = vmatpush1.msra.mxu0 0.0
    %7361 = vmatprep.subr.mxu0 0.0
    %7362 = vmatpush1.msra.mxu0 0.0
    %7363 = vmatprep.subr.mxu0 0.0
    %7364 = vmatpush1.msra.mxu0 0.0
    %7365 = vmatprep.subr.mxu0 0.0
    %7366 = vmatpush1.msra.mxu0 0.0
    %7367 = vmatprep.subr.mxu0 0.0
    %7368 = vmatpush1.msra.mxu0 0.0
    %7369 = vmatprep.subr.mxu0 0.0
    %7370 = vmatpush1.msra.mxu0 0.0
    %7371 = vmatprep.subr.mxu0 0.0
    %7372 = vmatpush1.msra.mxu0 0.0
    %7373 = vmatprep.subr.mxu0 0.0
    %7374 = vmatpush1.msra.mxu0 0.0
    %7375 = vmatprep.subr.mxu0 0.0
    %7376 = vmatpush1.msra.mxu0 0.0
    %7377 = vmatprep.subr.mxu0 0.0
    %7378 = vmatpush1.msra.mxu0 0.0
    %7379 = vmatprep.subr.mxu0 0.0
    %7380 = vmatpush1.msra.mxu0 0.0
    %7381 = vmatprep.subr.mxu0 0.0
    %7382 = vmatpush1.msra.mxu0 0.0
    %7383 = vmatprep.subr.mxu0 0.0
    %7384 = vmatpush1.msra.mxu0 0.0
    %7385 = vmatprep.mubr.f32.mxu0 0.0
    %v7386 = vand.u32 %v6702, 4294901760
    %7387 = vmatmul.mubr.f32.gmra.mrb[0].mxu0 %v7386
    %v7388 = vpop.f32.mrb[0].mxu0
    %v7389 = vadd.f32 %v7284, %v7388
    %v7390 = vpop.f32.mrb[0].mxu0
    %7391 = vmatprep.mubr.f32.mxu0 0.0
    %v7392 = vand.u32 %v6705, 4294901760
    %7393 = vmatmul.mubr.f32.gmra.mrb[0].mxu0 %v7392
    %v7394 = vpop.f32.mrb[0].mxu0
    %v7395 = vadd.f32 %v7290, %v7394
    %v7396 = vpop.f32.mrb[0].mxu0
    %7397 = vmatprep.mubr.f32.mxu0 0.0
    %v7398 = vand.u32 %v6708, 4294901760
    %7399 = vmatmul.mubr.f32.gmra.mrb[0].mxu0 %v7398
    %v7400 = vpop.f32.mrb[0].mxu0
    %v7401 = vadd.f32 %v7296, %v7400
    %v7402 = vpop.f32.mrb[0].mxu0
    %7403 = vmatprep.mubr.f32.mxu0 0.0
    %v7404 = vand.u32 %v6711, 4294901760
    %7405 = vmatmul.mubr.f32.gmra.mrb[0].mxu0 %v7404
    %v7406 = vpop.f32.mrb[0].mxu0
    %v7407 = vadd.f32 %v7302, %v7406
    %v7408 = vpop.f32.mrb[0].mxu0
    %7409 = vmatprep.mubr.f32.mxu0 0.0
    %v7410 = vand.u32 %v6714, 4294901760
    %7411 = vmatmul.mubr.f32.gmra.mrb[0].mxu0 %v7410
    %v7412 = vpop.f32.mrb[0].mxu0
    %v7413 = vadd.f32 %v7308, %v7412
    %v7414 = vpop.f32.mrb[0].mxu0
    %7415 = vmatprep.mubr.f32.mxu0 0.0
    %v7416 = vand.u32 %v6717, 4294901760
    %7417 = vmatmul.mubr.f32.gmra.mrb[0].mxu0 %v7416
    %v7418 = vpop.f32.mrb[0].mxu0
    %v7419 = vadd.f32 %v7314, %v7418
    %v7420 = vpop.f32.mrb[0].mxu0
    %7421 = vdwg.mxu0
    %v7422 = vlaneseq
    %v7423 = vshrl.u32 %v7422, 7
    %v7424 = vsub.s32 0, %v7423
    %v7425 = vrot.slane %v60, %v7424
    %v7427 = vsel %vm5929, %v7389, 0
    %v7430 = vsel %vm5929, %v7395, 0
    %v7433 = vsel %vm5929, %v7401, 0
    %v7436 = vsel %vm5929, %v7407, 0
    %v7439 = vsel %vm5929, %v7413, 0
    %v7442 = vsel %vm5929, %v7419, 0
    %7444 = vmatprep.subr.mxu0 0.0
    %v7445 = vand.u32 %v54, 4294901760
    %7446 = vmatpush1.msra.mxu0 %v7445
    %7447 = vmatprep.subr.mxu0 0.0
    %v7448 = vand.u32 %v55, 4294901760
    %7449 = vmatpush1.msra.mxu0 %v7448
    %7450 = vmatprep.subr.mxu0 0.0
    %v7451 = vand.u32 %v56, 4294901760
    %7452 = vmatpush1.msra.mxu0 %v7451
    %7453 = vmatprep.subr.mxu0 0.0
    %v7454 = vand.u32 %v57, 4294901760
    %7455 = vmatpush1.msra.mxu0 %v7454
    %7456 = vmatprep.subr.mxu0 0.0
    %7457 = vmatpush1.msra.mxu0 0.0
    %7458 = vmatprep.subr.mxu0 0.0
    %7459 = vmatpush1.msra.mxu0 0.0
    %7460 = vmatprep.subr.mxu0 0.0
    %7461 = vmatpush1.msra.mxu0 0.0
    %7462 = vmatprep.subr.mxu0 0.0
    %7463 = vmatpush1.msra.mxu0 0.0
    %7464 = vmatprep.subr.mxu0 0.0
    %7465 = vmatpush1.msra.mxu0 0.0
    %7466 = vmatprep.subr.mxu0 0.0
    %7467 = vmatpush1.msra.mxu0 0.0
    %7468 = vmatprep.subr.mxu0 0.0
    %7469 = vmatpush1.msra.mxu0 0.0
    %7470 = vmatprep.subr.mxu0 0.0
    %7471 = vmatpush1.msra.mxu0 0.0
    %7472 = vmatprep.subr.mxu0 0.0
    %7473 = vmatpush1.msra.mxu0 0.0
    %7474 = vmatprep.subr.mxu0 0.0
    %7475 = vmatpush1.msra.mxu0 0.0
    %7476 = vmatprep.subr.mxu0 0.0
    %7477 = vmatpush1.msra.mxu0 0.0
    %7478 = vmatprep.subr.mxu0 0.0
    %7479 = vmatpush1.msra.mxu0 0.0
    %7480 = vmatprep.subr.mxu0 0.0
    %7481 = vmatpush1.msra.mxu0 0.0
    %7482 = vmatprep.subr.mxu0 0.0
    %7483 = vmatpush1.msra.mxu0 0.0
    %7484 = vmatprep.subr.mxu0 0.0
    %7485 = vmatpush1.msra.mxu0 0.0
    %7486 = vmatprep.subr.mxu0 0.0
    %7487 = vmatpush1.msra.mxu0 0.0
    %7488 = vmatprep.subr.mxu0 0.0
    %7489 = vmatpush1.msra.mxu0 0.0
    %7490 = vmatprep.subr.mxu0 0.0
    %7491 = vmatpush1.msra.mxu0 0.0
    %7492 = vmatprep.subr.mxu0 0.0
    %7493 = vmatpush1.msra.mxu0 0.0
    %7494 = vmatprep.subr.mxu0 0.0
    %7495 = vmatpush1.msra.mxu0 0.0
    %7496 = vmatprep.subr.mxu0 0.0
    %7497 = vmatpush1.msra.mxu0 0.0
    %7498 = vmatprep.subr.mxu0 0.0
    %7499 = vmatpush1.msra.mxu0 0.0
    %7500 = vmatprep.subr.mxu0 0.0
    %7501 = vmatpush1.msra.mxu0 0.0
    %7502 = vmatprep.subr.mxu0 0.0
    %7503 = vmatpush1.msra.mxu0 0.0
    %7504 = vmatprep.subr.mxu0 0.0
    %7505 = vmatpush1.msra.mxu0 0.0
    %7506 = vmatprep.subr.mxu0 0.0
    %7507 = vmatpush1.msra.mxu0 0.0
    %7508 = vmatprep.subr.mxu0 0.0
    %7509 = vmatpush1.msra.mxu0 0.0
    %7510 = vmatprep.subr.mxu0 0.0
    %7511 = vmatpush1.msra.mxu0 0.0
    %7512 = vmatprep.mubr.f32.mxu0 0.0
    %v7513 = vand.u32 %v7427, 4294901760
    %v7514 = vsub.f32 %v7427, %v7513
    %v7515 = vand.u32 %v7514, 4294901760
    %v7516 = vsub.f32 %v7514, %v7515
    %v7517 = vand.u32 %v7516, 4294901760
    %7518 = vmatmul.mubr.f32.gmra.mrb[0].mxu0 %v7517
    %v7519 = vpop.f32.mrb[0].mxu0
    %v7520 = vadd.f32 %v7425, %v7519
    %v7521 = vpop.f32.mrb[0].mxu0
    %7522 = vmatprep.mubr.f32.mxu0 0.0
    %v7523 = vand.u32 %v7430, 4294901760
    %v7524 = vsub.f32 %v7430, %v7523
    %v7525 = vand.u32 %v7524, 4294901760
    %v7526 = vsub.f32 %v7524, %v7525
    %v7527 = vand.u32 %v7526, 4294901760
    %7528 = vmatmul.mubr.f32.gmra.mrb[0].mxu0 %v7527
    %v7529 = vpop.f32.mrb[0].mxu0
    %v7530 = vadd.f32 %v7425, %v7529
    %v7531 = vpop.f32.mrb[0].mxu0
    %7532 = vmatprep.mubr.f32.mxu0 0.0
    %v7533 = vand.u32 %v7433, 4294901760
    %v7534 = vsub.f32 %v7433, %v7533
    %v7535 = vand.u32 %v7534, 4294901760
    %v7536 = vsub.f32 %v7534, %v7535
    %v7537 = vand.u32 %v7536, 4294901760
    %7538 = vmatmul.mubr.f32.gmra.mrb[0].mxu0 %v7537
    %v7539 = vpop.f32.mrb[0].mxu0
    %v7540 = vadd.f32 %v7425, %v7539
    %v7541 = vpop.f32.mrb[0].mxu0
    %7542 = vmatprep.mubr.f32.mxu0 0.0
    %v7543 = vand.u32 %v7436, 4294901760
    %v7544 = vsub.f32 %v7436, %v7543
    %v7545 = vand.u32 %v7544, 4294901760
    %v7546 = vsub.f32 %v7544, %v7545
    %v7547 = vand.u32 %v7546, 4294901760
    %7548 = vmatmul.mubr.f32.gmra.mrb[0].mxu0 %v7547
    %v7549 = vpop.f32.mrb[0].mxu0
    %v7550 = vadd.f32 %v7425, %v7549
    %v7551 = vpop.f32.mrb[0].mxu0
    %7552 = vmatprep.mubr.f32.mxu0 0.0
    %v7553 = vand.u32 %v7439, 4294901760
    %v7554 = vsub.f32 %v7439, %v7553
    %v7555 = vand.u32 %v7554, 4294901760
    %v7556 = vsub.f32 %v7554, %v7555
    %v7557 = vand.u32 %v7556, 4294901760
    %7558 = vmatmul.mubr.f32.gmra.mrb[0].mxu0 %v7557
    %v7559 = vpop.f32.mrb[0].mxu0
    %v7560 = vadd.f32 %v7425, %v7559
    %v7561 = vpop.f32.mrb[0].mxu0
    %7562 = vmatprep.mubr.f32.mxu0 0.0
    %v7563 = vand.u32 %v7442, 4294901760
    %v7564 = vsub.f32 %v7442, %v7563
    %v7565 = vand.u32 %v7564, 4294901760
    %v7566 = vsub.f32 %v7564, %v7565
    %v7567 = vand.u32 %v7566, 4294901760
    %7568 = vmatmul.mubr.f32.gmra.mrb[0].mxu0 %v7567
    %v7569 = vpop.f32.mrb[0].mxu0
    %v7570 = vadd.f32 %v7425, %v7569
    %v7571 = vpop.f32.mrb[0].mxu0
    %7572 = vdwg.mxu0
    %7573 = vmatprep.subr.mxu0 0.0
    %v7574 = vand.u32 %v54, 4294901760
    %v7575 = vsub.f32 %v54, %v7574
    %v7576 = vand.u32 %v7575, 4294901760
    %v7577 = vsub.f32 %v7575, %v7576
    %v7578 = vand.u32 %v7577, 4294901760
    %7579 = vmatpush1.msra.mxu0 %v7578
    %7580 = vmatprep.subr.mxu0 0.0
    %v7581 = vand.u32 %v55, 4294901760
    %v7582 = vsub.f32 %v55, %v7581
    %v7583 = vand.u32 %v7582, 4294901760
    %v7584 = vsub.f32 %v7582, %v7583
    %v7585 = vand.u32 %v7584, 4294901760
    %7586 = vmatpush1.msra.mxu0 %v7585
    %7587 = vmatprep.subr.mxu0 0.0
    %v7588 = vand.u32 %v56, 4294901760
    %v7589 = vsub.f32 %v56, %v7588
    %v7590 = vand.u32 %v7589, 4294901760
    %v7591 = vsub.f32 %v7589, %v7590
    %v7592 = vand.u32 %v7591, 4294901760
    %7593 = vmatpush1.msra.mxu0 %v7592
    %7594 = vmatprep.subr.mxu0 0.0
    %v7595 = vand.u32 %v57, 4294901760
    %v7596 = vsub.f32 %v57, %v7595
    %v7597 = vand.u32 %v7596, 4294901760
    %v7598 = vsub.f32 %v7596, %v7597
    %v7599 = vand.u32 %v7598, 4294901760
    %7600 = vmatpush1.msra.mxu0 %v7599
    %7601 = vmatprep.subr.mxu0 0.0
    %7602 = vmatpush1.msra.mxu0 0.0
    %7603 = vmatprep.subr.mxu0 0.0
    %7604 = vmatpush1.msra.mxu0 0.0
    %7605 = vmatprep.subr.mxu0 0.0
    %7606 = vmatpush1.msra.mxu0 0.0
    %7607 = vmatprep.subr.mxu0 0.0
    %7608 = vmatpush1.msra.mxu0 0.0
    %7609 = vmatprep.subr.mxu0 0.0
    %7610 = vmatpush1.msra.mxu0 0.0
    %7611 = vmatprep.subr.mxu0 0.0
    %7612 = vmatpush1.msra.mxu0 0.0
    %7613 = vmatprep.subr.mxu0 0.0
    %7614 = vmatpush1.msra.mxu0 0.0
    %7615 = vmatprep.subr.mxu0 0.0
    %7616 = vmatpush1.msra.mxu0 0.0
    %7617 = vmatprep.subr.mxu0 0.0
    %7618 = vmatpush1.msra.mxu0 0.0
    %7619 = vmatprep.subr.mxu0 0.0
    %7620 = vmatpush1.msra.mxu0 0.0
    %7621 = vmatprep.subr.mxu0 0.0
    %7622 = vmatpush1.msra.mxu0 0.0
    %7623 = vmatprep.subr.mxu0 0.0
    %7624 = vmatpush1.msra.mxu0 0.0
    %7625 = vmatprep.subr.mxu0 0.0
    %7626 = vmatpush1.msra.mxu0 0.0
    %7627 = vmatprep.subr.mxu0 0.0
    %7628 = vmatpush1.msra.mxu0 0.0
    %7629 = vmatprep.subr.mxu0 0.0
    %7630 = vmatpush1.msra.mxu0 0.0
    %7631 = vmatprep.subr.mxu0 0.0
    %7632 = vmatpush1.msra.mxu0 0.0
    %7633 = vmatprep.subr.mxu0 0.0
    %7634 = vmatpush1.msra.mxu0 0.0
    %7635 = vmatprep.subr.mxu0 0.0
    %7636 = vmatpush1.msra.mxu0 0.0
    %7637 = vmatprep.subr.mxu0 0.0
    %7638 = vmatpush1.msra.mxu0 0.0
    %7639 = vmatprep.subr.mxu0 0.0
    %7640 = vmatpush1.msra.mxu0 0.0
    %7641 = vmatprep.subr.mxu0 0.0
    %7642 = vmatpush1.msra.mxu0 0.0
    %7643 = vmatprep.subr.mxu0 0.0
    %7644 = vmatpush1.msra.mxu0 0.0
    %7645 = vmatprep.subr.mxu0 0.0
    %7646 = vmatpush1.msra.mxu0 0.0
    %7647 = vmatprep.subr.mxu0 0.0
    %7648 = vmatpush1.msra.mxu0 0.0
    %7649 = vmatprep.subr.mxu0 0.0
    %7650 = vmatpush1.msra.mxu0 0.0
    %7651 = vmatprep.subr.mxu0 0.0
    %7652 = vmatpush1.msra.mxu0 0.0
    %7653 = vmatprep.subr.mxu0 0.0
    %7654 = vmatpush1.msra.mxu0 0.0
    %7655 = vmatprep.subr.mxu0 0.0
    %7656 = vmatpush1.msra.mxu0 0.0
    %7657 = vmatprep.mubr.f32.mxu0 0.0
    %v7658 = vand.u32 %v7427, 4294901760
    %7659 = vmatmul.mubr.f32.gmra.mrb[0].mxu0 %v7658
    %v7660 = vpop.f32.mrb[0].mxu0
    %v7661 = vadd.f32 %v7520, %v7660
    %v7662 = vpop.f32.mrb[0].mxu0
    %7663 = vmatprep.mubr.f32.mxu0 0.0
    %v7664 = vand.u32 %v7430, 4294901760
    %7665 = vmatmul.mubr.f32.gmra.mrb[0].mxu0 %v7664
    %v7666 = vpop.f32.mrb[0].mxu0
    %v7667 = vadd.f32 %v7530, %v7666
    %v7668 = vpop.f32.mrb[0].mxu0
    %7669 = vmatprep.mubr.f32.mxu0 0.0
    %v7670 = vand.u32 %v7433, 4294901760
    %7671 = vmatmul.mubr.f32.gmra.mrb[0].mxu0 %v7670
    %v7672 = vpop.f32.mrb[0].mxu0
    %v7673 = vadd.f32 %v7540, %v7672
    %v7674 = vpop.f32.mrb[0].mxu0
    %7675 = vmatprep.mubr.f32.mxu0 0.0
    %v7676 = vand.u32 %v7436, 4294901760
    %7677 = vmatmul.mubr.f32.gmra.mrb[0].mxu0 %v7676
    %v7678 = vpop.f32.mrb[0].mxu0
    %v7679 = vadd.f32 %v7550, %v7678
    %v7680 = vpop.f32.mrb[0].mxu0
    %7681 = vmatprep.mubr.f32.mxu0 0.0
    %v7682 = vand.u32 %v7439, 4294901760
    %7683 = vmatmul.mubr.f32.gmra.mrb[0].mxu0 %v7682
    %v7684 = vpop.f32.mrb[0].mxu0
    %v7685 = vadd.f32 %v7560, %v7684
    %v7686 = vpop.f32.mrb[0].mxu0
    %7687 = vmatprep.mubr.f32.mxu0 0.0
    %v7688 = vand.u32 %v7442, 4294901760
    %7689 = vmatmul.mubr.f32.gmra.mrb[0].mxu0 %v7688
    %v7690 = vpop.f32.mrb[0].mxu0
    %v7691 = vadd.f32 %v7570, %v7690
    %v7692 = vpop.f32.mrb[0].mxu0
    %7693 = vdwg.mxu0
    %7694 = vmatprep.subr.mxu0 0.0
    %v7695 = vand.u32 %v54, 4294901760
    %v7696 = vsub.f32 %v54, %v7695
    %7697 = vmatpush1.msra.mxu0 %v7696
    %7698 = vmatprep.subr.mxu0 0.0
    %v7699 = vand.u32 %v55, 4294901760
    %v7700 = vsub.f32 %v55, %v7699
    %7701 = vmatpush1.msra.mxu0 %v7700
    %7702 = vmatprep.subr.mxu0 0.0
    %v7703 = vand.u32 %v56, 4294901760
    %v7704 = vsub.f32 %v56, %v7703
    %7705 = vmatpush1.msra.mxu0 %v7704
    %7706 = vmatprep.subr.mxu0 0.0
    %v7707 = vand.u32 %v57, 4294901760
    %v7708 = vsub.f32 %v57, %v7707
    %7709 = vmatpush1.msra.mxu0 %v7708
    %7710 = vmatprep.subr.mxu0 0.0
    %7711 = vmatpush1.msra.mxu0 0.0
    %7712 = vmatprep.subr.mxu0 0.0
    %7713 = vmatpush1.msra.mxu0 0.0
    %7714 = vmatprep.subr.mxu0 0.0
    %7715 = vmatpush1.msra.mxu0 0.0
    %7716 = vmatprep.subr.mxu0 0.0
    %7717 = vmatpush1.msra.mxu0 0.0
    %7718 = vmatprep.subr.mxu0 0.0
    %7719 = vmatpush1.msra.mxu0 0.0
    %7720 = vmatprep.subr.mxu0 0.0
    %7721 = vmatpush1.msra.mxu0 0.0
    %7722 = vmatprep.subr.mxu0 0.0
    %7723 = vmatpush1.msra.mxu0 0.0
    %7724 = vmatprep.subr.mxu0 0.0
    %7725 = vmatpush1.msra.mxu0 0.0
    %7726 = vmatprep.subr.mxu0 0.0
    %7727 = vmatpush1.msra.mxu0 0.0
    %7728 = vmatprep.subr.mxu0 0.0
    %7729 = vmatpush1.msra.mxu0 0.0
    %7730 = vmatprep.subr.mxu0 0.0
    %7731 = vmatpush1.msra.mxu0 0.0
    %7732 = vmatprep.subr.mxu0 0.0
    %7733 = vmatpush1.msra.mxu0 0.0
    %7734 = vmatprep.subr.mxu0 0.0
    %7735 = vmatpush1.msra.mxu0 0.0
    %7736 = vmatprep.subr.mxu0 0.0
    %7737 = vmatpush1.msra.mxu0 0.0
    %7738 = vmatprep.subr.mxu0 0.0
    %7739 = vmatpush1.msra.mxu0 0.0
    %7740 = vmatprep.subr.mxu0 0.0
    %7741 = vmatpush1.msra.mxu0 0.0
    %7742 = vmatprep.subr.mxu0 0.0
    %7743 = vmatpush1.msra.mxu0 0.0
    %7744 = vmatprep.subr.mxu0 0.0
    %7745 = vmatpush1.msra.mxu0 0.0
    %7746 = vmatprep.subr.mxu0 0.0
    %7747 = vmatpush1.msra.mxu0 0.0
    %7748 = vmatprep.subr.mxu0 0.0
    %7749 = vmatpush1.msra.mxu0 0.0
    %7750 = vmatprep.subr.mxu0 0.0
    %7751 = vmatpush1.msra.mxu0 0.0
    %7752 = vmatprep.subr.mxu0 0.0
    %7753 = vmatpush1.msra.mxu0 0.0
    %7754 = vmatprep.subr.mxu0 0.0
    %7755 = vmatpush1.msra.mxu0 0.0
    %7756 = vmatprep.subr.mxu0 0.0
    %7757 = vmatpush1.msra.mxu0 0.0
    %7758 = vmatprep.subr.mxu0 0.0
    %7759 = vmatpush1.msra.mxu0 0.0
    %7760 = vmatprep.subr.mxu0 0.0
    %7761 = vmatpush1.msra.mxu0 0.0
    %7762 = vmatprep.subr.mxu0 0.0
    %7763 = vmatpush1.msra.mxu0 0.0
    %7764 = vmatprep.subr.mxu0 0.0
    %7765 = vmatpush1.msra.mxu0 0.0
    %7766 = vmatprep.mubr.f32.mxu0 0.0
    %v7767 = vand.u32 %v7427, 4294901760
    %v7768 = vsub.f32 %v7427, %v7767
    %7769 = vmatmul.mubr.f32.gmra.mrb[0].mxu0 %v7768
    %v7770 = vpop.f32.mrb[0].mxu0
    %v7771 = vadd.f32 %v7661, %v7770
    %v7772 = vpop.f32.mrb[0].mxu0
    %7773 = vmatprep.mubr.f32.mxu0 0.0
    %v7774 = vand.u32 %v7430, 4294901760
    %v7775 = vsub.f32 %v7430, %v7774
    %7776 = vmatmul.mubr.f32.gmra.mrb[0].mxu0 %v7775
    %v7777 = vpop.f32.mrb[0].mxu0
    %v7778 = vadd.f32 %v7667, %v7777
    %v7779 = vpop.f32.mrb[0].mxu0
    %7780 = vmatprep.mubr.f32.mxu0 0.0
    %v7781 = vand.u32 %v7433, 4294901760
    %v7782 = vsub.f32 %v7433, %v7781
    %7783 = vmatmul.mubr.f32.gmra.mrb[0].mxu0 %v7782
    %v7784 = vpop.f32.mrb[0].mxu0
    %v7785 = vadd.f32 %v7673, %v7784
    %v7786 = vpop.f32.mrb[0].mxu0
    %7787 = vmatprep.mubr.f32.mxu0 0.0
    %v7788 = vand.u32 %v7436, 4294901760
    %v7789 = vsub.f32 %v7436, %v7788
    %7790 = vmatmul.mubr.f32.gmra.mrb[0].mxu0 %v7789
    %v7791 = vpop.f32.mrb[0].mxu0
    %v7792 = vadd.f32 %v7679, %v7791
    %v7793 = vpop.f32.mrb[0].mxu0
    %7794 = vmatprep.mubr.f32.mxu0 0.0
    %v7795 = vand.u32 %v7439, 4294901760
    %v7796 = vsub.f32 %v7439, %v7795
    %7797 = vmatmul.mubr.f32.gmra.mrb[0].mxu0 %v7796
    %v7798 = vpop.f32.mrb[0].mxu0
    %v7799 = vadd.f32 %v7685, %v7798
    %v7800 = vpop.f32.mrb[0].mxu0
    %7801 = vmatprep.mubr.f32.mxu0 0.0
    %v7802 = vand.u32 %v7442, 4294901760
    %v7803 = vsub.f32 %v7442, %v7802
    %7804 = vmatmul.mubr.f32.gmra.mrb[0].mxu0 %v7803
    %v7805 = vpop.f32.mrb[0].mxu0
    %v7806 = vadd.f32 %v7691, %v7805
    %v7807 = vpop.f32.mrb[0].mxu0
    %7808 = vdwg.mxu0
    %7809 = vmatprep.subr.mxu0 0.0
    %v7810 = vand.u32 %v54, 4294901760
    %7811 = vmatpush1.msra.mxu0 %v7810
    %7812 = vmatprep.subr.mxu0 0.0
    %v7813 = vand.u32 %v55, 4294901760
    %7814 = vmatpush1.msra.mxu0 %v7813
    %7815 = vmatprep.subr.mxu0 0.0
    %v7816 = vand.u32 %v56, 4294901760
    %7817 = vmatpush1.msra.mxu0 %v7816
    %7818 = vmatprep.subr.mxu0 0.0
    %v7819 = vand.u32 %v57, 4294901760
    %7820 = vmatpush1.msra.mxu0 %v7819
    %7821 = vmatprep.subr.mxu0 0.0
    %7822 = vmatpush1.msra.mxu0 0.0
    %7823 = vmatprep.subr.mxu0 0.0
    %7824 = vmatpush1.msra.mxu0 0.0
    %7825 = vmatprep.subr.mxu0 0.0
    %7826 = vmatpush1.msra.mxu0 0.0
    %7827 = vmatprep.subr.mxu0 0.0
    %7828 = vmatpush1.msra.mxu0 0.0
    %7829 = vmatprep.subr.mxu0 0.0
    %7830 = vmatpush1.msra.mxu0 0.0
    %7831 = vmatprep.subr.mxu0 0.0
    %7832 = vmatpush1.msra.mxu0 0.0
    %7833 = vmatprep.subr.mxu0 0.0
    %7834 = vmatpush1.msra.mxu0 0.0
    %7835 = vmatprep.subr.mxu0 0.0
    %7836 = vmatpush1.msra.mxu0 0.0
    %7837 = vmatprep.subr.mxu0 0.0
    %7838 = vmatpush1.msra.mxu0 0.0
    %7839 = vmatprep.subr.mxu0 0.0
    %7840 = vmatpush1.msra.mxu0 0.0
    %7841 = vmatprep.subr.mxu0 0.0
    %7842 = vmatpush1.msra.mxu0 0.0
    %7843 = vmatprep.subr.mxu0 0.0
    %7844 = vmatpush1.msra.mxu0 0.0
    %7845 = vmatprep.subr.mxu0 0.0
    %7846 = vmatpush1.msra.mxu0 0.0
    %7847 = vmatprep.subr.mxu0 0.0
    %7848 = vmatpush1.msra.mxu0 0.0
    %7849 = vmatprep.subr.mxu0 0.0
    %7850 = vmatpush1.msra.mxu0 0.0
    %7851 = vmatprep.subr.mxu0 0.0
    %7852 = vmatpush1.msra.mxu0 0.0
    %7853 = vmatprep.subr.mxu0 0.0
    %7854 = vmatpush1.msra.mxu0 0.0
    %7855 = vmatprep.subr.mxu0 0.0
    %7856 = vmatpush1.msra.mxu0 0.0
    %7857 = vmatprep.subr.mxu0 0.0
    %7858 = vmatpush1.msra.mxu0 0.0
    %7859 = vmatprep.subr.mxu0 0.0
    %7860 = vmatpush1.msra.mxu0 0.0
    %7861 = vmatprep.subr.mxu0 0.0
    %7862 = vmatpush1.msra.mxu0 0.0
    %7863 = vmatprep.subr.mxu0 0.0
    %7864 = vmatpush1.msra.mxu0 0.0
    %7865 = vmatprep.subr.mxu0 0.0
    %7866 = vmatpush1.msra.mxu0 0.0
    %7867 = vmatprep.subr.mxu0 0.0
    %7868 = vmatpush1.msra.mxu0 0.0
    %7869 = vmatprep.subr.mxu0 0.0
    %7870 = vmatpush1.msra.mxu0 0.0
    %7871 = vmatprep.subr.mxu0 0.0
    %7872 = vmatpush1.msra.mxu0 0.0
    %7873 = vmatprep.subr.mxu0 0.0
    %7874 = vmatpush1.msra.mxu0 0.0
    %7875 = vmatprep.subr.mxu0 0.0
    %7876 = vmatpush1.msra.mxu0 0.0
    %7877 = vmatprep.mubr.f32.mxu0 0.0
    %v7878 = vand.u32 %v7427, 4294901760
    %v7879 = vsub.f32 %v7427, %v7878
    %v7880 = vand.u32 %v7879, 4294901760
    %7881 = vmatmul.mubr.f32.gmra.mrb[0].mxu0 %v7880
    %v7882 = vpop.f32.mrb[0].mxu0
    %v7883 = vadd.f32 %v7771, %v7882
    %v7884 = vpop.f32.mrb[0].mxu0
    %7885 = vmatprep.mubr.f32.mxu0 0.0
    %v7886 = vand.u32 %v7430, 4294901760
    %v7887 = vsub.f32 %v7430, %v7886
    %v7888 = vand.u32 %v7887, 4294901760
    %7889 = vmatmul.mubr.f32.gmra.mrb[0].mxu0 %v7888
    %v7890 = vpop.f32.mrb[0].mxu0
    %v7891 = vadd.f32 %v7778, %v7890
    %v7892 = vpop.f32.mrb[0].mxu0
    %7893 = vmatprep.mubr.f32.mxu0 0.0
    %v7894 = vand.u32 %v7433, 4294901760
    %v7895 = vsub.f32 %v7433, %v7894
    %v7896 = vand.u32 %v7895, 4294901760
    %7897 = vmatmul.mubr.f32.gmra.mrb[0].mxu0 %v7896
    %v7898 = vpop.f32.mrb[0].mxu0
    %v7899 = vadd.f32 %v7785, %v7898
    %v7900 = vpop.f32.mrb[0].mxu0
    %7901 = vmatprep.mubr.f32.mxu0 0.0
    %v7902 = vand.u32 %v7436, 4294901760
    %v7903 = vsub.f32 %v7436, %v7902
    %v7904 = vand.u32 %v7903, 4294901760
    %7905 = vmatmul.mubr.f32.gmra.mrb[0].mxu0 %v7904
    %v7906 = vpop.f32.mrb[0].mxu0
    %v7907 = vadd.f32 %v7792, %v7906
    %v7908 = vpop.f32.mrb[0].mxu0
    %7909 = vmatprep.mubr.f32.mxu0 0.0
    %v7910 = vand.u32 %v7439, 4294901760
    %v7911 = vsub.f32 %v7439, %v7910
    %v7912 = vand.u32 %v7911, 4294901760
    %7913 = vmatmul.mubr.f32.gmra.mrb[0].mxu0 %v7912
    %v7914 = vpop.f32.mrb[0].mxu0
    %v7915 = vadd.f32 %v7799, %v7914
    %v7916 = vpop.f32.mrb[0].mxu0
    %7917 = vmatprep.mubr.f32.mxu0 0.0
    %v7918 = vand.u32 %v7442, 4294901760
    %v7919 = vsub.f32 %v7442, %v7918
    %v7920 = vand.u32 %v7919, 4294901760
    %7921 = vmatmul.mubr.f32.gmra.mrb[0].mxu0 %v7920
    %v7922 = vpop.f32.mrb[0].mxu0
    %v7923 = vadd.f32 %v7806, %v7922
    %v7924 = vpop.f32.mrb[0].mxu0
    %7925 = vdwg.mxu0
    %7926 = vmatprep.subr.mxu0 0.0
    %v7927 = vand.u32 %v54, 4294901760
    %v7928 = vsub.f32 %v54, %v7927
    %v7929 = vand.u32 %v7928, 4294901760
    %7930 = vmatpush1.msra.mxu0 %v7929
    %7931 = vmatprep.subr.mxu0 0.0
    %v7932 = vand.u32 %v55, 4294901760
    %v7933 = vsub.f32 %v55, %v7932
    %v7934 = vand.u32 %v7933, 4294901760
    %7935 = vmatpush1.msra.mxu0 %v7934
    %7936 = vmatprep.subr.mxu0 0.0
    %v7937 = vand.u32 %v56, 4294901760
    %v7938 = vsub.f32 %v56, %v7937
    %v7939 = vand.u32 %v7938, 4294901760
    %7940 = vmatpush1.msra.mxu0 %v7939
    %7941 = vmatprep.subr.mxu0 0.0
    %v7942 = vand.u32 %v57, 4294901760
    %v7943 = vsub.f32 %v57, %v7942
    %v7944 = vand.u32 %v7943, 4294901760
    %7945 = vmatpush1.msra.mxu0 %v7944
    %7946 = vmatprep.subr.mxu0 0.0
    %7947 = vmatpush1.msra.mxu0 0.0
    %7948 = vmatprep.subr.mxu0 0.0
    %7949 = vmatpush1.msra.mxu0 0.0
    %7950 = vmatprep.subr.mxu0 0.0
    %7951 = vmatpush1.msra.mxu0 0.0
    %7952 = vmatprep.subr.mxu0 0.0
    %7953 = vmatpush1.msra.mxu0 0.0
    %7954 = vmatprep.subr.mxu0 0.0
    %7955 = vmatpush1.msra.mxu0 0.0
    %7956 = vmatprep.subr.mxu0 0.0
    %7957 = vmatpush1.msra.mxu0 0.0
    %7958 = vmatprep.subr.mxu0 0.0
    %7959 = vmatpush1.msra.mxu0 0.0
    %7960 = vmatprep.subr.mxu0 0.0
    %7961 = vmatpush1.msra.mxu0 0.0
    %7962 = vmatprep.subr.mxu0 0.0
    %7963 = vmatpush1.msra.mxu0 0.0
    %7964 = vmatprep.subr.mxu0 0.0
    %7965 = vmatpush1.msra.mxu0 0.0
    %7966 = vmatprep.subr.mxu0 0.0
    %7967 = vmatpush1.msra.mxu0 0.0
    %7968 = vmatprep.subr.mxu0 0.0
    %7969 = vmatpush1.msra.mxu0 0.0
    %7970 = vmatprep.subr.mxu0 0.0
    %7971 = vmatpush1.msra.mxu0 0.0
    %7972 = vmatprep.subr.mxu0 0.0
    %7973 = vmatpush1.msra.mxu0 0.0
    %7974 = vmatprep.subr.mxu0 0.0
    %7975 = vmatpush1.msra.mxu0 0.0
    %7976 = vmatprep.subr.mxu0 0.0
    %7977 = vmatpush1.msra.mxu0 0.0
    %7978 = vmatprep.subr.mxu0 0.0
    %7979 = vmatpush1.msra.mxu0 0.0
    %7980 = vmatprep.subr.mxu0 0.0
    %7981 = vmatpush1.msra.mxu0 0.0
    %7982 = vmatprep.subr.mxu0 0.0
    %7983 = vmatpush1.msra.mxu0 0.0
    %7984 = vmatprep.subr.mxu0 0.0
    %7985 = vmatpush1.msra.mxu0 0.0
    %7986 = vmatprep.subr.mxu0 0.0
    %7987 = vmatpush1.msra.mxu0 0.0
    %7988 = vmatprep.subr.mxu0 0.0
    %7989 = vmatpush1.msra.mxu0 0.0
    %7990 = vmatprep.subr.mxu0 0.0
    %7991 = vmatpush1.msra.mxu0 0.0
    %7992 = vmatprep.subr.mxu0 0.0
    %7993 = vmatpush1.msra.mxu0 0.0
    %7994 = vmatprep.subr.mxu0 0.0
    %7995 = vmatpush1.msra.mxu0 0.0
    %7996 = vmatprep.subr.mxu0 0.0
    %7997 = vmatpush1.msra.mxu0 0.0
    %7998 = vmatprep.subr.mxu0 0.0
    %7999 = vmatpush1.msra.mxu0 0.0
    %8000 = vmatprep.subr.mxu0 0.0
    %8001 = vmatpush1.msra.mxu0 0.0
    %8002 = vmatprep.mubr.f32.mxu0 0.0
    %v8003 = vand.u32 %v7427, 4294901760
    %8004 = vmatmul.mubr.f32.gmra.mrb[0].mxu0 %v8003
    %v8005 = vpop.f32.mrb[0].mxu0
    %v8006 = vadd.f32 %v7883, %v8005
    %v8007 = vpop.f32.mrb[0].mxu0
    %8008 = vmatprep.mubr.f32.mxu0 0.0
    %v8009 = vand.u32 %v7430, 4294901760
    %8010 = vmatmul.mubr.f32.gmra.mrb[0].mxu0 %v8009
    %v8011 = vpop.f32.mrb[0].mxu0
    %v8012 = vadd.f32 %v7891, %v8011
    %v8013 = vpop.f32.mrb[0].mxu0
    %8014 = vmatprep.mubr.f32.mxu0 0.0
    %v8015 = vand.u32 %v7433, 4294901760
    %8016 = vmatmul.mubr.f32.gmra.mrb[0].mxu0 %v8015
    %v8017 = vpop.f32.mrb[0].mxu0
    %v8018 = vadd.f32 %v7899, %v8017
    %v8019 = vpop.f32.mrb[0].mxu0
    %8020 = vmatprep.mubr.f32.mxu0 0.0
    %v8021 = vand.u32 %v7436, 4294901760
    %8022 = vmatmul.mubr.f32.gmra.mrb[0].mxu0 %v8021
    %v8023 = vpop.f32.mrb[0].mxu0
    %v8024 = vadd.f32 %v7907, %v8023
    %v8025 = vpop.f32.mrb[0].mxu0
    %8026 = vmatprep.mubr.f32.mxu0 0.0
    %v8027 = vand.u32 %v7439, 4294901760
    %8028 = vmatmul.mubr.f32.gmra.mrb[0].mxu0 %v8027
    %v8029 = vpop.f32.mrb[0].mxu0
    %v8030 = vadd.f32 %v7915, %v8029
    %v8031 = vpop.f32.mrb[0].mxu0
    %8032 = vmatprep.mubr.f32.mxu0 0.0
    %v8033 = vand.u32 %v7442, 4294901760
    %8034 = vmatmul.mubr.f32.gmra.mrb[0].mxu0 %v8033
    %v8035 = vpop.f32.mrb[0].mxu0
    %v8036 = vadd.f32 %v7923, %v8035
    %v8037 = vpop.f32.mrb[0].mxu0
    %8038 = vdwg.mxu0
    %8039 = vmatprep.subr.mxu0 0.0
    %v8040 = vand.u32 %v54, 4294901760
    %8041 = vmatpush1.msra.mxu0 %v8040
    %8042 = vmatprep.subr.mxu0 0.0
    %v8043 = vand.u32 %v55, 4294901760
    %8044 = vmatpush1.msra.mxu0 %v8043
    %8045 = vmatprep.subr.mxu0 0.0
    %v8046 = vand.u32 %v56, 4294901760
    %8047 = vmatpush1.msra.mxu0 %v8046
    %8048 = vmatprep.subr.mxu0 0.0
    %v8049 = vand.u32 %v57, 4294901760
    %8050 = vmatpush1.msra.mxu0 %v8049
    %8051 = vmatprep.subr.mxu0 0.0
    %8052 = vmatpush1.msra.mxu0 0.0
    %8053 = vmatprep.subr.mxu0 0.0
    %8054 = vmatpush1.msra.mxu0 0.0
    %8055 = vmatprep.subr.mxu0 0.0
    %8056 = vmatpush1.msra.mxu0 0.0
    %8057 = vmatprep.subr.mxu0 0.0
    %8058 = vmatpush1.msra.mxu0 0.0
    %8059 = vmatprep.subr.mxu0 0.0
    %8060 = vmatpush1.msra.mxu0 0.0
    %8061 = vmatprep.subr.mxu0 0.0
    %8062 = vmatpush1.msra.mxu0 0.0
    %8063 = vmatprep.subr.mxu0 0.0
    %8064 = vmatpush1.msra.mxu0 0.0
    %8065 = vmatprep.subr.mxu0 0.0
    %8066 = vmatpush1.msra.mxu0 0.0
    %8067 = vmatprep.subr.mxu0 0.0
    %8068 = vmatpush1.msra.mxu0 0.0
    %8069 = vmatprep.subr.mxu0 0.0
    %8070 = vmatpush1.msra.mxu0 0.0
    %8071 = vmatprep.subr.mxu0 0.0
    %8072 = vmatpush1.msra.mxu0 0.0
    %8073 = vmatprep.subr.mxu0 0.0
    %8074 = vmatpush1.msra.mxu0 0.0
    %8075 = vmatprep.subr.mxu0 0.0
    %8076 = vmatpush1.msra.mxu0 0.0
    %8077 = vmatprep.subr.mxu0 0.0
    %8078 = vmatpush1.msra.mxu0 0.0
    %8079 = vmatprep.subr.mxu0 0.0
    %8080 = vmatpush1.msra.mxu0 0.0
    %8081 = vmatprep.subr.mxu0 0.0
    %8082 = vmatpush1.msra.mxu0 0.0
    %8083 = vmatprep.subr.mxu0 0.0
    %8084 = vmatpush1.msra.mxu0 0.0
    %8085 = vmatprep.subr.mxu0 0.0
    %8086 = vmatpush1.msra.mxu0 0.0
    %8087 = vmatprep.subr.mxu0 0.0
    %8088 = vmatpush1.msra.mxu0 0.0
    %8089 = vmatprep.subr.mxu0 0.0
    %8090 = vmatpush1.msra.mxu0 0.0
    %8091 = vmatprep.subr.mxu0 0.0
    %8092 = vmatpush1.msra.mxu0 0.0
    %8093 = vmatprep.subr.mxu0 0.0
    %8094 = vmatpush1.msra.mxu0 0.0
    %8095 = vmatprep.subr.mxu0 0.0
    %8096 = vmatpush1.msra.mxu0 0.0
    %8097 = vmatprep.subr.mxu0 0.0
    %8098 = vmatpush1.msra.mxu0 0.0
    %8099 = vmatprep.subr.mxu0 0.0
    %8100 = vmatpush1.msra.mxu0 0.0
    %8101 = vmatprep.subr.mxu0 0.0
    %8102 = vmatpush1.msra.mxu0 0.0
    %8103 = vmatprep.subr.mxu0 0.0
    %8104 = vmatpush1.msra.mxu0 0.0
    %8105 = vmatprep.subr.mxu0 0.0
    %8106 = vmatpush1.msra.mxu0 0.0
    %8107 = vmatprep.mubr.f32.mxu0 0.0
    %v8108 = vand.u32 %v7427, 4294901760
    %8109 = vmatmul.mubr.f32.gmra.mrb[0].mxu0 %v8108
    %v8110 = vpop.f32.mrb[0].mxu0
    %v8111 = vadd.f32 %v8006, %v8110
    %v8112 = vpop.f32.mrb[0].mxu0
    %8113 = vmatprep.mubr.f32.mxu0 0.0
    %v8114 = vand.u32 %v7430, 4294901760
    %8115 = vmatmul.mubr.f32.gmra.mrb[0].mxu0 %v8114
    %v8116 = vpop.f32.mrb[0].mxu0
    %v8117 = vadd.f32 %v8012, %v8116
    %v8118 = vpop.f32.mrb[0].mxu0
    %8119 = vmatprep.mubr.f32.mxu0 0.0
    %v8120 = vand.u32 %v7433, 4294901760
    %8121 = vmatmul.mubr.f32.gmra.mrb[0].mxu0 %v8120
    %v8122 = vpop.f32.mrb[0].mxu0
    %v8123 = vadd.f32 %v8018, %v8122
    %v8124 = vpop.f32.mrb[0].mxu0
    %8125 = vmatprep.mubr.f32.mxu0 0.0
    %v8126 = vand.u32 %v7436, 4294901760
    %8127 = vmatmul.mubr.f32.gmra.mrb[0].mxu0 %v8126
    %v8128 = vpop.f32.mrb[0].mxu0
    %v8129 = vadd.f32 %v8024, %v8128
    %v8130 = vpop.f32.mrb[0].mxu0
    %8131 = vmatprep.mubr.f32.mxu0 0.0
    %v8132 = vand.u32 %v7439, 4294901760
    %8133 = vmatmul.mubr.f32.gmra.mrb[0].mxu0 %v8132
    %v8134 = vpop.f32.mrb[0].mxu0
    %v8135 = vadd.f32 %v8030, %v8134
    %v8136 = vpop.f32.mrb[0].mxu0
    %8137 = vmatprep.mubr.f32.mxu0 0.0
    %v8138 = vand.u32 %v7442, 4294901760
    %8139 = vmatmul.mubr.f32.gmra.mrb[0].mxu0 %v8138
    %v8140 = vpop.f32.mrb[0].mxu0
    %v8141 = vadd.f32 %v8036, %v8140
    %v8142 = vpop.f32.mrb[0].mxu0
    %8143 = vdwg.mxu0
    %8144 = vst [vmem:[%s5] sm:$0xff] %v8111
    %8145 = vst [vmem:[%s5 + $0x8] sm:$0xff] %v8117
    %8146 = vst [vmem:[%s5 + $0x10] sm:$0xff] %v8123
    %8147 = vst [vmem:[%s5 + $0x18] sm:$0xff] %v8129
    %8148 = vst [vmem:[%s5 + $0x20] sm:$0xff] %v8135
    %8149 = vst [vmem:[%s5 + $0x28] sm:$0xff] %v8141
    // Predicated region
    $region26: #{dec_list_flow_cnn.1} parent=1 // pred_check
      _
    $region27: #{dec_list_flow_cnn.1} parent=1 // pred_check_branch
      %8151 = sbr.rel (0) target = $region29
    $region28: #{dec_list_flow_cnn.1} parent=1 // pred_region
      _
    $region29: #{dec_list_flow_cnn.1} parent=1 // pred_fallthru
      _
    // Predicated region
    $region30: #{dec_list_flow_cnn.1} parent=1 // pred_check
      _
    $region31: #{dec_list_flow_cnn.1} parent=1 // pred_check_branch
      %8153 = sbr.rel (0) target = $region33
    $region32: #{dec_list_flow_cnn.1} parent=1 // pred_region
      _
    $region33: #{dec_list_flow_cnn.1} parent=1 // pred_fallthru
      _
    %8154 = vsyncpa [#allocation3], 1

</llo_original>
